<compile_context>
chip_gen: v7x
topology: tpu7x:2x2x1
jax: 0.10.0
libtpu: 0.0.40
codegen_flags: <defaults>
</compile_context>

<pallas_src>
import functools

import jax
import jax.numpy as jnp
import numpy as np
from jax.experimental import pallas as pl
from jax.experimental.pallas import tpu as pltpu


def basic_block_kernel(x_ref, w1_ref, b1_ref, w2_ref, b2_ref, o_ref, mid_ref,
                       *, W, fuse_k):
    """One batch element per grid step (spatial flattened at width W+2).

    x_ref    : (S, C)  zero-padded input, flattened, in the compute dtype;
                       S >= (H+2)*(W+2)+2, tail rows are zero.
    w1_ref   : (9, C, C) or (3, 3C, C) conv1 weights (BN1 scale folded in),
                       compute dtype.
    b1_ref   : (1, C)  BN1 folded bias (f32).
    w2_ref   : conv2 weights (same layout as w1_ref), compute dtype.
    b2_ref   : (1, C)  BN2 folded bias (f32).
    o_ref    : (L, C)  f32 output at padded-width layout (wrapper strips the
                       two wrap-around columns); L = H*(W+2).
    mid_ref  : (S, C)  compute-dtype VMEM scratch holding the padded
                       intermediate activation.
    """
    L, C = o_ref.shape
    S = mid_ref.shape[0]
    Wp = W + 2
    ctr = Wp + 1                      # flat offset of the 3x3 center tap

    def conv3x3(src_ref, w_ref):
        # f32 accumulation; operands already in the compute dtype (no per-tap
        # casts).
        acc = jnp.zeros((L, C), jnp.float32)
        if fuse_k:
            # 3 matmuls with K=3C: the three width-shifted taps of one kernel
            # row are lane-concatenated (128-aligned since C % 128 == 0) so the
            # tap accumulation happens inside the MXU.
            for r in range(3):
                base = r * Wp
                lhs = jnp.concatenate(
                    [src_ref[base + d:base + d + L, :] for d in range(3)],
                    axis=-1)
                acc = acc + jnp.dot(lhs, w_ref[r],
                                    preferred_element_type=jnp.float32)
        else:
            # Per-tap path (small / lane-unaligned C): each tap is a contiguous
            # row-offset slice of the flattened padded activation.
            for k in range(9):
                dy, dx = divmod(k, 3)
                off = dy * Wp + dx
                acc = acc + jnp.dot(src_ref[off:off + L, :], w_ref[k],
                                    preferred_element_type=jnp.float32)
        return acc

    # Valid-column mask (generated in-kernel, folded into the ReLU): the two
    # wrap-around columns per output row are zeroed so the conv1 output doubles
    # as the zero-padded intermediate when stored at offset `ctr`.
    col = jax.lax.broadcasted_iota(jnp.int32, (L, 1), 0) % Wp
    valid = col < W

    # ---- conv1 (3x3, pad 1, stride 1) + folded BN1 + ReLU --------------------
    out1 = jnp.where(valid,
                     jnp.maximum(conv3x3(x_ref, w1_ref) + b1_ref[...], 0.0),
                     0.0)

    # Padded-width intermediate: zero only the thin border strips (done every
    # step -- scratch is per-core and step order is not guaranteed on multi-TC
    # chips), write the interior once in the compute dtype.
    tail = S - (ctr + L)
    mid_ref[0:ctr, :] = jnp.zeros((ctr, C), mid_ref.dtype)
    if tail > 0:
        mid_ref[ctr + L:S, :] = jnp.zeros((tail, C), mid_ref.dtype)
    mid_ref[ctr:ctr + L, :] = out1.astype(mid_ref.dtype)

    # ---- conv2 (3x3, pad 1, stride 1) + folded BN2 + residual + ReLU ---------
    residual = x_ref[ctr:ctr + L, :].astype(jnp.float32)   # identity == center tap
    out2 = conv3x3(mid_ref, w2_ref) + b2_ref[...] + residual
    o_ref[...] = jnp.maximum(out2, 0.0).astype(o_ref.dtype)


def fold_bn(w_oihw, gamma, beta, mean, var, eps=1e-5):
    """Fold eval-mode BatchNorm2d into conv weights + per-channel bias.

    w_oihw: (Cout, Cin, 3, 3) PyTorch layout.
    Returns w_tap: (9, Cin, Cout) f32 and bias: (Cout,) f32.
    """
    scale = gamma / jnp.sqrt(var + eps)                    # (Cout,)
    w_scaled = w_oihw * scale[:, None, None, None]
    bias = beta - mean * scale                             # (Cout,)
    cout, cin = w_oihw.shape[0], w_oihw.shape[1]
    # (Cout, Cin, kh, kw) -> (kh, kw, Cin, Cout) -> (9, Cin, Cout)
    w_tap = jnp.transpose(w_scaled, (2, 3, 1, 0)).reshape(9, cin, cout)
    return w_tap.astype(jnp.float32), bias.astype(jnp.float32)


@functools.partial(jax.jit, static_argnames=("compute_dtype",))
def basic_block_forward(x_nchw, w1, bn1_params, w2, bn2_params,
                        compute_dtype=jnp.bfloat16):
    """x_nchw: (N, C, H, W) float32; conv weights in PyTorch OIHW layout.

    compute_dtype: dtype of the activations / MXU matmul operands (accumulation,
    bias, residual and epilogue stay f32).
    """
    N, C, H, W = x_nchw.shape
    Wp = W + 2
    P = (H + 2) * Wp                     # flattened padded spatial extent
    L = H * Wp                           # flattened output extent (width W+2)
    S = ((P + 2 + 15) // 16) * 16        # buffer rows (covers last tap slice;
                                         #  multiple of 16 for bf16 sublanes)

    act_dtype = jnp.dtype(compute_dtype)

    # NCHW -> NHWC -> zero-pad -> flatten spatial at padded width; cast to the
    # compute dtype ONCE here (single layout/cast pass in XLA, halves the HBM
    # read for bf16).
    x = jnp.transpose(x_nchw, (0, 2, 3, 1)).astype(act_dtype)
    xpad = jnp.pad(x, ((0, 0), (1, 1), (1, 1), (0, 0)))
    xflat = jnp.pad(xpad.reshape(N, P, C), ((0, 0), (0, S - P), (0, 0)))

    # Fold eval-mode BN into conv weights / per-channel bias.
    w1_tap, b1 = fold_bn(w1, *bn1_params)
    w2_tap, b2 = fold_bn(w2, *bn2_params)
    b1 = b1.reshape(1, C)
    b2 = b2.reshape(1, C)

    # Fused-K path only when the lane concat is 128-aligned.
    fuse_k = (C % 128 == 0)
    if fuse_k:
        w1_k = w1_tap.reshape(3, 3 * C, C).astype(act_dtype)
        w2_k = w2_tap.reshape(3, 3 * C, C).astype(act_dtype)
        w_spec = pl.BlockSpec((3, 3 * C, C), lambda n: (0, 0, 0))
    else:
        w1_k = w1_tap.astype(act_dtype)
        w2_k = w2_tap.astype(act_dtype)
        w_spec = pl.BlockSpec((9, C, C), lambda n: (0, 0, 0))

    out_flat = pl.pallas_call(
        functools.partial(basic_block_kernel, W=W, fuse_k=fuse_k),
        out_shape=jax.ShapeDtypeStruct((N, L, C), jnp.float32),
        grid=(N,),
        in_specs=[
            pl.BlockSpec((None, S, C), lambda n: (n, 0, 0)),   # xflat (per batch)
            w_spec,                                            # w1 (grid-invariant)
            pl.BlockSpec((1, C), lambda n: (0, 0)),            # b1
            w_spec,                                            # w2
            pl.BlockSpec((1, C), lambda n: (0, 0)),            # b2
        ],
        out_specs=pl.BlockSpec((None, L, C), lambda n: (n, 0, 0)),
        scratch_shapes=[pltpu.VMEM((S, C), act_dtype)],
        compiler_params=pltpu.CompilerParams(
            dimension_semantics=("parallel",)),
    )(xflat, w1_k, b1, w2_k, b2)

    # Strip the 2 wrap-around columns and convert back to NCHW (fuses with the
    # transpose; no extra pass).
    out = out_flat.reshape(N, H, Wp, C)[:, :, :W, :]
    return jnp.transpose(out, (0, 3, 1, 2))


def reference_forward(x, w1, bn1_params, w2, bn2_params, eps=1e-5):
    """Pure-JAX reference mirroring the PyTorch module (eval-mode BN)."""
    def conv(x, w):
        return jax.lax.conv_general_dilated(
            x, w, window_strides=(1, 1), padding=((1, 1), (1, 1)),
            dimension_numbers=('NCHW', 'OIHW', 'NCHW'))

    def bn(x, gamma, beta, mean, var):
        g = gamma[None, :, None, None]
        b = beta[None, :, None, None]
        m = mean[None, :, None, None]
        v = var[None, :, None, None]
        return (x - m) / jnp.sqrt(v + eps) * g + b

    out = jax.nn.relu(bn(conv(x, w1), *bn1_params))
    out = bn(conv(out, w2), *bn2_params)
    return jax.nn.relu(out + x)


if __name__ == "__main__":
    def run_case(key, N, C, H, W, w_scale, compute_dtype, rtol, atol):
        ks = jax.random.split(key, 11)
        x = jax.random.normal(ks[0], (N, C, H, W), dtype=jnp.float32)
        # conv weights in PyTorch OIHW layout (bias=False in conv3x3).
        w1 = w_scale * jax.random.normal(ks[1], (C, C, 3, 3), dtype=jnp.float32)
        w2 = w_scale * jax.random.normal(ks[2], (C, C, 3, 3), dtype=jnp.float32)
        # BatchNorm2d parameters (eval-mode / running stats), deterministic.
        bn1 = (1.0 + 0.1 * jax.random.normal(ks[3], (C,)),                      # gamma
               0.1 * jax.random.normal(ks[4], (C,)),                            # beta
               0.1 * jax.random.normal(ks[5], (C,)),                            # running_mean
               1.0 + 0.1 * jax.nn.softplus(jax.random.normal(ks[6], (C,))))     # running_var
        bn2 = (1.0 + 0.1 * jax.random.normal(ks[7], (C,)),
               0.1 * jax.random.normal(ks[8], (C,)),
               0.1 * jax.random.normal(ks[9], (C,)),
               1.0 + 0.1 * jax.nn.softplus(jax.random.normal(ks[10], (C,))))

        ref = jax.block_until_ready(reference_forward(x, w1, bn1, w2, bn2))
        out = jax.block_until_ready(
            basic_block_forward(x, w1, bn1, w2, bn2,
                                compute_dtype=compute_dtype))
        assert out.shape == (N, C, H, W), out.shape
        np.testing.assert_allclose(np.asarray(out), np.asarray(ref),
                                   rtol=rtol, atol=atol)

    key = jax.random.PRNGKey(0)
    k_small, k_big = jax.random.split(key)

    # Small config consistent with BasicBlock(inplanes=4, planes=4, stride=1):
    # exercises the per-tap path.  bf16 MXU operands + f32 accumulation.
    run_case(k_small, N=2, C=4, H=16, W=16, w_scale=0.1,
             compute_dtype=jnp.bfloat16, rtol=2e-2, atol=2e-2)
    # f32 path: structural exactness check against the reference.
    run_case(k_small, N=2, C=4, H=16, W=16, w_scale=0.1,
             compute_dtype=jnp.float32, rtol=1e-4, atol=1e-4)

    # C=128 config: exercises the fused-K (three K=3C matmuls per conv) path.
    run_case(k_big, N=1, C=128, H=8, W=8, w_scale=0.03,
             compute_dtype=jnp.bfloat16, rtol=3e-2, atol=4e-2)

    print("KERNEL_OK")
</pallas_src>

<mosaic_0001>
module attributes {stable_mosaic.version = 11 : i64} {
  func.func @basic_block_kernel(%arg0: i32, %arg1: memref<1x336x4xbf16, #tpu.memory_space<vmem>>, %arg2: memref<9x4x4xbf16, #tpu.memory_space<vmem>>, %arg3: memref<1x4xf32, #tpu.memory_space<vmem>>, %arg4: memref<9x4x4xbf16, #tpu.memory_space<vmem>>, %arg5: memref<1x4xf32, #tpu.memory_space<vmem>>, %arg6: memref<1x288x4xf32, #tpu.memory_space<vmem>>, %arg7: memref<336x4xbf16, #tpu.memory_space<vmem>>) attributes {dimension_semantics = [#tpu.dimension_semantics<parallel>], iteration_bounds = array<i64: 2>, scalar_prefetch = 0 : i64, scratch_operands = 1 : i64, tpu.core_type = #tpu.core_type<tc>, window_params = [{transform_indices = @transform_0, window_bounds = array<i64: 1, 336, 4>}, {pipeline_mode = #tpu.pipeline_mode<synchronous>, transform_indices = @transform_1, window_bounds = array<i64: 9, 4, 4>}, {pipeline_mode = #tpu.pipeline_mode<synchronous>, transform_indices = @transform_2, window_bounds = array<i64: 1, 4>}, {pipeline_mode = #tpu.pipeline_mode<synchronous>, transform_indices = @transform_3, window_bounds = array<i64: 9, 4, 4>}, {pipeline_mode = #tpu.pipeline_mode<synchronous>, transform_indices = @transform_4, window_bounds = array<i64: 1, 4>}, {transform_indices = @transform_5, window_bounds = array<i64: 1, 288, 4>}]} {
    %0 = tpu.iota {dimensions = array<i32: 0>} : vector<288x1xi32>
    %c18_i32 = arith.constant 18 : i32
    %c0_i32 = arith.constant 0 : i32
    %1 = arith.cmpi eq, %c18_i32, %c0_i32 : i32
    %c1_i32 = arith.constant 1 : i32
    %2 = arith.select %1, %c1_i32, %c18_i32 : i32
    %3 = vector.broadcast %2 : i32 to vector<288x1xi32>
    %4 = arith.remsi %0, %3 : vector<288x1xi32>
    %c0_i32_0 = arith.constant 0 : i32
    %5 = vector.broadcast %c0_i32_0 : i32 to vector<288x1xi32>
    %6 = arith.cmpi ne, %4, %5 : vector<288x1xi32>
    %c0_i32_1 = arith.constant 0 : i32
    %7 = vector.broadcast %c0_i32_1 : i32 to vector<288x1xi32>
    %8 = arith.cmpi slt, %4, %7 : vector<288x1xi32>
    %c0_i32_2 = arith.constant 0 : i32
    %9 = arith.cmpi slt, %2, %c0_i32_2 : i32
    %10 = vector.broadcast %9 : i1 to vector<288x1xi1>
    %11 = vector.broadcast %10 : vector<288x1xi1> to vector<288x1xi1>
    %12 = arith.xori %8, %11 : vector<288x1xi1>
    %13 = arith.andi %12, %6 : vector<288x1xi1>
    %14 = vector.broadcast %2 : i32 to vector<288x1xi32>
    %15 = arith.addi %4, %14 : vector<288x1xi32>
    %16 = arith.select %13, %15, %4 : vector<288x1xi1>, vector<288x1xi32>
    %c16_i32 = arith.constant 16 : i32
    %17 = vector.broadcast %c16_i32 : i32 to vector<288x1xi32>
    %18 = arith.cmpi slt, %16, %17 : vector<288x1xi32>
    %cst = arith.constant 0.000000e+00 : f32
    %19 = vector.broadcast %cst : f32 to vector<288x4xf32>
    %c0 = arith.constant 0 : index
    %c0_3 = arith.constant 0 : index
    %c0_4 = arith.constant 0 : index
    %20 = vector.load %arg1[%c0, %c0_3, %c0_4] : memref<1x336x4xbf16, #tpu.memory_space<vmem>>, vector<1x288x4xbf16>
    %21 = vector.shape_cast %20 : vector<1x288x4xbf16> to vector<288x4xbf16>
    %c0_5 = arith.constant 0 : index
    %c0_6 = arith.constant 0 : index
    %c0_7 = arith.constant 0 : index
    %22 = vector.load %arg2[%c0_5, %c0_6, %c0_7] : memref<9x4x4xbf16, #tpu.memory_space<vmem>>, vector<1x4x4xbf16>
    %23 = vector.shape_cast %22 : vector<1x4x4xbf16> to vector<4x4xbf16>
    %cst_8 = arith.constant dense<0.000000e+00> : vector<288x4xf32>
    %24 = tpu.matmul %21, %23, %cst_8 {dimension_numbers = #tpu.dot_dimension_numbers<[1], [0], [0], [1], [0, 0, 1, 1], [], []>} : vector<288x4xbf16>, vector<4x4xbf16>, vector<288x4xf32> -> vector<288x4xf32>
    %25 = arith.addf %19, %24 : vector<288x4xf32>
    %c0_9 = arith.constant 0 : index
    %c1 = arith.constant 1 : index
    %c0_10 = arith.constant 0 : index
    %26 = vector.load %arg1[%c0_9, %c1, %c0_10] : memref<1x336x4xbf16, #tpu.memory_space<vmem>>, vector<1x288x4xbf16>
    %27 = vector.shape_cast %26 : vector<1x288x4xbf16> to vector<288x4xbf16>
    %c1_11 = arith.constant 1 : index
    %c0_12 = arith.constant 0 : index
    %c0_13 = arith.constant 0 : index
    %28 = vector.load %arg2[%c1_11, %c0_12, %c0_13] : memref<9x4x4xbf16, #tpu.memory_space<vmem>>, vector<1x4x4xbf16>
    %29 = vector.shape_cast %28 : vector<1x4x4xbf16> to vector<4x4xbf16>
    %cst_14 = arith.constant dense<0.000000e+00> : vector<288x4xf32>
    %30 = tpu.matmul %27, %29, %cst_14 {dimension_numbers = #tpu.dot_dimension_numbers<[1], [0], [0], [1], [0, 0, 1, 1], [], []>} : vector<288x4xbf16>, vector<4x4xbf16>, vector<288x4xf32> -> vector<288x4xf32>
    %31 = arith.addf %25, %30 : vector<288x4xf32>
    %c0_15 = arith.constant 0 : index
    %c2 = arith.constant 2 : index
    %c0_16 = arith.constant 0 : index
    %32 = vector.load %arg1[%c0_15, %c2, %c0_16] : memref<1x336x4xbf16, #tpu.memory_space<vmem>>, vector<1x288x4xbf16>
    %33 = vector.shape_cast %32 : vector<1x288x4xbf16> to vector<288x4xbf16>
    %c2_17 = arith.constant 2 : index
    %c0_18 = arith.constant 0 : index
    %c0_19 = arith.constant 0 : index
    %34 = vector.load %arg2[%c2_17, %c0_18, %c0_19] : memref<9x4x4xbf16, #tpu.memory_space<vmem>>, vector<1x4x4xbf16>
    %35 = vector.shape_cast %34 : vector<1x4x4xbf16> to vector<4x4xbf16>
    %cst_20 = arith.constant dense<0.000000e+00> : vector<288x4xf32>
    %36 = tpu.matmul %33, %35, %cst_20 {dimension_numbers = #tpu.dot_dimension_numbers<[1], [0], [0], [1], [0, 0, 1, 1], [], []>} : vector<288x4xbf16>, vector<4x4xbf16>, vector<288x4xf32> -> vector<288x4xf32>
    %37 = arith.addf %31, %36 : vector<288x4xf32>
    %c0_21 = arith.constant 0 : index
    %c18 = arith.constant 18 : index
    %c0_22 = arith.constant 0 : index
    %38 = vector.load %arg1[%c0_21, %c18, %c0_22] : memref<1x336x4xbf16, #tpu.memory_space<vmem>>, vector<1x288x4xbf16>
    %39 = vector.shape_cast %38 : vector<1x288x4xbf16> to vector<288x4xbf16>
    %c3 = arith.constant 3 : index
    %c0_23 = arith.constant 0 : index
    %c0_24 = arith.constant 0 : index
    %40 = vector.load %arg2[%c3, %c0_23, %c0_24] : memref<9x4x4xbf16, #tpu.memory_space<vmem>>, vector<1x4x4xbf16>
    %41 = vector.shape_cast %40 : vector<1x4x4xbf16> to vector<4x4xbf16>
    %cst_25 = arith.constant dense<0.000000e+00> : vector<288x4xf32>
    %42 = tpu.matmul %39, %41, %cst_25 {dimension_numbers = #tpu.dot_dimension_numbers<[1], [0], [0], [1], [0, 0, 1, 1], [], []>} : vector<288x4xbf16>, vector<4x4xbf16>, vector<288x4xf32> -> vector<288x4xf32>
    %43 = arith.addf %37, %42 : vector<288x4xf32>
    %c0_26 = arith.constant 0 : index
    %c19 = arith.constant 19 : index
    %c0_27 = arith.constant 0 : index
    %44 = vector.load %arg1[%c0_26, %c19, %c0_27] : memref<1x336x4xbf16, #tpu.memory_space<vmem>>, vector<1x288x4xbf16>
    %45 = vector.shape_cast %44 : vector<1x288x4xbf16> to vector<288x4xbf16>
    %c4 = arith.constant 4 : index
    %c0_28 = arith.constant 0 : index
    %c0_29 = arith.constant 0 : index
    %46 = vector.load %arg2[%c4, %c0_28, %c0_29] : memref<9x4x4xbf16, #tpu.memory_space<vmem>>, vector<1x4x4xbf16>
    %47 = vector.shape_cast %46 : vector<1x4x4xbf16> to vector<4x4xbf16>
    %cst_30 = arith.constant dense<0.000000e+00> : vector<288x4xf32>
    %48 = tpu.matmul %45, %47, %cst_30 {dimension_numbers = #tpu.dot_dimension_numbers<[1], [0], [0], [1], [0, 0, 1, 1], [], []>} : vector<288x4xbf16>, vector<4x4xbf16>, vector<288x4xf32> -> vector<288x4xf32>
    %49 = arith.addf %43, %48 : vector<288x4xf32>
    %c0_31 = arith.constant 0 : index
    %c20 = arith.constant 20 : index
    %c0_32 = arith.constant 0 : index
    %50 = vector.load %arg1[%c0_31, %c20, %c0_32] : memref<1x336x4xbf16, #tpu.memory_space<vmem>>, vector<1x288x4xbf16>
    %51 = vector.shape_cast %50 : vector<1x288x4xbf16> to vector<288x4xbf16>
    %c5 = arith.constant 5 : index
    %c0_33 = arith.constant 0 : index
    %c0_34 = arith.constant 0 : index
    %52 = vector.load %arg2[%c5, %c0_33, %c0_34] : memref<9x4x4xbf16, #tpu.memory_space<vmem>>, vector<1x4x4xbf16>
    %53 = vector.shape_cast %52 : vector<1x4x4xbf16> to vector<4x4xbf16>
    %cst_35 = arith.constant dense<0.000000e+00> : vector<288x4xf32>
    %54 = tpu.matmul %51, %53, %cst_35 {dimension_numbers = #tpu.dot_dimension_numbers<[1], [0], [0], [1], [0, 0, 1, 1], [], []>} : vector<288x4xbf16>, vector<4x4xbf16>, vector<288x4xf32> -> vector<288x4xf32>
    %55 = arith.addf %49, %54 : vector<288x4xf32>
    %c0_36 = arith.constant 0 : index
    %c36 = arith.constant 36 : index
    %c0_37 = arith.constant 0 : index
    %56 = vector.load %arg1[%c0_36, %c36, %c0_37] : memref<1x336x4xbf16, #tpu.memory_space<vmem>>, vector<1x288x4xbf16>
    %57 = vector.shape_cast %56 : vector<1x288x4xbf16> to vector<288x4xbf16>
    %c6 = arith.constant 6 : index
    %c0_38 = arith.constant 0 : index
    %c0_39 = arith.constant 0 : index
    %58 = vector.load %arg2[%c6, %c0_38, %c0_39] : memref<9x4x4xbf16, #tpu.memory_space<vmem>>, vector<1x4x4xbf16>
    %59 = vector.shape_cast %58 : vector<1x4x4xbf16> to vector<4x4xbf16>
    %cst_40 = arith.constant dense<0.000000e+00> : vector<288x4xf32>
    %60 = tpu.matmul %57, %59, %cst_40 {dimension_numbers = #tpu.dot_dimension_numbers<[1], [0], [0], [1], [0, 0, 1, 1], [], []>} : vector<288x4xbf16>, vector<4x4xbf16>, vector<288x4xf32> -> vector<288x4xf32>
    %61 = arith.addf %55, %60 : vector<288x4xf32>
    %c0_41 = arith.constant 0 : index
    %c37 = arith.constant 37 : index
    %c0_42 = arith.constant 0 : index
    %62 = vector.load %arg1[%c0_41, %c37, %c0_42] : memref<1x336x4xbf16, #tpu.memory_space<vmem>>, vector<1x288x4xbf16>
    %63 = vector.shape_cast %62 : vector<1x288x4xbf16> to vector<288x4xbf16>
    %c7 = arith.constant 7 : index
    %c0_43 = arith.constant 0 : index
    %c0_44 = arith.constant 0 : index
    %64 = vector.load %arg2[%c7, %c0_43, %c0_44] : memref<9x4x4xbf16, #tpu.memory_space<vmem>>, vector<1x4x4xbf16>
    %65 = vector.shape_cast %64 : vector<1x4x4xbf16> to vector<4x4xbf16>
    %cst_45 = arith.constant dense<0.000000e+00> : vector<288x4xf32>
    %66 = tpu.matmul %63, %65, %cst_45 {dimension_numbers = #tpu.dot_dimension_numbers<[1], [0], [0], [1], [0, 0, 1, 1], [], []>} : vector<288x4xbf16>, vector<4x4xbf16>, vector<288x4xf32> -> vector<288x4xf32>
    %67 = arith.addf %61, %66 : vector<288x4xf32>
    %c0_46 = arith.constant 0 : index
    %c38 = arith.constant 38 : index
    %c0_47 = arith.constant 0 : index
    %68 = vector.load %arg1[%c0_46, %c38, %c0_47] : memref<1x336x4xbf16, #tpu.memory_space<vmem>>, vector<1x288x4xbf16>
    %69 = vector.shape_cast %68 : vector<1x288x4xbf16> to vector<288x4xbf16>
    %c8 = arith.constant 8 : index
    %c0_48 = arith.constant 0 : index
    %c0_49 = arith.constant 0 : index
    %70 = vector.load %arg2[%c8, %c0_48, %c0_49] : memref<9x4x4xbf16, #tpu.memory_space<vmem>>, vector<1x4x4xbf16>
    %71 = vector.shape_cast %70 : vector<1x4x4xbf16> to vector<4x4xbf16>
    %cst_50 = arith.constant dense<0.000000e+00> : vector<288x4xf32>
    %72 = tpu.matmul %69, %71, %cst_50 {dimension_numbers = #tpu.dot_dimension_numbers<[1], [0], [0], [1], [0, 0, 1, 1], [], []>} : vector<288x4xbf16>, vector<4x4xbf16>, vector<288x4xf32> -> vector<288x4xf32>
    %73 = arith.addf %67, %72 : vector<288x4xf32>
    %c0_51 = arith.constant 0 : index
    %c0_52 = arith.constant 0 : index
    %74 = vector.load %arg3[%c0_51, %c0_52] : memref<1x4xf32, #tpu.memory_space<vmem>>, vector<1x4xf32>
    %75 = vector.broadcast %74 : vector<1x4xf32> to vector<288x4xf32>
    %76 = arith.addf %73, %75 : vector<288x4xf32>
    %cst_53 = arith.constant 0.000000e+00 : f32
    %77 = vector.broadcast %cst_53 : f32 to vector<288x4xf32>
    %78 = arith.maximumf %76, %77 : vector<288x4xf32>
    %cst_54 = arith.constant 0.000000e+00 : f32
    %79 = vector.shape_cast %18 : vector<288x1xi1> to vector<288x1xi1>
    %80 = vector.broadcast %79 : vector<288x1xi1> to vector<288x4xi1>
    %81 = vector.broadcast %cst_54 : f32 to vector<288x4xf32>
    %82 = arith.select %80, %78, %81 : vector<288x4xi1>, vector<288x4xf32>
    %cst_55 = arith.constant 0.000000e+00 : bf16
    %83 = vector.broadcast %cst_55 : bf16 to vector<19x4xbf16>
    %c0_56 = arith.constant 0 : index
    %c0_57 = arith.constant 0 : index
    %84 = vector.load %arg7[%c0_56, %c0_57] : memref<336x4xbf16, #tpu.memory_space<vmem>>, vector<19x4xbf16>
    tpu.vector_store %arg7[%c0_56, %c0_57], %83 {strides = array<i32>} : memref<336x4xbf16, #tpu.memory_space<vmem>>, vector<19x4xbf16>,
    %cst_58 = arith.constant 0.000000e+00 : bf16
    %85 = vector.broadcast %cst_58 : bf16 to vector<29x4xbf16>
    %c307 = arith.constant 307 : index
    %c0_59 = arith.constant 0 : index
    %86 = vector.load %arg7[%c307, %c0_59] : memref<336x4xbf16, #tpu.memory_space<vmem>>, vector<29x4xbf16>
    tpu.vector_store %arg7[%c307, %c0_59], %85 {strides = array<i32>} : memref<336x4xbf16, #tpu.memory_space<vmem>>, vector<29x4xbf16>,
    %87 = arith.truncf %82 : vector<288x4xf32> to vector<288x4xbf16>
    %c19_60 = arith.constant 19 : index
    %c0_61 = arith.constant 0 : index
    %88 = vector.load %arg7[%c19_60, %c0_61] : memref<336x4xbf16, #tpu.memory_space<vmem>>, vector<288x4xbf16>
    tpu.vector_store %arg7[%c19_60, %c0_61], %87 {strides = array<i32>} : memref<336x4xbf16, #tpu.memory_space<vmem>>, vector<288x4xbf16>,
    %c0_62 = arith.constant 0 : index
    %c19_63 = arith.constant 19 : index
    %c0_64 = arith.constant 0 : index
    %89 = vector.load %arg1[%c0_62, %c19_63, %c0_64] : memref<1x336x4xbf16, #tpu.memory_space<vmem>>, vector<1x288x4xbf16>
    %90 = vector.shape_cast %89 : vector<1x288x4xbf16> to vector<288x4xbf16>
    %91 = arith.extf %90 : vector<288x4xbf16> to vector<288x4xf32>
    %cst_65 = arith.constant 0.000000e+00 : f32
    %92 = vector.broadcast %cst_65 : f32 to vector<288x4xf32>
    %c0_66 = arith.constant 0 : index
    %c0_67 = arith.constant 0 : index
    %93 = vector.load %arg7[%c0_66, %c0_67] : memref<336x4xbf16, #tpu.memory_space<vmem>>, vector<288x4xbf16>
    %c0_68 = arith.constant 0 : index
    %c0_69 = arith.constant 0 : index
    %c0_70 = arith.constant 0 : index
    %94 = vector.load %arg4[%c0_68, %c0_69, %c0_70] : memref<9x4x4xbf16, #tpu.memory_space<vmem>>, vector<1x4x4xbf16>
    %95 = vector.shape_cast %94 : vector<1x4x4xbf16> to vector<4x4xbf16>
    %cst_71 = arith.constant dense<0.000000e+00> : vector<288x4xf32>
    %96 = tpu.matmul %93, %95, %cst_71 {dimension_numbers = #tpu.dot_dimension_numbers<[1], [0], [0], [1], [0, 0, 1, 1], [], []>} : vector<288x4xbf16>, vector<4x4xbf16>, vector<288x4xf32> -> vector<288x4xf32>
    %97 = arith.addf %92, %96 : vector<288x4xf32>
    %c1_72 = arith.constant 1 : index
    %c0_73 = arith.constant 0 : index
    %98 = vector.load %arg7[%c1_72, %c0_73] : memref<336x4xbf16, #tpu.memory_space<vmem>>, vector<288x4xbf16>
    %c1_74 = arith.constant 1 : index
    %c0_75 = arith.constant 0 : index
    %c0_76 = arith.constant 0 : index
    %99 = vector.load %arg4[%c1_74, %c0_75, %c0_76] : memref<9x4x4xbf16, #tpu.memory_space<vmem>>, vector<1x4x4xbf16>
    %100 = vector.shape_cast %99 : vector<1x4x4xbf16> to vector<4x4xbf16>
    %cst_77 = arith.constant dense<0.000000e+00> : vector<288x4xf32>
    %101 = tpu.matmul %98, %100, %cst_77 {dimension_numbers = #tpu.dot_dimension_numbers<[1], [0], [0], [1], [0, 0, 1, 1], [], []>} : vector<288x4xbf16>, vector<4x4xbf16>, vector<288x4xf32> -> vector<288x4xf32>
    %102 = arith.addf %97, %101 : vector<288x4xf32>
    %c2_78 = arith.constant 2 : index
    %c0_79 = arith.constant 0 : index
    %103 = vector.load %arg7[%c2_78, %c0_79] : memref<336x4xbf16, #tpu.memory_space<vmem>>, vector<288x4xbf16>
    %c2_80 = arith.constant 2 : index
    %c0_81 = arith.constant 0 : index
    %c0_82 = arith.constant 0 : index
    %104 = vector.load %arg4[%c2_80, %c0_81, %c0_82] : memref<9x4x4xbf16, #tpu.memory_space<vmem>>, vector<1x4x4xbf16>
    %105 = vector.shape_cast %104 : vector<1x4x4xbf16> to vector<4x4xbf16>
    %cst_83 = arith.constant dense<0.000000e+00> : vector<288x4xf32>
    %106 = tpu.matmul %103, %105, %cst_83 {dimension_numbers = #tpu.dot_dimension_numbers<[1], [0], [0], [1], [0, 0, 1, 1], [], []>} : vector<288x4xbf16>, vector<4x4xbf16>, vector<288x4xf32> -> vector<288x4xf32>
    %107 = arith.addf %102, %106 : vector<288x4xf32>
    %c18_84 = arith.constant 18 : index
    %c0_85 = arith.constant 0 : index
    %108 = vector.load %arg7[%c18_84, %c0_85] : memref<336x4xbf16, #tpu.memory_space<vmem>>, vector<288x4xbf16>
    %c3_86 = arith.constant 3 : index
    %c0_87 = arith.constant 0 : index
    %c0_88 = arith.constant 0 : index
    %109 = vector.load %arg4[%c3_86, %c0_87, %c0_88] : memref<9x4x4xbf16, #tpu.memory_space<vmem>>, vector<1x4x4xbf16>
    %110 = vector.shape_cast %109 : vector<1x4x4xbf16> to vector<4x4xbf16>
    %cst_89 = arith.constant dense<0.000000e+00> : vector<288x4xf32>
    %111 = tpu.matmul %108, %110, %cst_89 {dimension_numbers = #tpu.dot_dimension_numbers<[1], [0], [0], [1], [0, 0, 1, 1], [], []>} : vector<288x4xbf16>, vector<4x4xbf16>, vector<288x4xf32> -> vector<288x4xf32>
    %112 = arith.addf %107, %111 : vector<288x4xf32>
    %c19_90 = arith.constant 19 : index
    %c0_91 = arith.constant 0 : index
    %113 = vector.load %arg7[%c19_90, %c0_91] : memref<336x4xbf16, #tpu.memory_space<vmem>>, vector<288x4xbf16>
    %c4_92 = arith.constant 4 : index
    %c0_93 = arith.constant 0 : index
    %c0_94 = arith.constant 0 : index
    %114 = vector.load %arg4[%c4_92, %c0_93, %c0_94] : memref<9x4x4xbf16, #tpu.memory_space<vmem>>, vector<1x4x4xbf16>
    %115 = vector.shape_cast %114 : vector<1x4x4xbf16> to vector<4x4xbf16>
    %cst_95 = arith.constant dense<0.000000e+00> : vector<288x4xf32>
    %116 = tpu.matmul %113, %115, %cst_95 {dimension_numbers = #tpu.dot_dimension_numbers<[1], [0], [0], [1], [0, 0, 1, 1], [], []>} : vector<288x4xbf16>, vector<4x4xbf16>, vector<288x4xf32> -> vector<288x4xf32>
    %117 = arith.addf %112, %116 : vector<288x4xf32>
    %c20_96 = arith.constant 20 : index
    %c0_97 = arith.constant 0 : index
    %118 = vector.load %arg7[%c20_96, %c0_97] : memref<336x4xbf16, #tpu.memory_space<vmem>>, vector<288x4xbf16>
    %c5_98 = arith.constant 5 : index
    %c0_99 = arith.constant 0 : index
    %c0_100 = arith.constant 0 : index
    %119 = vector.load %arg4[%c5_98, %c0_99, %c0_100] : memref<9x4x4xbf16, #tpu.memory_space<vmem>>, vector<1x4x4xbf16>
    %120 = vector.shape_cast %119 : vector<1x4x4xbf16> to vector<4x4xbf16>
    %cst_101 = arith.constant dense<0.000000e+00> : vector<288x4xf32>
    %121 = tpu.matmul %118, %120, %cst_101 {dimension_numbers = #tpu.dot_dimension_numbers<[1], [0], [0], [1], [0, 0, 1, 1], [], []>} : vector<288x4xbf16>, vector<4x4xbf16>, vector<288x4xf32> -> vector<288x4xf32>
    %122 = arith.addf %117, %121 : vector<288x4xf32>
    %c36_102 = arith.constant 36 : index
    %c0_103 = arith.constant 0 : index
    %123 = vector.load %arg7[%c36_102, %c0_103] : memref<336x4xbf16, #tpu.memory_space<vmem>>, vector<288x4xbf16>
    %c6_104 = arith.constant 6 : index
    %c0_105 = arith.constant 0 : index
    %c0_106 = arith.constant 0 : index
    %124 = vector.load %arg4[%c6_104, %c0_105, %c0_106] : memref<9x4x4xbf16, #tpu.memory_space<vmem>>, vector<1x4x4xbf16>
    %125 = vector.shape_cast %124 : vector<1x4x4xbf16> to vector<4x4xbf16>
    %cst_107 = arith.constant dense<0.000000e+00> : vector<288x4xf32>
    %126 = tpu.matmul %123, %125, %cst_107 {dimension_numbers = #tpu.dot_dimension_numbers<[1], [0], [0], [1], [0, 0, 1, 1], [], []>} : vector<288x4xbf16>, vector<4x4xbf16>, vector<288x4xf32> -> vector<288x4xf32>
    %127 = arith.addf %122, %126 : vector<288x4xf32>
    %c37_108 = arith.constant 37 : index
    %c0_109 = arith.constant 0 : index
    %128 = vector.load %arg7[%c37_108, %c0_109] : memref<336x4xbf16, #tpu.memory_space<vmem>>, vector<288x4xbf16>
    %c7_110 = arith.constant 7 : index
    %c0_111 = arith.constant 0 : index
    %c0_112 = arith.constant 0 : index
    %129 = vector.load %arg4[%c7_110, %c0_111, %c0_112] : memref<9x4x4xbf16, #tpu.memory_space<vmem>>, vector<1x4x4xbf16>
    %130 = vector.shape_cast %129 : vector<1x4x4xbf16> to vector<4x4xbf16>
    %cst_113 = arith.constant dense<0.000000e+00> : vector<288x4xf32>
    %131 = tpu.matmul %128, %130, %cst_113 {dimension_numbers = #tpu.dot_dimension_numbers<[1], [0], [0], [1], [0, 0, 1, 1], [], []>} : vector<288x4xbf16>, vector<4x4xbf16>, vector<288x4xf32> -> vector<288x4xf32>
    %132 = arith.addf %127, %131 : vector<288x4xf32>
    %c38_114 = arith.constant 38 : index
    %c0_115 = arith.constant 0 : index
    %133 = vector.load %arg7[%c38_114, %c0_115] : memref<336x4xbf16, #tpu.memory_space<vmem>>, vector<288x4xbf16>
    %c8_116 = arith.constant 8 : index
    %c0_117 = arith.constant 0 : index
    %c0_118 = arith.constant 0 : index
    %134 = vector.load %arg4[%c8_116, %c0_117, %c0_118] : memref<9x4x4xbf16, #tpu.memory_space<vmem>>, vector<1x4x4xbf16>
    %135 = vector.shape_cast %134 : vector<1x4x4xbf16> to vector<4x4xbf16>
    %cst_119 = arith.constant dense<0.000000e+00> : vector<288x4xf32>
    %136 = tpu.matmul %133, %135, %cst_119 {dimension_numbers = #tpu.dot_dimension_numbers<[1], [0], [0], [1], [0, 0, 1, 1], [], []>} : vector<288x4xbf16>, vector<4x4xbf16>, vector<288x4xf32> -> vector<288x4xf32>
    %137 = arith.addf %132, %136 : vector<288x4xf32>
    %c0_120 = arith.constant 0 : index
    %c0_121 = arith.constant 0 : index
    %138 = vector.load %arg5[%c0_120, %c0_121] : memref<1x4xf32, #tpu.memory_space<vmem>>, vector<1x4xf32>
    %139 = vector.broadcast %138 : vector<1x4xf32> to vector<288x4xf32>
    %140 = arith.addf %137, %139 : vector<288x4xf32>
    %141 = arith.addf %140, %91 : vector<288x4xf32>
    %cst_122 = arith.constant 0.000000e+00 : f32
    %142 = vector.broadcast %cst_122 : f32 to vector<288x4xf32>
    %143 = arith.maximumf %141, %142 : vector<288x4xf32>
    %c0_123 = arith.constant 0 : index
    %c0_124 = arith.constant 0 : index
    %c0_125 = arith.constant 0 : index
    %144 = vector.load %arg6[%c0_123, %c0_124, %c0_125] : memref<1x288x4xf32, #tpu.memory_space<vmem>>, vector<1x288x4xf32>
    %145 = vector.shape_cast %144 : vector<1x288x4xf32> to vector<288x4xf32>
    %146 = vector.shape_cast %143 : vector<288x4xf32> to vector<1x288x4xf32>
    tpu.vector_store %arg6[%c0_123, %c0_124, %c0_125], %146 {strides = array<i32>} : memref<1x288x4xf32, #tpu.memory_space<vmem>>, vector<1x288x4xf32>,
    return
  }
  func.func @transform_0(%arg0: i32) -> (i32, i32, i32) {
    %c0_i32 = arith.constant 0 : i32
    %c0_i32_0 = arith.constant 0 : i32
    %c0_i32_1 = arith.constant 0 : i32
    return %arg0, %c0_i32, %c0_i32_0 : i32, i32, i32
  }
  func.func @transform_1(%arg0: i32) -> (i32, i32, i32) {
    %c0_i32 = arith.constant 0 : i32
    %c0_i32_0 = arith.constant 0 : i32
    %c0_i32_1 = arith.constant 0 : i32
    %c0_i32_2 = arith.constant 0 : i32
    return %c0_i32, %c0_i32_0, %c0_i32_1 : i32, i32, i32
  }
  func.func @transform_2(%arg0: i32) -> (i32, i32) {
    %c0_i32 = arith.constant 0 : i32
    %c0_i32_0 = arith.constant 0 : i32
    %c0_i32_1 = arith.constant 0 : i32
    return %c0_i32, %c0_i32_0 : i32, i32
  }
  func.func @transform_3(%arg0: i32) -> (i32, i32, i32) {
    %c0_i32 = arith.constant 0 : i32
    %c0_i32_0 = arith.constant 0 : i32
    %c0_i32_1 = arith.constant 0 : i32
    %c0_i32_2 = arith.constant 0 : i32
    return %c0_i32, %c0_i32_0, %c0_i32_1 : i32, i32, i32
  }
  func.func @transform_4(%arg0: i32) -> (i32, i32) {
    %c0_i32 = arith.constant 0 : i32
    %c0_i32_0 = arith.constant 0 : i32
    %c0_i32_1 = arith.constant 0 : i32
    return %c0_i32, %c0_i32_0 : i32, i32
  }
  func.func @transform_5(%arg0: i32) -> (i32, i32, i32) {
    %c0_i32 = arith.constant 0 : i32
    %c0_i32_0 = arith.constant 0 : i32
    %c0_i32_1 = arith.constant 0 : i32
    return %arg0, %c0_i32, %c0_i32_0 : i32, i32, i32
  }
}

</mosaic_0001>

<llo_original>
// kernel: basic_block_forward.1
$region0: #{basic_block_forward.1}
  #allocation0 [shape = 'u32[]', space=smem, size = 0x4, offset = 0x4, fixed_abs, tag = 'smem constant byte address 0x4 - core index']
  #allocation1 [shape = 'u32[144,128]{1,0:T(1,128)}', space=vmem, size = 0x12000, scoped, tag = 'internal scratch']
  #allocation2 [shape = 'bf16[336,4]{1,0:T(16,128)(2,1)}', space=vmem, size = 0x15000, scoped, tag = 'scratch operand']
  %s0 = inlined_call_operand.vmem [shape: bf16[2,336,4], index: 0, kind: input, shape index: {}]
  %s1 = inlined_call_operand.vmem [shape: bf16[9,4,4], index: 1, kind: input, shape index: {}]
  %s2 = inlined_call_operand.vmem [shape: f32[1,4], index: 2, kind: input, shape index: {}]
  %s3 = inlined_call_operand.vmem [shape: bf16[9,4,4], index: 3, kind: input, shape index: {}]
  %s4 = inlined_call_operand.vmem [shape: f32[1,4], index: 4, kind: input, shape index: {}]
  %s5 = inlined_call_operand.vmem [shape: f32[2,288,4], index: 5, kind: output, shape index: {}]
  %s6 = sld [smem:[#allocation0]]
  $region53: #{basic_block_forward.1} parent=0
    _
  %s8 = ssub.s32 1, %s6
  %s9 = scalar_select 0, %s8, %s6
  loop: start=0, step=1, limit=4
  $region2: #{basic_block_forward.1} parent=0 // loop_pre_header
    _
  $region3: #{basic_block_forward.1} parent=0 // loop_header
    %s11 = sphi 0, %s15
    %p12 = scmp.ge.s32.totalorder %s11, 4
    %s21 = sphi 0, %s23
    %s24 = sphi 0, %s21
    %s25 = sphi 0, %s24
    %s41 = sphi 0, %s25
    %s45 = sphi 0, %s45
    %s47 = sphi 0, %s45
    %s48 = sphi 0, %s47
    %s62 = sphi 0, %s48
    %s66 = sphi 0, %s66
    %s68 = sphi 0, %s66
    %s69 = sphi 0, %s68
    %s83 = sphi 0, %s69
    %s87 = sphi 0, %s87
    %s89 = sphi 0, %s87
    %s90 = sphi 0, %s89
    %s104 = sphi 0, %s90
    %s108 = sphi 0, %s108
    %s110 = sphi 0, %s108
    %s111 = sphi 0, %s110
    %s125 = sphi 0, %s111
    %s131 = sphi 0, %s133
    %s134 = sphi 0, %s131
    %s135 = sphi 0, %s134
    %s151 = sphi 0, %s135
  $region4: #{basic_block_forward.1} parent=0 // loop_header_branch
    %14 = sbr.rel (%p12) target = $region8
  $region5: #{basic_block_forward.1} parent=0 // loop_body
    %s16 = ssub.s32 %s11, 1
    %s17 = ssub.s32 %s11, 2
    %s18 = sadd.s32 %s11, 1
    %s19 = ssub.s32 %s11, %s18
    %p20 = scmp.eq.s32.totalorder %s19, 0
    %s22 = sadd.s32 %s21, 1
    %s23 = scalar_select %p20, %s21, %s22
    %p26 = pneg %p20
    %p27 = scmp.eq.s32.totalorder %s11, 1
    %p28 = por %p26, %p27
    %p29 = scmp.ne.s32.totalorder %s21, %s24
    %p30 = scmp.eq.s32.totalorder %s11, 0
    %p31 = por %p29, %p30
    %p32 = scmp.ne.s32.totalorder %s21, %s24
    %p33 = scmp.eq.s32.totalorder %s16, 1
    %p34 = por %p32, %p33
    %p35 = scmp.ne.s32.totalorder %s24, %s25
    %p36 = scmp.eq.s32.totalorder %s16, 0
    %p37 = por %p35, %p36
    %p38 = scmp.ne.s32.totalorder %s24, %s25
    %p39 = scmp.eq.s32.totalorder %s17, 1
    %p40 = por %p38, %p39
    %p42 = scmp.ne.s32.totalorder %s25, %s41
    %p43 = scmp.eq.s32.totalorder %s17, 0
    %p44 = por %p42, %p43
    %s46 = sadd.s32 %s45, 1
    %p49 = scmp.eq.s32.totalorder %s11, 1
    %p50 = scmp.ne.s32.totalorder %s45, %s47
    %p51 = scmp.eq.s32.totalorder %s11, 0
    %p52 = por %p50, %p51
    %p53 = scmp.ne.s32.totalorder %s45, %s47
    %p54 = scmp.eq.s32.totalorder %s16, 1
    %p55 = por %p53, %p54
    %p56 = scmp.ne.s32.totalorder %s47, %s48
    %p57 = scmp.eq.s32.totalorder %s16, 0
    %p58 = por %p56, %p57
    %p59 = scmp.ne.s32.totalorder %s47, %s48
    %p60 = scmp.eq.s32.totalorder %s17, 1
    %p61 = por %p59, %p60
    %p63 = scmp.ne.s32.totalorder %s48, %s62
    %p64 = scmp.eq.s32.totalorder %s17, 0
    %p65 = por %p63, %p64
    %s67 = sadd.s32 %s66, 1
    %p70 = scmp.eq.s32.totalorder %s11, 1
    %p71 = scmp.ne.s32.totalorder %s66, %s68
    %p72 = scmp.eq.s32.totalorder %s11, 0
    %p73 = por %p71, %p72
    %p74 = scmp.ne.s32.totalorder %s66, %s68
    %p75 = scmp.eq.s32.totalorder %s16, 1
    %p76 = por %p74, %p75
    %p77 = scmp.ne.s32.totalorder %s68, %s69
    %p78 = scmp.eq.s32.totalorder %s16, 0
    %p79 = por %p77, %p78
    %p80 = scmp.ne.s32.totalorder %s68, %s69
    %p81 = scmp.eq.s32.totalorder %s17, 1
    %p82 = por %p80, %p81
    %p84 = scmp.ne.s32.totalorder %s69, %s83
    %p85 = scmp.eq.s32.totalorder %s17, 0
    %p86 = por %p84, %p85
    %s88 = sadd.s32 %s87, 1
    %p91 = scmp.eq.s32.totalorder %s11, 1
    %p92 = scmp.ne.s32.totalorder %s87, %s89
    %p93 = scmp.eq.s32.totalorder %s11, 0
    %p94 = por %p92, %p93
    %p95 = scmp.ne.s32.totalorder %s87, %s89
    %p96 = scmp.eq.s32.totalorder %s16, 1
    %p97 = por %p95, %p96
    %p98 = scmp.ne.s32.totalorder %s89, %s90
    %p99 = scmp.eq.s32.totalorder %s16, 0
    %p100 = por %p98, %p99
    %p101 = scmp.ne.s32.totalorder %s89, %s90
    %p102 = scmp.eq.s32.totalorder %s17, 1
    %p103 = por %p101, %p102
    %p105 = scmp.ne.s32.totalorder %s90, %s104
    %p106 = scmp.eq.s32.totalorder %s17, 0
    %p107 = por %p105, %p106
    %s109 = sadd.s32 %s108, 1
    %p112 = scmp.eq.s32.totalorder %s11, 1
    %p113 = scmp.ne.s32.totalorder %s108, %s110
    %p114 = scmp.eq.s32.totalorder %s11, 0
    %p115 = por %p113, %p114
    %p116 = scmp.ne.s32.totalorder %s108, %s110
    %p117 = scmp.eq.s32.totalorder %s16, 1
    %p118 = por %p116, %p117
    %p119 = scmp.ne.s32.totalorder %s110, %s111
    %p120 = scmp.eq.s32.totalorder %s16, 0
    %p121 = por %p119, %p120
    %p122 = scmp.ne.s32.totalorder %s110, %s111
    %p123 = scmp.eq.s32.totalorder %s17, 1
    %p124 = por %p122, %p123
    %p126 = scmp.ne.s32.totalorder %s111, %s125
    %p127 = scmp.eq.s32.totalorder %s17, 0
    %p128 = por %p126, %p127
    %s129 = ssub.s32 %s11, %s18
    %p130 = scmp.eq.s32.totalorder %s129, 0
    %s132 = sadd.s32 %s131, 1
    %s133 = scalar_select %p130, %s131, %s132
    %p136 = pneg %p130
    %p137 = scmp.eq.s32.totalorder %s11, 1
    %p138 = por %p136, %p137
    %p139 = scmp.ne.s32.totalorder %s131, %s134
    %p140 = scmp.eq.s32.totalorder %s11, 0
    %p141 = por %p139, %p140
    %p142 = scmp.ne.s32.totalorder %s131, %s134
    %p143 = scmp.eq.s32.totalorder %s16, 1
    %p144 = por %p142, %p143
    %p145 = scmp.ne.s32.totalorder %s134, %s135
    %p146 = scmp.eq.s32.totalorder %s16, 0
    %p147 = por %p145, %p146
    %p148 = scmp.ne.s32.totalorder %s134, %s135
    %p149 = scmp.eq.s32.totalorder %s17, 1
    %p150 = por %p148, %p149
    %p152 = scmp.ne.s32.totalorder %s135, %s151
    %p153 = scmp.eq.s32.totalorder %s17, 0
    %p154 = por %p152, %p153
    %p155 = scmp.le.s32.totalorder 1, %s11
    %p156 = scmp.lt.s32.totalorder %s11, 3
    %p157 = pnand %p155, %p156
    %p158 = pneg %p157
    // Predicated region
    $region9: #{basic_block_forward.1} parent=5 // pred_check
      _
    $region10: #{basic_block_forward.1} parent=5 // pred_check_branch
      %160 = sbr.rel (%p157) target = $region12
    $region11: #{basic_block_forward.1} parent=5 // pred_region
      %s161 = ssub.s32 %s11, 1
      // Predicated region
      $region13: #{basic_block_forward.1} parent=11 // pred_check
        %p162 = pneg %p58
      $region14: #{basic_block_forward.1} parent=11 // pred_check_branch
        %164 = sbr.rel (%p162) target = $region16
      $region15: #{basic_block_forward.1} parent=11 // pred_region
        _
      $region16: #{basic_block_forward.1} parent=11 // pred_fallthru
        _
      // Predicated region
      $region17: #{basic_block_forward.1} parent=11 // pred_check
        %p165 = pneg %p79
      $region18: #{basic_block_forward.1} parent=11 // pred_check_branch
        %167 = sbr.rel (%p165) target = $region20
      $region19: #{basic_block_forward.1} parent=11 // pred_region
        _
      $region20: #{basic_block_forward.1} parent=11 // pred_fallthru
        _
      // Predicated region
      $region21: #{basic_block_forward.1} parent=11 // pred_check
        %p168 = pneg %p100
      $region22: #{basic_block_forward.1} parent=11 // pred_check_branch
        %170 = sbr.rel (%p168) target = $region24
      $region23: #{basic_block_forward.1} parent=11 // pred_region
        _
      $region24: #{basic_block_forward.1} parent=11 // pred_fallthru
        _
      // Predicated region
      $region25: #{basic_block_forward.1} parent=11 // pred_check
        %p171 = pneg %p121
      $region26: #{basic_block_forward.1} parent=11 // pred_check_branch
        %173 = sbr.rel (%p171) target = $region28
      $region27: #{basic_block_forward.1} parent=11 // pred_region
        _
      $region28: #{basic_block_forward.1} parent=11 // pred_fallthru
        _
    $region12: #{basic_block_forward.1} parent=5 // pred_fallthru
      _
    %p174 = scmp.lt.s32.totalorder %s11, 2
    // Predicated region
    $region29: #{basic_block_forward.1} parent=5 // pred_check
      %p175 = pneg %p174
    $region30: #{basic_block_forward.1} parent=5 // pred_check_branch
      %177 = sbr.rel (%p175) target = $region32
    $region31: #{basic_block_forward.1} parent=5 // pred_region
      // Predicated region
      $region33: #{basic_block_forward.1} parent=31 // pred_check
        %p178 = pneg %p31
      $region34: #{basic_block_forward.1} parent=31 // pred_check_branch
        %180 = sbr.rel (%p178) target = $region36
      $region35: #{basic_block_forward.1} parent=31 // pred_region
        %p181 = scmp.lt.s32.totalorder %s11, 1
        %s182 = scalar_select %p181, %s11, 1
        %s183 = smul.addr %s182, 42
        %s184 = smul.addr %s183, 4
        %s185 = scalar_lea.vmem %s0, %s184
      $region36: #{basic_block_forward.1} parent=31 // pred_fallthru
        _
    $region32: #{basic_block_forward.1} parent=5 // pred_fallthru
      _
    %p186 = scmp.le.s32.totalorder 1, %s11
    %p187 = scmp.lt.s32.totalorder %s11, 3
    %p188 = pnand %p186, %p187
    %p189 = pneg %p188
    // Predicated region
    $region37: #{basic_block_forward.1} parent=5 // pred_check
      _
    $region38: #{basic_block_forward.1} parent=5 // pred_check_branch
      %191 = sbr.rel (%p188) target = $region40
    $region39: #{basic_block_forward.1} parent=5 // pred_region
      %s192 = ssub.s32 %s11, 1
      %p193 = scmp.lt.s32.totalorder %s16, 1
      %s194 = scalar_select %p193, %s16, 1
      %s195 = smul.addr %s194, 42
      %s196 = smul.addr %s195, 4
      %s197 = scalar_lea.vmem %s0, %s196
      %p198 = pneg %p37
      %p199 = pneg %p34
      %p200 = pneg %p58
      %p201 = pneg %p55
      %p202 = pneg %p79
      %p203 = pneg %p76
      %p204 = pneg %p100
      %p205 = pneg %p97
      %p206 = pneg %p121
      %p207 = pneg %p118
      %p208 = pneg %p147
      %p209 = pneg %p144
      %p210 = scmp.lt.s32.totalorder %s16, 1
      %s211 = scalar_select %p210, %s16, 1
      %s212 = smul.addr %s211, 36
      %s213 = smul.addr %s212, 8
      %s214 = scalar_lea.vmem %s5, %s213
      %p215 = scmp.lt.s32.totalorder %s16, 1
      %s216 = scalar_select %p215, %s16, 1
      %s217 = smul.addr %s216, 42
      %s218 = smul.addr %s217, 4
      %s219 = scalar_lea.vmem %s0, %s218
      %p220 = scmp.lt.s32.totalorder %s16, 1
      %s221 = scalar_select %p220, %s16, 1
      %s222 = smul.addr %s221, 36
      %s223 = smul.addr %s222, 8
      %s224 = scalar_lea.vmem %s5, %s223
      %v226 = vlaneseq
      %v227 = vshrl.u32 %v226, 7
      %v228 = vadd.s32 %v227, 8
      %v229 = vadd.s32 %v227, 16
      %v230 = vadd.s32 %v227, 24
      %v231 = vadd.s32 %v227, 32
      %v232 = vadd.s32 %v227, 40
      %v233 = vadd.s32 %v227, 48
      %v234 = vadd.s32 %v227, 56
      %v235 = vadd.s32 %v227, 64
      %v236 = vadd.s32 %v227, 72
      %v237 = vadd.s32 %v227, 80
      %v238 = vadd.s32 %v227, 88
      %v239 = vadd.s32 %v227, 96
      %v240 = vadd.s32 %v227, 104
      %v241 = vadd.s32 %v227, 112
      %v242 = vadd.s32 %v227, 120
      %v243 = vadd.s32 %v227, 128
      %v244 = vadd.s32 %v227, 136
      %v245 = vadd.s32 %v227, 144
      %v246 = vadd.s32 %v227, 152
      %v247 = vadd.s32 %v227, 160
      %v248 = vadd.s32 %v227, 168
      %v249 = vadd.s32 %v227, 176
      %v250 = vadd.s32 %v227, 184
      %v251 = vadd.s32 %v227, 192
      %v252 = vadd.s32 %v227, 200
      %v253 = vadd.s32 %v227, 208
      %v254 = vadd.s32 %v227, 216
      %v255 = vadd.s32 %v227, 224
      %v256 = vadd.s32 %v227, 232
      %v257 = vadd.s32 %v227, 240
      %v258 = vadd.s32 %v227, 248
      %v259 = vadd.s32 %v227, 256
      %v260 = vadd.s32 %v227, 264
      %v261 = vadd.s32 %v227, 272
      %v262 = vadd.s32 %v227, 280
      %vm263 = vcmp.lt.s32.totalorder %v227, 0
      %v264 = vsub.s32 0, %v227
      %v265 = vsel %vm263, %v264, %v227
      %v266 = vmul.u32.u64.compose %v265, 3817748708
      %v267 = vextract.low.u32 %v266
      %v268 = vextract.high.u32 %v266
      %v269 = vshrl.u32 %v268, 4
      %v270 = vmul.u32 %v269, 18
      %v271 = vsub.s32 %v265, %v270
      %v272 = vsub.s32 0, %v271
      %v273 = vsel %vm263, %v272, %v271
      %vm274 = vcmp.lt.s32.totalorder %v228, 0
      %v275 = vsub.s32 0, %v228
      %v276 = vsel %vm274, %v275, %v228
      %v277 = vmul.u32.u64.compose %v276, 3817748708
      %v278 = vextract.low.u32 %v277
      %v279 = vextract.high.u32 %v277
      %v280 = vshrl.u32 %v279, 4
      %v281 = vmul.u32 %v280, 18
      %v282 = vsub.s32 %v276, %v281
      %v283 = vsub.s32 0, %v282
      %v284 = vsel %vm274, %v283, %v282
      %vm285 = vcmp.lt.s32.totalorder %v229, 0
      %v286 = vsub.s32 0, %v229
      %v287 = vsel %vm285, %v286, %v229
      %v288 = vmul.u32.u64.compose %v287, 3817748708
      %v289 = vextract.low.u32 %v288
      %v290 = vextract.high.u32 %v288
      %v291 = vshrl.u32 %v290, 4
      %v292 = vmul.u32 %v291, 18
      %v293 = vsub.s32 %v287, %v292
      %v294 = vsub.s32 0, %v293
      %v295 = vsel %vm285, %v294, %v293
      %vm296 = vcmp.lt.s32.totalorder %v230, 0
      %v297 = vsub.s32 0, %v230
      %v298 = vsel %vm296, %v297, %v230
      %v299 = vmul.u32.u64.compose %v298, 3817748708
      %v300 = vextract.low.u32 %v299
      %v301 = vextract.high.u32 %v299
      %v302 = vshrl.u32 %v301, 4
      %v303 = vmul.u32 %v302, 18
      %v304 = vsub.s32 %v298, %v303
      %v305 = vsub.s32 0, %v304
      %v306 = vsel %vm296, %v305, %v304
      %vm307 = vcmp.lt.s32.totalorder %v231, 0
      %v308 = vsub.s32 0, %v231
      %v309 = vsel %vm307, %v308, %v231
      %v310 = vmul.u32.u64.compose %v309, 3817748708
      %v311 = vextract.low.u32 %v310
      %v312 = vextract.high.u32 %v310
      %v313 = vshrl.u32 %v312, 4
      %v314 = vmul.u32 %v313, 18
      %v315 = vsub.s32 %v309, %v314
      %v316 = vsub.s32 0, %v315
      %v317 = vsel %vm307, %v316, %v315
      %vm318 = vcmp.lt.s32.totalorder %v232, 0
      %v319 = vsub.s32 0, %v232
      %v320 = vsel %vm318, %v319, %v232
      %v321 = vmul.u32.u64.compose %v320, 3817748708
      %v322 = vextract.low.u32 %v321
      %v323 = vextract.high.u32 %v321
      %v324 = vshrl.u32 %v323, 4
      %v325 = vmul.u32 %v324, 18
      %v326 = vsub.s32 %v320, %v325
      %v327 = vsub.s32 0, %v326
      %v328 = vsel %vm318, %v327, %v326
      %vm329 = vcmp.lt.s32.totalorder %v233, 0
      %v330 = vsub.s32 0, %v233
      %v331 = vsel %vm329, %v330, %v233
      %v332 = vmul.u32.u64.compose %v331, 3817748708
      %v333 = vextract.low.u32 %v332
      %v334 = vextract.high.u32 %v332
      %v335 = vshrl.u32 %v334, 4
      %v336 = vmul.u32 %v335, 18
      %v337 = vsub.s32 %v331, %v336
      %v338 = vsub.s32 0, %v337
      %v339 = vsel %vm329, %v338, %v337
      %vm340 = vcmp.lt.s32.totalorder %v234, 0
      %v341 = vsub.s32 0, %v234
      %v342 = vsel %vm340, %v341, %v234
      %v343 = vmul.u32.u64.compose %v342, 3817748708
      %v344 = vextract.low.u32 %v343
      %v345 = vextract.high.u32 %v343
      %v346 = vshrl.u32 %v345, 4
      %v347 = vmul.u32 %v346, 18
      %v348 = vsub.s32 %v342, %v347
      %v349 = vsub.s32 0, %v348
      %v350 = vsel %vm340, %v349, %v348
      %vm351 = vcmp.lt.s32.totalorder %v235, 0
      %v352 = vsub.s32 0, %v235
      %v353 = vsel %vm351, %v352, %v235
      %v354 = vmul.u32.u64.compose %v353, 3817748708
      %v355 = vextract.low.u32 %v354
      %v356 = vextract.high.u32 %v354
      %v357 = vshrl.u32 %v356, 4
      %v358 = vmul.u32 %v357, 18
      %v359 = vsub.s32 %v353, %v358
      %v360 = vsub.s32 0, %v359
      %v361 = vsel %vm351, %v360, %v359
      %vm362 = vcmp.lt.s32.totalorder %v236, 0
      %v363 = vsub.s32 0, %v236
      %v364 = vsel %vm362, %v363, %v236
      %v365 = vmul.u32.u64.compose %v364, 3817748708
      %v366 = vextract.low.u32 %v365
      %v367 = vextract.high.u32 %v365
      %v368 = vshrl.u32 %v367, 4
      %v369 = vmul.u32 %v368, 18
      %v370 = vsub.s32 %v364, %v369
      %v371 = vsub.s32 0, %v370
      %v372 = vsel %vm362, %v371, %v370
      %vm373 = vcmp.lt.s32.totalorder %v237, 0
      %v374 = vsub.s32 0, %v237
      %v375 = vsel %vm373, %v374, %v237
      %v376 = vmul.u32.u64.compose %v375, 3817748708
      %v377 = vextract.low.u32 %v376
      %v378 = vextract.high.u32 %v376
      %v379 = vshrl.u32 %v378, 4
      %v380 = vmul.u32 %v379, 18
      %v381 = vsub.s32 %v375, %v380
      %v382 = vsub.s32 0, %v381
      %v383 = vsel %vm373, %v382, %v381
      %vm384 = vcmp.lt.s32.totalorder %v238, 0
      %v385 = vsub.s32 0, %v238
      %v386 = vsel %vm384, %v385, %v238
      %v387 = vmul.u32.u64.compose %v386, 3817748708
      %v388 = vextract.low.u32 %v387
      %v389 = vextract.high.u32 %v387
      %v390 = vshrl.u32 %v389, 4
      %v391 = vmul.u32 %v390, 18
      %v392 = vsub.s32 %v386, %v391
      %v393 = vsub.s32 0, %v392
      %v394 = vsel %vm384, %v393, %v392
      %vm395 = vcmp.lt.s32.totalorder %v239, 0
      %v396 = vsub.s32 0, %v239
      %v397 = vsel %vm395, %v396, %v239
      %v398 = vmul.u32.u64.compose %v397, 3817748708
      %v399 = vextract.low.u32 %v398
      %v400 = vextract.high.u32 %v398
      %v401 = vshrl.u32 %v400, 4
      %v402 = vmul.u32 %v401, 18
      %v403 = vsub.s32 %v397, %v402
      %v404 = vsub.s32 0, %v403
      %v405 = vsel %vm395, %v404, %v403
      %vm406 = vcmp.lt.s32.totalorder %v240, 0
      %v407 = vsub.s32 0, %v240
      %v408 = vsel %vm406, %v407, %v240
      %v409 = vmul.u32.u64.compose %v408, 3817748708
      %v410 = vextract.low.u32 %v409
      %v411 = vextract.high.u32 %v409
      %v412 = vshrl.u32 %v411, 4
      %v413 = vmul.u32 %v412, 18
      %v414 = vsub.s32 %v408, %v413
      %v415 = vsub.s32 0, %v414
      %v416 = vsel %vm406, %v415, %v414
      %vm417 = vcmp.lt.s32.totalorder %v241, 0
      %v418 = vsub.s32 0, %v241
      %v419 = vsel %vm417, %v418, %v241
      %v420 = vmul.u32.u64.compose %v419, 3817748708
      %v421 = vextract.low.u32 %v420
      %v422 = vextract.high.u32 %v420
      %v423 = vshrl.u32 %v422, 4
      %v424 = vmul.u32 %v423, 18
      %v425 = vsub.s32 %v419, %v424
      %v426 = vsub.s32 0, %v425
      %v427 = vsel %vm417, %v426, %v425
      %vm428 = vcmp.lt.s32.totalorder %v242, 0
      %v429 = vsub.s32 0, %v242
      %v430 = vsel %vm428, %v429, %v242
      %v431 = vmul.u32.u64.compose %v430, 3817748708
      %v432 = vextract.low.u32 %v431
      %v433 = vextract.high.u32 %v431
      %v434 = vshrl.u32 %v433, 4
      %v435 = vmul.u32 %v434, 18
      %v436 = vsub.s32 %v430, %v435
      %v437 = vsub.s32 0, %v436
      %v438 = vsel %vm428, %v437, %v436
      %vm439 = vcmp.lt.s32.totalorder %v243, 0
      %v440 = vsub.s32 0, %v243
      %v441 = vsel %vm439, %v440, %v243
      %v442 = vmul.u32.u64.compose %v441, 3817748708
      %v443 = vextract.low.u32 %v442
      %v444 = vextract.high.u32 %v442
      %v445 = vshrl.u32 %v444, 4
      %v446 = vmul.u32 %v445, 18
      %v447 = vsub.s32 %v441, %v446
      %v448 = vsub.s32 0, %v447
      %v449 = vsel %vm439, %v448, %v447
      %vm450 = vcmp.lt.s32.totalorder %v244, 0
      %v451 = vsub.s32 0, %v244
      %v452 = vsel %vm450, %v451, %v244
      %v453 = vmul.u32.u64.compose %v452, 3817748708
      %v454 = vextract.low.u32 %v453
      %v455 = vextract.high.u32 %v453
      %v456 = vshrl.u32 %v455, 4
      %v457 = vmul.u32 %v456, 18
      %v458 = vsub.s32 %v452, %v457
      %v459 = vsub.s32 0, %v458
      %v460 = vsel %vm450, %v459, %v458
      %vm461 = vcmp.lt.s32.totalorder %v245, 0
      %v462 = vsub.s32 0, %v245
      %v463 = vsel %vm461, %v462, %v245
      %v464 = vmul.u32.u64.compose %v463, 3817748708
      %v465 = vextract.low.u32 %v464
      %v466 = vextract.high.u32 %v464
      %v467 = vshrl.u32 %v466, 4
      %v468 = vmul.u32 %v467, 18
      %v469 = vsub.s32 %v463, %v468
      %v470 = vsub.s32 0, %v469
      %v471 = vsel %vm461, %v470, %v469
      %vm472 = vcmp.lt.s32.totalorder %v246, 0
      %v473 = vsub.s32 0, %v246
      %v474 = vsel %vm472, %v473, %v246
      %v475 = vmul.u32.u64.compose %v474, 3817748708
      %v476 = vextract.low.u32 %v475
      %v477 = vextract.high.u32 %v475
      %v478 = vshrl.u32 %v477, 4
      %v479 = vmul.u32 %v478, 18
      %v480 = vsub.s32 %v474, %v479
      %v481 = vsub.s32 0, %v480
      %v482 = vsel %vm472, %v481, %v480
      %vm483 = vcmp.lt.s32.totalorder %v247, 0
      %v484 = vsub.s32 0, %v247
      %v485 = vsel %vm483, %v484, %v247
      %v486 = vmul.u32.u64.compose %v485, 3817748708
      %v487 = vextract.low.u32 %v486
      %v488 = vextract.high.u32 %v486
      %v489 = vshrl.u32 %v488, 4
      %v490 = vmul.u32 %v489, 18
      %v491 = vsub.s32 %v485, %v490
      %v492 = vsub.s32 0, %v491
      %v493 = vsel %vm483, %v492, %v491
      %vm494 = vcmp.lt.s32.totalorder %v248, 0
      %v495 = vsub.s32 0, %v248
      %v496 = vsel %vm494, %v495, %v248
      %v497 = vmul.u32.u64.compose %v496, 3817748708
      %v498 = vextract.low.u32 %v497
      %v499 = vextract.high.u32 %v497
      %v500 = vshrl.u32 %v499, 4
      %v501 = vmul.u32 %v500, 18
      %v502 = vsub.s32 %v496, %v501
      %v503 = vsub.s32 0, %v502
      %v504 = vsel %vm494, %v503, %v502
      %vm505 = vcmp.lt.s32.totalorder %v249, 0
      %v506 = vsub.s32 0, %v249
      %v507 = vsel %vm505, %v506, %v249
      %v508 = vmul.u32.u64.compose %v507, 3817748708
      %v509 = vextract.low.u32 %v508
      %v510 = vextract.high.u32 %v508
      %v511 = vshrl.u32 %v510, 4
      %v512 = vmul.u32 %v511, 18
      %v513 = vsub.s32 %v507, %v512
      %v514 = vsub.s32 0, %v513
      %v515 = vsel %vm505, %v514, %v513
      %vm516 = vcmp.lt.s32.totalorder %v250, 0
      %v517 = vsub.s32 0, %v250
      %v518 = vsel %vm516, %v517, %v250
      %v519 = vmul.u32.u64.compose %v518, 3817748708
      %v520 = vextract.low.u32 %v519
      %v521 = vextract.high.u32 %v519
      %v522 = vshrl.u32 %v521, 4
      %v523 = vmul.u32 %v522, 18
      %v524 = vsub.s32 %v518, %v523
      %v525 = vsub.s32 0, %v524
      %v526 = vsel %vm516, %v525, %v524
      %vm527 = vcmp.lt.s32.totalorder %v251, 0
      %v528 = vsub.s32 0, %v251
      %v529 = vsel %vm527, %v528, %v251
      %v530 = vmul.u32.u64.compose %v529, 3817748708
      %v531 = vextract.low.u32 %v530
      %v532 = vextract.high.u32 %v530
      %v533 = vshrl.u32 %v532, 4
      %v534 = vmul.u32 %v533, 18
      %v535 = vsub.s32 %v529, %v534
      %v536 = vsub.s32 0, %v535
      %v537 = vsel %vm527, %v536, %v535
      %vm538 = vcmp.lt.s32.totalorder %v252, 0
      %v539 = vsub.s32 0, %v252
      %v540 = vsel %vm538, %v539, %v252
      %v541 = vmul.u32.u64.compose %v540, 3817748708
      %v542 = vextract.low.u32 %v541
      %v543 = vextract.high.u32 %v541
      %v544 = vshrl.u32 %v543, 4
      %v545 = vmul.u32 %v544, 18
      %v546 = vsub.s32 %v540, %v545
      %v547 = vsub.s32 0, %v546
      %v548 = vsel %vm538, %v547, %v546
      %vm549 = vcmp.lt.s32.totalorder %v253, 0
      %v550 = vsub.s32 0, %v253
      %v551 = vsel %vm549, %v550, %v253
      %v552 = vmul.u32.u64.compose %v551, 3817748708
      %v553 = vextract.low.u32 %v552
      %v554 = vextract.high.u32 %v552
      %v555 = vshrl.u32 %v554, 4
      %v556 = vmul.u32 %v555, 18
      %v557 = vsub.s32 %v551, %v556
      %v558 = vsub.s32 0, %v557
      %v559 = vsel %vm549, %v558, %v557
      %vm560 = vcmp.lt.s32.totalorder %v254, 0
      %v561 = vsub.s32 0, %v254
      %v562 = vsel %vm560, %v561, %v254
      %v563 = vmul.u32.u64.compose %v562, 3817748708
      %v564 = vextract.low.u32 %v563
      %v565 = vextract.high.u32 %v563
      %v566 = vshrl.u32 %v565, 4
      %v567 = vmul.u32 %v566, 18
      %v568 = vsub.s32 %v562, %v567
      %v569 = vsub.s32 0, %v568
      %v570 = vsel %vm560, %v569, %v568
      %vm571 = vcmp.lt.s32.totalorder %v255, 0
      %v572 = vsub.s32 0, %v255
      %v573 = vsel %vm571, %v572, %v255
      %v574 = vmul.u32.u64.compose %v573, 3817748708
      %v575 = vextract.low.u32 %v574
      %v576 = vextract.high.u32 %v574
      %v577 = vshrl.u32 %v576, 4
      %v578 = vmul.u32 %v577, 18
      %v579 = vsub.s32 %v573, %v578
      %v580 = vsub.s32 0, %v579
      %v581 = vsel %vm571, %v580, %v579
      %vm582 = vcmp.lt.s32.totalorder %v256, 0
      %v583 = vsub.s32 0, %v256
      %v584 = vsel %vm582, %v583, %v256
      %v585 = vmul.u32.u64.compose %v584, 3817748708
      %v586 = vextract.low.u32 %v585
      %v587 = vextract.high.u32 %v585
      %v588 = vshrl.u32 %v587, 4
      %v589 = vmul.u32 %v588, 18
      %v590 = vsub.s32 %v584, %v589
      %v591 = vsub.s32 0, %v590
      %v592 = vsel %vm582, %v591, %v590
      %vm593 = vcmp.lt.s32.totalorder %v257, 0
      %v594 = vsub.s32 0, %v257
      %v595 = vsel %vm593, %v594, %v257
      %v596 = vmul.u32.u64.compose %v595, 3817748708
      %v597 = vextract.low.u32 %v596
      %v598 = vextract.high.u32 %v596
      %v599 = vshrl.u32 %v598, 4
      %v600 = vmul.u32 %v599, 18
      %v601 = vsub.s32 %v595, %v600
      %v602 = vsub.s32 0, %v601
      %v603 = vsel %vm593, %v602, %v601
      %vm604 = vcmp.lt.s32.totalorder %v258, 0
      %v605 = vsub.s32 0, %v258
      %v606 = vsel %vm604, %v605, %v258
      %v607 = vmul.u32.u64.compose %v606, 3817748708
      %v608 = vextract.low.u32 %v607
      %v609 = vextract.high.u32 %v607
      %v610 = vshrl.u32 %v609, 4
      %v611 = vmul.u32 %v610, 18
      %v612 = vsub.s32 %v606, %v611
      %v613 = vsub.s32 0, %v612
      %v614 = vsel %vm604, %v613, %v612
      %vm615 = vcmp.lt.s32.totalorder %v259, 0
      %v616 = vsub.s32 0, %v259
      %v617 = vsel %vm615, %v616, %v259
      %v618 = vmul.u32.u64.compose %v617, 3817748708
      %v619 = vextract.low.u32 %v618
      %v620 = vextract.high.u32 %v618
      %v621 = vshrl.u32 %v620, 4
      %v622 = vmul.u32 %v621, 18
      %v623 = vsub.s32 %v617, %v622
      %v624 = vsub.s32 0, %v623
      %v625 = vsel %vm615, %v624, %v623
      %vm626 = vcmp.lt.s32.totalorder %v260, 0
      %v627 = vsub.s32 0, %v260
      %v628 = vsel %vm626, %v627, %v260
      %v629 = vmul.u32.u64.compose %v628, 3817748708
      %v630 = vextract.low.u32 %v629
      %v631 = vextract.high.u32 %v629
      %v632 = vshrl.u32 %v631, 4
      %v633 = vmul.u32 %v632, 18
      %v634 = vsub.s32 %v628, %v633
      %v635 = vsub.s32 0, %v634
      %v636 = vsel %vm626, %v635, %v634
      %vm637 = vcmp.lt.s32.totalorder %v261, 0
      %v638 = vsub.s32 0, %v261
      %v639 = vsel %vm637, %v638, %v261
      %v640 = vmul.u32.u64.compose %v639, 3817748708
      %v641 = vextract.low.u32 %v640
      %v642 = vextract.high.u32 %v640
      %v643 = vshrl.u32 %v642, 4
      %v644 = vmul.u32 %v643, 18
      %v645 = vsub.s32 %v639, %v644
      %v646 = vsub.s32 0, %v645
      %v647 = vsel %vm637, %v646, %v645
      %vm648 = vcmp.lt.s32.totalorder %v262, 0
      %v649 = vsub.s32 0, %v262
      %v650 = vsel %vm648, %v649, %v262
      %v651 = vmul.u32.u64.compose %v650, 3817748708
      %v652 = vextract.low.u32 %v651
      %v653 = vextract.high.u32 %v651
      %v654 = vshrl.u32 %v653, 4
      %v655 = vmul.u32 %v654, 18
      %v656 = vsub.s32 %v650, %v655
      %v657 = vsub.s32 0, %v656
      %v658 = vsel %vm648, %v657, %v656
      %vm659 = vcmp.ne.s32.totalorder %v273, 0
      %vm660 = vcmp.ne.s32.totalorder %v284, 0
      %vm661 = vcmp.ne.s32.totalorder %v295, 0
      %vm662 = vcmp.ne.s32.totalorder %v306, 0
      %vm663 = vcmp.ne.s32.totalorder %v317, 0
      %vm664 = vcmp.ne.s32.totalorder %v328, 0
      %vm665 = vcmp.ne.s32.totalorder %v339, 0
      %vm666 = vcmp.ne.s32.totalorder %v350, 0
      %vm667 = vcmp.ne.s32.totalorder %v361, 0
      %vm668 = vcmp.ne.s32.totalorder %v372, 0
      %vm669 = vcmp.ne.s32.totalorder %v383, 0
      %vm670 = vcmp.ne.s32.totalorder %v394, 0
      %vm671 = vcmp.ne.s32.totalorder %v405, 0
      %vm672 = vcmp.ne.s32.totalorder %v416, 0
      %vm673 = vcmp.ne.s32.totalorder %v427, 0
      %vm674 = vcmp.ne.s32.totalorder %v438, 0
      %vm675 = vcmp.ne.s32.totalorder %v449, 0
      %vm676 = vcmp.ne.s32.totalorder %v460, 0
      %vm677 = vcmp.ne.s32.totalorder %v471, 0
      %vm678 = vcmp.ne.s32.totalorder %v482, 0
      %vm679 = vcmp.ne.s32.totalorder %v493, 0
      %vm680 = vcmp.ne.s32.totalorder %v504, 0
      %vm681 = vcmp.ne.s32.totalorder %v515, 0
      %vm682 = vcmp.ne.s32.totalorder %v526, 0
      %vm683 = vcmp.ne.s32.totalorder %v537, 0
      %vm684 = vcmp.ne.s32.totalorder %v548, 0
      %vm685 = vcmp.ne.s32.totalorder %v559, 0
      %vm686 = vcmp.ne.s32.totalorder %v570, 0
      %vm687 = vcmp.ne.s32.totalorder %v581, 0
      %vm688 = vcmp.ne.s32.totalorder %v592, 0
      %vm689 = vcmp.ne.s32.totalorder %v603, 0
      %vm690 = vcmp.ne.s32.totalorder %v614, 0
      %vm691 = vcmp.ne.s32.totalorder %v625, 0
      %vm692 = vcmp.ne.s32.totalorder %v636, 0
      %vm693 = vcmp.ne.s32.totalorder %v647, 0
      %vm694 = vcmp.ne.s32.totalorder %v658, 0
      %vm695 = vcmp.lt.s32.totalorder %v273, 0
      %vm696 = vcmp.lt.s32.totalorder %v284, 0
      %vm697 = vcmp.lt.s32.totalorder %v295, 0
      %vm698 = vcmp.lt.s32.totalorder %v306, 0
      %vm699 = vcmp.lt.s32.totalorder %v317, 0
      %vm700 = vcmp.lt.s32.totalorder %v328, 0
      %vm701 = vcmp.lt.s32.totalorder %v339, 0
      %vm702 = vcmp.lt.s32.totalorder %v350, 0
      %vm703 = vcmp.lt.s32.totalorder %v361, 0
      %vm704 = vcmp.lt.s32.totalorder %v372, 0
      %vm705 = vcmp.lt.s32.totalorder %v383, 0
      %vm706 = vcmp.lt.s32.totalorder %v394, 0
      %vm707 = vcmp.lt.s32.totalorder %v405, 0
      %vm708 = vcmp.lt.s32.totalorder %v416, 0
      %vm709 = vcmp.lt.s32.totalorder %v427, 0
      %vm710 = vcmp.lt.s32.totalorder %v438, 0
      %vm711 = vcmp.lt.s32.totalorder %v449, 0
      %vm712 = vcmp.lt.s32.totalorder %v460, 0
      %vm713 = vcmp.lt.s32.totalorder %v471, 0
      %vm714 = vcmp.lt.s32.totalorder %v482, 0
      %vm715 = vcmp.lt.s32.totalorder %v493, 0
      %vm716 = vcmp.lt.s32.totalorder %v504, 0
      %vm717 = vcmp.lt.s32.totalorder %v515, 0
      %vm718 = vcmp.lt.s32.totalorder %v526, 0
      %vm719 = vcmp.lt.s32.totalorder %v537, 0
      %vm720 = vcmp.lt.s32.totalorder %v548, 0
      %vm721 = vcmp.lt.s32.totalorder %v559, 0
      %vm722 = vcmp.lt.s32.totalorder %v570, 0
      %vm723 = vcmp.lt.s32.totalorder %v581, 0
      %vm724 = vcmp.lt.s32.totalorder %v592, 0
      %vm725 = vcmp.lt.s32.totalorder %v603, 0
      %vm726 = vcmp.lt.s32.totalorder %v614, 0
      %vm727 = vcmp.lt.s32.totalorder %v625, 0
      %vm728 = vcmp.lt.s32.totalorder %v636, 0
      %vm729 = vcmp.lt.s32.totalorder %v647, 0
      %vm730 = vcmp.lt.s32.totalorder %v658, 0
      %vm731 = vmand %vm695, %vm659
      %vm732 = vmand %vm696, %vm660
      %vm733 = vmand %vm697, %vm661
      %vm734 = vmand %vm698, %vm662
      %vm735 = vmand %vm699, %vm663
      %vm736 = vmand %vm700, %vm664
      %vm737 = vmand %vm701, %vm665
      %vm738 = vmand %vm702, %vm666
      %vm739 = vmand %vm703, %vm667
      %vm740 = vmand %vm704, %vm668
      %vm741 = vmand %vm705, %vm669
      %vm742 = vmand %vm706, %vm670
      %vm743 = vmand %vm707, %vm671
      %vm744 = vmand %vm708, %vm672
      %vm745 = vmand %vm709, %vm673
      %vm746 = vmand %vm710, %vm674
      %vm747 = vmand %vm711, %vm675
      %vm748 = vmand %vm712, %vm676
      %vm749 = vmand %vm713, %vm677
      %vm750 = vmand %vm714, %vm678
      %vm751 = vmand %vm715, %vm679
      %vm752 = vmand %vm716, %vm680
      %vm753 = vmand %vm717, %vm681
      %vm754 = vmand %vm718, %vm682
      %vm755 = vmand %vm719, %vm683
      %vm756 = vmand %vm720, %vm684
      %vm757 = vmand %vm721, %vm685
      %vm758 = vmand %vm722, %vm686
      %vm759 = vmand %vm723, %vm687
      %vm760 = vmand %vm724, %vm688
      %vm761 = vmand %vm725, %vm689
      %vm762 = vmand %vm726, %vm690
      %vm763 = vmand %vm727, %vm691
      %vm764 = vmand %vm728, %vm692
      %vm765 = vmand %vm729, %vm693
      %vm766 = vmand %vm730, %vm694
      %v767 = vadd.s32 %v273, 18
      %v768 = vadd.s32 %v284, 18
      %v769 = vadd.s32 %v295, 18
      %v770 = vadd.s32 %v306, 18
      %v771 = vadd.s32 %v317, 18
      %v772 = vadd.s32 %v328, 18
      %v773 = vadd.s32 %v339, 18
      %v774 = vadd.s32 %v350, 18
      %v775 = vadd.s32 %v361, 18
      %v776 = vadd.s32 %v372, 18
      %v777 = vadd.s32 %v383, 18
      %v778 = vadd.s32 %v394, 18
      %v779 = vadd.s32 %v405, 18
      %v780 = vadd.s32 %v416, 18
      %v781 = vadd.s32 %v427, 18
      %v782 = vadd.s32 %v438, 18
      %v783 = vadd.s32 %v449, 18
      %v784 = vadd.s32 %v460, 18
      %v785 = vadd.s32 %v471, 18
      %v786 = vadd.s32 %v482, 18
      %v787 = vadd.s32 %v493, 18
      %v788 = vadd.s32 %v504, 18
      %v789 = vadd.s32 %v515, 18
      %v790 = vadd.s32 %v526, 18
      %v791 = vadd.s32 %v537, 18
      %v792 = vadd.s32 %v548, 18
      %v793 = vadd.s32 %v559, 18
      %v794 = vadd.s32 %v570, 18
      %v795 = vadd.s32 %v581, 18
      %v796 = vadd.s32 %v592, 18
      %v797 = vadd.s32 %v603, 18
      %v798 = vadd.s32 %v614, 18
      %v799 = vadd.s32 %v625, 18
      %v800 = vadd.s32 %v636, 18
      %v801 = vadd.s32 %v647, 18
      %v802 = vadd.s32 %v658, 18
      %v803 = vsel %vm731, %v767, %v273
      %v804 = vsel %vm732, %v768, %v284
      %v805 = vsel %vm733, %v769, %v295
      %v806 = vsel %vm734, %v770, %v306
      %v807 = vsel %vm735, %v771, %v317
      %v808 = vsel %vm736, %v772, %v328
      %v809 = vsel %vm737, %v773, %v339
      %v810 = vsel %vm738, %v774, %v350
      %v811 = vsel %vm739, %v775, %v361
      %v812 = vsel %vm740, %v776, %v372
      %v813 = vsel %vm741, %v777, %v383
      %v814 = vsel %vm742, %v778, %v394
      %v815 = vsel %vm743, %v779, %v405
      %v816 = vsel %vm744, %v780, %v416
      %v817 = vsel %vm745, %v781, %v427
      %v818 = vsel %vm746, %v782, %v438
      %v819 = vsel %vm747, %v783, %v449
      %v820 = vsel %vm748, %v784, %v460
      %v821 = vsel %vm749, %v785, %v471
      %v822 = vsel %vm750, %v786, %v482
      %v823 = vsel %vm751, %v787, %v493
      %v824 = vsel %vm752, %v788, %v504
      %v825 = vsel %vm753, %v789, %v515
      %v826 = vsel %vm754, %v790, %v526
      %v827 = vsel %vm755, %v791, %v537
      %v828 = vsel %vm756, %v792, %v548
      %v829 = vsel %vm757, %v793, %v559
      %v830 = vsel %vm758, %v794, %v570
      %v831 = vsel %vm759, %v795, %v581
      %v832 = vsel %vm760, %v796, %v592
      %v833 = vsel %vm761, %v797, %v603
      %v834 = vsel %vm762, %v798, %v614
      %v835 = vsel %vm763, %v799, %v625
      %v836 = vsel %vm764, %v800, %v636
      %v837 = vsel %vm765, %v801, %v647
      %v838 = vsel %vm766, %v802, %v658
      %vm839 = vcmp.lt.s32.totalorder %v803, 16
      %vm840 = vcmp.lt.s32.totalorder %v804, 16
      %vm841 = vcmp.lt.s32.totalorder %v805, 16
      %vm842 = vcmp.lt.s32.totalorder %v806, 16
      %vm843 = vcmp.lt.s32.totalorder %v807, 16
      %vm844 = vcmp.lt.s32.totalorder %v808, 16
      %vm845 = vcmp.lt.s32.totalorder %v809, 16
      %vm846 = vcmp.lt.s32.totalorder %v810, 16
      %vm847 = vcmp.lt.s32.totalorder %v811, 16
      %vm848 = vcmp.lt.s32.totalorder %v812, 16
      %vm849 = vcmp.lt.s32.totalorder %v813, 16
      %vm850 = vcmp.lt.s32.totalorder %v814, 16
      %vm851 = vcmp.lt.s32.totalorder %v815, 16
      %vm852 = vcmp.lt.s32.totalorder %v816, 16
      %vm853 = vcmp.lt.s32.totalorder %v817, 16
      %vm854 = vcmp.lt.s32.totalorder %v818, 16
      %vm855 = vcmp.lt.s32.totalorder %v819, 16
      %vm856 = vcmp.lt.s32.totalorder %v820, 16
      %vm857 = vcmp.lt.s32.totalorder %v821, 16
      %vm858 = vcmp.lt.s32.totalorder %v822, 16
      %vm859 = vcmp.lt.s32.totalorder %v823, 16
      %vm860 = vcmp.lt.s32.totalorder %v824, 16
      %vm861 = vcmp.lt.s32.totalorder %v825, 16
      %vm862 = vcmp.lt.s32.totalorder %v826, 16
      %vm863 = vcmp.lt.s32.totalorder %v827, 16
      %vm864 = vcmp.lt.s32.totalorder %v828, 16
      %vm865 = vcmp.lt.s32.totalorder %v829, 16
      %vm866 = vcmp.lt.s32.totalorder %v830, 16
      %vm867 = vcmp.lt.s32.totalorder %v831, 16
      %vm868 = vcmp.lt.s32.totalorder %v832, 16
      %vm869 = vcmp.lt.s32.totalorder %v833, 16
      %vm870 = vcmp.lt.s32.totalorder %v834, 16
      %vm871 = vcmp.lt.s32.totalorder %v835, 16
      %vm872 = vcmp.lt.s32.totalorder %v836, 16
      %vm873 = vcmp.lt.s32.totalorder %v837, 16
      %vm874 = vcmp.lt.s32.totalorder %v838, 16
      %v875 = vld [vmem:[%s219] sm:$0xf]
      %v876 = vld [vmem:[%s219 + $0x4] sm:$0xf]
      %v877 = vld [vmem:[%s219 + $0x8] sm:$0xf]
      %v878 = vld [vmem:[%s219 + $0xc] sm:$0xf]
      %v879 = vld [vmem:[%s219 + $0x10] sm:$0xf]
      %v880 = vld [vmem:[%s219 + $0x14] sm:$0xf]
      %v881 = vld [vmem:[%s219 + $0x18] sm:$0xf]
      %v882 = vld [vmem:[%s219 + $0x1c] sm:$0xf]
      %v883 = vld [vmem:[%s219 + $0x20] sm:$0xf]
      %v884 = vld [vmem:[%s219 + $0x24] sm:$0xf]
      %v885 = vld [vmem:[%s219 + $0x28] sm:$0xf]
      %v886 = vld [vmem:[%s219 + $0x2c] sm:$0xf]
      %v887 = vld [vmem:[%s219 + $0x30] sm:$0xf]
      %v888 = vld [vmem:[%s219 + $0x34] sm:$0xf]
      %v889 = vld [vmem:[%s219 + $0x38] sm:$0xf]
      %v890 = vld [vmem:[%s219 + $0x3c] sm:$0xf]
      %v891 = vld [vmem:[%s219 + $0x40] sm:$0xf]
      %v892 = vld [vmem:[%s219 + $0x44] sm:$0xf]
      %v893 = vld [vmem:[%s219 + $0x48] sm:$0xf]
      %v894 = vld [vmem:[%s219 + $0x4c] sm:$0xf]
      %v895 = vld [vmem:[%s219 + $0x50] sm:$0xf]
      %v896 = vld [vmem:[%s219 + $0x54] sm:$0xf]
      %v897 = vld [vmem:[%s219 + $0x58] sm:$0xf]
      %v898 = vld [vmem:[%s219 + $0x5c] sm:$0xf]
      %v899 = vld [vmem:[%s219 + $0x60] sm:$0xf]
      %v900 = vld [vmem:[%s219 + $0x64] sm:$0xf]
      %v901 = vld [vmem:[%s219 + $0x68] sm:$0xf]
      %v902 = vld [vmem:[%s219 + $0x6c] sm:$0xf]
      %v903 = vld [vmem:[%s219 + $0x70] sm:$0xf]
      %v904 = vld [vmem:[%s219 + $0x74] sm:$0xf]
      %v905 = vld [vmem:[%s219 + $0x78] sm:$0xf]
      %v906 = vld [vmem:[%s219 + $0x7c] sm:$0xf]
      %v907 = vld [vmem:[%s219 + $0x80] sm:$0xf]
      %v908 = vld [vmem:[%s219 + $0x84] sm:$0xf]
      %v909 = vld [vmem:[%s219 + $0x88] sm:$0xf]
      %v910 = vld [vmem:[%s219 + $0x8c] sm:$0xf]
      %v911 = vld [vmem:[%s1] sm:$0x3]
      %v912 = vld [vmem:[%s219 + $0x90] sm:$0x1]
      %s913 = scalar_lea.vmem %s1, 2
      %v914 = vld [vmem:[%s913] sm:$0x3]
      %v952 = vunpack.c.l.b16 %v875
      %v953 = vunpack.c.l.b16 %v876
      %v954 = vunpack.c.l.b16 %v877
      %v955 = vunpack.c.l.b16 %v878
      %v956 = vunpack.c.l.b16 %v879
      %v957 = vunpack.c.l.b16 %v880
      %v958 = vunpack.c.l.b16 %v881
      %v959 = vunpack.c.l.b16 %v882
      %v960 = vunpack.c.l.b16 %v883
      %v961 = vunpack.c.l.b16 %v884
      %v962 = vunpack.c.l.b16 %v885
      %v963 = vunpack.c.l.b16 %v886
      %v964 = vunpack.c.l.b16 %v887
      %v965 = vunpack.c.l.b16 %v888
      %v966 = vunpack.c.l.b16 %v889
      %v967 = vunpack.c.l.b16 %v890
      %v968 = vunpack.c.l.b16 %v891
      %v969 = vunpack.c.l.b16 %v892
      %v970 = vunpack.c.l.b16 %v893
      %v971 = vunpack.c.l.b16 %v894
      %v972 = vunpack.c.l.b16 %v895
      %v973 = vunpack.c.l.b16 %v896
      %v974 = vunpack.c.l.b16 %v897
      %v975 = vunpack.c.l.b16 %v898
      %v976 = vunpack.c.l.b16 %v899
      %v977 = vunpack.c.l.b16 %v900
      %v978 = vunpack.c.l.b16 %v901
      %v979 = vunpack.c.l.b16 %v902
      %v980 = vunpack.c.l.b16 %v903
      %v981 = vunpack.c.l.b16 %v904
      %v982 = vunpack.c.l.b16 %v905
      %v983 = vunpack.c.l.b16 %v906
      %v984 = vunpack.c.l.b16 %v907
      %v985 = vunpack.c.l.b16 %v908
      %v986 = vunpack.c.l.b16 %v909
      %v987 = vunpack.c.l.b16 %v910
      %v988 = vunpack.c.l.b16 %v912
      %v989 = vpack.c.b16 %v953, %v952
      %v990 = vpack.c.b16 %v955, %v954
      %v991 = vpack.c.b16 %v957, %v956
      %v992 = vpack.c.b16 %v959, %v958
      %v993 = vpack.c.b16 %v961, %v960
      %v994 = vpack.c.b16 %v963, %v962
      %v995 = vpack.c.b16 %v965, %v964
      %v996 = vpack.c.b16 %v967, %v966
      %v997 = vpack.c.b16 %v969, %v968
      %v998 = vpack.c.b16 %v971, %v970
      %v999 = vpack.c.b16 %v973, %v972
      %v1000 = vpack.c.b16 %v975, %v974
      %v1001 = vpack.c.b16 %v977, %v976
      %v1002 = vpack.c.b16 %v979, %v978
      %v1003 = vpack.c.b16 %v981, %v980
      %v1004 = vpack.c.b16 %v983, %v982
      %v1005 = vpack.c.b16 %v985, %v984
      %v1006 = vpack.c.b16 %v987, %v986
      %v1007 = vpack.c.b16 %v988, %v988
      %vm1008 = vsmask.f32 7424
      %v1010 = vshrl.u32 %v989, 16
      %v1012 = vshll.u32 %v989, 16
      %v1014 = vrot.slane %v1012, 1
      %v1015 = vor.u32 %v1010, %v1014
      %v1017 = vshll.u32 %v990, 16
      %v1019 = vrot.slane %v1017, 1
      %v1020 = vsel %vm1008, %v1015, %v1019
      %v1021 = vshrl.u32 %v990, 16
      %v1023 = vor.u32 %v1021, %v1019
      %v1025 = vshll.u32 %v991, 16
      %v1027 = vrot.slane %v1025, 1
      %v1028 = vsel %vm1008, %v1023, %v1027
      %v1029 = vshrl.u32 %v991, 16
      %v1031 = vor.u32 %v1029, %v1027
      %v1033 = vshll.u32 %v992, 16
      %v1035 = vrot.slane %v1033, 1
      %v1036 = vsel %vm1008, %v1031, %v1035
      %v1037 = vshrl.u32 %v992, 16
      %v1039 = vor.u32 %v1037, %v1035
      %v1041 = vshll.u32 %v993, 16
      %v1043 = vrot.slane %v1041, 1
      %v1044 = vsel %vm1008, %v1039, %v1043
      %v1045 = vshrl.u32 %v993, 16
      %v1047 = vor.u32 %v1045, %v1043
      %v1049 = vshll.u32 %v994, 16
      %v1051 = vrot.slane %v1049, 1
      %v1052 = vsel %vm1008, %v1047, %v1051
      %v1053 = vshrl.u32 %v994, 16
      %v1055 = vor.u32 %v1053, %v1051
      %v1057 = vshll.u32 %v995, 16
      %v1059 = vrot.slane %v1057, 1
      %v1060 = vsel %vm1008, %v1055, %v1059
      %v1061 = vshrl.u32 %v995, 16
      %v1063 = vor.u32 %v1061, %v1059
      %v1065 = vshll.u32 %v996, 16
      %v1067 = vrot.slane %v1065, 1
      %v1068 = vsel %vm1008, %v1063, %v1067
      %v1069 = vshrl.u32 %v996, 16
      %v1071 = vor.u32 %v1069, %v1067
      %v1073 = vshll.u32 %v997, 16
      %v1075 = vrot.slane %v1073, 1
      %v1076 = vsel %vm1008, %v1071, %v1075
      %v1077 = vshrl.u32 %v997, 16
      %v1079 = vor.u32 %v1077, %v1075
      %v1081 = vshll.u32 %v998, 16
      %v1083 = vrot.slane %v1081, 1
      %v1084 = vsel %vm1008, %v1079, %v1083
      %v1085 = vshrl.u32 %v998, 16
      %v1087 = vor.u32 %v1085, %v1083
      %v1089 = vshll.u32 %v999, 16
      %v1091 = vrot.slane %v1089, 1
      %v1092 = vsel %vm1008, %v1087, %v1091
      %v1093 = vshrl.u32 %v999, 16
      %v1095 = vor.u32 %v1093, %v1091
      %v1097 = vshll.u32 %v1000, 16
      %v1099 = vrot.slane %v1097, 1
      %v1100 = vsel %vm1008, %v1095, %v1099
      %v1101 = vshrl.u32 %v1000, 16
      %v1103 = vor.u32 %v1101, %v1099
      %v1105 = vshll.u32 %v1001, 16
      %v1107 = vrot.slane %v1105, 1
      %v1108 = vsel %vm1008, %v1103, %v1107
      %v1109 = vshrl.u32 %v1001, 16
      %v1111 = vor.u32 %v1109, %v1107
      %v1113 = vshll.u32 %v1002, 16
      %v1115 = vrot.slane %v1113, 1
      %v1116 = vsel %vm1008, %v1111, %v1115
      %v1117 = vshrl.u32 %v1002, 16
      %v1119 = vor.u32 %v1117, %v1115
      %v1121 = vshll.u32 %v1003, 16
      %v1123 = vrot.slane %v1121, 1
      %v1124 = vsel %vm1008, %v1119, %v1123
      %v1125 = vshrl.u32 %v1003, 16
      %v1127 = vor.u32 %v1125, %v1123
      %v1129 = vshll.u32 %v1004, 16
      %v1131 = vrot.slane %v1129, 1
      %v1132 = vsel %vm1008, %v1127, %v1131
      %v1133 = vshrl.u32 %v1004, 16
      %v1135 = vor.u32 %v1133, %v1131
      %v1137 = vshll.u32 %v1005, 16
      %v1139 = vrot.slane %v1137, 1
      %v1140 = vsel %vm1008, %v1135, %v1139
      %v1141 = vshrl.u32 %v1005, 16
      %v1143 = vor.u32 %v1141, %v1139
      %v1145 = vshll.u32 %v1006, 16
      %v1147 = vrot.slane %v1145, 1
      %v1148 = vsel %vm1008, %v1143, %v1147
      %v1149 = vshrl.u32 %v1006, 16
      %v1151 = vor.u32 %v1149, %v1147
      %v1153 = vshll.u32 %v1007, 16
      %v1155 = vrot.slane %v1153, 1
      %v1156 = vsel %vm1008, %v1151, %v1155
      %vm1157 = vcmask 31744
      %v1159 = vsel %vm1157, %v1020, 0
      %v1162 = vsel %vm1157, %v1028, 0
      %v1165 = vsel %vm1157, %v1036, 0
      %v1168 = vsel %vm1157, %v1044, 0
      %v1171 = vsel %vm1157, %v1052, 0
      %v1174 = vsel %vm1157, %v1060, 0
      %v1177 = vsel %vm1157, %v1068, 0
      %v1180 = vsel %vm1157, %v1076, 0
      %v1183 = vsel %vm1157, %v1084, 0
      %v1186 = vsel %vm1157, %v1092, 0
      %v1189 = vsel %vm1157, %v1100, 0
      %v1192 = vsel %vm1157, %v1108, 0
      %v1195 = vsel %vm1157, %v1116, 0
      %v1198 = vsel %vm1157, %v1124, 0
      %v1201 = vsel %vm1157, %v1132, 0
      %v1204 = vsel %vm1157, %v1140, 0
      %v1207 = vsel %vm1157, %v1148, 0
      %v1210 = vsel %vm1157, %v1156, 0
      %vm1212 = vcmask 1041408
      %v1214 = vsel %vm1212, %v914, 0
      %1216 = vmatprep.subr.bf16.mxu0 0
      %1217 = vmatpush1.bf16.msra.mxu0 %v1214
      %1218 = vmatprep.subr.bf16.mxu0 0
      %1219 = vmatpush1.bf16.msra.mxu0 0
      %1220 = vmatprep.subr.bf16.mxu0 0
      %1221 = vmatpush1.bf16.msra.mxu0 0
      %1222 = vmatprep.subr.bf16.mxu0 0
      %1223 = vmatpush1.bf16.msra.mxu0 0
      %1224 = vmatprep.subr.bf16.mxu0 0
      %1225 = vmatpush1.bf16.msra.mxu0 0
      %1226 = vmatprep.subr.bf16.mxu0 0
      %1227 = vmatpush1.bf16.msra.mxu0 0
      %1228 = vmatprep.subr.bf16.mxu0 0
      %1229 = vmatpush1.bf16.msra.mxu0 0
      %1230 = vmatprep.subr.bf16.mxu0 0
      %1231 = vmatpush1.bf16.msra.mxu0 0
      %1232 = vmatprep.subr.bf16.mxu0 0
      %1233 = vmatpush1.bf16.msra.mxu0 0
      %1234 = vmatprep.subr.bf16.mxu0 0
      %1235 = vmatpush1.bf16.msra.mxu0 0
      %1236 = vmatprep.subr.bf16.mxu0 0
      %1237 = vmatpush1.bf16.msra.mxu0 0
      %1238 = vmatprep.subr.bf16.mxu0 0
      %1239 = vmatpush1.bf16.msra.mxu0 0
      %1240 = vmatprep.subr.bf16.mxu0 0
      %1241 = vmatpush1.bf16.msra.mxu0 0
      %1242 = vmatprep.subr.bf16.mxu0 0
      %1243 = vmatpush1.bf16.msra.mxu0 0
      %1244 = vmatprep.subr.bf16.mxu0 0
      %1245 = vmatpush1.bf16.msra.mxu0 0
      %1246 = vmatprep.subr.bf16.mxu0 0
      %1247 = vmatpush1.bf16.msra.mxu0 0
      %1248 = vmatprep.mubr.bf16.mxu0 0
      %1249 = vmatmul.mubr.bf16.gmra.mrb[0].mxu0 %v1159
      %v1250 = vpop.f32.mrb[0].mxu0
      %v1251 = vadd.f32 0.0, %v1250
      %v1252 = vpop.f32.mrb[0].mxu0
      %v1253 = vpop.f32.mrb[0].mxu0
      %v1254 = vadd.f32 0.0, %v1253
      %v1255 = vpop.f32.mrb[0].mxu0
      %1256 = vmatprep.mubr.bf16.mxu0 0
      %1257 = vmatmul.mubr.bf16.gmra.mrb[0].mxu0 %v1162
      %v1258 = vpop.f32.mrb[0].mxu0
      %v1259 = vadd.f32 0.0, %v1258
      %v1260 = vpop.f32.mrb[0].mxu0
      %v1261 = vpop.f32.mrb[0].mxu0
      %v1262 = vadd.f32 0.0, %v1261
      %v1263 = vpop.f32.mrb[0].mxu0
      %1264 = vmatprep.mubr.bf16.mxu0 0
      %1265 = vmatmul.mubr.bf16.gmra.mrb[0].mxu0 %v1165
      %v1266 = vpop.f32.mrb[0].mxu0
      %v1267 = vadd.f32 0.0, %v1266
      %v1268 = vpop.f32.mrb[0].mxu0
      %v1269 = vpop.f32.mrb[0].mxu0
      %v1270 = vadd.f32 0.0, %v1269
      %v1271 = vpop.f32.mrb[0].mxu0
      %1272 = vmatprep.mubr.bf16.mxu0 0
      %1273 = vmatmul.mubr.bf16.gmra.mrb[0].mxu0 %v1168
      %v1274 = vpop.f32.mrb[0].mxu0
      %v1275 = vadd.f32 0.0, %v1274
      %v1276 = vpop.f32.mrb[0].mxu0
      %v1277 = vpop.f32.mrb[0].mxu0
      %v1278 = vadd.f32 0.0, %v1277
      %v1279 = vpop.f32.mrb[0].mxu0
      %1280 = vmatprep.mubr.bf16.mxu0 0
      %1281 = vmatmul.mubr.bf16.gmra.mrb[0].mxu0 %v1171
      %v1282 = vpop.f32.mrb[0].mxu0
      %v1283 = vadd.f32 0.0, %v1282
      %v1284 = vpop.f32.mrb[0].mxu0
      %v1285 = vpop.f32.mrb[0].mxu0
      %v1286 = vadd.f32 0.0, %v1285
      %v1287 = vpop.f32.mrb[0].mxu0
      %1288 = vmatprep.mubr.bf16.mxu0 0
      %1289 = vmatmul.mubr.bf16.gmra.mrb[0].mxu0 %v1174
      %v1290 = vpop.f32.mrb[0].mxu0
      %v1291 = vadd.f32 0.0, %v1290
      %v1292 = vpop.f32.mrb[0].mxu0
      %v1293 = vpop.f32.mrb[0].mxu0
      %v1294 = vadd.f32 0.0, %v1293
      %v1295 = vpop.f32.mrb[0].mxu0
      %1296 = vmatprep.mubr.bf16.mxu0 0
      %1297 = vmatmul.mubr.bf16.gmra.mrb[0].mxu0 %v1177
      %v1298 = vpop.f32.mrb[0].mxu0
      %v1299 = vadd.f32 0.0, %v1298
      %v1300 = vpop.f32.mrb[0].mxu0
      %v1301 = vpop.f32.mrb[0].mxu0
      %v1302 = vadd.f32 0.0, %v1301
      %v1303 = vpop.f32.mrb[0].mxu0
      %1304 = vmatprep.mubr.bf16.mxu0 0
      %1305 = vmatmul.mubr.bf16.gmra.mrb[0].mxu0 %v1180
      %v1306 = vpop.f32.mrb[0].mxu0
      %v1307 = vadd.f32 0.0, %v1306
      %v1308 = vpop.f32.mrb[0].mxu0
      %v1309 = vpop.f32.mrb[0].mxu0
      %v1310 = vadd.f32 0.0, %v1309
      %v1311 = vpop.f32.mrb[0].mxu0
      %1312 = vmatprep.mubr.bf16.mxu0 0
      %1313 = vmatmul.mubr.bf16.gmra.mrb[0].mxu0 %v1183
      %v1314 = vpop.f32.mrb[0].mxu0
      %v1315 = vadd.f32 0.0, %v1314
      %v1316 = vpop.f32.mrb[0].mxu0
      %v1317 = vpop.f32.mrb[0].mxu0
      %v1318 = vadd.f32 0.0, %v1317
      %v1319 = vpop.f32.mrb[0].mxu0
      %1320 = vmatprep.mubr.bf16.mxu0 0
      %1321 = vmatmul.mubr.bf16.gmra.mrb[0].mxu0 %v1186
      %v1322 = vpop.f32.mrb[0].mxu0
      %v1323 = vadd.f32 0.0, %v1322
      %v1324 = vpop.f32.mrb[0].mxu0
      %v1325 = vpop.f32.mrb[0].mxu0
      %v1326 = vadd.f32 0.0, %v1325
      %v1327 = vpop.f32.mrb[0].mxu0
      %1328 = vmatprep.mubr.bf16.mxu0 0
      %1329 = vmatmul.mubr.bf16.gmra.mrb[0].mxu0 %v1189
      %v1330 = vpop.f32.mrb[0].mxu0
      %v1331 = vadd.f32 0.0, %v1330
      %v1332 = vpop.f32.mrb[0].mxu0
      %v1333 = vpop.f32.mrb[0].mxu0
      %v1334 = vadd.f32 0.0, %v1333
      %v1335 = vpop.f32.mrb[0].mxu0
      %1336 = vmatprep.mubr.bf16.mxu0 0
      %1337 = vmatmul.mubr.bf16.gmra.mrb[0].mxu0 %v1192
      %v1338 = vpop.f32.mrb[0].mxu0
      %v1339 = vadd.f32 0.0, %v1338
      %v1340 = vpop.f32.mrb[0].mxu0
      %v1341 = vpop.f32.mrb[0].mxu0
      %v1342 = vadd.f32 0.0, %v1341
      %v1343 = vpop.f32.mrb[0].mxu0
      %1344 = vmatprep.mubr.bf16.mxu0 0
      %1345 = vmatmul.mubr.bf16.gmra.mrb[0].mxu0 %v1195
      %v1346 = vpop.f32.mrb[0].mxu0
      %v1347 = vadd.f32 0.0, %v1346
      %v1348 = vpop.f32.mrb[0].mxu0
      %v1349 = vpop.f32.mrb[0].mxu0
      %v1350 = vadd.f32 0.0, %v1349
      %v1351 = vpop.f32.mrb[0].mxu0
      %1352 = vmatprep.mubr.bf16.mxu0 0
      %1353 = vmatmul.mubr.bf16.gmra.mrb[0].mxu0 %v1198
      %v1354 = vpop.f32.mrb[0].mxu0
      %v1355 = vadd.f32 0.0, %v1354
      %v1356 = vpop.f32.mrb[0].mxu0
      %v1357 = vpop.f32.mrb[0].mxu0
      %v1358 = vadd.f32 0.0, %v1357
      %v1359 = vpop.f32.mrb[0].mxu0
      %1360 = vmatprep.mubr.bf16.mxu0 0
      %1361 = vmatmul.mubr.bf16.gmra.mrb[0].mxu0 %v1201
      %v1362 = vpop.f32.mrb[0].mxu0
      %v1363 = vadd.f32 0.0, %v1362
      %v1364 = vpop.f32.mrb[0].mxu0
      %v1365 = vpop.f32.mrb[0].mxu0
      %v1366 = vadd.f32 0.0, %v1365
      %v1367 = vpop.f32.mrb[0].mxu0
      %1368 = vmatprep.mubr.bf16.mxu0 0
      %1369 = vmatmul.mubr.bf16.gmra.mrb[0].mxu0 %v1204
      %v1370 = vpop.f32.mrb[0].mxu0
      %v1371 = vadd.f32 0.0, %v1370
      %v1372 = vpop.f32.mrb[0].mxu0
      %v1373 = vpop.f32.mrb[0].mxu0
      %v1374 = vadd.f32 0.0, %v1373
      %v1375 = vpop.f32.mrb[0].mxu0
      %1376 = vmatprep.mubr.bf16.mxu0 0
      %1377 = vmatmul.mubr.bf16.gmra.mrb[0].mxu0 %v1207
      %v1378 = vpop.f32.mrb[0].mxu0
      %v1379 = vadd.f32 0.0, %v1378
      %v1380 = vpop.f32.mrb[0].mxu0
      %v1381 = vpop.f32.mrb[0].mxu0
      %v1382 = vadd.f32 0.0, %v1381
      %v1383 = vpop.f32.mrb[0].mxu0
      %1384 = vmatprep.mubr.bf16.mxu0 0
      %1385 = vmatmul.mubr.bf16.gmra.mrb[0].mxu0 %v1210
      %v1386 = vpop.f32.mrb[0].mxu0
      %v1387 = vadd.f32 0.0, %v1386
      %v1388 = vpop.f32.mrb[0].mxu0
      %v1389 = vpop.f32.mrb[0].mxu0
      %v1390 = vadd.f32 0.0, %v1389
      %v1391 = vpop.f32.mrb[0].mxu0
      %1392 = vdwg.mxu0
      %v1393 = vsel %vm1157, %v989, 0
      %v1395 = vsel %vm1157, %v990, 0
      %v1397 = vsel %vm1157, %v991, 0
      %v1399 = vsel %vm1157, %v992, 0
      %v1401 = vsel %vm1157, %v993, 0
      %v1403 = vsel %vm1157, %v994, 0
      %v1405 = vsel %vm1157, %v995, 0
      %v1407 = vsel %vm1157, %v996, 0
      %v1409 = vsel %vm1157, %v997, 0
      %v1411 = vsel %vm1157, %v998, 0
      %v1413 = vsel %vm1157, %v999, 0
      %v1415 = vsel %vm1157, %v1000, 0
      %v1417 = vsel %vm1157, %v1001, 0
      %v1419 = vsel %vm1157, %v1002, 0
      %v1421 = vsel %vm1157, %v1003, 0
      %v1423 = vsel %vm1157, %v1004, 0
      %v1425 = vsel %vm1157, %v1005, 0
      %v1427 = vsel %vm1157, %v1006, 0
      %v1430 = vsel %vm1212, %v911, 0
      %1432 = vmatprep.subr.bf16.mxu0 0
      %1433 = vmatpush1.bf16.msra.mxu0 %v1430
      %1434 = vmatprep.subr.bf16.mxu0 0
      %1435 = vmatpush1.bf16.msra.mxu0 0
      %1436 = vmatprep.subr.bf16.mxu0 0
      %1437 = vmatpush1.bf16.msra.mxu0 0
      %1438 = vmatprep.subr.bf16.mxu0 0
      %1439 = vmatpush1.bf16.msra.mxu0 0
      %1440 = vmatprep.subr.bf16.mxu0 0
      %1441 = vmatpush1.bf16.msra.mxu0 0
      %1442 = vmatprep.subr.bf16.mxu0 0
      %1443 = vmatpush1.bf16.msra.mxu0 0
      %1444 = vmatprep.subr.bf16.mxu0 0
      %1445 = vmatpush1.bf16.msra.mxu0 0
      %1446 = vmatprep.subr.bf16.mxu0 0
      %1447 = vmatpush1.bf16.msra.mxu0 0
      %1448 = vmatprep.subr.bf16.mxu0 0
      %1449 = vmatpush1.bf16.msra.mxu0 0
      %1450 = vmatprep.subr.bf16.mxu0 0
      %1451 = vmatpush1.bf16.msra.mxu0 0
      %1452 = vmatprep.subr.bf16.mxu0 0
      %1453 = vmatpush1.bf16.msra.mxu0 0
      %1454 = vmatprep.subr.bf16.mxu0 0
      %1455 = vmatpush1.bf16.msra.mxu0 0
      %1456 = vmatprep.subr.bf16.mxu0 0
      %1457 = vmatpush1.bf16.msra.mxu0 0
      %1458 = vmatprep.subr.bf16.mxu0 0
      %1459 = vmatpush1.bf16.msra.mxu0 0
      %1460 = vmatprep.subr.bf16.mxu0 0
      %1461 = vmatpush1.bf16.msra.mxu0 0
      %1462 = vmatprep.subr.bf16.mxu0 0
      %1463 = vmatpush1.bf16.msra.mxu0 0
      %1464 = vmatprep.mubr.bf16.mxu0 0
      %1465 = vmatmul.mubr.bf16.gmra.mrb[0].mxu0 %v1393
      %v1466 = vpop.f32.mrb[0].mxu0
      %v1467 = vadd.f32 %v1251, %v1466
      %v1468 = vpop.f32.mrb[0].mxu0
      %v1469 = vpop.f32.mrb[0].mxu0
      %v1470 = vadd.f32 %v1254, %v1469
      %v1471 = vpop.f32.mrb[0].mxu0
      %1472 = vmatprep.mubr.bf16.mxu0 0
      %1473 = vmatmul.mubr.bf16.gmra.mrb[0].mxu0 %v1395
      %v1474 = vpop.f32.mrb[0].mxu0
      %v1475 = vadd.f32 %v1259, %v1474
      %v1476 = vpop.f32.mrb[0].mxu0
      %v1477 = vpop.f32.mrb[0].mxu0
      %v1478 = vadd.f32 %v1262, %v1477
      %v1479 = vpop.f32.mrb[0].mxu0
      %1480 = vmatprep.mubr.bf16.mxu0 0
      %1481 = vmatmul.mubr.bf16.gmra.mrb[0].mxu0 %v1397
      %v1482 = vpop.f32.mrb[0].mxu0
      %v1483 = vadd.f32 %v1267, %v1482
      %v1484 = vpop.f32.mrb[0].mxu0
      %v1485 = vpop.f32.mrb[0].mxu0
      %v1486 = vadd.f32 %v1270, %v1485
      %v1487 = vpop.f32.mrb[0].mxu0
      %1488 = vmatprep.mubr.bf16.mxu0 0
      %1489 = vmatmul.mubr.bf16.gmra.mrb[0].mxu0 %v1399
      %v1490 = vpop.f32.mrb[0].mxu0
      %v1491 = vadd.f32 %v1275, %v1490
      %v1492 = vpop.f32.mrb[0].mxu0
      %v1493 = vpop.f32.mrb[0].mxu0
      %v1494 = vadd.f32 %v1278, %v1493
      %v1495 = vpop.f32.mrb[0].mxu0
      %1496 = vmatprep.mubr.bf16.mxu0 0
      %1497 = vmatmul.mubr.bf16.gmra.mrb[0].mxu0 %v1401
      %v1498 = vpop.f32.mrb[0].mxu0
      %v1499 = vadd.f32 %v1283, %v1498
      %v1500 = vpop.f32.mrb[0].mxu0
      %v1501 = vpop.f32.mrb[0].mxu0
      %v1502 = vadd.f32 %v1286, %v1501
      %v1503 = vpop.f32.mrb[0].mxu0
      %1504 = vmatprep.mubr.bf16.mxu0 0
      %1505 = vmatmul.mubr.bf16.gmra.mrb[0].mxu0 %v1403
      %v1506 = vpop.f32.mrb[0].mxu0
      %v1507 = vadd.f32 %v1291, %v1506
      %v1508 = vpop.f32.mrb[0].mxu0
      %v1509 = vpop.f32.mrb[0].mxu0
      %v1510 = vadd.f32 %v1294, %v1509
      %v1511 = vpop.f32.mrb[0].mxu0
      %1512 = vmatprep.mubr.bf16.mxu0 0
      %1513 = vmatmul.mubr.bf16.gmra.mrb[0].mxu0 %v1405
      %v1514 = vpop.f32.mrb[0].mxu0
      %v1515 = vadd.f32 %v1299, %v1514
      %v1516 = vpop.f32.mrb[0].mxu0
      %v1517 = vpop.f32.mrb[0].mxu0
      %v1518 = vadd.f32 %v1302, %v1517
      %v1519 = vpop.f32.mrb[0].mxu0
      %1520 = vmatprep.mubr.bf16.mxu0 0
      %1521 = vmatmul.mubr.bf16.gmra.mrb[0].mxu0 %v1407
      %v1522 = vpop.f32.mrb[0].mxu0
      %v1523 = vadd.f32 %v1307, %v1522
      %v1524 = vpop.f32.mrb[0].mxu0
      %v1525 = vpop.f32.mrb[0].mxu0
      %v1526 = vadd.f32 %v1310, %v1525
      %v1527 = vpop.f32.mrb[0].mxu0
      %1528 = vmatprep.mubr.bf16.mxu0 0
      %1529 = vmatmul.mubr.bf16.gmra.mrb[0].mxu0 %v1409
      %v1530 = vpop.f32.mrb[0].mxu0
      %v1531 = vadd.f32 %v1315, %v1530
      %v1532 = vpop.f32.mrb[0].mxu0
      %v1533 = vpop.f32.mrb[0].mxu0
      %v1534 = vadd.f32 %v1318, %v1533
      %v1535 = vpop.f32.mrb[0].mxu0
      %1536 = vmatprep.mubr.bf16.mxu0 0
      %1537 = vmatmul.mubr.bf16.gmra.mrb[0].mxu0 %v1411
      %v1538 = vpop.f32.mrb[0].mxu0
      %v1539 = vadd.f32 %v1323, %v1538
      %v1540 = vpop.f32.mrb[0].mxu0
      %v1541 = vpop.f32.mrb[0].mxu0
      %v1542 = vadd.f32 %v1326, %v1541
      %v1543 = vpop.f32.mrb[0].mxu0
      %1544 = vmatprep.mubr.bf16.mxu0 0
      %1545 = vmatmul.mubr.bf16.gmra.mrb[0].mxu0 %v1413
      %v1546 = vpop.f32.mrb[0].mxu0
      %v1547 = vadd.f32 %v1331, %v1546
      %v1548 = vpop.f32.mrb[0].mxu0
      %v1549 = vpop.f32.mrb[0].mxu0
      %v1550 = vadd.f32 %v1334, %v1549
      %v1551 = vpop.f32.mrb[0].mxu0
      %1552 = vmatprep.mubr.bf16.mxu0 0
      %1553 = vmatmul.mubr.bf16.gmra.mrb[0].mxu0 %v1415
      %v1554 = vpop.f32.mrb[0].mxu0
      %v1555 = vadd.f32 %v1339, %v1554
      %v1556 = vpop.f32.mrb[0].mxu0
      %v1557 = vpop.f32.mrb[0].mxu0
      %v1558 = vadd.f32 %v1342, %v1557
      %v1559 = vpop.f32.mrb[0].mxu0
      %1560 = vmatprep.mubr.bf16.mxu0 0
      %1561 = vmatmul.mubr.bf16.gmra.mrb[0].mxu0 %v1417
      %v1562 = vpop.f32.mrb[0].mxu0
      %v1563 = vadd.f32 %v1347, %v1562
      %v1564 = vpop.f32.mrb[0].mxu0
      %v1565 = vpop.f32.mrb[0].mxu0
      %v1566 = vadd.f32 %v1350, %v1565
      %v1567 = vpop.f32.mrb[0].mxu0
      %1568 = vmatprep.mubr.bf16.mxu0 0
      %1569 = vmatmul.mubr.bf16.gmra.mrb[0].mxu0 %v1419
      %v1570 = vpop.f32.mrb[0].mxu0
      %v1571 = vadd.f32 %v1355, %v1570
      %v1572 = vpop.f32.mrb[0].mxu0
      %v1573 = vpop.f32.mrb[0].mxu0
      %v1574 = vadd.f32 %v1358, %v1573
      %v1575 = vpop.f32.mrb[0].mxu0
      %1576 = vmatprep.mubr.bf16.mxu0 0
      %1577 = vmatmul.mubr.bf16.gmra.mrb[0].mxu0 %v1421
      %v1578 = vpop.f32.mrb[0].mxu0
      %v1579 = vadd.f32 %v1363, %v1578
      %v1580 = vpop.f32.mrb[0].mxu0
      %v1581 = vpop.f32.mrb[0].mxu0
      %v1582 = vadd.f32 %v1366, %v1581
      %v1583 = vpop.f32.mrb[0].mxu0
      %1584 = vmatprep.mubr.bf16.mxu0 0
      %1585 = vmatmul.mubr.bf16.gmra.mrb[0].mxu0 %v1423
      %v1586 = vpop.f32.mrb[0].mxu0
      %v1587 = vadd.f32 %v1371, %v1586
      %v1588 = vpop.f32.mrb[0].mxu0
      %v1589 = vpop.f32.mrb[0].mxu0
      %v1590 = vadd.f32 %v1374, %v1589
      %v1591 = vpop.f32.mrb[0].mxu0
      %1592 = vmatprep.mubr.bf16.mxu0 0
      %1593 = vmatmul.mubr.bf16.gmra.mrb[0].mxu0 %v1425
      %v1594 = vpop.f32.mrb[0].mxu0
      %v1595 = vadd.f32 %v1379, %v1594
      %v1596 = vpop.f32.mrb[0].mxu0
      %v1597 = vpop.f32.mrb[0].mxu0
      %v1598 = vadd.f32 %v1382, %v1597
      %v1599 = vpop.f32.mrb[0].mxu0
      %1600 = vmatprep.mubr.bf16.mxu0 0
      %1601 = vmatmul.mubr.bf16.gmra.mrb[0].mxu0 %v1427
      %v1602 = vpop.f32.mrb[0].mxu0
      %v1603 = vadd.f32 %v1387, %v1602
      %v1604 = vpop.f32.mrb[0].mxu0
      %v1605 = vpop.f32.mrb[0].mxu0
      %v1606 = vadd.f32 %v1390, %v1605
      %v1607 = vpop.f32.mrb[0].mxu0
      %1608 = vdwg.mxu0
      %v1609 = vld [vmem:[%s219] sm:$0xe]
      %s1610 = scalar_lea.vmem %s1, 4
      %v1611 = vld [vmem:[%s1610] sm:$0x3]
      %v1613 = vunpack.c.l.b16 %v1609
      %v1614 = vpack.c.b16 %v953, %v1613
      %vm1615 = vcmask 1046528
      %v1616 = vrot.slane %v1614, 1
      %v1617 = vrot.slane %v990, 1
      %v1618 = vsel %vm1615, %v1616, %v1617
      %v1619 = vrot.slane %v991, 1
      %v1620 = vsel %vm1615, %v1617, %v1619
      %v1621 = vrot.slane %v992, 1
      %v1622 = vsel %vm1615, %v1619, %v1621
      %v1623 = vrot.slane %v993, 1
      %v1624 = vsel %vm1615, %v1621, %v1623
      %v1625 = vrot.slane %v994, 1
      %v1626 = vsel %vm1615, %v1623, %v1625
      %v1627 = vrot.slane %v995, 1
      %v1628 = vsel %vm1615, %v1625, %v1627
      %v1629 = vrot.slane %v996, 1
      %v1630 = vsel %vm1615, %v1627, %v1629
      %v1631 = vrot.slane %v997, 1
      %v1632 = vsel %vm1615, %v1629, %v1631
      %v1633 = vrot.slane %v998, 1
      %v1634 = vsel %vm1615, %v1631, %v1633
      %v1635 = vrot.slane %v999, 1
      %v1636 = vsel %vm1615, %v1633, %v1635
      %v1637 = vrot.slane %v1000, 1
      %v1638 = vsel %vm1615, %v1635, %v1637
      %v1639 = vrot.slane %v1001, 1
      %v1640 = vsel %vm1615, %v1637, %v1639
      %v1641 = vrot.slane %v1002, 1
      %v1642 = vsel %vm1615, %v1639, %v1641
      %v1643 = vrot.slane %v1003, 1
      %v1644 = vsel %vm1615, %v1641, %v1643
      %v1645 = vrot.slane %v1004, 1
      %v1646 = vsel %vm1615, %v1643, %v1645
      %v1647 = vrot.slane %v1005, 1
      %v1648 = vsel %vm1615, %v1645, %v1647
      %v1649 = vrot.slane %v1006, 1
      %v1650 = vsel %vm1615, %v1647, %v1649
      %v1651 = vrot.slane %v1007, 1
      %v1652 = vsel %vm1615, %v1649, %v1651
      %v1654 = vsel %vm1157, %v1618, 0
      %v1657 = vsel %vm1157, %v1620, 0
      %v1660 = vsel %vm1157, %v1622, 0
      %v1663 = vsel %vm1157, %v1624, 0
      %v1666 = vsel %vm1157, %v1626, 0
      %v1669 = vsel %vm1157, %v1628, 0
      %v1672 = vsel %vm1157, %v1630, 0
      %v1675 = vsel %vm1157, %v1632, 0
      %v1678 = vsel %vm1157, %v1634, 0
      %v1681 = vsel %vm1157, %v1636, 0
      %v1684 = vsel %vm1157, %v1638, 0
      %v1687 = vsel %vm1157, %v1640, 0
      %v1690 = vsel %vm1157, %v1642, 0
      %v1693 = vsel %vm1157, %v1644, 0
      %v1696 = vsel %vm1157, %v1646, 0
      %v1699 = vsel %vm1157, %v1648, 0
      %v1702 = vsel %vm1157, %v1650, 0
      %v1705 = vsel %vm1157, %v1652, 0
      %v1708 = vsel %vm1212, %v1611, 0
      %1710 = vmatprep.subr.bf16.mxu0 0
      %1711 = vmatpush1.bf16.msra.mxu0 %v1708
      %1712 = vmatprep.subr.bf16.mxu0 0
      %1713 = vmatpush1.bf16.msra.mxu0 0
      %1714 = vmatprep.subr.bf16.mxu0 0
      %1715 = vmatpush1.bf16.msra.mxu0 0
      %1716 = vmatprep.subr.bf16.mxu0 0
      %1717 = vmatpush1.bf16.msra.mxu0 0
      %1718 = vmatprep.subr.bf16.mxu0 0
      %1719 = vmatpush1.bf16.msra.mxu0 0
      %1720 = vmatprep.subr.bf16.mxu0 0
      %1721 = vmatpush1.bf16.msra.mxu0 0
      %1722 = vmatprep.subr.bf16.mxu0 0
      %1723 = vmatpush1.bf16.msra.mxu0 0
      %1724 = vmatprep.subr.bf16.mxu0 0
      %1725 = vmatpush1.bf16.msra.mxu0 0
      %1726 = vmatprep.subr.bf16.mxu0 0
      %1727 = vmatpush1.bf16.msra.mxu0 0
      %1728 = vmatprep.subr.bf16.mxu0 0
      %1729 = vmatpush1.bf16.msra.mxu0 0
      %1730 = vmatprep.subr.bf16.mxu0 0
      %1731 = vmatpush1.bf16.msra.mxu0 0
      %1732 = vmatprep.subr.bf16.mxu0 0
      %1733 = vmatpush1.bf16.msra.mxu0 0
      %1734 = vmatprep.subr.bf16.mxu0 0
      %1735 = vmatpush1.bf16.msra.mxu0 0
      %1736 = vmatprep.subr.bf16.mxu0 0
      %1737 = vmatpush1.bf16.msra.mxu0 0
      %1738 = vmatprep.subr.bf16.mxu0 0
      %1739 = vmatpush1.bf16.msra.mxu0 0
      %1740 = vmatprep.subr.bf16.mxu0 0
      %1741 = vmatpush1.bf16.msra.mxu0 0
      %1742 = vmatprep.mubr.bf16.mxu0 0
      %1743 = vmatmul.mubr.bf16.gmra.mrb[0].mxu0 %v1654
      %v1744 = vpop.f32.mrb[0].mxu0
      %v1745 = vadd.f32 0.0, %v1744
      %v1746 = vpop.f32.mrb[0].mxu0
      %v1747 = vpop.f32.mrb[0].mxu0
      %v1748 = vadd.f32 0.0, %v1747
      %v1749 = vpop.f32.mrb[0].mxu0
      %1750 = vmatprep.mubr.bf16.mxu0 0
      %1751 = vmatmul.mubr.bf16.gmra.mrb[0].mxu0 %v1657
      %v1752 = vpop.f32.mrb[0].mxu0
      %v1753 = vadd.f32 0.0, %v1752
      %v1754 = vpop.f32.mrb[0].mxu0
      %v1755 = vpop.f32.mrb[0].mxu0
      %v1756 = vadd.f32 0.0, %v1755
      %v1757 = vpop.f32.mrb[0].mxu0
      %1758 = vmatprep.mubr.bf16.mxu0 0
      %1759 = vmatmul.mubr.bf16.gmra.mrb[0].mxu0 %v1660
      %v1760 = vpop.f32.mrb[0].mxu0
      %v1761 = vadd.f32 0.0, %v1760
      %v1762 = vpop.f32.mrb[0].mxu0
      %v1763 = vpop.f32.mrb[0].mxu0
      %v1764 = vadd.f32 0.0, %v1763
      %v1765 = vpop.f32.mrb[0].mxu0
      %1766 = vmatprep.mubr.bf16.mxu0 0
      %1767 = vmatmul.mubr.bf16.gmra.mrb[0].mxu0 %v1663
      %v1768 = vpop.f32.mrb[0].mxu0
      %v1769 = vadd.f32 0.0, %v1768
      %v1770 = vpop.f32.mrb[0].mxu0
      %v1771 = vpop.f32.mrb[0].mxu0
      %v1772 = vadd.f32 0.0, %v1771
      %v1773 = vpop.f32.mrb[0].mxu0
      %1774 = vmatprep.mubr.bf16.mxu0 0
      %1775 = vmatmul.mubr.bf16.gmra.mrb[0].mxu0 %v1666
      %v1776 = vpop.f32.mrb[0].mxu0
      %v1777 = vadd.f32 0.0, %v1776
      %v1778 = vpop.f32.mrb[0].mxu0
      %v1779 = vpop.f32.mrb[0].mxu0
      %v1780 = vadd.f32 0.0, %v1779
      %v1781 = vpop.f32.mrb[0].mxu0
      %1782 = vmatprep.mubr.bf16.mxu0 0
      %1783 = vmatmul.mubr.bf16.gmra.mrb[0].mxu0 %v1669
      %v1784 = vpop.f32.mrb[0].mxu0
      %v1785 = vadd.f32 0.0, %v1784
      %v1786 = vpop.f32.mrb[0].mxu0
      %v1787 = vpop.f32.mrb[0].mxu0
      %v1788 = vadd.f32 0.0, %v1787
      %v1789 = vpop.f32.mrb[0].mxu0
      %1790 = vmatprep.mubr.bf16.mxu0 0
      %1791 = vmatmul.mubr.bf16.gmra.mrb[0].mxu0 %v1672
      %v1792 = vpop.f32.mrb[0].mxu0
      %v1793 = vadd.f32 0.0, %v1792
      %v1794 = vpop.f32.mrb[0].mxu0
      %v1795 = vpop.f32.mrb[0].mxu0
      %v1796 = vadd.f32 0.0, %v1795
      %v1797 = vpop.f32.mrb[0].mxu0
      %1798 = vmatprep.mubr.bf16.mxu0 0
      %1799 = vmatmul.mubr.bf16.gmra.mrb[0].mxu0 %v1675
      %v1800 = vpop.f32.mrb[0].mxu0
      %v1801 = vadd.f32 0.0, %v1800
      %v1802 = vpop.f32.mrb[0].mxu0
      %v1803 = vpop.f32.mrb[0].mxu0
      %v1804 = vadd.f32 0.0, %v1803
      %v1805 = vpop.f32.mrb[0].mxu0
      %1806 = vmatprep.mubr.bf16.mxu0 0
      %1807 = vmatmul.mubr.bf16.gmra.mrb[0].mxu0 %v1678
      %v1808 = vpop.f32.mrb[0].mxu0
      %v1809 = vadd.f32 0.0, %v1808
      %v1810 = vpop.f32.mrb[0].mxu0
      %v1811 = vpop.f32.mrb[0].mxu0
      %v1812 = vadd.f32 0.0, %v1811
      %v1813 = vpop.f32.mrb[0].mxu0
      %1814 = vmatprep.mubr.bf16.mxu0 0
      %1815 = vmatmul.mubr.bf16.gmra.mrb[0].mxu0 %v1681
      %v1816 = vpop.f32.mrb[0].mxu0
      %v1817 = vadd.f32 0.0, %v1816
      %v1818 = vpop.f32.mrb[0].mxu0
      %v1819 = vpop.f32.mrb[0].mxu0
      %v1820 = vadd.f32 0.0, %v1819
      %v1821 = vpop.f32.mrb[0].mxu0
      %1822 = vmatprep.mubr.bf16.mxu0 0
      %1823 = vmatmul.mubr.bf16.gmra.mrb[0].mxu0 %v1684
      %v1824 = vpop.f32.mrb[0].mxu0
      %v1825 = vadd.f32 0.0, %v1824
      %v1826 = vpop.f32.mrb[0].mxu0
      %v1827 = vpop.f32.mrb[0].mxu0
      %v1828 = vadd.f32 0.0, %v1827
      %v1829 = vpop.f32.mrb[0].mxu0
      %1830 = vmatprep.mubr.bf16.mxu0 0
      %1831 = vmatmul.mubr.bf16.gmra.mrb[0].mxu0 %v1687
      %v1832 = vpop.f32.mrb[0].mxu0
      %v1833 = vadd.f32 0.0, %v1832
      %v1834 = vpop.f32.mrb[0].mxu0
      %v1835 = vpop.f32.mrb[0].mxu0
      %v1836 = vadd.f32 0.0, %v1835
      %v1837 = vpop.f32.mrb[0].mxu0
      %1838 = vmatprep.mubr.bf16.mxu0 0
      %1839 = vmatmul.mubr.bf16.gmra.mrb[0].mxu0 %v1690
      %v1840 = vpop.f32.mrb[0].mxu0
      %v1841 = vadd.f32 0.0, %v1840
      %v1842 = vpop.f32.mrb[0].mxu0
      %v1843 = vpop.f32.mrb[0].mxu0
      %v1844 = vadd.f32 0.0, %v1843
      %v1845 = vpop.f32.mrb[0].mxu0
      %1846 = vmatprep.mubr.bf16.mxu0 0
      %1847 = vmatmul.mubr.bf16.gmra.mrb[0].mxu0 %v1693
      %v1848 = vpop.f32.mrb[0].mxu0
      %v1849 = vadd.f32 0.0, %v1848
      %v1850 = vpop.f32.mrb[0].mxu0
      %v1851 = vpop.f32.mrb[0].mxu0
      %v1852 = vadd.f32 0.0, %v1851
      %v1853 = vpop.f32.mrb[0].mxu0
      %1854 = vmatprep.mubr.bf16.mxu0 0
      %1855 = vmatmul.mubr.bf16.gmra.mrb[0].mxu0 %v1696
      %v1856 = vpop.f32.mrb[0].mxu0
      %v1857 = vadd.f32 0.0, %v1856
      %v1858 = vpop.f32.mrb[0].mxu0
      %v1859 = vpop.f32.mrb[0].mxu0
      %v1860 = vadd.f32 0.0, %v1859
      %v1861 = vpop.f32.mrb[0].mxu0
      %1862 = vmatprep.mubr.bf16.mxu0 0
      %1863 = vmatmul.mubr.bf16.gmra.mrb[0].mxu0 %v1699
      %v1864 = vpop.f32.mrb[0].mxu0
      %v1865 = vadd.f32 0.0, %v1864
      %v1866 = vpop.f32.mrb[0].mxu0
      %v1867 = vpop.f32.mrb[0].mxu0
      %v1868 = vadd.f32 0.0, %v1867
      %v1869 = vpop.f32.mrb[0].mxu0
      %1870 = vmatprep.mubr.bf16.mxu0 0
      %1871 = vmatmul.mubr.bf16.gmra.mrb[0].mxu0 %v1702
      %v1872 = vpop.f32.mrb[0].mxu0
      %v1873 = vadd.f32 0.0, %v1872
      %v1874 = vpop.f32.mrb[0].mxu0
      %v1875 = vpop.f32.mrb[0].mxu0
      %v1876 = vadd.f32 0.0, %v1875
      %v1877 = vpop.f32.mrb[0].mxu0
      %1878 = vmatprep.mubr.bf16.mxu0 0
      %1879 = vmatmul.mubr.bf16.gmra.mrb[0].mxu0 %v1705
      %v1880 = vpop.f32.mrb[0].mxu0
      %v1881 = vadd.f32 0.0, %v1880
      %v1882 = vpop.f32.mrb[0].mxu0
      %v1883 = vpop.f32.mrb[0].mxu0
      %v1884 = vadd.f32 0.0, %v1883
      %v1885 = vpop.f32.mrb[0].mxu0
      %1886 = vdwg.mxu0
      %v1887 = vadd.f32 %v1467, %v1745
      %v1888 = vadd.f32 %v1470, %v1748
      %v1889 = vadd.f32 %v1475, %v1753
      %v1890 = vadd.f32 %v1478, %v1756
      %v1891 = vadd.f32 %v1483, %v1761
      %v1892 = vadd.f32 %v1486, %v1764
      %v1893 = vadd.f32 %v1491, %v1769
      %v1894 = vadd.f32 %v1494, %v1772
      %v1895 = vadd.f32 %v1499, %v1777
      %v1896 = vadd.f32 %v1502, %v1780
      %v1897 = vadd.f32 %v1507, %v1785
      %v1898 = vadd.f32 %v1510, %v1788
      %v1899 = vadd.f32 %v1515, %v1793
      %v1900 = vadd.f32 %v1518, %v1796
      %v1901 = vadd.f32 %v1523, %v1801
      %v1902 = vadd.f32 %v1526, %v1804
      %v1903 = vadd.f32 %v1531, %v1809
      %v1904 = vadd.f32 %v1534, %v1812
      %v1905 = vadd.f32 %v1539, %v1817
      %v1906 = vadd.f32 %v1542, %v1820
      %v1907 = vadd.f32 %v1547, %v1825
      %v1908 = vadd.f32 %v1550, %v1828
      %v1909 = vadd.f32 %v1555, %v1833
      %v1910 = vadd.f32 %v1558, %v1836
      %v1911 = vadd.f32 %v1563, %v1841
      %v1912 = vadd.f32 %v1566, %v1844
      %v1913 = vadd.f32 %v1571, %v1849
      %v1914 = vadd.f32 %v1574, %v1852
      %v1915 = vadd.f32 %v1579, %v1857
      %v1916 = vadd.f32 %v1582, %v1860
      %v1917 = vadd.f32 %v1587, %v1865
      %v1918 = vadd.f32 %v1590, %v1868
      %v1919 = vadd.f32 %v1595, %v1873
      %v1920 = vadd.f32 %v1598, %v1876
      %v1921 = vadd.f32 %v1603, %v1881
      %v1922 = vadd.f32 %v1606, %v1884
      %v1923 = vld [vmem:[%s219 + $0x8] sm:$0xe]
      %v1924 = vld [vmem:[%s219 + $0xc] sm:$0xf]
      %v1925 = vld [vmem:[%s219 + $0x10] sm:$0xf]
      %v1926 = vld [vmem:[%s219 + $0x14] sm:$0xf]
      %v1927 = vld [vmem:[%s219 + $0x18] sm:$0xf]
      %v1928 = vld [vmem:[%s219 + $0x1c] sm:$0xf]
      %v1929 = vld [vmem:[%s219 + $0x20] sm:$0xf]
      %v1930 = vld [vmem:[%s219 + $0x24] sm:$0xf]
      %v1931 = vld [vmem:[%s219 + $0x28] sm:$0xf]
      %v1932 = vld [vmem:[%s219 + $0x2c] sm:$0xf]
      %v1933 = vld [vmem:[%s219 + $0x30] sm:$0xf]
      %v1934 = vld [vmem:[%s219 + $0x34] sm:$0xf]
      %v1935 = vld [vmem:[%s219 + $0x38] sm:$0xf]
      %v1936 = vld [vmem:[%s219 + $0x3c] sm:$0xf]
      %v1937 = vld [vmem:[%s219 + $0x40] sm:$0xf]
      %v1938 = vld [vmem:[%s219 + $0x44] sm:$0xf]
      %v1939 = vld [vmem:[%s219 + $0x48] sm:$0xf]
      %v1940 = vld [vmem:[%s219 + $0x4c] sm:$0xf]
      %v1941 = vld [vmem:[%s219 + $0x50] sm:$0xf]
      %v1942 = vld [vmem:[%s219 + $0x54] sm:$0xf]
      %v1943 = vld [vmem:[%s219 + $0x58] sm:$0xf]
      %v1944 = vld [vmem:[%s219 + $0x5c] sm:$0xf]
      %v1945 = vld [vmem:[%s219 + $0x60] sm:$0xf]
      %v1946 = vld [vmem:[%s219 + $0x64] sm:$0xf]
      %v1947 = vld [vmem:[%s219 + $0x68] sm:$0xf]
      %v1948 = vld [vmem:[%s219 + $0x6c] sm:$0xf]
      %v1949 = vld [vmem:[%s219 + $0x70] sm:$0xf]
      %v1950 = vld [vmem:[%s219 + $0x74] sm:$0xf]
      %v1951 = vld [vmem:[%s219 + $0x78] sm:$0xf]
      %v1952 = vld [vmem:[%s219 + $0x7c] sm:$0xf]
      %v1953 = vld [vmem:[%s219 + $0x80] sm:$0xf]
      %v1954 = vld [vmem:[%s219 + $0x84] sm:$0xf]
      %v1955 = vld [vmem:[%s219 + $0x88] sm:$0xf]
      %v1956 = vld [vmem:[%s219 + $0x8c] sm:$0xf]
      %v1957 = vld [vmem:[%s219 + $0x90] sm:$0xf]
      %v1958 = vld [vmem:[%s219 + $0x94] sm:$0xf]
      %v1959 = vld [vmem:[%s219 + $0x98] sm:$0x1]
      %s1960 = scalar_lea.vmem %s1, 6
      %v1961 = vld [vmem:[%s1960] sm:$0x3]
      %v1999 = vunpack.c.l.b16 %v1923
      %v2000 = vunpack.c.l.b16 %v1924
      %v2001 = vunpack.c.l.b16 %v1925
      %v2002 = vunpack.c.l.b16 %v1926
      %v2003 = vunpack.c.l.b16 %v1927
      %v2004 = vunpack.c.l.b16 %v1928
      %v2005 = vunpack.c.l.b16 %v1929
      %v2006 = vunpack.c.l.b16 %v1930
      %v2007 = vunpack.c.l.b16 %v1931
      %v2008 = vunpack.c.l.b16 %v1932
      %v2009 = vunpack.c.l.b16 %v1933
      %v2010 = vunpack.c.l.b16 %v1934
      %v2011 = vunpack.c.l.b16 %v1935
      %v2012 = vunpack.c.l.b16 %v1936
      %v2013 = vunpack.c.l.b16 %v1937
      %v2014 = vunpack.c.l.b16 %v1938
      %v2015 = vunpack.c.l.b16 %v1939
      %v2016 = vunpack.c.l.b16 %v1940
      %v2017 = vunpack.c.l.b16 %v1941
      %v2018 = vunpack.c.l.b16 %v1942
      %v2019 = vunpack.c.l.b16 %v1943
      %v2020 = vunpack.c.l.b16 %v1944
      %v2021 = vunpack.c.l.b16 %v1945
      %v2022 = vunpack.c.l.b16 %v1946
      %v2023 = vunpack.c.l.b16 %v1947
      %v2024 = vunpack.c.l.b16 %v1948
      %v2025 = vunpack.c.l.b16 %v1949
      %v2026 = vunpack.c.l.b16 %v1950
      %v2027 = vunpack.c.l.b16 %v1951
      %v2028 = vunpack.c.l.b16 %v1952
      %v2029 = vunpack.c.l.b16 %v1953
      %v2030 = vunpack.c.l.b16 %v1954
      %v2031 = vunpack.c.l.b16 %v1955
      %v2032 = vunpack.c.l.b16 %v1956
      %v2033 = vunpack.c.l.b16 %v1957
      %v2034 = vunpack.c.l.b16 %v1958
      %v2035 = vunpack.c.l.b16 %v1959
      %v2036 = vpack.c.b16 %v2000, %v1999
      %v2037 = vpack.c.b16 %v2002, %v2001
      %v2038 = vpack.c.b16 %v2004, %v2003
      %v2039 = vpack.c.b16 %v2006, %v2005
      %v2040 = vpack.c.b16 %v2008, %v2007
      %v2041 = vpack.c.b16 %v2010, %v2009
      %v2042 = vpack.c.b16 %v2012, %v2011
      %v2043 = vpack.c.b16 %v2014, %v2013
      %v2044 = vpack.c.b16 %v2016, %v2015
      %v2045 = vpack.c.b16 %v2018, %v2017
      %v2046 = vpack.c.b16 %v2020, %v2019
      %v2047 = vpack.c.b16 %v2022, %v2021
      %v2048 = vpack.c.b16 %v2024, %v2023
      %v2049 = vpack.c.b16 %v2026, %v2025
      %v2050 = vpack.c.b16 %v2028, %v2027
      %v2051 = vpack.c.b16 %v2030, %v2029
      %v2052 = vpack.c.b16 %v2032, %v2031
      %v2053 = vpack.c.b16 %v2034, %v2033
      %v2054 = vpack.c.b16 %v2035, %v2035
      %v2055 = vrot.slane %v2036, 1
      %v2056 = vrot.slane %v2037, 1
      %v2057 = vsel %vm1615, %v2055, %v2056
      %v2058 = vrot.slane %v2038, 1
      %v2059 = vsel %vm1615, %v2056, %v2058
      %v2060 = vrot.slane %v2039, 1
      %v2061 = vsel %vm1615, %v2058, %v2060
      %v2062 = vrot.slane %v2040, 1
      %v2063 = vsel %vm1615, %v2060, %v2062
      %v2064 = vrot.slane %v2041, 1
      %v2065 = vsel %vm1615, %v2062, %v2064
      %v2066 = vrot.slane %v2042, 1
      %v2067 = vsel %vm1615, %v2064, %v2066
      %v2068 = vrot.slane %v2043, 1
      %v2069 = vsel %vm1615, %v2066, %v2068
      %v2070 = vrot.slane %v2044, 1
      %v2071 = vsel %vm1615, %v2068, %v2070
      %v2072 = vrot.slane %v2045, 1
      %v2073 = vsel %vm1615, %v2070, %v2072
      %v2074 = vrot.slane %v2046, 1
      %v2075 = vsel %vm1615, %v2072, %v2074
      %v2076 = vrot.slane %v2047, 1
      %v2077 = vsel %vm1615, %v2074, %v2076
      %v2078 = vrot.slane %v2048, 1
      %v2079 = vsel %vm1615, %v2076, %v2078
      %v2080 = vrot.slane %v2049, 1
      %v2081 = vsel %vm1615, %v2078, %v2080
      %v2082 = vrot.slane %v2050, 1
      %v2083 = vsel %vm1615, %v2080, %v2082
      %v2084 = vrot.slane %v2051, 1
      %v2085 = vsel %vm1615, %v2082, %v2084
      %v2086 = vrot.slane %v2052, 1
      %v2087 = vsel %vm1615, %v2084, %v2086
      %v2088 = vrot.slane %v2053, 1
      %v2089 = vsel %vm1615, %v2086, %v2088
      %v2090 = vrot.slane %v2054, 1
      %v2091 = vsel %vm1615, %v2088, %v2090
      %v2093 = vsel %vm1157, %v2057, 0
      %v2096 = vsel %vm1157, %v2059, 0
      %v2099 = vsel %vm1157, %v2061, 0
      %v2102 = vsel %vm1157, %v2063, 0
      %v2105 = vsel %vm1157, %v2065, 0
      %v2108 = vsel %vm1157, %v2067, 0
      %v2111 = vsel %vm1157, %v2069, 0
      %v2114 = vsel %vm1157, %v2071, 0
      %v2117 = vsel %vm1157, %v2073, 0
      %v2120 = vsel %vm1157, %v2075, 0
      %v2123 = vsel %vm1157, %v2077, 0
      %v2126 = vsel %vm1157, %v2079, 0
      %v2129 = vsel %vm1157, %v2081, 0
      %v2132 = vsel %vm1157, %v2083, 0
      %v2135 = vsel %vm1157, %v2085, 0
      %v2138 = vsel %vm1157, %v2087, 0
      %v2141 = vsel %vm1157, %v2089, 0
      %v2144 = vsel %vm1157, %v2091, 0
      %v2147 = vsel %vm1212, %v1961, 0
      %2149 = vmatprep.subr.bf16.mxu0 0
      %2150 = vmatpush1.bf16.msra.mxu0 %v2147
      %2151 = vmatprep.subr.bf16.mxu0 0
      %2152 = vmatpush1.bf16.msra.mxu0 0
      %2153 = vmatprep.subr.bf16.mxu0 0
      %2154 = vmatpush1.bf16.msra.mxu0 0
      %2155 = vmatprep.subr.bf16.mxu0 0
      %2156 = vmatpush1.bf16.msra.mxu0 0
      %2157 = vmatprep.subr.bf16.mxu0 0
      %2158 = vmatpush1.bf16.msra.mxu0 0
      %2159 = vmatprep.subr.bf16.mxu0 0
      %2160 = vmatpush1.bf16.msra.mxu0 0
      %2161 = vmatprep.subr.bf16.mxu0 0
      %2162 = vmatpush1.bf16.msra.mxu0 0
      %2163 = vmatprep.subr.bf16.mxu0 0
      %2164 = vmatpush1.bf16.msra.mxu0 0
      %2165 = vmatprep.subr.bf16.mxu0 0
      %2166 = vmatpush1.bf16.msra.mxu0 0
      %2167 = vmatprep.subr.bf16.mxu0 0
      %2168 = vmatpush1.bf16.msra.mxu0 0
      %2169 = vmatprep.subr.bf16.mxu0 0
      %2170 = vmatpush1.bf16.msra.mxu0 0
      %2171 = vmatprep.subr.bf16.mxu0 0
      %2172 = vmatpush1.bf16.msra.mxu0 0
      %2173 = vmatprep.subr.bf16.mxu0 0
      %2174 = vmatpush1.bf16.msra.mxu0 0
      %2175 = vmatprep.subr.bf16.mxu0 0
      %2176 = vmatpush1.bf16.msra.mxu0 0
      %2177 = vmatprep.subr.bf16.mxu0 0
      %2178 = vmatpush1.bf16.msra.mxu0 0
      %2179 = vmatprep.subr.bf16.mxu0 0
      %2180 = vmatpush1.bf16.msra.mxu0 0
      %2181 = vmatprep.mubr.bf16.mxu0 0
      %2182 = vmatmul.mubr.bf16.gmra.mrb[0].mxu0 %v2093
      %v2183 = vpop.f32.mrb[0].mxu0
      %v2184 = vadd.f32 0.0, %v2183
      %v2185 = vpop.f32.mrb[0].mxu0
      %v2186 = vpop.f32.mrb[0].mxu0
      %v2187 = vadd.f32 0.0, %v2186
      %v2188 = vpop.f32.mrb[0].mxu0
      %2189 = vmatprep.mubr.bf16.mxu0 0
      %2190 = vmatmul.mubr.bf16.gmra.mrb[0].mxu0 %v2096
      %v2191 = vpop.f32.mrb[0].mxu0
      %v2192 = vadd.f32 0.0, %v2191
      %v2193 = vpop.f32.mrb[0].mxu0
      %v2194 = vpop.f32.mrb[0].mxu0
      %v2195 = vadd.f32 0.0, %v2194
      %v2196 = vpop.f32.mrb[0].mxu0
      %2197 = vmatprep.mubr.bf16.mxu0 0
      %2198 = vmatmul.mubr.bf16.gmra.mrb[0].mxu0 %v2099
      %v2199 = vpop.f32.mrb[0].mxu0
      %v2200 = vadd.f32 0.0, %v2199
      %v2201 = vpop.f32.mrb[0].mxu0
      %v2202 = vpop.f32.mrb[0].mxu0
      %v2203 = vadd.f32 0.0, %v2202
      %v2204 = vpop.f32.mrb[0].mxu0
      %2205 = vmatprep.mubr.bf16.mxu0 0
      %2206 = vmatmul.mubr.bf16.gmra.mrb[0].mxu0 %v2102
      %v2207 = vpop.f32.mrb[0].mxu0
      %v2208 = vadd.f32 0.0, %v2207
      %v2209 = vpop.f32.mrb[0].mxu0
      %v2210 = vpop.f32.mrb[0].mxu0
      %v2211 = vadd.f32 0.0, %v2210
      %v2212 = vpop.f32.mrb[0].mxu0
      %2213 = vmatprep.mubr.bf16.mxu0 0
      %2214 = vmatmul.mubr.bf16.gmra.mrb[0].mxu0 %v2105
      %v2215 = vpop.f32.mrb[0].mxu0
      %v2216 = vadd.f32 0.0, %v2215
      %v2217 = vpop.f32.mrb[0].mxu0
      %v2218 = vpop.f32.mrb[0].mxu0
      %v2219 = vadd.f32 0.0, %v2218
      %v2220 = vpop.f32.mrb[0].mxu0
      %2221 = vmatprep.mubr.bf16.mxu0 0
      %2222 = vmatmul.mubr.bf16.gmra.mrb[0].mxu0 %v2108
      %v2223 = vpop.f32.mrb[0].mxu0
      %v2224 = vadd.f32 0.0, %v2223
      %v2225 = vpop.f32.mrb[0].mxu0
      %v2226 = vpop.f32.mrb[0].mxu0
      %v2227 = vadd.f32 0.0, %v2226
      %v2228 = vpop.f32.mrb[0].mxu0
      %2229 = vmatprep.mubr.bf16.mxu0 0
      %2230 = vmatmul.mubr.bf16.gmra.mrb[0].mxu0 %v2111
      %v2231 = vpop.f32.mrb[0].mxu0
      %v2232 = vadd.f32 0.0, %v2231
      %v2233 = vpop.f32.mrb[0].mxu0
      %v2234 = vpop.f32.mrb[0].mxu0
      %v2235 = vadd.f32 0.0, %v2234
      %v2236 = vpop.f32.mrb[0].mxu0
      %2237 = vmatprep.mubr.bf16.mxu0 0
      %2238 = vmatmul.mubr.bf16.gmra.mrb[0].mxu0 %v2114
      %v2239 = vpop.f32.mrb[0].mxu0
      %v2240 = vadd.f32 0.0, %v2239
      %v2241 = vpop.f32.mrb[0].mxu0
      %v2242 = vpop.f32.mrb[0].mxu0
      %v2243 = vadd.f32 0.0, %v2242
      %v2244 = vpop.f32.mrb[0].mxu0
      %2245 = vmatprep.mubr.bf16.mxu0 0
      %2246 = vmatmul.mubr.bf16.gmra.mrb[0].mxu0 %v2117
      %v2247 = vpop.f32.mrb[0].mxu0
      %v2248 = vadd.f32 0.0, %v2247
      %v2249 = vpop.f32.mrb[0].mxu0
      %v2250 = vpop.f32.mrb[0].mxu0
      %v2251 = vadd.f32 0.0, %v2250
      %v2252 = vpop.f32.mrb[0].mxu0
      %2253 = vmatprep.mubr.bf16.mxu0 0
      %2254 = vmatmul.mubr.bf16.gmra.mrb[0].mxu0 %v2120
      %v2255 = vpop.f32.mrb[0].mxu0
      %v2256 = vadd.f32 0.0, %v2255
      %v2257 = vpop.f32.mrb[0].mxu0
      %v2258 = vpop.f32.mrb[0].mxu0
      %v2259 = vadd.f32 0.0, %v2258
      %v2260 = vpop.f32.mrb[0].mxu0
      %2261 = vmatprep.mubr.bf16.mxu0 0
      %2262 = vmatmul.mubr.bf16.gmra.mrb[0].mxu0 %v2123
      %v2263 = vpop.f32.mrb[0].mxu0
      %v2264 = vadd.f32 0.0, %v2263
      %v2265 = vpop.f32.mrb[0].mxu0
      %v2266 = vpop.f32.mrb[0].mxu0
      %v2267 = vadd.f32 0.0, %v2266
      %v2268 = vpop.f32.mrb[0].mxu0
      %2269 = vmatprep.mubr.bf16.mxu0 0
      %2270 = vmatmul.mubr.bf16.gmra.mrb[0].mxu0 %v2126
      %v2271 = vpop.f32.mrb[0].mxu0
      %v2272 = vadd.f32 0.0, %v2271
      %v2273 = vpop.f32.mrb[0].mxu0
      %v2274 = vpop.f32.mrb[0].mxu0
      %v2275 = vadd.f32 0.0, %v2274
      %v2276 = vpop.f32.mrb[0].mxu0
      %2277 = vmatprep.mubr.bf16.mxu0 0
      %2278 = vmatmul.mubr.bf16.gmra.mrb[0].mxu0 %v2129
      %v2279 = vpop.f32.mrb[0].mxu0
      %v2280 = vadd.f32 0.0, %v2279
      %v2281 = vpop.f32.mrb[0].mxu0
      %v2282 = vpop.f32.mrb[0].mxu0
      %v2283 = vadd.f32 0.0, %v2282
      %v2284 = vpop.f32.mrb[0].mxu0
      %2285 = vmatprep.mubr.bf16.mxu0 0
      %2286 = vmatmul.mubr.bf16.gmra.mrb[0].mxu0 %v2132
      %v2287 = vpop.f32.mrb[0].mxu0
      %v2288 = vadd.f32 0.0, %v2287
      %v2289 = vpop.f32.mrb[0].mxu0
      %v2290 = vpop.f32.mrb[0].mxu0
      %v2291 = vadd.f32 0.0, %v2290
      %v2292 = vpop.f32.mrb[0].mxu0
      %2293 = vmatprep.mubr.bf16.mxu0 0
      %2294 = vmatmul.mubr.bf16.gmra.mrb[0].mxu0 %v2135
      %v2295 = vpop.f32.mrb[0].mxu0
      %v2296 = vadd.f32 0.0, %v2295
      %v2297 = vpop.f32.mrb[0].mxu0
      %v2298 = vpop.f32.mrb[0].mxu0
      %v2299 = vadd.f32 0.0, %v2298
      %v2300 = vpop.f32.mrb[0].mxu0
      %2301 = vmatprep.mubr.bf16.mxu0 0
      %2302 = vmatmul.mubr.bf16.gmra.mrb[0].mxu0 %v2138
      %v2303 = vpop.f32.mrb[0].mxu0
      %v2304 = vadd.f32 0.0, %v2303
      %v2305 = vpop.f32.mrb[0].mxu0
      %v2306 = vpop.f32.mrb[0].mxu0
      %v2307 = vadd.f32 0.0, %v2306
      %v2308 = vpop.f32.mrb[0].mxu0
      %2309 = vmatprep.mubr.bf16.mxu0 0
      %2310 = vmatmul.mubr.bf16.gmra.mrb[0].mxu0 %v2141
      %v2311 = vpop.f32.mrb[0].mxu0
      %v2312 = vadd.f32 0.0, %v2311
      %v2313 = vpop.f32.mrb[0].mxu0
      %v2314 = vpop.f32.mrb[0].mxu0
      %v2315 = vadd.f32 0.0, %v2314
      %v2316 = vpop.f32.mrb[0].mxu0
      %2317 = vmatprep.mubr.bf16.mxu0 0
      %2318 = vmatmul.mubr.bf16.gmra.mrb[0].mxu0 %v2144
      %v2319 = vpop.f32.mrb[0].mxu0
      %v2320 = vadd.f32 0.0, %v2319
      %v2321 = vpop.f32.mrb[0].mxu0
      %v2322 = vpop.f32.mrb[0].mxu0
      %v2323 = vadd.f32 0.0, %v2322
      %v2324 = vpop.f32.mrb[0].mxu0
      %2325 = vdwg.mxu0
      %v2326 = vadd.f32 %v1887, %v2184
      %v2327 = vadd.f32 %v1888, %v2187
      %v2328 = vadd.f32 %v1889, %v2192
      %v2329 = vadd.f32 %v1890, %v2195
      %v2330 = vadd.f32 %v1891, %v2200
      %v2331 = vadd.f32 %v1892, %v2203
      %v2332 = vadd.f32 %v1893, %v2208
      %v2333 = vadd.f32 %v1894, %v2211
      %v2334 = vadd.f32 %v1895, %v2216
      %v2335 = vadd.f32 %v1896, %v2219
      %v2336 = vadd.f32 %v1897, %v2224
      %v2337 = vadd.f32 %v1898, %v2227
      %v2338 = vadd.f32 %v1899, %v2232
      %v2339 = vadd.f32 %v1900, %v2235
      %v2340 = vadd.f32 %v1901, %v2240
      %v2341 = vadd.f32 %v1902, %v2243
      %v2342 = vadd.f32 %v1903, %v2248
      %v2343 = vadd.f32 %v1904, %v2251
      %v2344 = vadd.f32 %v1905, %v2256
      %v2345 = vadd.f32 %v1906, %v2259
      %v2346 = vadd.f32 %v1907, %v2264
      %v2347 = vadd.f32 %v1908, %v2267
      %v2348 = vadd.f32 %v1909, %v2272
      %v2349 = vadd.f32 %v1910, %v2275
      %v2350 = vadd.f32 %v1911, %v2280
      %v2351 = vadd.f32 %v1912, %v2283
      %v2352 = vadd.f32 %v1913, %v2288
      %v2353 = vadd.f32 %v1914, %v2291
      %v2354 = vadd.f32 %v1915, %v2296
      %v2355 = vadd.f32 %v1916, %v2299
      %v2356 = vadd.f32 %v1917, %v2304
      %v2357 = vadd.f32 %v1918, %v2307
      %v2358 = vadd.f32 %v1919, %v2312
      %v2359 = vadd.f32 %v1920, %v2315
      %v2360 = vadd.f32 %v1921, %v2320
      %v2361 = vadd.f32 %v1922, %v2323
      %v2362 = vld [vmem:[%s219 + $0x98] sm:$0x3]
      %s2363 = scalar_lea.vmem %s1, 8
      %v2364 = vld [vmem:[%s2363] sm:$0x3]
      %v2366 = vunpack.c.l.b16 %v2362
      %v2367 = vpack.c.b16 %v2366, %v2366
      %vm2368 = vsmask.f32 6400
      %v2370 = vshrl.u32 %v2036, 16
      %v2372 = vrot.slane %v2370, 1
      %v2373 = vshll.u32 %v2036, 16
      %v2375 = vrot.slane %v2373, 2
      %v2376 = vor.u32 %v2372, %v2375
      %v2378 = vshrl.u32 %v2037, 16
      %v2380 = vrot.slane %v2378, 1
      %v2381 = vshll.u32 %v2037, 16
      %v2383 = vrot.slane %v2381, 2
      %v2384 = vor.u32 %v2380, %v2383
      %v2385 = vsel %vm2368, %v2376, %v2384
      %v2387 = vshrl.u32 %v2038, 16
      %v2389 = vrot.slane %v2387, 1
      %v2390 = vshll.u32 %v2038, 16
      %v2392 = vrot.slane %v2390, 2
      %v2393 = vor.u32 %v2389, %v2392
      %v2394 = vsel %vm2368, %v2384, %v2393
      %v2396 = vshrl.u32 %v2039, 16
      %v2398 = vrot.slane %v2396, 1
      %v2399 = vshll.u32 %v2039, 16
      %v2401 = vrot.slane %v2399, 2
      %v2402 = vor.u32 %v2398, %v2401
      %v2403 = vsel %vm2368, %v2393, %v2402
      %v2405 = vshrl.u32 %v2040, 16
      %v2407 = vrot.slane %v2405, 1
      %v2408 = vshll.u32 %v2040, 16
      %v2410 = vrot.slane %v2408, 2
      %v2411 = vor.u32 %v2407, %v2410
      %v2412 = vsel %vm2368, %v2402, %v2411
      %v2414 = vshrl.u32 %v2041, 16
      %v2416 = vrot.slane %v2414, 1
      %v2417 = vshll.u32 %v2041, 16
      %v2419 = vrot.slane %v2417, 2
      %v2420 = vor.u32 %v2416, %v2419
      %v2421 = vsel %vm2368, %v2411, %v2420
      %v2423 = vshrl.u32 %v2042, 16
      %v2425 = vrot.slane %v2423, 1
      %v2426 = vshll.u32 %v2042, 16
      %v2428 = vrot.slane %v2426, 2
      %v2429 = vor.u32 %v2425, %v2428
      %v2430 = vsel %vm2368, %v2420, %v2429
      %v2432 = vshrl.u32 %v2043, 16
      %v2434 = vrot.slane %v2432, 1
      %v2435 = vshll.u32 %v2043, 16
      %v2437 = vrot.slane %v2435, 2
      %v2438 = vor.u32 %v2434, %v2437
      %v2439 = vsel %vm2368, %v2429, %v2438
      %v2441 = vshrl.u32 %v2044, 16
      %v2443 = vrot.slane %v2441, 1
      %v2444 = vshll.u32 %v2044, 16
      %v2446 = vrot.slane %v2444, 2
      %v2447 = vor.u32 %v2443, %v2446
      %v2448 = vsel %vm2368, %v2438, %v2447
      %v2450 = vshrl.u32 %v2045, 16
      %v2452 = vrot.slane %v2450, 1
      %v2453 = vshll.u32 %v2045, 16
      %v2455 = vrot.slane %v2453, 2
      %v2456 = vor.u32 %v2452, %v2455
      %v2457 = vsel %vm2368, %v2447, %v2456
      %v2459 = vshrl.u32 %v2046, 16
      %v2461 = vrot.slane %v2459, 1
      %v2462 = vshll.u32 %v2046, 16
      %v2464 = vrot.slane %v2462, 2
      %v2465 = vor.u32 %v2461, %v2464
      %v2466 = vsel %vm2368, %v2456, %v2465
      %v2468 = vshrl.u32 %v2047, 16
      %v2470 = vrot.slane %v2468, 1
      %v2471 = vshll.u32 %v2047, 16
      %v2473 = vrot.slane %v2471, 2
      %v2474 = vor.u32 %v2470, %v2473
      %v2475 = vsel %vm2368, %v2465, %v2474
      %v2477 = vshrl.u32 %v2048, 16
      %v2479 = vrot.slane %v2477, 1
      %v2480 = vshll.u32 %v2048, 16
      %v2482 = vrot.slane %v2480, 2
      %v2483 = vor.u32 %v2479, %v2482
      %v2484 = vsel %vm2368, %v2474, %v2483
      %v2486 = vshrl.u32 %v2049, 16
      %v2488 = vrot.slane %v2486, 1
      %v2489 = vshll.u32 %v2049, 16
      %v2491 = vrot.slane %v2489, 2
      %v2492 = vor.u32 %v2488, %v2491
      %v2493 = vsel %vm2368, %v2483, %v2492
      %v2495 = vshrl.u32 %v2050, 16
      %v2497 = vrot.slane %v2495, 1
      %v2498 = vshll.u32 %v2050, 16
      %v2500 = vrot.slane %v2498, 2
      %v2501 = vor.u32 %v2497, %v2500
      %v2502 = vsel %vm2368, %v2492, %v2501
      %v2504 = vshrl.u32 %v2051, 16
      %v2506 = vrot.slane %v2504, 1
      %v2507 = vshll.u32 %v2051, 16
      %v2509 = vrot.slane %v2507, 2
      %v2510 = vor.u32 %v2506, %v2509
      %v2511 = vsel %vm2368, %v2501, %v2510
      %v2513 = vshrl.u32 %v2052, 16
      %v2515 = vrot.slane %v2513, 1
      %v2516 = vshll.u32 %v2052, 16
      %v2518 = vrot.slane %v2516, 2
      %v2519 = vor.u32 %v2515, %v2518
      %v2520 = vsel %vm2368, %v2510, %v2519
      %v2522 = vshrl.u32 %v2053, 16
      %v2524 = vrot.slane %v2522, 1
      %v2525 = vshll.u32 %v2053, 16
      %v2527 = vrot.slane %v2525, 2
      %v2528 = vor.u32 %v2524, %v2527
      %v2529 = vsel %vm2368, %v2519, %v2528
      %v2531 = vshrl.u32 %v2367, 16
      %v2533 = vrot.slane %v2531, 1
      %v2534 = vshll.u32 %v2367, 16
      %v2536 = vrot.slane %v2534, 2
      %v2537 = vor.u32 %v2533, %v2536
      %v2538 = vsel %vm2368, %v2528, %v2537
      %v2540 = vsel %vm1157, %v2385, 0
      %v2543 = vsel %vm1157, %v2394, 0
      %v2546 = vsel %vm1157, %v2403, 0
      %v2549 = vsel %vm1157, %v2412, 0
      %v2552 = vsel %vm1157, %v2421, 0
      %v2555 = vsel %vm1157, %v2430, 0
      %v2558 = vsel %vm1157, %v2439, 0
      %v2561 = vsel %vm1157, %v2448, 0
      %v2564 = vsel %vm1157, %v2457, 0
      %v2567 = vsel %vm1157, %v2466, 0
      %v2570 = vsel %vm1157, %v2475, 0
      %v2573 = vsel %vm1157, %v2484, 0
      %v2576 = vsel %vm1157, %v2493, 0
      %v2579 = vsel %vm1157, %v2502, 0
      %v2582 = vsel %vm1157, %v2511, 0
      %v2585 = vsel %vm1157, %v2520, 0
      %v2588 = vsel %vm1157, %v2529, 0
      %v2591 = vsel %vm1157, %v2538, 0
      %v2594 = vsel %vm1212, %v2364, 0
      %2596 = vmatprep.subr.bf16.mxu0 0
      %2597 = vmatpush1.bf16.msra.mxu0 %v2594
      %2598 = vmatprep.subr.bf16.mxu0 0
      %2599 = vmatpush1.bf16.msra.mxu0 0
      %2600 = vmatprep.subr.bf16.mxu0 0
      %2601 = vmatpush1.bf16.msra.mxu0 0
      %2602 = vmatprep.subr.bf16.mxu0 0
      %2603 = vmatpush1.bf16.msra.mxu0 0
      %2604 = vmatprep.subr.bf16.mxu0 0
      %2605 = vmatpush1.bf16.msra.mxu0 0
      %2606 = vmatprep.subr.bf16.mxu0 0
      %2607 = vmatpush1.bf16.msra.mxu0 0
      %2608 = vmatprep.subr.bf16.mxu0 0
      %2609 = vmatpush1.bf16.msra.mxu0 0
      %2610 = vmatprep.subr.bf16.mxu0 0
      %2611 = vmatpush1.bf16.msra.mxu0 0
      %2612 = vmatprep.subr.bf16.mxu0 0
      %2613 = vmatpush1.bf16.msra.mxu0 0
      %2614 = vmatprep.subr.bf16.mxu0 0
      %2615 = vmatpush1.bf16.msra.mxu0 0
      %2616 = vmatprep.subr.bf16.mxu0 0
      %2617 = vmatpush1.bf16.msra.mxu0 0
      %2618 = vmatprep.subr.bf16.mxu0 0
      %2619 = vmatpush1.bf16.msra.mxu0 0
      %2620 = vmatprep.subr.bf16.mxu0 0
      %2621 = vmatpush1.bf16.msra.mxu0 0
      %2622 = vmatprep.subr.bf16.mxu0 0
      %2623 = vmatpush1.bf16.msra.mxu0 0
      %2624 = vmatprep.subr.bf16.mxu0 0
      %2625 = vmatpush1.bf16.msra.mxu0 0
      %2626 = vmatprep.subr.bf16.mxu0 0
      %2627 = vmatpush1.bf16.msra.mxu0 0
      %2628 = vmatprep.mubr.bf16.mxu0 0
      %2629 = vmatmul.mubr.bf16.gmra.mrb[0].mxu0 %v2540
      %v2630 = vpop.f32.mrb[0].mxu0
      %v2631 = vadd.f32 0.0, %v2630
      %v2632 = vpop.f32.mrb[0].mxu0
      %v2633 = vpop.f32.mrb[0].mxu0
      %v2634 = vadd.f32 0.0, %v2633
      %v2635 = vpop.f32.mrb[0].mxu0
      %2636 = vmatprep.mubr.bf16.mxu0 0
      %2637 = vmatmul.mubr.bf16.gmra.mrb[0].mxu0 %v2543
      %v2638 = vpop.f32.mrb[0].mxu0
      %v2639 = vadd.f32 0.0, %v2638
      %v2640 = vpop.f32.mrb[0].mxu0
      %v2641 = vpop.f32.mrb[0].mxu0
      %v2642 = vadd.f32 0.0, %v2641
      %v2643 = vpop.f32.mrb[0].mxu0
      %2644 = vmatprep.mubr.bf16.mxu0 0
      %2645 = vmatmul.mubr.bf16.gmra.mrb[0].mxu0 %v2546
      %v2646 = vpop.f32.mrb[0].mxu0
      %v2647 = vadd.f32 0.0, %v2646
      %v2648 = vpop.f32.mrb[0].mxu0
      %v2649 = vpop.f32.mrb[0].mxu0
      %v2650 = vadd.f32 0.0, %v2649
      %v2651 = vpop.f32.mrb[0].mxu0
      %2652 = vmatprep.mubr.bf16.mxu0 0
      %2653 = vmatmul.mubr.bf16.gmra.mrb[0].mxu0 %v2549
      %v2654 = vpop.f32.mrb[0].mxu0
      %v2655 = vadd.f32 0.0, %v2654
      %v2656 = vpop.f32.mrb[0].mxu0
      %v2657 = vpop.f32.mrb[0].mxu0
      %v2658 = vadd.f32 0.0, %v2657
      %v2659 = vpop.f32.mrb[0].mxu0
      %2660 = vmatprep.mubr.bf16.mxu0 0
      %2661 = vmatmul.mubr.bf16.gmra.mrb[0].mxu0 %v2552
      %v2662 = vpop.f32.mrb[0].mxu0
      %v2663 = vadd.f32 0.0, %v2662
      %v2664 = vpop.f32.mrb[0].mxu0
      %v2665 = vpop.f32.mrb[0].mxu0
      %v2666 = vadd.f32 0.0, %v2665
      %v2667 = vpop.f32.mrb[0].mxu0
      %2668 = vmatprep.mubr.bf16.mxu0 0
      %2669 = vmatmul.mubr.bf16.gmra.mrb[0].mxu0 %v2555
      %v2670 = vpop.f32.mrb[0].mxu0
      %v2671 = vadd.f32 0.0, %v2670
      %v2672 = vpop.f32.mrb[0].mxu0
      %v2673 = vpop.f32.mrb[0].mxu0
      %v2674 = vadd.f32 0.0, %v2673
      %v2675 = vpop.f32.mrb[0].mxu0
      %2676 = vmatprep.mubr.bf16.mxu0 0
      %2677 = vmatmul.mubr.bf16.gmra.mrb[0].mxu0 %v2558
      %v2678 = vpop.f32.mrb[0].mxu0
      %v2679 = vadd.f32 0.0, %v2678
      %v2680 = vpop.f32.mrb[0].mxu0
      %v2681 = vpop.f32.mrb[0].mxu0
      %v2682 = vadd.f32 0.0, %v2681
      %v2683 = vpop.f32.mrb[0].mxu0
      %2684 = vmatprep.mubr.bf16.mxu0 0
      %2685 = vmatmul.mubr.bf16.gmra.mrb[0].mxu0 %v2561
      %v2686 = vpop.f32.mrb[0].mxu0
      %v2687 = vadd.f32 0.0, %v2686
      %v2688 = vpop.f32.mrb[0].mxu0
      %v2689 = vpop.f32.mrb[0].mxu0
      %v2690 = vadd.f32 0.0, %v2689
      %v2691 = vpop.f32.mrb[0].mxu0
      %2692 = vmatprep.mubr.bf16.mxu0 0
      %2693 = vmatmul.mubr.bf16.gmra.mrb[0].mxu0 %v2564
      %v2694 = vpop.f32.mrb[0].mxu0
      %v2695 = vadd.f32 0.0, %v2694
      %v2696 = vpop.f32.mrb[0].mxu0
      %v2697 = vpop.f32.mrb[0].mxu0
      %v2698 = vadd.f32 0.0, %v2697
      %v2699 = vpop.f32.mrb[0].mxu0
      %2700 = vmatprep.mubr.bf16.mxu0 0
      %2701 = vmatmul.mubr.bf16.gmra.mrb[0].mxu0 %v2567
      %v2702 = vpop.f32.mrb[0].mxu0
      %v2703 = vadd.f32 0.0, %v2702
      %v2704 = vpop.f32.mrb[0].mxu0
      %v2705 = vpop.f32.mrb[0].mxu0
      %v2706 = vadd.f32 0.0, %v2705
      %v2707 = vpop.f32.mrb[0].mxu0
      %2708 = vmatprep.mubr.bf16.mxu0 0
      %2709 = vmatmul.mubr.bf16.gmra.mrb[0].mxu0 %v2570
      %v2710 = vpop.f32.mrb[0].mxu0
      %v2711 = vadd.f32 0.0, %v2710
      %v2712 = vpop.f32.mrb[0].mxu0
      %v2713 = vpop.f32.mrb[0].mxu0
      %v2714 = vadd.f32 0.0, %v2713
      %v2715 = vpop.f32.mrb[0].mxu0
      %2716 = vmatprep.mubr.bf16.mxu0 0
      %2717 = vmatmul.mubr.bf16.gmra.mrb[0].mxu0 %v2573
      %v2718 = vpop.f32.mrb[0].mxu0
      %v2719 = vadd.f32 0.0, %v2718
      %v2720 = vpop.f32.mrb[0].mxu0
      %v2721 = vpop.f32.mrb[0].mxu0
      %v2722 = vadd.f32 0.0, %v2721
      %v2723 = vpop.f32.mrb[0].mxu0
      %2724 = vmatprep.mubr.bf16.mxu0 0
      %2725 = vmatmul.mubr.bf16.gmra.mrb[0].mxu0 %v2576
      %v2726 = vpop.f32.mrb[0].mxu0
      %v2727 = vadd.f32 0.0, %v2726
      %v2728 = vpop.f32.mrb[0].mxu0
      %v2729 = vpop.f32.mrb[0].mxu0
      %v2730 = vadd.f32 0.0, %v2729
      %v2731 = vpop.f32.mrb[0].mxu0
      %2732 = vmatprep.mubr.bf16.mxu0 0
      %2733 = vmatmul.mubr.bf16.gmra.mrb[0].mxu0 %v2579
      %v2734 = vpop.f32.mrb[0].mxu0
      %v2735 = vadd.f32 0.0, %v2734
      %v2736 = vpop.f32.mrb[0].mxu0
      %v2737 = vpop.f32.mrb[0].mxu0
      %v2738 = vadd.f32 0.0, %v2737
      %v2739 = vpop.f32.mrb[0].mxu0
      %2740 = vmatprep.mubr.bf16.mxu0 0
      %2741 = vmatmul.mubr.bf16.gmra.mrb[0].mxu0 %v2582
      %v2742 = vpop.f32.mrb[0].mxu0
      %v2743 = vadd.f32 0.0, %v2742
      %v2744 = vpop.f32.mrb[0].mxu0
      %v2745 = vpop.f32.mrb[0].mxu0
      %v2746 = vadd.f32 0.0, %v2745
      %v2747 = vpop.f32.mrb[0].mxu0
      %2748 = vmatprep.mubr.bf16.mxu0 0
      %2749 = vmatmul.mubr.bf16.gmra.mrb[0].mxu0 %v2585
      %v2750 = vpop.f32.mrb[0].mxu0
      %v2751 = vadd.f32 0.0, %v2750
      %v2752 = vpop.f32.mrb[0].mxu0
      %v2753 = vpop.f32.mrb[0].mxu0
      %v2754 = vadd.f32 0.0, %v2753
      %v2755 = vpop.f32.mrb[0].mxu0
      %2756 = vmatprep.mubr.bf16.mxu0 0
      %2757 = vmatmul.mubr.bf16.gmra.mrb[0].mxu0 %v2588
      %v2758 = vpop.f32.mrb[0].mxu0
      %v2759 = vadd.f32 0.0, %v2758
      %v2760 = vpop.f32.mrb[0].mxu0
      %v2761 = vpop.f32.mrb[0].mxu0
      %v2762 = vadd.f32 0.0, %v2761
      %v2763 = vpop.f32.mrb[0].mxu0
      %2764 = vmatprep.mubr.bf16.mxu0 0
      %2765 = vmatmul.mubr.bf16.gmra.mrb[0].mxu0 %v2591
      %v2766 = vpop.f32.mrb[0].mxu0
      %v2767 = vadd.f32 0.0, %v2766
      %v2768 = vpop.f32.mrb[0].mxu0
      %v2769 = vpop.f32.mrb[0].mxu0
      %v2770 = vadd.f32 0.0, %v2769
      %v2771 = vpop.f32.mrb[0].mxu0
      %2772 = vdwg.mxu0
      %v2773 = vadd.f32 %v2326, %v2631
      %v2774 = vadd.f32 %v2327, %v2634
      %v2775 = vadd.f32 %v2328, %v2639
      %v2776 = vadd.f32 %v2329, %v2642
      %v2777 = vadd.f32 %v2330, %v2647
      %v2778 = vadd.f32 %v2331, %v2650
      %v2779 = vadd.f32 %v2332, %v2655
      %v2780 = vadd.f32 %v2333, %v2658
      %v2781 = vadd.f32 %v2334, %v2663
      %v2782 = vadd.f32 %v2335, %v2666
      %v2783 = vadd.f32 %v2336, %v2671
      %v2784 = vadd.f32 %v2337, %v2674
      %v2785 = vadd.f32 %v2338, %v2679
      %v2786 = vadd.f32 %v2339, %v2682
      %v2787 = vadd.f32 %v2340, %v2687
      %v2788 = vadd.f32 %v2341, %v2690
      %v2789 = vadd.f32 %v2342, %v2695
      %v2790 = vadd.f32 %v2343, %v2698
      %v2791 = vadd.f32 %v2344, %v2703
      %v2792 = vadd.f32 %v2345, %v2706
      %v2793 = vadd.f32 %v2346, %v2711
      %v2794 = vadd.f32 %v2347, %v2714
      %v2795 = vadd.f32 %v2348, %v2719
      %v2796 = vadd.f32 %v2349, %v2722
      %v2797 = vadd.f32 %v2350, %v2727
      %v2798 = vadd.f32 %v2351, %v2730
      %v2799 = vadd.f32 %v2352, %v2735
      %v2800 = vadd.f32 %v2353, %v2738
      %v2801 = vadd.f32 %v2354, %v2743
      %v2802 = vadd.f32 %v2355, %v2746
      %v2803 = vadd.f32 %v2356, %v2751
      %v2804 = vadd.f32 %v2357, %v2754
      %v2805 = vadd.f32 %v2358, %v2759
      %v2806 = vadd.f32 %v2359, %v2762
      %v2807 = vadd.f32 %v2360, %v2767
      %v2808 = vadd.f32 %v2361, %v2770
      %v2809 = vld [vmem:[%s219 + $0x8] sm:$0xc]
      %s2810 = scalar_lea.vmem %s1, 10
      %v2811 = vld [vmem:[%s2810] sm:$0x3]
      %v2813 = vunpack.c.l.b16 %v2809
      %v2814 = vpack.c.b16 %v2000, %v2813
      %vm2815 = vcmask 1045504
      %v2816 = vrot.slane %v2814, 2
      %v2817 = vrot.slane %v2037, 2
      %v2818 = vsel %vm2815, %v2816, %v2817
      %v2819 = vrot.slane %v2038, 2
      %v2820 = vsel %vm2815, %v2817, %v2819
      %v2821 = vrot.slane %v2039, 2
      %v2822 = vsel %vm2815, %v2819, %v2821
      %v2823 = vrot.slane %v2040, 2
      %v2824 = vsel %vm2815, %v2821, %v2823
      %v2825 = vrot.slane %v2041, 2
      %v2826 = vsel %vm2815, %v2823, %v2825
      %v2827 = vrot.slane %v2042, 2
      %v2828 = vsel %vm2815, %v2825, %v2827
      %v2829 = vrot.slane %v2043, 2
      %v2830 = vsel %vm2815, %v2827, %v2829
      %v2831 = vrot.slane %v2044, 2
      %v2832 = vsel %vm2815, %v2829, %v2831
      %v2833 = vrot.slane %v2045, 2
      %v2834 = vsel %vm2815, %v2831, %v2833
      %v2835 = vrot.slane %v2046, 2
      %v2836 = vsel %vm2815, %v2833, %v2835
      %v2837 = vrot.slane %v2047, 2
      %v2838 = vsel %vm2815, %v2835, %v2837
      %v2839 = vrot.slane %v2048, 2
      %v2840 = vsel %vm2815, %v2837, %v2839
      %v2841 = vrot.slane %v2049, 2
      %v2842 = vsel %vm2815, %v2839, %v2841
      %v2843 = vrot.slane %v2050, 2
      %v2844 = vsel %vm2815, %v2841, %v2843
      %v2845 = vrot.slane %v2051, 2
      %v2846 = vsel %vm2815, %v2843, %v2845
      %v2847 = vrot.slane %v2052, 2
      %v2848 = vsel %vm2815, %v2845, %v2847
      %v2849 = vrot.slane %v2053, 2
      %v2850 = vsel %vm2815, %v2847, %v2849
      %v2851 = vrot.slane %v2367, 2
      %v2852 = vsel %vm2815, %v2849, %v2851
      %v2854 = vsel %vm1157, %v2818, 0
      %v2857 = vsel %vm1157, %v2820, 0
      %v2860 = vsel %vm1157, %v2822, 0
      %v2863 = vsel %vm1157, %v2824, 0
      %v2866 = vsel %vm1157, %v2826, 0
      %v2869 = vsel %vm1157, %v2828, 0
      %v2872 = vsel %vm1157, %v2830, 0
      %v2875 = vsel %vm1157, %v2832, 0
      %v2878 = vsel %vm1157, %v2834, 0
      %v2881 = vsel %vm1157, %v2836, 0
      %v2884 = vsel %vm1157, %v2838, 0
      %v2887 = vsel %vm1157, %v2840, 0
      %v2890 = vsel %vm1157, %v2842, 0
      %v2893 = vsel %vm1157, %v2844, 0
      %v2896 = vsel %vm1157, %v2846, 0
      %v2899 = vsel %vm1157, %v2848, 0
      %v2902 = vsel %vm1157, %v2850, 0
      %v2905 = vsel %vm1157, %v2852, 0
      %v2908 = vsel %vm1212, %v2811, 0
      %2910 = vmatprep.subr.bf16.mxu0 0
      %2911 = vmatpush1.bf16.msra.mxu0 %v2908
      %2912 = vmatprep.subr.bf16.mxu0 0
      %2913 = vmatpush1.bf16.msra.mxu0 0
      %2914 = vmatprep.subr.bf16.mxu0 0
      %2915 = vmatpush1.bf16.msra.mxu0 0
      %2916 = vmatprep.subr.bf16.mxu0 0
      %2917 = vmatpush1.bf16.msra.mxu0 0
      %2918 = vmatprep.subr.bf16.mxu0 0
      %2919 = vmatpush1.bf16.msra.mxu0 0
      %2920 = vmatprep.subr.bf16.mxu0 0
      %2921 = vmatpush1.bf16.msra.mxu0 0
      %2922 = vmatprep.subr.bf16.mxu0 0
      %2923 = vmatpush1.bf16.msra.mxu0 0
      %2924 = vmatprep.subr.bf16.mxu0 0
      %2925 = vmatpush1.bf16.msra.mxu0 0
      %2926 = vmatprep.subr.bf16.mxu0 0
      %2927 = vmatpush1.bf16.msra.mxu0 0
      %2928 = vmatprep.subr.bf16.mxu0 0
      %2929 = vmatpush1.bf16.msra.mxu0 0
      %2930 = vmatprep.subr.bf16.mxu0 0
      %2931 = vmatpush1.bf16.msra.mxu0 0
      %2932 = vmatprep.subr.bf16.mxu0 0
      %2933 = vmatpush1.bf16.msra.mxu0 0
      %2934 = vmatprep.subr.bf16.mxu0 0
      %2935 = vmatpush1.bf16.msra.mxu0 0
      %2936 = vmatprep.subr.bf16.mxu0 0
      %2937 = vmatpush1.bf16.msra.mxu0 0
      %2938 = vmatprep.subr.bf16.mxu0 0
      %2939 = vmatpush1.bf16.msra.mxu0 0
      %2940 = vmatprep.subr.bf16.mxu0 0
      %2941 = vmatpush1.bf16.msra.mxu0 0
      %2942 = vmatprep.mubr.bf16.mxu0 0
      %2943 = vmatmul.mubr.bf16.gmra.mrb[0].mxu0 %v2854
      %v2944 = vpop.f32.mrb[0].mxu0
      %v2945 = vadd.f32 0.0, %v2944
      %v2946 = vpop.f32.mrb[0].mxu0
      %v2947 = vpop.f32.mrb[0].mxu0
      %v2948 = vadd.f32 0.0, %v2947
      %v2949 = vpop.f32.mrb[0].mxu0
      %2950 = vmatprep.mubr.bf16.mxu0 0
      %2951 = vmatmul.mubr.bf16.gmra.mrb[0].mxu0 %v2857
      %v2952 = vpop.f32.mrb[0].mxu0
      %v2953 = vadd.f32 0.0, %v2952
      %v2954 = vpop.f32.mrb[0].mxu0
      %v2955 = vpop.f32.mrb[0].mxu0
      %v2956 = vadd.f32 0.0, %v2955
      %v2957 = vpop.f32.mrb[0].mxu0
      %2958 = vmatprep.mubr.bf16.mxu0 0
      %2959 = vmatmul.mubr.bf16.gmra.mrb[0].mxu0 %v2860
      %v2960 = vpop.f32.mrb[0].mxu0
      %v2961 = vadd.f32 0.0, %v2960
      %v2962 = vpop.f32.mrb[0].mxu0
      %v2963 = vpop.f32.mrb[0].mxu0
      %v2964 = vadd.f32 0.0, %v2963
      %v2965 = vpop.f32.mrb[0].mxu0
      %2966 = vmatprep.mubr.bf16.mxu0 0
      %2967 = vmatmul.mubr.bf16.gmra.mrb[0].mxu0 %v2863
      %v2968 = vpop.f32.mrb[0].mxu0
      %v2969 = vadd.f32 0.0, %v2968
      %v2970 = vpop.f32.mrb[0].mxu0
      %v2971 = vpop.f32.mrb[0].mxu0
      %v2972 = vadd.f32 0.0, %v2971
      %v2973 = vpop.f32.mrb[0].mxu0
      %2974 = vmatprep.mubr.bf16.mxu0 0
      %2975 = vmatmul.mubr.bf16.gmra.mrb[0].mxu0 %v2866
      %v2976 = vpop.f32.mrb[0].mxu0
      %v2977 = vadd.f32 0.0, %v2976
      %v2978 = vpop.f32.mrb[0].mxu0
      %v2979 = vpop.f32.mrb[0].mxu0
      %v2980 = vadd.f32 0.0, %v2979
      %v2981 = vpop.f32.mrb[0].mxu0
      %2982 = vmatprep.mubr.bf16.mxu0 0
      %2983 = vmatmul.mubr.bf16.gmra.mrb[0].mxu0 %v2869
      %v2984 = vpop.f32.mrb[0].mxu0
      %v2985 = vadd.f32 0.0, %v2984
      %v2986 = vpop.f32.mrb[0].mxu0
      %v2987 = vpop.f32.mrb[0].mxu0
      %v2988 = vadd.f32 0.0, %v2987
      %v2989 = vpop.f32.mrb[0].mxu0
      %2990 = vmatprep.mubr.bf16.mxu0 0
      %2991 = vmatmul.mubr.bf16.gmra.mrb[0].mxu0 %v2872
      %v2992 = vpop.f32.mrb[0].mxu0
      %v2993 = vadd.f32 0.0, %v2992
      %v2994 = vpop.f32.mrb[0].mxu0
      %v2995 = vpop.f32.mrb[0].mxu0
      %v2996 = vadd.f32 0.0, %v2995
      %v2997 = vpop.f32.mrb[0].mxu0
      %2998 = vmatprep.mubr.bf16.mxu0 0
      %2999 = vmatmul.mubr.bf16.gmra.mrb[0].mxu0 %v2875
      %v3000 = vpop.f32.mrb[0].mxu0
      %v3001 = vadd.f32 0.0, %v3000
      %v3002 = vpop.f32.mrb[0].mxu0
      %v3003 = vpop.f32.mrb[0].mxu0
      %v3004 = vadd.f32 0.0, %v3003
      %v3005 = vpop.f32.mrb[0].mxu0
      %3006 = vmatprep.mubr.bf16.mxu0 0
      %3007 = vmatmul.mubr.bf16.gmra.mrb[0].mxu0 %v2878
      %v3008 = vpop.f32.mrb[0].mxu0
      %v3009 = vadd.f32 0.0, %v3008
      %v3010 = vpop.f32.mrb[0].mxu0
      %v3011 = vpop.f32.mrb[0].mxu0
      %v3012 = vadd.f32 0.0, %v3011
      %v3013 = vpop.f32.mrb[0].mxu0
      %3014 = vmatprep.mubr.bf16.mxu0 0
      %3015 = vmatmul.mubr.bf16.gmra.mrb[0].mxu0 %v2881
      %v3016 = vpop.f32.mrb[0].mxu0
      %v3017 = vadd.f32 0.0, %v3016
      %v3018 = vpop.f32.mrb[0].mxu0
      %v3019 = vpop.f32.mrb[0].mxu0
      %v3020 = vadd.f32 0.0, %v3019
      %v3021 = vpop.f32.mrb[0].mxu0
      %3022 = vmatprep.mubr.bf16.mxu0 0
      %3023 = vmatmul.mubr.bf16.gmra.mrb[0].mxu0 %v2884
      %v3024 = vpop.f32.mrb[0].mxu0
      %v3025 = vadd.f32 0.0, %v3024
      %v3026 = vpop.f32.mrb[0].mxu0
      %v3027 = vpop.f32.mrb[0].mxu0
      %v3028 = vadd.f32 0.0, %v3027
      %v3029 = vpop.f32.mrb[0].mxu0
      %3030 = vmatprep.mubr.bf16.mxu0 0
      %3031 = vmatmul.mubr.bf16.gmra.mrb[0].mxu0 %v2887
      %v3032 = vpop.f32.mrb[0].mxu0
      %v3033 = vadd.f32 0.0, %v3032
      %v3034 = vpop.f32.mrb[0].mxu0
      %v3035 = vpop.f32.mrb[0].mxu0
      %v3036 = vadd.f32 0.0, %v3035
      %v3037 = vpop.f32.mrb[0].mxu0
      %3038 = vmatprep.mubr.bf16.mxu0 0
      %3039 = vmatmul.mubr.bf16.gmra.mrb[0].mxu0 %v2890
      %v3040 = vpop.f32.mrb[0].mxu0
      %v3041 = vadd.f32 0.0, %v3040
      %v3042 = vpop.f32.mrb[0].mxu0
      %v3043 = vpop.f32.mrb[0].mxu0
      %v3044 = vadd.f32 0.0, %v3043
      %v3045 = vpop.f32.mrb[0].mxu0
      %3046 = vmatprep.mubr.bf16.mxu0 0
      %3047 = vmatmul.mubr.bf16.gmra.mrb[0].mxu0 %v2893
      %v3048 = vpop.f32.mrb[0].mxu0
      %v3049 = vadd.f32 0.0, %v3048
      %v3050 = vpop.f32.mrb[0].mxu0
      %v3051 = vpop.f32.mrb[0].mxu0
      %v3052 = vadd.f32 0.0, %v3051
      %v3053 = vpop.f32.mrb[0].mxu0
      %3054 = vmatprep.mubr.bf16.mxu0 0
      %3055 = vmatmul.mubr.bf16.gmra.mrb[0].mxu0 %v2896
      %v3056 = vpop.f32.mrb[0].mxu0
      %v3057 = vadd.f32 0.0, %v3056
      %v3058 = vpop.f32.mrb[0].mxu0
      %v3059 = vpop.f32.mrb[0].mxu0
      %v3060 = vadd.f32 0.0, %v3059
      %v3061 = vpop.f32.mrb[0].mxu0
      %3062 = vmatprep.mubr.bf16.mxu0 0
      %3063 = vmatmul.mubr.bf16.gmra.mrb[0].mxu0 %v2899
      %v3064 = vpop.f32.mrb[0].mxu0
      %v3065 = vadd.f32 0.0, %v3064
      %v3066 = vpop.f32.mrb[0].mxu0
      %v3067 = vpop.f32.mrb[0].mxu0
      %v3068 = vadd.f32 0.0, %v3067
      %v3069 = vpop.f32.mrb[0].mxu0
      %3070 = vmatprep.mubr.bf16.mxu0 0
      %3071 = vmatmul.mubr.bf16.gmra.mrb[0].mxu0 %v2902
      %v3072 = vpop.f32.mrb[0].mxu0
      %v3073 = vadd.f32 0.0, %v3072
      %v3074 = vpop.f32.mrb[0].mxu0
      %v3075 = vpop.f32.mrb[0].mxu0
      %v3076 = vadd.f32 0.0, %v3075
      %v3077 = vpop.f32.mrb[0].mxu0
      %3078 = vmatprep.mubr.bf16.mxu0 0
      %3079 = vmatmul.mubr.bf16.gmra.mrb[0].mxu0 %v2905
      %v3080 = vpop.f32.mrb[0].mxu0
      %v3081 = vadd.f32 0.0, %v3080
      %v3082 = vpop.f32.mrb[0].mxu0
      %v3083 = vpop.f32.mrb[0].mxu0
      %v3084 = vadd.f32 0.0, %v3083
      %v3085 = vpop.f32.mrb[0].mxu0
      %3086 = vdwg.mxu0
      %v3087 = vadd.f32 %v2773, %v2945
      %v3088 = vadd.f32 %v2774, %v2948
      %v3089 = vadd.f32 %v2775, %v2953
      %v3090 = vadd.f32 %v2776, %v2956
      %v3091 = vadd.f32 %v2777, %v2961
      %v3092 = vadd.f32 %v2778, %v2964
      %v3093 = vadd.f32 %v2779, %v2969
      %v3094 = vadd.f32 %v2780, %v2972
      %v3095 = vadd.f32 %v2781, %v2977
      %v3096 = vadd.f32 %v2782, %v2980
      %v3097 = vadd.f32 %v2783, %v2985
      %v3098 = vadd.f32 %v2784, %v2988
      %v3099 = vadd.f32 %v2785, %v2993
      %v3100 = vadd.f32 %v2786, %v2996
      %v3101 = vadd.f32 %v2787, %v3001
      %v3102 = vadd.f32 %v2788, %v3004
      %v3103 = vadd.f32 %v2789, %v3009
      %v3104 = vadd.f32 %v2790, %v3012
      %v3105 = vadd.f32 %v2791, %v3017
      %v3106 = vadd.f32 %v2792, %v3020
      %v3107 = vadd.f32 %v2793, %v3025
      %v3108 = vadd.f32 %v2794, %v3028
      %v3109 = vadd.f32 %v2795, %v3033
      %v3110 = vadd.f32 %v2796, %v3036
      %v3111 = vadd.f32 %v2797, %v3041
      %v3112 = vadd.f32 %v2798, %v3044
      %v3113 = vadd.f32 %v2799, %v3049
      %v3114 = vadd.f32 %v2800, %v3052
      %v3115 = vadd.f32 %v2801, %v3057
      %v3116 = vadd.f32 %v2802, %v3060
      %v3117 = vadd.f32 %v2803, %v3065
      %v3118 = vadd.f32 %v2804, %v3068
      %v3119 = vadd.f32 %v2805, %v3073
      %v3120 = vadd.f32 %v2806, %v3076
      %v3121 = vadd.f32 %v2807, %v3081
      %v3122 = vadd.f32 %v2808, %v3084
      %v3123 = vld [vmem:[%s219 + $0x10] sm:$0xc]
      %v3124 = vld [vmem:[%s219 + $0x14] sm:$0xf]
      %v3125 = vld [vmem:[%s219 + $0x18] sm:$0xf]
      %v3126 = vld [vmem:[%s219 + $0x1c] sm:$0xf]
      %v3127 = vld [vmem:[%s219 + $0x20] sm:$0xf]
      %v3128 = vld [vmem:[%s219 + $0x24] sm:$0xf]
      %v3129 = vld [vmem:[%s219 + $0x28] sm:$0xf]
      %v3130 = vld [vmem:[%s219 + $0x2c] sm:$0xf]
      %v3131 = vld [vmem:[%s219 + $0x30] sm:$0xf]
      %v3132 = vld [vmem:[%s219 + $0x34] sm:$0xf]
      %v3133 = vld [vmem:[%s219 + $0x38] sm:$0xf]
      %v3134 = vld [vmem:[%s219 + $0x3c] sm:$0xf]
      %v3135 = vld [vmem:[%s219 + $0x40] sm:$0xf]
      %v3136 = vld [vmem:[%s219 + $0x44] sm:$0xf]
      %v3137 = vld [vmem:[%s219 + $0x48] sm:$0xf]
      %v3138 = vld [vmem:[%s219 + $0x4c] sm:$0xf]
      %v3139 = vld [vmem:[%s219 + $0x50] sm:$0xf]
      %v3140 = vld [vmem:[%s219 + $0x54] sm:$0xf]
      %v3141 = vld [vmem:[%s219 + $0x58] sm:$0xf]
      %v3142 = vld [vmem:[%s219 + $0x5c] sm:$0xf]
      %v3143 = vld [vmem:[%s219 + $0x60] sm:$0xf]
      %v3144 = vld [vmem:[%s219 + $0x64] sm:$0xf]
      %v3145 = vld [vmem:[%s219 + $0x68] sm:$0xf]
      %v3146 = vld [vmem:[%s219 + $0x6c] sm:$0xf]
      %v3147 = vld [vmem:[%s219 + $0x70] sm:$0xf]
      %v3148 = vld [vmem:[%s219 + $0x74] sm:$0xf]
      %v3149 = vld [vmem:[%s219 + $0x78] sm:$0xf]
      %v3150 = vld [vmem:[%s219 + $0x7c] sm:$0xf]
      %v3151 = vld [vmem:[%s219 + $0x80] sm:$0xf]
      %v3152 = vld [vmem:[%s219 + $0x84] sm:$0xf]
      %v3153 = vld [vmem:[%s219 + $0x88] sm:$0xf]
      %v3154 = vld [vmem:[%s219 + $0x8c] sm:$0xf]
      %v3155 = vld [vmem:[%s219 + $0x90] sm:$0xf]
      %v3156 = vld [vmem:[%s219 + $0x94] sm:$0xf]
      %v3157 = vld [vmem:[%s219 + $0x98] sm:$0xf]
      %v3158 = vld [vmem:[%s219 + $0x9c] sm:$0xf]
      %v3159 = vld [vmem:[%s219 + $0xa0] sm:$0x3]
      %s3160 = scalar_lea.vmem %s1, 12
      %v3161 = vld [vmem:[%s3160] sm:$0x3]
      %v3199 = vunpack.c.l.b16 %v3123
      %v3200 = vunpack.c.l.b16 %v3124
      %v3201 = vunpack.c.l.b16 %v3125
      %v3202 = vunpack.c.l.b16 %v3126
      %v3203 = vunpack.c.l.b16 %v3127
      %v3204 = vunpack.c.l.b16 %v3128
      %v3205 = vunpack.c.l.b16 %v3129
      %v3206 = vunpack.c.l.b16 %v3130
      %v3207 = vunpack.c.l.b16 %v3131
      %v3208 = vunpack.c.l.b16 %v3132
      %v3209 = vunpack.c.l.b16 %v3133
      %v3210 = vunpack.c.l.b16 %v3134
      %v3211 = vunpack.c.l.b16 %v3135
      %v3212 = vunpack.c.l.b16 %v3136
      %v3213 = vunpack.c.l.b16 %v3137
      %v3214 = vunpack.c.l.b16 %v3138
      %v3215 = vunpack.c.l.b16 %v3139
      %v3216 = vunpack.c.l.b16 %v3140
      %v3217 = vunpack.c.l.b16 %v3141
      %v3218 = vunpack.c.l.b16 %v3142
      %v3219 = vunpack.c.l.b16 %v3143
      %v3220 = vunpack.c.l.b16 %v3144
      %v3221 = vunpack.c.l.b16 %v3145
      %v3222 = vunpack.c.l.b16 %v3146
      %v3223 = vunpack.c.l.b16 %v3147
      %v3224 = vunpack.c.l.b16 %v3148
      %v3225 = vunpack.c.l.b16 %v3149
      %v3226 = vunpack.c.l.b16 %v3150
      %v3227 = vunpack.c.l.b16 %v3151
      %v3228 = vunpack.c.l.b16 %v3152
      %v3229 = vunpack.c.l.b16 %v3153
      %v3230 = vunpack.c.l.b16 %v3154
      %v3231 = vunpack.c.l.b16 %v3155
      %v3232 = vunpack.c.l.b16 %v3156
      %v3233 = vunpack.c.l.b16 %v3157
      %v3234 = vunpack.c.l.b16 %v3158
      %v3235 = vunpack.c.l.b16 %v3159
      %v3236 = vpack.c.b16 %v3200, %v3199
      %v3237 = vpack.c.b16 %v3202, %v3201
      %v3238 = vpack.c.b16 %v3204, %v3203
      %v3239 = vpack.c.b16 %v3206, %v3205
      %v3240 = vpack.c.b16 %v3208, %v3207
      %v3241 = vpack.c.b16 %v3210, %v3209
      %v3242 = vpack.c.b16 %v3212, %v3211
      %v3243 = vpack.c.b16 %v3214, %v3213
      %v3244 = vpack.c.b16 %v3216, %v3215
      %v3245 = vpack.c.b16 %v3218, %v3217
      %v3246 = vpack.c.b16 %v3220, %v3219
      %v3247 = vpack.c.b16 %v3222, %v3221
      %v3248 = vpack.c.b16 %v3224, %v3223
      %v3249 = vpack.c.b16 %v3226, %v3225
      %v3250 = vpack.c.b16 %v3228, %v3227
      %v3251 = vpack.c.b16 %v3230, %v3229
      %v3252 = vpack.c.b16 %v3232, %v3231
      %v3253 = vpack.c.b16 %v3234, %v3233
      %v3254 = vpack.c.b16 %v3235, %v3235
      %v3255 = vrot.slane %v3236, 2
      %v3256 = vrot.slane %v3237, 2
      %v3257 = vsel %vm2815, %v3255, %v3256
      %v3258 = vrot.slane %v3238, 2
      %v3259 = vsel %vm2815, %v3256, %v3258
      %v3260 = vrot.slane %v3239, 2
      %v3261 = vsel %vm2815, %v3258, %v3260
      %v3262 = vrot.slane %v3240, 2
      %v3263 = vsel %vm2815, %v3260, %v3262
      %v3264 = vrot.slane %v3241, 2
      %v3265 = vsel %vm2815, %v3262, %v3264
      %v3266 = vrot.slane %v3242, 2
      %v3267 = vsel %vm2815, %v3264, %v3266
      %v3268 = vrot.slane %v3243, 2
      %v3269 = vsel %vm2815, %v3266, %v3268
      %v3270 = vrot.slane %v3244, 2
      %v3271 = vsel %vm2815, %v3268, %v3270
      %v3272 = vrot.slane %v3245, 2
      %v3273 = vsel %vm2815, %v3270, %v3272
      %v3274 = vrot.slane %v3246, 2
      %v3275 = vsel %vm2815, %v3272, %v3274
      %v3276 = vrot.slane %v3247, 2
      %v3277 = vsel %vm2815, %v3274, %v3276
      %v3278 = vrot.slane %v3248, 2
      %v3279 = vsel %vm2815, %v3276, %v3278
      %v3280 = vrot.slane %v3249, 2
      %v3281 = vsel %vm2815, %v3278, %v3280
      %v3282 = vrot.slane %v3250, 2
      %v3283 = vsel %vm2815, %v3280, %v3282
      %v3284 = vrot.slane %v3251, 2
      %v3285 = vsel %vm2815, %v3282, %v3284
      %v3286 = vrot.slane %v3252, 2
      %v3287 = vsel %vm2815, %v3284, %v3286
      %v3288 = vrot.slane %v3253, 2
      %v3289 = vsel %vm2815, %v3286, %v3288
      %v3290 = vrot.slane %v3254, 2
      %v3291 = vsel %vm2815, %v3288, %v3290
      %v3293 = vsel %vm1157, %v3257, 0
      %v3296 = vsel %vm1157, %v3259, 0
      %v3299 = vsel %vm1157, %v3261, 0
      %v3302 = vsel %vm1157, %v3263, 0
      %v3305 = vsel %vm1157, %v3265, 0
      %v3308 = vsel %vm1157, %v3267, 0
      %v3311 = vsel %vm1157, %v3269, 0
      %v3314 = vsel %vm1157, %v3271, 0
      %v3317 = vsel %vm1157, %v3273, 0
      %v3320 = vsel %vm1157, %v3275, 0
      %v3323 = vsel %vm1157, %v3277, 0
      %v3326 = vsel %vm1157, %v3279, 0
      %v3329 = vsel %vm1157, %v3281, 0
      %v3332 = vsel %vm1157, %v3283, 0
      %v3335 = vsel %vm1157, %v3285, 0
      %v3338 = vsel %vm1157, %v3287, 0
      %v3341 = vsel %vm1157, %v3289, 0
      %v3344 = vsel %vm1157, %v3291, 0
      %v3347 = vsel %vm1212, %v3161, 0
      %3349 = vmatprep.subr.bf16.mxu0 0
      %3350 = vmatpush1.bf16.msra.mxu0 %v3347
      %3351 = vmatprep.subr.bf16.mxu0 0
      %3352 = vmatpush1.bf16.msra.mxu0 0
      %3353 = vmatprep.subr.bf16.mxu0 0
      %3354 = vmatpush1.bf16.msra.mxu0 0
      %3355 = vmatprep.subr.bf16.mxu0 0
      %3356 = vmatpush1.bf16.msra.mxu0 0
      %3357 = vmatprep.subr.bf16.mxu0 0
      %3358 = vmatpush1.bf16.msra.mxu0 0
      %3359 = vmatprep.subr.bf16.mxu0 0
      %3360 = vmatpush1.bf16.msra.mxu0 0
      %3361 = vmatprep.subr.bf16.mxu0 0
      %3362 = vmatpush1.bf16.msra.mxu0 0
      %3363 = vmatprep.subr.bf16.mxu0 0
      %3364 = vmatpush1.bf16.msra.mxu0 0
      %3365 = vmatprep.subr.bf16.mxu0 0
      %3366 = vmatpush1.bf16.msra.mxu0 0
      %3367 = vmatprep.subr.bf16.mxu0 0
      %3368 = vmatpush1.bf16.msra.mxu0 0
      %3369 = vmatprep.subr.bf16.mxu0 0
      %3370 = vmatpush1.bf16.msra.mxu0 0
      %3371 = vmatprep.subr.bf16.mxu0 0
      %3372 = vmatpush1.bf16.msra.mxu0 0
      %3373 = vmatprep.subr.bf16.mxu0 0
      %3374 = vmatpush1.bf16.msra.mxu0 0
      %3375 = vmatprep.subr.bf16.mxu0 0
      %3376 = vmatpush1.bf16.msra.mxu0 0
      %3377 = vmatprep.subr.bf16.mxu0 0
      %3378 = vmatpush1.bf16.msra.mxu0 0
      %3379 = vmatprep.subr.bf16.mxu0 0
      %3380 = vmatpush1.bf16.msra.mxu0 0
      %3381 = vmatprep.mubr.bf16.mxu0 0
      %3382 = vmatmul.mubr.bf16.gmra.mrb[0].mxu0 %v3293
      %v3383 = vpop.f32.mrb[0].mxu0
      %v3384 = vadd.f32 0.0, %v3383
      %v3385 = vpop.f32.mrb[0].mxu0
      %v3386 = vpop.f32.mrb[0].mxu0
      %v3387 = vadd.f32 0.0, %v3386
      %v3388 = vpop.f32.mrb[0].mxu0
      %3389 = vmatprep.mubr.bf16.mxu0 0
      %3390 = vmatmul.mubr.bf16.gmra.mrb[0].mxu0 %v3296
      %v3391 = vpop.f32.mrb[0].mxu0
      %v3392 = vadd.f32 0.0, %v3391
      %v3393 = vpop.f32.mrb[0].mxu0
      %v3394 = vpop.f32.mrb[0].mxu0
      %v3395 = vadd.f32 0.0, %v3394
      %v3396 = vpop.f32.mrb[0].mxu0
      %3397 = vmatprep.mubr.bf16.mxu0 0
      %3398 = vmatmul.mubr.bf16.gmra.mrb[0].mxu0 %v3299
      %v3399 = vpop.f32.mrb[0].mxu0
      %v3400 = vadd.f32 0.0, %v3399
      %v3401 = vpop.f32.mrb[0].mxu0
      %v3402 = vpop.f32.mrb[0].mxu0
      %v3403 = vadd.f32 0.0, %v3402
      %v3404 = vpop.f32.mrb[0].mxu0
      %3405 = vmatprep.mubr.bf16.mxu0 0
      %3406 = vmatmul.mubr.bf16.gmra.mrb[0].mxu0 %v3302
      %v3407 = vpop.f32.mrb[0].mxu0
      %v3408 = vadd.f32 0.0, %v3407
      %v3409 = vpop.f32.mrb[0].mxu0
      %v3410 = vpop.f32.mrb[0].mxu0
      %v3411 = vadd.f32 0.0, %v3410
      %v3412 = vpop.f32.mrb[0].mxu0
      %3413 = vmatprep.mubr.bf16.mxu0 0
      %3414 = vmatmul.mubr.bf16.gmra.mrb[0].mxu0 %v3305
      %v3415 = vpop.f32.mrb[0].mxu0
      %v3416 = vadd.f32 0.0, %v3415
      %v3417 = vpop.f32.mrb[0].mxu0
      %v3418 = vpop.f32.mrb[0].mxu0
      %v3419 = vadd.f32 0.0, %v3418
      %v3420 = vpop.f32.mrb[0].mxu0
      %3421 = vmatprep.mubr.bf16.mxu0 0
      %3422 = vmatmul.mubr.bf16.gmra.mrb[0].mxu0 %v3308
      %v3423 = vpop.f32.mrb[0].mxu0
      %v3424 = vadd.f32 0.0, %v3423
      %v3425 = vpop.f32.mrb[0].mxu0
      %v3426 = vpop.f32.mrb[0].mxu0
      %v3427 = vadd.f32 0.0, %v3426
      %v3428 = vpop.f32.mrb[0].mxu0
      %3429 = vmatprep.mubr.bf16.mxu0 0
      %3430 = vmatmul.mubr.bf16.gmra.mrb[0].mxu0 %v3311
      %v3431 = vpop.f32.mrb[0].mxu0
      %v3432 = vadd.f32 0.0, %v3431
      %v3433 = vpop.f32.mrb[0].mxu0
      %v3434 = vpop.f32.mrb[0].mxu0
      %v3435 = vadd.f32 0.0, %v3434
      %v3436 = vpop.f32.mrb[0].mxu0
      %3437 = vmatprep.mubr.bf16.mxu0 0
      %3438 = vmatmul.mubr.bf16.gmra.mrb[0].mxu0 %v3314
      %v3439 = vpop.f32.mrb[0].mxu0
      %v3440 = vadd.f32 0.0, %v3439
      %v3441 = vpop.f32.mrb[0].mxu0
      %v3442 = vpop.f32.mrb[0].mxu0
      %v3443 = vadd.f32 0.0, %v3442
      %v3444 = vpop.f32.mrb[0].mxu0
      %3445 = vmatprep.mubr.bf16.mxu0 0
      %3446 = vmatmul.mubr.bf16.gmra.mrb[0].mxu0 %v3317
      %v3447 = vpop.f32.mrb[0].mxu0
      %v3448 = vadd.f32 0.0, %v3447
      %v3449 = vpop.f32.mrb[0].mxu0
      %v3450 = vpop.f32.mrb[0].mxu0
      %v3451 = vadd.f32 0.0, %v3450
      %v3452 = vpop.f32.mrb[0].mxu0
      %3453 = vmatprep.mubr.bf16.mxu0 0
      %3454 = vmatmul.mubr.bf16.gmra.mrb[0].mxu0 %v3320
      %v3455 = vpop.f32.mrb[0].mxu0
      %v3456 = vadd.f32 0.0, %v3455
      %v3457 = vpop.f32.mrb[0].mxu0
      %v3458 = vpop.f32.mrb[0].mxu0
      %v3459 = vadd.f32 0.0, %v3458
      %v3460 = vpop.f32.mrb[0].mxu0
      %3461 = vmatprep.mubr.bf16.mxu0 0
      %3462 = vmatmul.mubr.bf16.gmra.mrb[0].mxu0 %v3323
      %v3463 = vpop.f32.mrb[0].mxu0
      %v3464 = vadd.f32 0.0, %v3463
      %v3465 = vpop.f32.mrb[0].mxu0
      %v3466 = vpop.f32.mrb[0].mxu0
      %v3467 = vadd.f32 0.0, %v3466
      %v3468 = vpop.f32.mrb[0].mxu0
      %3469 = vmatprep.mubr.bf16.mxu0 0
      %3470 = vmatmul.mubr.bf16.gmra.mrb[0].mxu0 %v3326
      %v3471 = vpop.f32.mrb[0].mxu0
      %v3472 = vadd.f32 0.0, %v3471
      %v3473 = vpop.f32.mrb[0].mxu0
      %v3474 = vpop.f32.mrb[0].mxu0
      %v3475 = vadd.f32 0.0, %v3474
      %v3476 = vpop.f32.mrb[0].mxu0
      %3477 = vmatprep.mubr.bf16.mxu0 0
      %3478 = vmatmul.mubr.bf16.gmra.mrb[0].mxu0 %v3329
      %v3479 = vpop.f32.mrb[0].mxu0
      %v3480 = vadd.f32 0.0, %v3479
      %v3481 = vpop.f32.mrb[0].mxu0
      %v3482 = vpop.f32.mrb[0].mxu0
      %v3483 = vadd.f32 0.0, %v3482
      %v3484 = vpop.f32.mrb[0].mxu0
      %3485 = vmatprep.mubr.bf16.mxu0 0
      %3486 = vmatmul.mubr.bf16.gmra.mrb[0].mxu0 %v3332
      %v3487 = vpop.f32.mrb[0].mxu0
      %v3488 = vadd.f32 0.0, %v3487
      %v3489 = vpop.f32.mrb[0].mxu0
      %v3490 = vpop.f32.mrb[0].mxu0
      %v3491 = vadd.f32 0.0, %v3490
      %v3492 = vpop.f32.mrb[0].mxu0
      %3493 = vmatprep.mubr.bf16.mxu0 0
      %3494 = vmatmul.mubr.bf16.gmra.mrb[0].mxu0 %v3335
      %v3495 = vpop.f32.mrb[0].mxu0
      %v3496 = vadd.f32 0.0, %v3495
      %v3497 = vpop.f32.mrb[0].mxu0
      %v3498 = vpop.f32.mrb[0].mxu0
      %v3499 = vadd.f32 0.0, %v3498
      %v3500 = vpop.f32.mrb[0].mxu0
      %3501 = vmatprep.mubr.bf16.mxu0 0
      %3502 = vmatmul.mubr.bf16.gmra.mrb[0].mxu0 %v3338
      %v3503 = vpop.f32.mrb[0].mxu0
      %v3504 = vadd.f32 0.0, %v3503
      %v3505 = vpop.f32.mrb[0].mxu0
      %v3506 = vpop.f32.mrb[0].mxu0
      %v3507 = vadd.f32 0.0, %v3506
      %v3508 = vpop.f32.mrb[0].mxu0
      %3509 = vmatprep.mubr.bf16.mxu0 0
      %3510 = vmatmul.mubr.bf16.gmra.mrb[0].mxu0 %v3341
      %v3511 = vpop.f32.mrb[0].mxu0
      %v3512 = vadd.f32 0.0, %v3511
      %v3513 = vpop.f32.mrb[0].mxu0
      %v3514 = vpop.f32.mrb[0].mxu0
      %v3515 = vadd.f32 0.0, %v3514
      %v3516 = vpop.f32.mrb[0].mxu0
      %3517 = vmatprep.mubr.bf16.mxu0 0
      %3518 = vmatmul.mubr.bf16.gmra.mrb[0].mxu0 %v3344
      %v3519 = vpop.f32.mrb[0].mxu0
      %v3520 = vadd.f32 0.0, %v3519
      %v3521 = vpop.f32.mrb[0].mxu0
      %v3522 = vpop.f32.mrb[0].mxu0
      %v3523 = vadd.f32 0.0, %v3522
      %v3524 = vpop.f32.mrb[0].mxu0
      %3525 = vdwg.mxu0
      %v3526 = vadd.f32 %v3087, %v3384
      %v3527 = vadd.f32 %v3088, %v3387
      %v3528 = vadd.f32 %v3089, %v3392
      %v3529 = vadd.f32 %v3090, %v3395
      %v3530 = vadd.f32 %v3091, %v3400
      %v3531 = vadd.f32 %v3092, %v3403
      %v3532 = vadd.f32 %v3093, %v3408
      %v3533 = vadd.f32 %v3094, %v3411
      %v3534 = vadd.f32 %v3095, %v3416
      %v3535 = vadd.f32 %v3096, %v3419
      %v3536 = vadd.f32 %v3097, %v3424
      %v3537 = vadd.f32 %v3098, %v3427
      %v3538 = vadd.f32 %v3099, %v3432
      %v3539 = vadd.f32 %v3100, %v3435
      %v3540 = vadd.f32 %v3101, %v3440
      %v3541 = vadd.f32 %v3102, %v3443
      %v3542 = vadd.f32 %v3103, %v3448
      %v3543 = vadd.f32 %v3104, %v3451
      %v3544 = vadd.f32 %v3105, %v3456
      %v3545 = vadd.f32 %v3106, %v3459
      %v3546 = vadd.f32 %v3107, %v3464
      %v3547 = vadd.f32 %v3108, %v3467
      %v3548 = vadd.f32 %v3109, %v3472
      %v3549 = vadd.f32 %v3110, %v3475
      %v3550 = vadd.f32 %v3111, %v3480
      %v3551 = vadd.f32 %v3112, %v3483
      %v3552 = vadd.f32 %v3113, %v3488
      %v3553 = vadd.f32 %v3114, %v3491
      %v3554 = vadd.f32 %v3115, %v3496
      %v3555 = vadd.f32 %v3116, %v3499
      %v3556 = vadd.f32 %v3117, %v3504
      %v3557 = vadd.f32 %v3118, %v3507
      %v3558 = vadd.f32 %v3119, %v3512
      %v3559 = vadd.f32 %v3120, %v3515
      %v3560 = vadd.f32 %v3121, %v3520
      %v3561 = vadd.f32 %v3122, %v3523
      %v3562 = vld [vmem:[%s219 + $0xa0] sm:$0x7]
      %s3563 = scalar_lea.vmem %s1, 14
      %v3564 = vld [vmem:[%s3563] sm:$0x3]
      %v3566 = vunpack.c.l.b16 %v3562
      %v3567 = vpack.c.b16 %v3566, %v3566
      %vm3568 = vsmask.f32 5376
      %v3570 = vshrl.u32 %v3236, 16
      %v3572 = vrot.slane %v3570, 2
      %v3573 = vshll.u32 %v3236, 16
      %v3575 = vrot.slane %v3573, 3
      %v3576 = vor.u32 %v3572, %v3575
      %v3578 = vshrl.u32 %v3237, 16
      %v3580 = vrot.slane %v3578, 2
      %v3581 = vshll.u32 %v3237, 16
      %v3583 = vrot.slane %v3581, 3
      %v3584 = vor.u32 %v3580, %v3583
      %v3585 = vsel %vm3568, %v3576, %v3584
      %v3587 = vshrl.u32 %v3238, 16
      %v3589 = vrot.slane %v3587, 2
      %v3590 = vshll.u32 %v3238, 16
      %v3592 = vrot.slane %v3590, 3
      %v3593 = vor.u32 %v3589, %v3592
      %v3594 = vsel %vm3568, %v3584, %v3593
      %v3596 = vshrl.u32 %v3239, 16
      %v3598 = vrot.slane %v3596, 2
      %v3599 = vshll.u32 %v3239, 16
      %v3601 = vrot.slane %v3599, 3
      %v3602 = vor.u32 %v3598, %v3601
      %v3603 = vsel %vm3568, %v3593, %v3602
      %v3605 = vshrl.u32 %v3240, 16
      %v3607 = vrot.slane %v3605, 2
      %v3608 = vshll.u32 %v3240, 16
      %v3610 = vrot.slane %v3608, 3
      %v3611 = vor.u32 %v3607, %v3610
      %v3612 = vsel %vm3568, %v3602, %v3611
      %v3614 = vshrl.u32 %v3241, 16
      %v3616 = vrot.slane %v3614, 2
      %v3617 = vshll.u32 %v3241, 16
      %v3619 = vrot.slane %v3617, 3
      %v3620 = vor.u32 %v3616, %v3619
      %v3621 = vsel %vm3568, %v3611, %v3620
      %v3623 = vshrl.u32 %v3242, 16
      %v3625 = vrot.slane %v3623, 2
      %v3626 = vshll.u32 %v3242, 16
      %v3628 = vrot.slane %v3626, 3
      %v3629 = vor.u32 %v3625, %v3628
      %v3630 = vsel %vm3568, %v3620, %v3629
      %v3632 = vshrl.u32 %v3243, 16
      %v3634 = vrot.slane %v3632, 2
      %v3635 = vshll.u32 %v3243, 16
      %v3637 = vrot.slane %v3635, 3
      %v3638 = vor.u32 %v3634, %v3637
      %v3639 = vsel %vm3568, %v3629, %v3638
      %v3641 = vshrl.u32 %v3244, 16
      %v3643 = vrot.slane %v3641, 2
      %v3644 = vshll.u32 %v3244, 16
      %v3646 = vrot.slane %v3644, 3
      %v3647 = vor.u32 %v3643, %v3646
      %v3648 = vsel %vm3568, %v3638, %v3647
      %v3650 = vshrl.u32 %v3245, 16
      %v3652 = vrot.slane %v3650, 2
      %v3653 = vshll.u32 %v3245, 16
      %v3655 = vrot.slane %v3653, 3
      %v3656 = vor.u32 %v3652, %v3655
      %v3657 = vsel %vm3568, %v3647, %v3656
      %v3659 = vshrl.u32 %v3246, 16
      %v3661 = vrot.slane %v3659, 2
      %v3662 = vshll.u32 %v3246, 16
      %v3664 = vrot.slane %v3662, 3
      %v3665 = vor.u32 %v3661, %v3664
      %v3666 = vsel %vm3568, %v3656, %v3665
      %v3668 = vshrl.u32 %v3247, 16
      %v3670 = vrot.slane %v3668, 2
      %v3671 = vshll.u32 %v3247, 16
      %v3673 = vrot.slane %v3671, 3
      %v3674 = vor.u32 %v3670, %v3673
      %v3675 = vsel %vm3568, %v3665, %v3674
      %v3677 = vshrl.u32 %v3248, 16
      %v3679 = vrot.slane %v3677, 2
      %v3680 = vshll.u32 %v3248, 16
      %v3682 = vrot.slane %v3680, 3
      %v3683 = vor.u32 %v3679, %v3682
      %v3684 = vsel %vm3568, %v3674, %v3683
      %v3686 = vshrl.u32 %v3249, 16
      %v3688 = vrot.slane %v3686, 2
      %v3689 = vshll.u32 %v3249, 16
      %v3691 = vrot.slane %v3689, 3
      %v3692 = vor.u32 %v3688, %v3691
      %v3693 = vsel %vm3568, %v3683, %v3692
      %v3695 = vshrl.u32 %v3250, 16
      %v3697 = vrot.slane %v3695, 2
      %v3698 = vshll.u32 %v3250, 16
      %v3700 = vrot.slane %v3698, 3
      %v3701 = vor.u32 %v3697, %v3700
      %v3702 = vsel %vm3568, %v3692, %v3701
      %v3704 = vshrl.u32 %v3251, 16
      %v3706 = vrot.slane %v3704, 2
      %v3707 = vshll.u32 %v3251, 16
      %v3709 = vrot.slane %v3707, 3
      %v3710 = vor.u32 %v3706, %v3709
      %v3711 = vsel %vm3568, %v3701, %v3710
      %v3713 = vshrl.u32 %v3252, 16
      %v3715 = vrot.slane %v3713, 2
      %v3716 = vshll.u32 %v3252, 16
      %v3718 = vrot.slane %v3716, 3
      %v3719 = vor.u32 %v3715, %v3718
      %v3720 = vsel %vm3568, %v3710, %v3719
      %v3722 = vshrl.u32 %v3253, 16
      %v3724 = vrot.slane %v3722, 2
      %v3725 = vshll.u32 %v3253, 16
      %v3727 = vrot.slane %v3725, 3
      %v3728 = vor.u32 %v3724, %v3727
      %v3729 = vsel %vm3568, %v3719, %v3728
      %v3731 = vshrl.u32 %v3567, 16
      %v3733 = vrot.slane %v3731, 2
      %v3734 = vshll.u32 %v3567, 16
      %v3736 = vrot.slane %v3734, 3
      %v3737 = vor.u32 %v3733, %v3736
      %v3738 = vsel %vm3568, %v3728, %v3737
      %v3740 = vsel %vm1157, %v3585, 0
      %v3743 = vsel %vm1157, %v3594, 0
      %v3746 = vsel %vm1157, %v3603, 0
      %v3749 = vsel %vm1157, %v3612, 0
      %v3752 = vsel %vm1157, %v3621, 0
      %v3755 = vsel %vm1157, %v3630, 0
      %v3758 = vsel %vm1157, %v3639, 0
      %v3761 = vsel %vm1157, %v3648, 0
      %v3764 = vsel %vm1157, %v3657, 0
      %v3767 = vsel %vm1157, %v3666, 0
      %v3770 = vsel %vm1157, %v3675, 0
      %v3773 = vsel %vm1157, %v3684, 0
      %v3776 = vsel %vm1157, %v3693, 0
      %v3779 = vsel %vm1157, %v3702, 0
      %v3782 = vsel %vm1157, %v3711, 0
      %v3785 = vsel %vm1157, %v3720, 0
      %v3788 = vsel %vm1157, %v3729, 0
      %v3791 = vsel %vm1157, %v3738, 0
      %v3794 = vsel %vm1212, %v3564, 0
      %3796 = vmatprep.subr.bf16.mxu0 0
      %3797 = vmatpush1.bf16.msra.mxu0 %v3794
      %3798 = vmatprep.subr.bf16.mxu0 0
      %3799 = vmatpush1.bf16.msra.mxu0 0
      %3800 = vmatprep.subr.bf16.mxu0 0
      %3801 = vmatpush1.bf16.msra.mxu0 0
      %3802 = vmatprep.subr.bf16.mxu0 0
      %3803 = vmatpush1.bf16.msra.mxu0 0
      %3804 = vmatprep.subr.bf16.mxu0 0
      %3805 = vmatpush1.bf16.msra.mxu0 0
      %3806 = vmatprep.subr.bf16.mxu0 0
      %3807 = vmatpush1.bf16.msra.mxu0 0
      %3808 = vmatprep.subr.bf16.mxu0 0
      %3809 = vmatpush1.bf16.msra.mxu0 0
      %3810 = vmatprep.subr.bf16.mxu0 0
      %3811 = vmatpush1.bf16.msra.mxu0 0
      %3812 = vmatprep.subr.bf16.mxu0 0
      %3813 = vmatpush1.bf16.msra.mxu0 0
      %3814 = vmatprep.subr.bf16.mxu0 0
      %3815 = vmatpush1.bf16.msra.mxu0 0
      %3816 = vmatprep.subr.bf16.mxu0 0
      %3817 = vmatpush1.bf16.msra.mxu0 0
      %3818 = vmatprep.subr.bf16.mxu0 0
      %3819 = vmatpush1.bf16.msra.mxu0 0
      %3820 = vmatprep.subr.bf16.mxu0 0
      %3821 = vmatpush1.bf16.msra.mxu0 0
      %3822 = vmatprep.subr.bf16.mxu0 0
      %3823 = vmatpush1.bf16.msra.mxu0 0
      %3824 = vmatprep.subr.bf16.mxu0 0
      %3825 = vmatpush1.bf16.msra.mxu0 0
      %3826 = vmatprep.subr.bf16.mxu0 0
      %3827 = vmatpush1.bf16.msra.mxu0 0
      %3828 = vmatprep.mubr.bf16.mxu0 0
      %3829 = vmatmul.mubr.bf16.gmra.mrb[0].mxu0 %v3740
      %v3830 = vpop.f32.mrb[0].mxu0
      %v3831 = vadd.f32 0.0, %v3830
      %v3832 = vpop.f32.mrb[0].mxu0
      %v3833 = vpop.f32.mrb[0].mxu0
      %v3834 = vadd.f32 0.0, %v3833
      %v3835 = vpop.f32.mrb[0].mxu0
      %3836 = vmatprep.mubr.bf16.mxu0 0
      %3837 = vmatmul.mubr.bf16.gmra.mrb[0].mxu0 %v3743
      %v3838 = vpop.f32.mrb[0].mxu0
      %v3839 = vadd.f32 0.0, %v3838
      %v3840 = vpop.f32.mrb[0].mxu0
      %v3841 = vpop.f32.mrb[0].mxu0
      %v3842 = vadd.f32 0.0, %v3841
      %v3843 = vpop.f32.mrb[0].mxu0
      %3844 = vmatprep.mubr.bf16.mxu0 0
      %3845 = vmatmul.mubr.bf16.gmra.mrb[0].mxu0 %v3746
      %v3846 = vpop.f32.mrb[0].mxu0
      %v3847 = vadd.f32 0.0, %v3846
      %v3848 = vpop.f32.mrb[0].mxu0
      %v3849 = vpop.f32.mrb[0].mxu0
      %v3850 = vadd.f32 0.0, %v3849
      %v3851 = vpop.f32.mrb[0].mxu0
      %3852 = vmatprep.mubr.bf16.mxu0 0
      %3853 = vmatmul.mubr.bf16.gmra.mrb[0].mxu0 %v3749
      %v3854 = vpop.f32.mrb[0].mxu0
      %v3855 = vadd.f32 0.0, %v3854
      %v3856 = vpop.f32.mrb[0].mxu0
      %v3857 = vpop.f32.mrb[0].mxu0
      %v3858 = vadd.f32 0.0, %v3857
      %v3859 = vpop.f32.mrb[0].mxu0
      %3860 = vmatprep.mubr.bf16.mxu0 0
      %3861 = vmatmul.mubr.bf16.gmra.mrb[0].mxu0 %v3752
      %v3862 = vpop.f32.mrb[0].mxu0
      %v3863 = vadd.f32 0.0, %v3862
      %v3864 = vpop.f32.mrb[0].mxu0
      %v3865 = vpop.f32.mrb[0].mxu0
      %v3866 = vadd.f32 0.0, %v3865
      %v3867 = vpop.f32.mrb[0].mxu0
      %3868 = vmatprep.mubr.bf16.mxu0 0
      %3869 = vmatmul.mubr.bf16.gmra.mrb[0].mxu0 %v3755
      %v3870 = vpop.f32.mrb[0].mxu0
      %v3871 = vadd.f32 0.0, %v3870
      %v3872 = vpop.f32.mrb[0].mxu0
      %v3873 = vpop.f32.mrb[0].mxu0
      %v3874 = vadd.f32 0.0, %v3873
      %v3875 = vpop.f32.mrb[0].mxu0
      %3876 = vmatprep.mubr.bf16.mxu0 0
      %3877 = vmatmul.mubr.bf16.gmra.mrb[0].mxu0 %v3758
      %v3878 = vpop.f32.mrb[0].mxu0
      %v3879 = vadd.f32 0.0, %v3878
      %v3880 = vpop.f32.mrb[0].mxu0
      %v3881 = vpop.f32.mrb[0].mxu0
      %v3882 = vadd.f32 0.0, %v3881
      %v3883 = vpop.f32.mrb[0].mxu0
      %3884 = vmatprep.mubr.bf16.mxu0 0
      %3885 = vmatmul.mubr.bf16.gmra.mrb[0].mxu0 %v3761
      %v3886 = vpop.f32.mrb[0].mxu0
      %v3887 = vadd.f32 0.0, %v3886
      %v3888 = vpop.f32.mrb[0].mxu0
      %v3889 = vpop.f32.mrb[0].mxu0
      %v3890 = vadd.f32 0.0, %v3889
      %v3891 = vpop.f32.mrb[0].mxu0
      %3892 = vmatprep.mubr.bf16.mxu0 0
      %3893 = vmatmul.mubr.bf16.gmra.mrb[0].mxu0 %v3764
      %v3894 = vpop.f32.mrb[0].mxu0
      %v3895 = vadd.f32 0.0, %v3894
      %v3896 = vpop.f32.mrb[0].mxu0
      %v3897 = vpop.f32.mrb[0].mxu0
      %v3898 = vadd.f32 0.0, %v3897
      %v3899 = vpop.f32.mrb[0].mxu0
      %3900 = vmatprep.mubr.bf16.mxu0 0
      %3901 = vmatmul.mubr.bf16.gmra.mrb[0].mxu0 %v3767
      %v3902 = vpop.f32.mrb[0].mxu0
      %v3903 = vadd.f32 0.0, %v3902
      %v3904 = vpop.f32.mrb[0].mxu0
      %v3905 = vpop.f32.mrb[0].mxu0
      %v3906 = vadd.f32 0.0, %v3905
      %v3907 = vpop.f32.mrb[0].mxu0
      %3908 = vmatprep.mubr.bf16.mxu0 0
      %3909 = vmatmul.mubr.bf16.gmra.mrb[0].mxu0 %v3770
      %v3910 = vpop.f32.mrb[0].mxu0
      %v3911 = vadd.f32 0.0, %v3910
      %v3912 = vpop.f32.mrb[0].mxu0
      %v3913 = vpop.f32.mrb[0].mxu0
      %v3914 = vadd.f32 0.0, %v3913
      %v3915 = vpop.f32.mrb[0].mxu0
      %3916 = vmatprep.mubr.bf16.mxu0 0
      %3917 = vmatmul.mubr.bf16.gmra.mrb[0].mxu0 %v3773
      %v3918 = vpop.f32.mrb[0].mxu0
      %v3919 = vadd.f32 0.0, %v3918
      %v3920 = vpop.f32.mrb[0].mxu0
      %v3921 = vpop.f32.mrb[0].mxu0
      %v3922 = vadd.f32 0.0, %v3921
      %v3923 = vpop.f32.mrb[0].mxu0
      %3924 = vmatprep.mubr.bf16.mxu0 0
      %3925 = vmatmul.mubr.bf16.gmra.mrb[0].mxu0 %v3776
      %v3926 = vpop.f32.mrb[0].mxu0
      %v3927 = vadd.f32 0.0, %v3926
      %v3928 = vpop.f32.mrb[0].mxu0
      %v3929 = vpop.f32.mrb[0].mxu0
      %v3930 = vadd.f32 0.0, %v3929
      %v3931 = vpop.f32.mrb[0].mxu0
      %3932 = vmatprep.mubr.bf16.mxu0 0
      %3933 = vmatmul.mubr.bf16.gmra.mrb[0].mxu0 %v3779
      %v3934 = vpop.f32.mrb[0].mxu0
      %v3935 = vadd.f32 0.0, %v3934
      %v3936 = vpop.f32.mrb[0].mxu0
      %v3937 = vpop.f32.mrb[0].mxu0
      %v3938 = vadd.f32 0.0, %v3937
      %v3939 = vpop.f32.mrb[0].mxu0
      %3940 = vmatprep.mubr.bf16.mxu0 0
      %3941 = vmatmul.mubr.bf16.gmra.mrb[0].mxu0 %v3782
      %v3942 = vpop.f32.mrb[0].mxu0
      %v3943 = vadd.f32 0.0, %v3942
      %v3944 = vpop.f32.mrb[0].mxu0
      %v3945 = vpop.f32.mrb[0].mxu0
      %v3946 = vadd.f32 0.0, %v3945
      %v3947 = vpop.f32.mrb[0].mxu0
      %3948 = vmatprep.mubr.bf16.mxu0 0
      %3949 = vmatmul.mubr.bf16.gmra.mrb[0].mxu0 %v3785
      %v3950 = vpop.f32.mrb[0].mxu0
      %v3951 = vadd.f32 0.0, %v3950
      %v3952 = vpop.f32.mrb[0].mxu0
      %v3953 = vpop.f32.mrb[0].mxu0
      %v3954 = vadd.f32 0.0, %v3953
      %v3955 = vpop.f32.mrb[0].mxu0
      %3956 = vmatprep.mubr.bf16.mxu0 0
      %3957 = vmatmul.mubr.bf16.gmra.mrb[0].mxu0 %v3788
      %v3958 = vpop.f32.mrb[0].mxu0
      %v3959 = vadd.f32 0.0, %v3958
      %v3960 = vpop.f32.mrb[0].mxu0
      %v3961 = vpop.f32.mrb[0].mxu0
      %v3962 = vadd.f32 0.0, %v3961
      %v3963 = vpop.f32.mrb[0].mxu0
      %3964 = vmatprep.mubr.bf16.mxu0 0
      %3965 = vmatmul.mubr.bf16.gmra.mrb[0].mxu0 %v3791
      %v3966 = vpop.f32.mrb[0].mxu0
      %v3967 = vadd.f32 0.0, %v3966
      %v3968 = vpop.f32.mrb[0].mxu0
      %v3969 = vpop.f32.mrb[0].mxu0
      %v3970 = vadd.f32 0.0, %v3969
      %v3971 = vpop.f32.mrb[0].mxu0
      %3972 = vdwg.mxu0
      %v3973 = vadd.f32 %v3526, %v3831
      %v3974 = vadd.f32 %v3527, %v3834
      %v3975 = vadd.f32 %v3528, %v3839
      %v3976 = vadd.f32 %v3529, %v3842
      %v3977 = vadd.f32 %v3530, %v3847
      %v3978 = vadd.f32 %v3531, %v3850
      %v3979 = vadd.f32 %v3532, %v3855
      %v3980 = vadd.f32 %v3533, %v3858
      %v3981 = vadd.f32 %v3534, %v3863
      %v3982 = vadd.f32 %v3535, %v3866
      %v3983 = vadd.f32 %v3536, %v3871
      %v3984 = vadd.f32 %v3537, %v3874
      %v3985 = vadd.f32 %v3538, %v3879
      %v3986 = vadd.f32 %v3539, %v3882
      %v3987 = vadd.f32 %v3540, %v3887
      %v3988 = vadd.f32 %v3541, %v3890
      %v3989 = vadd.f32 %v3542, %v3895
      %v3990 = vadd.f32 %v3543, %v3898
      %v3991 = vadd.f32 %v3544, %v3903
      %v3992 = vadd.f32 %v3545, %v3906
      %v3993 = vadd.f32 %v3546, %v3911
      %v3994 = vadd.f32 %v3547, %v3914
      %v3995 = vadd.f32 %v3548, %v3919
      %v3996 = vadd.f32 %v3549, %v3922
      %v3997 = vadd.f32 %v3550, %v3927
      %v3998 = vadd.f32 %v3551, %v3930
      %v3999 = vadd.f32 %v3552, %v3935
      %v4000 = vadd.f32 %v3553, %v3938
      %v4001 = vadd.f32 %v3554, %v3943
      %v4002 = vadd.f32 %v3555, %v3946
      %v4003 = vadd.f32 %v3556, %v3951
      %v4004 = vadd.f32 %v3557, %v3954
      %v4005 = vadd.f32 %v3558, %v3959
      %v4006 = vadd.f32 %v3559, %v3962
      %v4007 = vadd.f32 %v3560, %v3967
      %v4008 = vadd.f32 %v3561, %v3970
      %v4009 = vld [vmem:[%s219 + $0x10] sm:$0x8]
      %s4010 = scalar_lea.vmem %s1, 16
      %v4011 = vld [vmem:[%s4010] sm:$0x3]
      %v4013 = vunpack.c.l.b16 %v4009
      %v4014 = vpack.c.b16 %v3200, %v4013
      %vm4015 = vcmask 1044480
      %v4016 = vrot.slane %v4014, 3
      %v4017 = vrot.slane %v3237, 3
      %v4018 = vsel %vm4015, %v4016, %v4017
      %v4019 = vrot.slane %v3238, 3
      %v4020 = vsel %vm4015, %v4017, %v4019
      %v4021 = vrot.slane %v3239, 3
      %v4022 = vsel %vm4015, %v4019, %v4021
      %v4023 = vrot.slane %v3240, 3
      %v4024 = vsel %vm4015, %v4021, %v4023
      %v4025 = vrot.slane %v3241, 3
      %v4026 = vsel %vm4015, %v4023, %v4025
      %v4027 = vrot.slane %v3242, 3
      %v4028 = vsel %vm4015, %v4025, %v4027
      %v4029 = vrot.slane %v3243, 3
      %v4030 = vsel %vm4015, %v4027, %v4029
      %v4031 = vrot.slane %v3244, 3
      %v4032 = vsel %vm4015, %v4029, %v4031
      %v4033 = vrot.slane %v3245, 3
      %v4034 = vsel %vm4015, %v4031, %v4033
      %v4035 = vrot.slane %v3246, 3
      %v4036 = vsel %vm4015, %v4033, %v4035
      %v4037 = vrot.slane %v3247, 3
      %v4038 = vsel %vm4015, %v4035, %v4037
      %v4039 = vrot.slane %v3248, 3
      %v4040 = vsel %vm4015, %v4037, %v4039
      %v4041 = vrot.slane %v3249, 3
      %v4042 = vsel %vm4015, %v4039, %v4041
      %v4043 = vrot.slane %v3250, 3
      %v4044 = vsel %vm4015, %v4041, %v4043
      %v4045 = vrot.slane %v3251, 3
      %v4046 = vsel %vm4015, %v4043, %v4045
      %v4047 = vrot.slane %v3252, 3
      %v4048 = vsel %vm4015, %v4045, %v4047
      %v4049 = vrot.slane %v3253, 3
      %v4050 = vsel %vm4015, %v4047, %v4049
      %v4051 = vrot.slane %v3567, 3
      %v4052 = vsel %vm4015, %v4049, %v4051
      %v4054 = vsel %vm1157, %v4018, 0
      %v4057 = vsel %vm1157, %v4020, 0
      %v4060 = vsel %vm1157, %v4022, 0
      %v4063 = vsel %vm1157, %v4024, 0
      %v4066 = vsel %vm1157, %v4026, 0
      %v4069 = vsel %vm1157, %v4028, 0
      %v4072 = vsel %vm1157, %v4030, 0
      %v4075 = vsel %vm1157, %v4032, 0
      %v4078 = vsel %vm1157, %v4034, 0
      %v4081 = vsel %vm1157, %v4036, 0
      %v4084 = vsel %vm1157, %v4038, 0
      %v4087 = vsel %vm1157, %v4040, 0
      %v4090 = vsel %vm1157, %v4042, 0
      %v4093 = vsel %vm1157, %v4044, 0
      %v4096 = vsel %vm1157, %v4046, 0
      %v4099 = vsel %vm1157, %v4048, 0
      %v4102 = vsel %vm1157, %v4050, 0
      %v4105 = vsel %vm1157, %v4052, 0
      %v4108 = vsel %vm1212, %v4011, 0
      %4110 = vmatprep.subr.bf16.mxu0 0
      %4111 = vmatpush1.bf16.msra.mxu0 %v4108
      %4112 = vmatprep.subr.bf16.mxu0 0
      %4113 = vmatpush1.bf16.msra.mxu0 0
      %4114 = vmatprep.subr.bf16.mxu0 0
      %4115 = vmatpush1.bf16.msra.mxu0 0
      %4116 = vmatprep.subr.bf16.mxu0 0
      %4117 = vmatpush1.bf16.msra.mxu0 0
      %4118 = vmatprep.subr.bf16.mxu0 0
      %4119 = vmatpush1.bf16.msra.mxu0 0
      %4120 = vmatprep.subr.bf16.mxu0 0
      %4121 = vmatpush1.bf16.msra.mxu0 0
      %4122 = vmatprep.subr.bf16.mxu0 0
      %4123 = vmatpush1.bf16.msra.mxu0 0
      %4124 = vmatprep.subr.bf16.mxu0 0
      %4125 = vmatpush1.bf16.msra.mxu0 0
      %4126 = vmatprep.subr.bf16.mxu0 0
      %4127 = vmatpush1.bf16.msra.mxu0 0
      %4128 = vmatprep.subr.bf16.mxu0 0
      %4129 = vmatpush1.bf16.msra.mxu0 0
      %4130 = vmatprep.subr.bf16.mxu0 0
      %4131 = vmatpush1.bf16.msra.mxu0 0
      %4132 = vmatprep.subr.bf16.mxu0 0
      %4133 = vmatpush1.bf16.msra.mxu0 0
      %4134 = vmatprep.subr.bf16.mxu0 0
      %4135 = vmatpush1.bf16.msra.mxu0 0
      %4136 = vmatprep.subr.bf16.mxu0 0
      %4137 = vmatpush1.bf16.msra.mxu0 0
      %4138 = vmatprep.subr.bf16.mxu0 0
      %4139 = vmatpush1.bf16.msra.mxu0 0
      %4140 = vmatprep.subr.bf16.mxu0 0
      %4141 = vmatpush1.bf16.msra.mxu0 0
      %4142 = vmatprep.mubr.bf16.mxu0 0
      %4143 = vmatmul.mubr.bf16.gmra.mrb[0].mxu0 %v4054
      %v4144 = vpop.f32.mrb[0].mxu0
      %v4145 = vadd.f32 0.0, %v4144
      %v4146 = vpop.f32.mrb[0].mxu0
      %v4147 = vpop.f32.mrb[0].mxu0
      %v4148 = vadd.f32 0.0, %v4147
      %v4149 = vpop.f32.mrb[0].mxu0
      %4150 = vmatprep.mubr.bf16.mxu0 0
      %4151 = vmatmul.mubr.bf16.gmra.mrb[0].mxu0 %v4057
      %v4152 = vpop.f32.mrb[0].mxu0
      %v4153 = vadd.f32 0.0, %v4152
      %v4154 = vpop.f32.mrb[0].mxu0
      %v4155 = vpop.f32.mrb[0].mxu0
      %v4156 = vadd.f32 0.0, %v4155
      %v4157 = vpop.f32.mrb[0].mxu0
      %4158 = vmatprep.mubr.bf16.mxu0 0
      %4159 = vmatmul.mubr.bf16.gmra.mrb[0].mxu0 %v4060
      %v4160 = vpop.f32.mrb[0].mxu0
      %v4161 = vadd.f32 0.0, %v4160
      %v4162 = vpop.f32.mrb[0].mxu0
      %v4163 = vpop.f32.mrb[0].mxu0
      %v4164 = vadd.f32 0.0, %v4163
      %v4165 = vpop.f32.mrb[0].mxu0
      %4166 = vmatprep.mubr.bf16.mxu0 0
      %4167 = vmatmul.mubr.bf16.gmra.mrb[0].mxu0 %v4063
      %v4168 = vpop.f32.mrb[0].mxu0
      %v4169 = vadd.f32 0.0, %v4168
      %v4170 = vpop.f32.mrb[0].mxu0
      %v4171 = vpop.f32.mrb[0].mxu0
      %v4172 = vadd.f32 0.0, %v4171
      %v4173 = vpop.f32.mrb[0].mxu0
      %4174 = vmatprep.mubr.bf16.mxu0 0
      %4175 = vmatmul.mubr.bf16.gmra.mrb[0].mxu0 %v4066
      %v4176 = vpop.f32.mrb[0].mxu0
      %v4177 = vadd.f32 0.0, %v4176
      %v4178 = vpop.f32.mrb[0].mxu0
      %v4179 = vpop.f32.mrb[0].mxu0
      %v4180 = vadd.f32 0.0, %v4179
      %v4181 = vpop.f32.mrb[0].mxu0
      %4182 = vmatprep.mubr.bf16.mxu0 0
      %4183 = vmatmul.mubr.bf16.gmra.mrb[0].mxu0 %v4069
      %v4184 = vpop.f32.mrb[0].mxu0
      %v4185 = vadd.f32 0.0, %v4184
      %v4186 = vpop.f32.mrb[0].mxu0
      %v4187 = vpop.f32.mrb[0].mxu0
      %v4188 = vadd.f32 0.0, %v4187
      %v4189 = vpop.f32.mrb[0].mxu0
      %4190 = vmatprep.mubr.bf16.mxu0 0
      %4191 = vmatmul.mubr.bf16.gmra.mrb[0].mxu0 %v4072
      %v4192 = vpop.f32.mrb[0].mxu0
      %v4193 = vadd.f32 0.0, %v4192
      %v4194 = vpop.f32.mrb[0].mxu0
      %v4195 = vpop.f32.mrb[0].mxu0
      %v4196 = vadd.f32 0.0, %v4195
      %v4197 = vpop.f32.mrb[0].mxu0
      %4198 = vmatprep.mubr.bf16.mxu0 0
      %4199 = vmatmul.mubr.bf16.gmra.mrb[0].mxu0 %v4075
      %v4200 = vpop.f32.mrb[0].mxu0
      %v4201 = vadd.f32 0.0, %v4200
      %v4202 = vpop.f32.mrb[0].mxu0
      %v4203 = vpop.f32.mrb[0].mxu0
      %v4204 = vadd.f32 0.0, %v4203
      %v4205 = vpop.f32.mrb[0].mxu0
      %4206 = vmatprep.mubr.bf16.mxu0 0
      %4207 = vmatmul.mubr.bf16.gmra.mrb[0].mxu0 %v4078
      %v4208 = vpop.f32.mrb[0].mxu0
      %v4209 = vadd.f32 0.0, %v4208
      %v4210 = vpop.f32.mrb[0].mxu0
      %v4211 = vpop.f32.mrb[0].mxu0
      %v4212 = vadd.f32 0.0, %v4211
      %v4213 = vpop.f32.mrb[0].mxu0
      %4214 = vmatprep.mubr.bf16.mxu0 0
      %4215 = vmatmul.mubr.bf16.gmra.mrb[0].mxu0 %v4081
      %v4216 = vpop.f32.mrb[0].mxu0
      %v4217 = vadd.f32 0.0, %v4216
      %v4218 = vpop.f32.mrb[0].mxu0
      %v4219 = vpop.f32.mrb[0].mxu0
      %v4220 = vadd.f32 0.0, %v4219
      %v4221 = vpop.f32.mrb[0].mxu0
      %4222 = vmatprep.mubr.bf16.mxu0 0
      %4223 = vmatmul.mubr.bf16.gmra.mrb[0].mxu0 %v4084
      %v4224 = vpop.f32.mrb[0].mxu0
      %v4225 = vadd.f32 0.0, %v4224
      %v4226 = vpop.f32.mrb[0].mxu0
      %v4227 = vpop.f32.mrb[0].mxu0
      %v4228 = vadd.f32 0.0, %v4227
      %v4229 = vpop.f32.mrb[0].mxu0
      %4230 = vmatprep.mubr.bf16.mxu0 0
      %4231 = vmatmul.mubr.bf16.gmra.mrb[0].mxu0 %v4087
      %v4232 = vpop.f32.mrb[0].mxu0
      %v4233 = vadd.f32 0.0, %v4232
      %v4234 = vpop.f32.mrb[0].mxu0
      %v4235 = vpop.f32.mrb[0].mxu0
      %v4236 = vadd.f32 0.0, %v4235
      %v4237 = vpop.f32.mrb[0].mxu0
      %4238 = vmatprep.mubr.bf16.mxu0 0
      %4239 = vmatmul.mubr.bf16.gmra.mrb[0].mxu0 %v4090
      %v4240 = vpop.f32.mrb[0].mxu0
      %v4241 = vadd.f32 0.0, %v4240
      %v4242 = vpop.f32.mrb[0].mxu0
      %v4243 = vpop.f32.mrb[0].mxu0
      %v4244 = vadd.f32 0.0, %v4243
      %v4245 = vpop.f32.mrb[0].mxu0
      %4246 = vmatprep.mubr.bf16.mxu0 0
      %4247 = vmatmul.mubr.bf16.gmra.mrb[0].mxu0 %v4093
      %v4248 = vpop.f32.mrb[0].mxu0
      %v4249 = vadd.f32 0.0, %v4248
      %v4250 = vpop.f32.mrb[0].mxu0
      %v4251 = vpop.f32.mrb[0].mxu0
      %v4252 = vadd.f32 0.0, %v4251
      %v4253 = vpop.f32.mrb[0].mxu0
      %4254 = vmatprep.mubr.bf16.mxu0 0
      %4255 = vmatmul.mubr.bf16.gmra.mrb[0].mxu0 %v4096
      %v4256 = vpop.f32.mrb[0].mxu0
      %v4257 = vadd.f32 0.0, %v4256
      %v4258 = vpop.f32.mrb[0].mxu0
      %v4259 = vpop.f32.mrb[0].mxu0
      %v4260 = vadd.f32 0.0, %v4259
      %v4261 = vpop.f32.mrb[0].mxu0
      %4262 = vmatprep.mubr.bf16.mxu0 0
      %4263 = vmatmul.mubr.bf16.gmra.mrb[0].mxu0 %v4099
      %v4264 = vpop.f32.mrb[0].mxu0
      %v4265 = vadd.f32 0.0, %v4264
      %v4266 = vpop.f32.mrb[0].mxu0
      %v4267 = vpop.f32.mrb[0].mxu0
      %v4268 = vadd.f32 0.0, %v4267
      %v4269 = vpop.f32.mrb[0].mxu0
      %4270 = vmatprep.mubr.bf16.mxu0 0
      %4271 = vmatmul.mubr.bf16.gmra.mrb[0].mxu0 %v4102
      %v4272 = vpop.f32.mrb[0].mxu0
      %v4273 = vadd.f32 0.0, %v4272
      %v4274 = vpop.f32.mrb[0].mxu0
      %v4275 = vpop.f32.mrb[0].mxu0
      %v4276 = vadd.f32 0.0, %v4275
      %v4277 = vpop.f32.mrb[0].mxu0
      %4278 = vmatprep.mubr.bf16.mxu0 0
      %4279 = vmatmul.mubr.bf16.gmra.mrb[0].mxu0 %v4105
      %v4280 = vpop.f32.mrb[0].mxu0
      %v4281 = vadd.f32 0.0, %v4280
      %v4282 = vpop.f32.mrb[0].mxu0
      %v4283 = vpop.f32.mrb[0].mxu0
      %v4284 = vadd.f32 0.0, %v4283
      %v4285 = vpop.f32.mrb[0].mxu0
      %4286 = vdwg.mxu0
      %v4287 = vadd.f32 %v3973, %v4145
      %v4288 = vadd.f32 %v3974, %v4148
      %v4289 = vadd.f32 %v3975, %v4153
      %v4290 = vadd.f32 %v3976, %v4156
      %v4291 = vadd.f32 %v3977, %v4161
      %v4292 = vadd.f32 %v3978, %v4164
      %v4293 = vadd.f32 %v3979, %v4169
      %v4294 = vadd.f32 %v3980, %v4172
      %v4295 = vadd.f32 %v3981, %v4177
      %v4296 = vadd.f32 %v3982, %v4180
      %v4297 = vadd.f32 %v3983, %v4185
      %v4298 = vadd.f32 %v3984, %v4188
      %v4299 = vadd.f32 %v3985, %v4193
      %v4300 = vadd.f32 %v3986, %v4196
      %v4301 = vadd.f32 %v3987, %v4201
      %v4302 = vadd.f32 %v3988, %v4204
      %v4303 = vadd.f32 %v3989, %v4209
      %v4304 = vadd.f32 %v3990, %v4212
      %v4305 = vadd.f32 %v3991, %v4217
      %v4306 = vadd.f32 %v3992, %v4220
      %v4307 = vadd.f32 %v3993, %v4225
      %v4308 = vadd.f32 %v3994, %v4228
      %v4309 = vadd.f32 %v3995, %v4233
      %v4310 = vadd.f32 %v3996, %v4236
      %v4311 = vadd.f32 %v3997, %v4241
      %v4312 = vadd.f32 %v3998, %v4244
      %v4313 = vadd.f32 %v3999, %v4249
      %v4314 = vadd.f32 %v4000, %v4252
      %v4315 = vadd.f32 %v4001, %v4257
      %v4316 = vadd.f32 %v4002, %v4260
      %v4317 = vadd.f32 %v4003, %v4265
      %v4318 = vadd.f32 %v4004, %v4268
      %v4319 = vadd.f32 %v4005, %v4273
      %v4320 = vadd.f32 %v4006, %v4276
      %v4321 = vadd.f32 %v4007, %v4281
      %v4322 = vadd.f32 %v4008, %v4284
      %v4323 = vld [vmem:[%s2] sm:$0x1]
      %v4325 = vlaneseq
      %v4326 = vshrl.u32 %v4325, 7
      %v4327 = vsub.s32 0, %v4326
      %v4328 = vrot.slane %v4323, %v4327
      %v4330 = vadd.f32 %v4287, %v4328
      %v4331 = vadd.f32 %v4288, %v4328
      %v4332 = vadd.f32 %v4289, %v4328
      %v4333 = vadd.f32 %v4290, %v4328
      %v4334 = vadd.f32 %v4291, %v4328
      %v4335 = vadd.f32 %v4292, %v4328
      %v4336 = vadd.f32 %v4293, %v4328
      %v4337 = vadd.f32 %v4294, %v4328
      %v4338 = vadd.f32 %v4295, %v4328
      %v4339 = vadd.f32 %v4296, %v4328
      %v4340 = vadd.f32 %v4297, %v4328
      %v4341 = vadd.f32 %v4298, %v4328
      %v4342 = vadd.f32 %v4299, %v4328
      %v4343 = vadd.f32 %v4300, %v4328
      %v4344 = vadd.f32 %v4301, %v4328
      %v4345 = vadd.f32 %v4302, %v4328
      %v4346 = vadd.f32 %v4303, %v4328
      %v4347 = vadd.f32 %v4304, %v4328
      %v4348 = vadd.f32 %v4305, %v4328
      %v4349 = vadd.f32 %v4306, %v4328
      %v4350 = vadd.f32 %v4307, %v4328
      %v4351 = vadd.f32 %v4308, %v4328
      %v4352 = vadd.f32 %v4309, %v4328
      %v4353 = vadd.f32 %v4310, %v4328
      %v4354 = vadd.f32 %v4311, %v4328
      %v4355 = vadd.f32 %v4312, %v4328
      %v4356 = vadd.f32 %v4313, %v4328
      %v4357 = vadd.f32 %v4314, %v4328
      %v4358 = vadd.f32 %v4315, %v4328
      %v4359 = vadd.f32 %v4316, %v4328
      %v4360 = vadd.f32 %v4317, %v4328
      %v4361 = vadd.f32 %v4318, %v4328
      %v4362 = vadd.f32 %v4319, %v4328
      %v4363 = vadd.f32 %v4320, %v4328
      %v4364 = vadd.f32 %v4321, %v4328
      %v4365 = vadd.f32 %v4322, %v4328
      %v4366 = vmax.f32 %v4330, 0.0
      %v4367 = vmax.f32 %v4331, 0.0
      %v4368 = vmax.f32 %v4332, 0.0
      %v4369 = vmax.f32 %v4333, 0.0
      %v4370 = vmax.f32 %v4334, 0.0
      %v4371 = vmax.f32 %v4335, 0.0
      %v4372 = vmax.f32 %v4336, 0.0
      %v4373 = vmax.f32 %v4337, 0.0
      %v4374 = vmax.f32 %v4338, 0.0
      %v4375 = vmax.f32 %v4339, 0.0
      %v4376 = vmax.f32 %v4340, 0.0
      %v4377 = vmax.f32 %v4341, 0.0
      %v4378 = vmax.f32 %v4342, 0.0
      %v4379 = vmax.f32 %v4343, 0.0
      %v4380 = vmax.f32 %v4344, 0.0
      %v4381 = vmax.f32 %v4345, 0.0
      %v4382 = vmax.f32 %v4346, 0.0
      %v4383 = vmax.f32 %v4347, 0.0
      %v4384 = vmax.f32 %v4348, 0.0
      %v4385 = vmax.f32 %v4349, 0.0
      %v4386 = vmax.f32 %v4350, 0.0
      %v4387 = vmax.f32 %v4351, 0.0
      %v4388 = vmax.f32 %v4352, 0.0
      %v4389 = vmax.f32 %v4353, 0.0
      %v4390 = vmax.f32 %v4354, 0.0
      %v4391 = vmax.f32 %v4355, 0.0
      %v4392 = vmax.f32 %v4356, 0.0
      %v4393 = vmax.f32 %v4357, 0.0
      %v4394 = vmax.f32 %v4358, 0.0
      %v4395 = vmax.f32 %v4359, 0.0
      %v4396 = vmax.f32 %v4360, 0.0
      %v4397 = vmax.f32 %v4361, 0.0
      %v4398 = vmax.f32 %v4362, 0.0
      %v4399 = vmax.f32 %v4363, 0.0
      %v4400 = vmax.f32 %v4364, 0.0
      %v4401 = vmax.f32 %v4365, 0.0
      %v4402 = vsel %vm839, 1, 0
      %v4403 = vsel %vm840, 1, 0
      %v4404 = vsel %vm841, 1, 0
      %v4405 = vsel %vm842, 1, 0
      %v4406 = vsel %vm843, 1, 0
      %v4407 = vsel %vm844, 1, 0
      %v4408 = vsel %vm845, 1, 0
      %v4409 = vsel %vm846, 1, 0
      %v4410 = vsel %vm847, 1, 0
      %v4411 = vsel %vm848, 1, 0
      %v4412 = vsel %vm849, 1, 0
      %v4413 = vsel %vm850, 1, 0
      %v4414 = vsel %vm851, 1, 0
      %v4415 = vsel %vm852, 1, 0
      %v4416 = vsel %vm853, 1, 0
      %v4417 = vsel %vm854, 1, 0
      %v4418 = vsel %vm855, 1, 0
      %v4419 = vsel %vm856, 1, 0
      %v4420 = vsel %vm857, 1, 0
      %v4421 = vsel %vm858, 1, 0
      %v4422 = vsel %vm859, 1, 0
      %v4423 = vsel %vm860, 1, 0
      %v4424 = vsel %vm861, 1, 0
      %v4425 = vsel %vm862, 1, 0
      %v4426 = vsel %vm863, 1, 0
      %v4427 = vsel %vm864, 1, 0
      %v4428 = vsel %vm865, 1, 0
      %v4429 = vsel %vm866, 1, 0
      %v4430 = vsel %vm867, 1, 0
      %v4431 = vsel %vm868, 1, 0
      %v4432 = vsel %vm869, 1, 0
      %v4433 = vsel %vm870, 1, 0
      %v4434 = vsel %vm871, 1, 0
      %v4435 = vsel %vm872, 1, 0
      %v4436 = vsel %vm873, 1, 0
      %v4437 = vsel %vm874, 1, 0
      %vm4438 = vcmp.eq.s32.totalorder %v4402, 1
      %vm4439 = vcmp.eq.s32.totalorder %v4403, 1
      %vm4440 = vcmp.eq.s32.totalorder %v4404, 1
      %vm4441 = vcmp.eq.s32.totalorder %v4405, 1
      %vm4442 = vcmp.eq.s32.totalorder %v4406, 1
      %vm4443 = vcmp.eq.s32.totalorder %v4407, 1
      %vm4444 = vcmp.eq.s32.totalorder %v4408, 1
      %vm4445 = vcmp.eq.s32.totalorder %v4409, 1
      %vm4446 = vcmp.eq.s32.totalorder %v4410, 1
      %vm4447 = vcmp.eq.s32.totalorder %v4411, 1
      %vm4448 = vcmp.eq.s32.totalorder %v4412, 1
      %vm4449 = vcmp.eq.s32.totalorder %v4413, 1
      %vm4450 = vcmp.eq.s32.totalorder %v4414, 1
      %vm4451 = vcmp.eq.s32.totalorder %v4415, 1
      %vm4452 = vcmp.eq.s32.totalorder %v4416, 1
      %vm4453 = vcmp.eq.s32.totalorder %v4417, 1
      %vm4454 = vcmp.eq.s32.totalorder %v4418, 1
      %vm4455 = vcmp.eq.s32.totalorder %v4419, 1
      %vm4456 = vcmp.eq.s32.totalorder %v4420, 1
      %vm4457 = vcmp.eq.s32.totalorder %v4421, 1
      %vm4458 = vcmp.eq.s32.totalorder %v4422, 1
      %vm4459 = vcmp.eq.s32.totalorder %v4423, 1
      %vm4460 = vcmp.eq.s32.totalorder %v4424, 1
      %vm4461 = vcmp.eq.s32.totalorder %v4425, 1
      %vm4462 = vcmp.eq.s32.totalorder %v4426, 1
      %vm4463 = vcmp.eq.s32.totalorder %v4427, 1
      %vm4464 = vcmp.eq.s32.totalorder %v4428, 1
      %vm4465 = vcmp.eq.s32.totalorder %v4429, 1
      %vm4466 = vcmp.eq.s32.totalorder %v4430, 1
      %vm4467 = vcmp.eq.s32.totalorder %v4431, 1
      %vm4468 = vcmp.eq.s32.totalorder %v4432, 1
      %vm4469 = vcmp.eq.s32.totalorder %v4433, 1
      %vm4470 = vcmp.eq.s32.totalorder %v4434, 1
      %vm4471 = vcmp.eq.s32.totalorder %v4435, 1
      %vm4472 = vcmp.eq.s32.totalorder %v4436, 1
      %vm4473 = vcmp.eq.s32.totalorder %v4437, 1
      %v4474 = vsel %vm4438, %v4366, 0.0
      %v4475 = vsel %vm4439, %v4367, 0.0
      %v4476 = vsel %vm4440, %v4368, 0.0
      %v4477 = vsel %vm4441, %v4369, 0.0
      %v4478 = vsel %vm4442, %v4370, 0.0
      %v4479 = vsel %vm4443, %v4371, 0.0
      %v4480 = vsel %vm4444, %v4372, 0.0
      %v4481 = vsel %vm4445, %v4373, 0.0
      %v4482 = vsel %vm4446, %v4374, 0.0
      %v4483 = vsel %vm4447, %v4375, 0.0
      %v4484 = vsel %vm4448, %v4376, 0.0
      %v4485 = vsel %vm4449, %v4377, 0.0
      %v4486 = vsel %vm4450, %v4378, 0.0
      %v4487 = vsel %vm4451, %v4379, 0.0
      %v4488 = vsel %vm4452, %v4380, 0.0
      %v4489 = vsel %vm4453, %v4381, 0.0
      %v4490 = vsel %vm4454, %v4382, 0.0
      %v4491 = vsel %vm4455, %v4383, 0.0
      %v4492 = vsel %vm4456, %v4384, 0.0
      %v4493 = vsel %vm4457, %v4385, 0.0
      %v4494 = vsel %vm4458, %v4386, 0.0
      %v4495 = vsel %vm4459, %v4387, 0.0
      %v4496 = vsel %vm4460, %v4388, 0.0
      %v4497 = vsel %vm4461, %v4389, 0.0
      %v4498 = vsel %vm4462, %v4390, 0.0
      %v4499 = vsel %vm4463, %v4391, 0.0
      %v4500 = vsel %vm4464, %v4392, 0.0
      %v4501 = vsel %vm4465, %v4393, 0.0
      %v4502 = vsel %vm4466, %v4394, 0.0
      %v4503 = vsel %vm4467, %v4395, 0.0
      %v4504 = vsel %vm4468, %v4396, 0.0
      %v4505 = vsel %vm4469, %v4397, 0.0
      %v4506 = vsel %vm4470, %v4398, 0.0
      %v4507 = vsel %vm4471, %v4399, 0.0
      %v4508 = vsel %vm4472, %v4400, 0.0
      %v4509 = vsel %vm4473, %v4401, 0.0
      %4510 = vst.msk [vmem:[#allocation2] sm:$0xff] %vm1157, 0
      %vm4511 = vcmask 25600
      %vm4512 = vsmask.f32 1280
      %vm4513 = vmand %vm4511, %vm4512
      %v4514 = vld [vmem:[#allocation2 + $0x8] sm:$0x3]
      %v4515 = vsel %vm4513, 0, %v4514
      %4516 = vst [vmem:[#allocation2 + $0x8] sm:$0x3] %v4515
      %vm4517 = vcmask 31745
      %vm4518 = vsmask.f32 7942
      %vm4519 = vmand %vm4517, %vm4518
      %v4520 = vld [vmem:[#allocation2 + $0x98] sm:$0xfe]
      %v4521 = vsel %vm4519, 0, %v4520
      %4522 = vst [vmem:[#allocation2 + $0x98] sm:$0xfe] %v4521
      %4523 = vst.msk [vmem:[#allocation2 + $0xa0] sm:$0xff] %vm1157, 0
      %v4524 = vpack.c.bf16 %v4475, %v4474
      %v4525 = vpack.c.bf16 %v4477, %v4476
      %v4526 = vpack.c.bf16 %v4479, %v4478
      %v4527 = vpack.c.bf16 %v4481, %v4480
      %v4528 = vpack.c.bf16 %v4483, %v4482
      %v4529 = vpack.c.bf16 %v4485, %v4484
      %v4530 = vpack.c.bf16 %v4487, %v4486
      %v4531 = vpack.c.bf16 %v4489, %v4488
      %v4532 = vpack.c.bf16 %v4491, %v4490
      %v4533 = vpack.c.bf16 %v4493, %v4492
      %v4534 = vpack.c.bf16 %v4495, %v4494
      %v4535 = vpack.c.bf16 %v4497, %v4496
      %v4536 = vpack.c.bf16 %v4499, %v4498
      %v4537 = vpack.c.bf16 %v4501, %v4500
      %v4538 = vpack.c.bf16 %v4503, %v4502
      %v4539 = vpack.c.bf16 %v4505, %v4504
      %v4540 = vpack.c.bf16 %v4507, %v4506
      %v4541 = vpack.c.bf16 %v4509, %v4508
      %v4543 = vshrl.u32 %v4524, 16
      %v4545 = vrot.slane %v4543, 6
      %v4546 = vshll.u32 %v4524, 16
      %v4548 = vrot.slane %v4546, 7
      %v4549 = vor.u32 %v4545, %v4548
      %v4551 = vshrl.u32 %v4525, 16
      %v4553 = vrot.slane %v4551, 6
      %v4554 = vshll.u32 %v4525, 16
      %v4556 = vrot.slane %v4554, 7
      %v4557 = vor.u32 %v4553, %v4556
      %v4558 = vsel %vm4512, %v4549, %v4557
      %v4560 = vshrl.u32 %v4526, 16
      %v4562 = vrot.slane %v4560, 6
      %v4563 = vshll.u32 %v4526, 16
      %v4565 = vrot.slane %v4563, 7
      %v4566 = vor.u32 %v4562, %v4565
      %v4567 = vsel %vm4512, %v4557, %v4566
      %v4569 = vshrl.u32 %v4527, 16
      %v4571 = vrot.slane %v4569, 6
      %v4572 = vshll.u32 %v4527, 16
      %v4574 = vrot.slane %v4572, 7
      %v4575 = vor.u32 %v4571, %v4574
      %v4576 = vsel %vm4512, %v4566, %v4575
      %v4578 = vshrl.u32 %v4528, 16
      %v4580 = vrot.slane %v4578, 6
      %v4581 = vshll.u32 %v4528, 16
      %v4583 = vrot.slane %v4581, 7
      %v4584 = vor.u32 %v4580, %v4583
      %v4585 = vsel %vm4512, %v4575, %v4584
      %v4587 = vshrl.u32 %v4529, 16
      %v4589 = vrot.slane %v4587, 6
      %v4590 = vshll.u32 %v4529, 16
      %v4592 = vrot.slane %v4590, 7
      %v4593 = vor.u32 %v4589, %v4592
      %v4594 = vsel %vm4512, %v4584, %v4593
      %v4596 = vshrl.u32 %v4530, 16
      %v4598 = vrot.slane %v4596, 6
      %v4599 = vshll.u32 %v4530, 16
      %v4601 = vrot.slane %v4599, 7
      %v4602 = vor.u32 %v4598, %v4601
      %v4603 = vsel %vm4512, %v4593, %v4602
      %v4605 = vshrl.u32 %v4531, 16
      %v4607 = vrot.slane %v4605, 6
      %v4608 = vshll.u32 %v4531, 16
      %v4610 = vrot.slane %v4608, 7
      %v4611 = vor.u32 %v4607, %v4610
      %v4612 = vsel %vm4512, %v4602, %v4611
      %v4614 = vshrl.u32 %v4532, 16
      %v4616 = vrot.slane %v4614, 6
      %v4617 = vshll.u32 %v4532, 16
      %v4619 = vrot.slane %v4617, 7
      %v4620 = vor.u32 %v4616, %v4619
      %v4621 = vsel %vm4512, %v4611, %v4620
      %v4623 = vshrl.u32 %v4533, 16
      %v4625 = vrot.slane %v4623, 6
      %v4626 = vshll.u32 %v4533, 16
      %v4628 = vrot.slane %v4626, 7
      %v4629 = vor.u32 %v4625, %v4628
      %v4630 = vsel %vm4512, %v4620, %v4629
      %v4632 = vshrl.u32 %v4534, 16
      %v4634 = vrot.slane %v4632, 6
      %v4635 = vshll.u32 %v4534, 16
      %v4637 = vrot.slane %v4635, 7
      %v4638 = vor.u32 %v4634, %v4637
      %v4639 = vsel %vm4512, %v4629, %v4638
      %v4641 = vshrl.u32 %v4535, 16
      %v4643 = vrot.slane %v4641, 6
      %v4644 = vshll.u32 %v4535, 16
      %v4646 = vrot.slane %v4644, 7
      %v4647 = vor.u32 %v4643, %v4646
      %v4648 = vsel %vm4512, %v4638, %v4647
      %v4650 = vshrl.u32 %v4536, 16
      %v4652 = vrot.slane %v4650, 6
      %v4653 = vshll.u32 %v4536, 16
      %v4655 = vrot.slane %v4653, 7
      %v4656 = vor.u32 %v4652, %v4655
      %v4657 = vsel %vm4512, %v4647, %v4656
      %v4659 = vshrl.u32 %v4537, 16
      %v4661 = vrot.slane %v4659, 6
      %v4662 = vshll.u32 %v4537, 16
      %v4664 = vrot.slane %v4662, 7
      %v4665 = vor.u32 %v4661, %v4664
      %v4666 = vsel %vm4512, %v4656, %v4665
      %v4668 = vshrl.u32 %v4538, 16
      %v4670 = vrot.slane %v4668, 6
      %v4671 = vshll.u32 %v4538, 16
      %v4673 = vrot.slane %v4671, 7
      %v4674 = vor.u32 %v4670, %v4673
      %v4675 = vsel %vm4512, %v4665, %v4674
      %v4677 = vshrl.u32 %v4539, 16
      %v4679 = vrot.slane %v4677, 6
      %v4680 = vshll.u32 %v4539, 16
      %v4682 = vrot.slane %v4680, 7
      %v4683 = vor.u32 %v4679, %v4682
      %v4684 = vsel %vm4512, %v4674, %v4683
      %v4686 = vshrl.u32 %v4540, 16
      %v4688 = vrot.slane %v4686, 6
      %v4689 = vshll.u32 %v4540, 16
      %v4691 = vrot.slane %v4689, 7
      %v4692 = vor.u32 %v4688, %v4691
      %v4693 = vsel %vm4512, %v4683, %v4692
      %v4695 = vshrl.u32 %v4541, 16
      %v4697 = vrot.slane %v4695, 6
      %v4698 = vshll.u32 %v4541, 16
      %v4700 = vrot.slane %v4698, 7
      %v4701 = vor.u32 %v4697, %v4700
      %v4702 = vsel %vm4512, %v4692, %v4701
      %v4722 = vld [vmem:[#allocation2 + $0x8] sm:$0xfe]
      %v4723 = vsel %vm4519, %v4549, %v4722
      %4724 = vst [vmem:[#allocation2 + $0x8] sm:$0xfe] %v4723
      %4725 = vst.msk [vmem:[#allocation2 + $0x10] sm:$0xff] %vm1157, %v4558
      %4726 = vst.msk [vmem:[#allocation2 + $0x18] sm:$0xff] %vm1157, %v4567
      %4727 = vst.msk [vmem:[#allocation2 + $0x20] sm:$0xff] %vm1157, %v4576
      %4728 = vst.msk [vmem:[#allocation2 + $0x28] sm:$0xff] %vm1157, %v4585
      %4729 = vst.msk [vmem:[#allocation2 + $0x30] sm:$0xff] %vm1157, %v4594
      %4730 = vst.msk [vmem:[#allocation2 + $0x38] sm:$0xff] %vm1157, %v4603
      %4731 = vst.msk [vmem:[#allocation2 + $0x40] sm:$0xff] %vm1157, %v4612
      %4732 = vst.msk [vmem:[#allocation2 + $0x48] sm:$0xff] %vm1157, %v4621
      %4733 = vst.msk [vmem:[#allocation2 + $0x50] sm:$0xff] %vm1157, %v4630
      %4734 = vst.msk [vmem:[#allocation2 + $0x58] sm:$0xff] %vm1157, %v4639
      %4735 = vst.msk [vmem:[#allocation2 + $0x60] sm:$0xff] %vm1157, %v4648
      %4736 = vst.msk [vmem:[#allocation2 + $0x68] sm:$0xff] %vm1157, %v4657
      %4737 = vst.msk [vmem:[#allocation2 + $0x70] sm:$0xff] %vm1157, %v4666
      %4738 = vst.msk [vmem:[#allocation2 + $0x78] sm:$0xff] %vm1157, %v4675
      %4739 = vst.msk [vmem:[#allocation2 + $0x80] sm:$0xff] %vm1157, %v4684
      %4740 = vst.msk [vmem:[#allocation2 + $0x88] sm:$0xff] %vm1157, %v4693
      %4741 = vst.msk [vmem:[#allocation2 + $0x90] sm:$0xff] %vm1157, %v4702
      %v4742 = vld [vmem:[#allocation2 + $0x98] sm:$0x3]
      %v4743 = vsel %vm4513, %v4701, %v4742
      %4744 = vst [vmem:[#allocation2 + $0x98] sm:$0x3] %v4743
      %v4745 = vld [vmem:[%s219 + $0x8] sm:$0xe]
      %v4746 = vld [vmem:[%s219 + $0xc] sm:$0xf]
      %v4747 = vld [vmem:[%s219 + $0x10] sm:$0xf]
      %v4748 = vld [vmem:[%s219 + $0x14] sm:$0xf]
      %v4749 = vld [vmem:[%s219 + $0x18] sm:$0xf]
      %v4750 = vld [vmem:[%s219 + $0x1c] sm:$0xf]
      %v4751 = vld [vmem:[%s219 + $0x20] sm:$0xf]
      %v4752 = vld [vmem:[%s219 + $0x24] sm:$0xf]
      %v4753 = vld [vmem:[%s219 + $0x28] sm:$0xf]
      %v4754 = vld [vmem:[%s219 + $0x2c] sm:$0xf]
      %v4755 = vld [vmem:[%s219 + $0x30] sm:$0xf]
      %v4756 = vld [vmem:[%s219 + $0x34] sm:$0xf]
      %v4757 = vld [vmem:[%s219 + $0x38] sm:$0xf]
      %v4758 = vld [vmem:[%s219 + $0x3c] sm:$0xf]
      %v4759 = vld [vmem:[%s219 + $0x40] sm:$0xf]
      %v4760 = vld [vmem:[%s219 + $0x44] sm:$0xf]
      %v4761 = vld [vmem:[%s219 + $0x48] sm:$0xf]
      %v4762 = vld [vmem:[%s219 + $0x4c] sm:$0xf]
      %v4763 = vld [vmem:[%s219 + $0x50] sm:$0xf]
      %v4764 = vld [vmem:[%s219 + $0x54] sm:$0xf]
      %v4765 = vld [vmem:[%s219 + $0x58] sm:$0xf]
      %v4766 = vld [vmem:[%s219 + $0x5c] sm:$0xf]
      %v4767 = vld [vmem:[%s219 + $0x60] sm:$0xf]
      %v4768 = vld [vmem:[%s219 + $0x64] sm:$0xf]
      %v4769 = vld [vmem:[%s219 + $0x68] sm:$0xf]
      %v4770 = vld [vmem:[%s219 + $0x6c] sm:$0xf]
      %v4771 = vld [vmem:[%s219 + $0x70] sm:$0xf]
      %v4772 = vld [vmem:[%s219 + $0x74] sm:$0xf]
      %v4773 = vld [vmem:[%s219 + $0x78] sm:$0xf]
      %v4774 = vld [vmem:[%s219 + $0x7c] sm:$0xf]
      %v4775 = vld [vmem:[%s219 + $0x80] sm:$0xf]
      %v4776 = vld [vmem:[%s219 + $0x84] sm:$0xf]
      %v4777 = vld [vmem:[%s219 + $0x88] sm:$0xf]
      %v4778 = vld [vmem:[%s219 + $0x8c] sm:$0xf]
      %v4779 = vld [vmem:[%s219 + $0x90] sm:$0xf]
      %v4780 = vld [vmem:[%s219 + $0x94] sm:$0xf]
      %v4781 = vld [vmem:[%s219 + $0x98] sm:$0x3]
      %v4782 = vunpack.c.l.bf16 %v4745
      %v4783 = vunpack.c.l.bf16 %v4746
      %v4784 = vunpack.c.l.bf16 %v4747
      %v4785 = vunpack.c.l.bf16 %v4748
      %v4786 = vunpack.c.l.bf16 %v4749
      %v4787 = vunpack.c.l.bf16 %v4750
      %v4788 = vunpack.c.l.bf16 %v4751
      %v4789 = vunpack.c.l.bf16 %v4752
      %v4790 = vunpack.c.l.bf16 %v4753
      %v4791 = vunpack.c.l.bf16 %v4754
      %v4792 = vunpack.c.l.bf16 %v4755
      %v4793 = vunpack.c.l.bf16 %v4756
      %v4794 = vunpack.c.l.bf16 %v4757
      %v4795 = vunpack.c.l.bf16 %v4758
      %v4796 = vunpack.c.l.bf16 %v4759
      %v4797 = vunpack.c.l.bf16 %v4760
      %v4798 = vunpack.c.l.bf16 %v4761
      %v4799 = vunpack.c.l.bf16 %v4762
      %v4800 = vunpack.c.l.bf16 %v4763
      %v4801 = vunpack.c.l.bf16 %v4764
      %v4802 = vunpack.c.l.bf16 %v4765
      %v4803 = vunpack.c.l.bf16 %v4766
      %v4804 = vunpack.c.l.bf16 %v4767
      %v4805 = vunpack.c.l.bf16 %v4768
      %v4806 = vunpack.c.l.bf16 %v4769
      %v4807 = vunpack.c.l.bf16 %v4770
      %v4808 = vunpack.c.l.bf16 %v4771
      %v4809 = vunpack.c.l.bf16 %v4772
      %v4810 = vunpack.c.l.bf16 %v4773
      %v4811 = vunpack.c.l.bf16 %v4774
      %v4812 = vunpack.c.l.bf16 %v4775
      %v4813 = vunpack.c.l.bf16 %v4776
      %v4814 = vunpack.c.l.bf16 %v4777
      %v4815 = vunpack.c.l.bf16 %v4778
      %v4816 = vunpack.c.l.bf16 %v4779
      %v4817 = vunpack.c.l.bf16 %v4780
      %v4818 = vunpack.c.l.bf16 %v4781
      %v4819 = vld [vmem:[#allocation2] sm:$0xff]
      %v4820 = vld [vmem:[#allocation2 + $0x8] sm:$0xff]
      %v4821 = vld [vmem:[#allocation2 + $0x10] sm:$0xff]
      %v4822 = vld [vmem:[#allocation2 + $0x18] sm:$0xff]
      %v4823 = vld [vmem:[#allocation2 + $0x20] sm:$0xff]
      %v4824 = vld [vmem:[#allocation2 + $0x28] sm:$0xff]
      %v4825 = vld [vmem:[#allocation2 + $0x30] sm:$0xff]
      %v4826 = vld [vmem:[#allocation2 + $0x38] sm:$0xff]
      %v4827 = vld [vmem:[#allocation2 + $0x40] sm:$0xff]
      %v4828 = vld [vmem:[#allocation2 + $0x48] sm:$0xff]
      %v4829 = vld [vmem:[#allocation2 + $0x50] sm:$0xff]
      %v4830 = vld [vmem:[#allocation2 + $0x58] sm:$0xff]
      %v4831 = vld [vmem:[#allocation2 + $0x60] sm:$0xff]
      %v4832 = vld [vmem:[#allocation2 + $0x68] sm:$0xff]
      %v4833 = vld [vmem:[#allocation2 + $0x70] sm:$0xff]
      %v4834 = vld [vmem:[#allocation2 + $0x78] sm:$0xff]
      %v4835 = vld [vmem:[#allocation2 + $0x80] sm:$0xff]
      %v4836 = vld [vmem:[#allocation2 + $0x88] sm:$0xff]
      %v4837 = vld [vmem:[%s3] sm:$0x3]
      %v4838 = vld [vmem:[#allocation2 + $0x90] sm:$0x1]
      %s4839 = scalar_lea.vmem %s3, 2
      %v4840 = vld [vmem:[%s4839] sm:$0x3]
      %v4842 = vshrl.u32 %v4819, 16
      %v4844 = vshll.u32 %v4819, 16
      %v4846 = vrot.slane %v4844, 1
      %v4847 = vor.u32 %v4842, %v4846
      %v4849 = vshll.u32 %v4820, 16
      %v4851 = vrot.slane %v4849, 1
      %v4852 = vsel %vm1008, %v4847, %v4851
      %v4853 = vshrl.u32 %v4820, 16
      %v4855 = vor.u32 %v4853, %v4851
      %v4857 = vshll.u32 %v4821, 16
      %v4859 = vrot.slane %v4857, 1
      %v4860 = vsel %vm1008, %v4855, %v4859
      %v4861 = vshrl.u32 %v4821, 16
      %v4863 = vor.u32 %v4861, %v4859
      %v4865 = vshll.u32 %v4822, 16
      %v4867 = vrot.slane %v4865, 1
      %v4868 = vsel %vm1008, %v4863, %v4867
      %v4869 = vshrl.u32 %v4822, 16
      %v4871 = vor.u32 %v4869, %v4867
      %v4873 = vshll.u32 %v4823, 16
      %v4875 = vrot.slane %v4873, 1
      %v4876 = vsel %vm1008, %v4871, %v4875
      %v4877 = vshrl.u32 %v4823, 16
      %v4879 = vor.u32 %v4877, %v4875
      %v4881 = vshll.u32 %v4824, 16
      %v4883 = vrot.slane %v4881, 1
      %v4884 = vsel %vm1008, %v4879, %v4883
      %v4885 = vshrl.u32 %v4824, 16
      %v4887 = vor.u32 %v4885, %v4883
      %v4889 = vshll.u32 %v4825, 16
      %v4891 = vrot.slane %v4889, 1
      %v4892 = vsel %vm1008, %v4887, %v4891
      %v4893 = vshrl.u32 %v4825, 16
      %v4895 = vor.u32 %v4893, %v4891
      %v4897 = vshll.u32 %v4826, 16
      %v4899 = vrot.slane %v4897, 1
      %v4900 = vsel %vm1008, %v4895, %v4899
      %v4901 = vshrl.u32 %v4826, 16
      %v4903 = vor.u32 %v4901, %v4899
      %v4905 = vshll.u32 %v4827, 16
      %v4907 = vrot.slane %v4905, 1
      %v4908 = vsel %vm1008, %v4903, %v4907
      %v4909 = vshrl.u32 %v4827, 16
      %v4911 = vor.u32 %v4909, %v4907
      %v4913 = vshll.u32 %v4828, 16
      %v4915 = vrot.slane %v4913, 1
      %v4916 = vsel %vm1008, %v4911, %v4915
      %v4917 = vshrl.u32 %v4828, 16
      %v4919 = vor.u32 %v4917, %v4915
      %v4921 = vshll.u32 %v4829, 16
      %v4923 = vrot.slane %v4921, 1
      %v4924 = vsel %vm1008, %v4919, %v4923
      %v4925 = vshrl.u32 %v4829, 16
      %v4927 = vor.u32 %v4925, %v4923
      %v4929 = vshll.u32 %v4830, 16
      %v4931 = vrot.slane %v4929, 1
      %v4932 = vsel %vm1008, %v4927, %v4931
      %v4933 = vshrl.u32 %v4830, 16
      %v4935 = vor.u32 %v4933, %v4931
      %v4937 = vshll.u32 %v4831, 16
      %v4939 = vrot.slane %v4937, 1
      %v4940 = vsel %vm1008, %v4935, %v4939
      %v4941 = vshrl.u32 %v4831, 16
      %v4943 = vor.u32 %v4941, %v4939
      %v4945 = vshll.u32 %v4832, 16
      %v4947 = vrot.slane %v4945, 1
      %v4948 = vsel %vm1008, %v4943, %v4947
      %v4949 = vshrl.u32 %v4832, 16
      %v4951 = vor.u32 %v4949, %v4947
      %v4953 = vshll.u32 %v4833, 16
      %v4955 = vrot.slane %v4953, 1
      %v4956 = vsel %vm1008, %v4951, %v4955
      %v4957 = vshrl.u32 %v4833, 16
      %v4959 = vor.u32 %v4957, %v4955
      %v4961 = vshll.u32 %v4834, 16
      %v4963 = vrot.slane %v4961, 1
      %v4964 = vsel %vm1008, %v4959, %v4963
      %v4965 = vshrl.u32 %v4834, 16
      %v4967 = vor.u32 %v4965, %v4963
      %v4969 = vshll.u32 %v4835, 16
      %v4971 = vrot.slane %v4969, 1
      %v4972 = vsel %vm1008, %v4967, %v4971
      %v4973 = vshrl.u32 %v4835, 16
      %v4975 = vor.u32 %v4973, %v4971
      %v4977 = vshll.u32 %v4836, 16
      %v4979 = vrot.slane %v4977, 1
      %v4980 = vsel %vm1008, %v4975, %v4979
      %v4981 = vshrl.u32 %v4836, 16
      %v4983 = vor.u32 %v4981, %v4979
      %v4985 = vshll.u32 %v4838, 16
      %v4987 = vrot.slane %v4985, 1
      %v4988 = vsel %vm1008, %v4983, %v4987
      %v4990 = vsel %vm1157, %v4852, 0
      %v4993 = vsel %vm1157, %v4860, 0
      %v4996 = vsel %vm1157, %v4868, 0
      %v4999 = vsel %vm1157, %v4876, 0
      %v5002 = vsel %vm1157, %v4884, 0
      %v5005 = vsel %vm1157, %v4892, 0
      %v5008 = vsel %vm1157, %v4900, 0
      %v5011 = vsel %vm1157, %v4908, 0
      %v5014 = vsel %vm1157, %v4916, 0
      %v5017 = vsel %vm1157, %v4924, 0
      %v5020 = vsel %vm1157, %v4932, 0
      %v5023 = vsel %vm1157, %v4940, 0
      %v5026 = vsel %vm1157, %v4948, 0
      %v5029 = vsel %vm1157, %v4956, 0
      %v5032 = vsel %vm1157, %v4964, 0
      %v5035 = vsel %vm1157, %v4972, 0
      %v5038 = vsel %vm1157, %v4980, 0
      %v5041 = vsel %vm1157, %v4988, 0
      %v5044 = vsel %vm1212, %v4840, 0
      %5046 = vmatprep.subr.bf16.mxu0 0
      %5047 = vmatpush1.bf16.msra.mxu0 %v5044
      %5048 = vmatprep.subr.bf16.mxu0 0
      %5049 = vmatpush1.bf16.msra.mxu0 0
      %5050 = vmatprep.subr.bf16.mxu0 0
      %5051 = vmatpush1.bf16.msra.mxu0 0
      %5052 = vmatprep.subr.bf16.mxu0 0
      %5053 = vmatpush1.bf16.msra.mxu0 0
      %5054 = vmatprep.subr.bf16.mxu0 0
      %5055 = vmatpush1.bf16.msra.mxu0 0
      %5056 = vmatprep.subr.bf16.mxu0 0
      %5057 = vmatpush1.bf16.msra.mxu0 0
      %5058 = vmatprep.subr.bf16.mxu0 0
      %5059 = vmatpush1.bf16.msra.mxu0 0
      %5060 = vmatprep.subr.bf16.mxu0 0
      %5061 = vmatpush1.bf16.msra.mxu0 0
      %5062 = vmatprep.subr.bf16.mxu0 0
      %5063 = vmatpush1.bf16.msra.mxu0 0
      %5064 = vmatprep.subr.bf16.mxu0 0
      %5065 = vmatpush1.bf16.msra.mxu0 0
      %5066 = vmatprep.subr.bf16.mxu0 0
      %5067 = vmatpush1.bf16.msra.mxu0 0
      %5068 = vmatprep.subr.bf16.mxu0 0
      %5069 = vmatpush1.bf16.msra.mxu0 0
      %5070 = vmatprep.subr.bf16.mxu0 0
      %5071 = vmatpush1.bf16.msra.mxu0 0
      %5072 = vmatprep.subr.bf16.mxu0 0
      %5073 = vmatpush1.bf16.msra.mxu0 0
      %5074 = vmatprep.subr.bf16.mxu0 0
      %5075 = vmatpush1.bf16.msra.mxu0 0
      %5076 = vmatprep.subr.bf16.mxu0 0
      %5077 = vmatpush1.bf16.msra.mxu0 0
      %5078 = vmatprep.mubr.bf16.mxu0 0
      %5079 = vmatmul.mubr.bf16.gmra.mrb[0].mxu0 %v4990
      %v5080 = vpop.f32.mrb[0].mxu0
      %v5081 = vadd.f32 0.0, %v5080
      %v5082 = vpop.f32.mrb[0].mxu0
      %v5083 = vpop.f32.mrb[0].mxu0
      %v5084 = vadd.f32 0.0, %v5083
      %v5085 = vpop.f32.mrb[0].mxu0
      %5086 = vmatprep.mubr.bf16.mxu0 0
      %5087 = vmatmul.mubr.bf16.gmra.mrb[0].mxu0 %v4993
      %v5088 = vpop.f32.mrb[0].mxu0
      %v5089 = vadd.f32 0.0, %v5088
      %v5090 = vpop.f32.mrb[0].mxu0
      %v5091 = vpop.f32.mrb[0].mxu0
      %v5092 = vadd.f32 0.0, %v5091
      %v5093 = vpop.f32.mrb[0].mxu0
      %5094 = vmatprep.mubr.bf16.mxu0 0
      %5095 = vmatmul.mubr.bf16.gmra.mrb[0].mxu0 %v4996
      %v5096 = vpop.f32.mrb[0].mxu0
      %v5097 = vadd.f32 0.0, %v5096
      %v5098 = vpop.f32.mrb[0].mxu0
      %v5099 = vpop.f32.mrb[0].mxu0
      %v5100 = vadd.f32 0.0, %v5099
      %v5101 = vpop.f32.mrb[0].mxu0
      %5102 = vmatprep.mubr.bf16.mxu0 0
      %5103 = vmatmul.mubr.bf16.gmra.mrb[0].mxu0 %v4999
      %v5104 = vpop.f32.mrb[0].mxu0
      %v5105 = vadd.f32 0.0, %v5104
      %v5106 = vpop.f32.mrb[0].mxu0
      %v5107 = vpop.f32.mrb[0].mxu0
      %v5108 = vadd.f32 0.0, %v5107
      %v5109 = vpop.f32.mrb[0].mxu0
      %5110 = vmatprep.mubr.bf16.mxu0 0
      %5111 = vmatmul.mubr.bf16.gmra.mrb[0].mxu0 %v5002
      %v5112 = vpop.f32.mrb[0].mxu0
      %v5113 = vadd.f32 0.0, %v5112
      %v5114 = vpop.f32.mrb[0].mxu0
      %v5115 = vpop.f32.mrb[0].mxu0
      %v5116 = vadd.f32 0.0, %v5115
      %v5117 = vpop.f32.mrb[0].mxu0
      %5118 = vmatprep.mubr.bf16.mxu0 0
      %5119 = vmatmul.mubr.bf16.gmra.mrb[0].mxu0 %v5005
      %v5120 = vpop.f32.mrb[0].mxu0
      %v5121 = vadd.f32 0.0, %v5120
      %v5122 = vpop.f32.mrb[0].mxu0
      %v5123 = vpop.f32.mrb[0].mxu0
      %v5124 = vadd.f32 0.0, %v5123
      %v5125 = vpop.f32.mrb[0].mxu0
      %5126 = vmatprep.mubr.bf16.mxu0 0
      %5127 = vmatmul.mubr.bf16.gmra.mrb[0].mxu0 %v5008
      %v5128 = vpop.f32.mrb[0].mxu0
      %v5129 = vadd.f32 0.0, %v5128
      %v5130 = vpop.f32.mrb[0].mxu0
      %v5131 = vpop.f32.mrb[0].mxu0
      %v5132 = vadd.f32 0.0, %v5131
      %v5133 = vpop.f32.mrb[0].mxu0
      %5134 = vmatprep.mubr.bf16.mxu0 0
      %5135 = vmatmul.mubr.bf16.gmra.mrb[0].mxu0 %v5011
      %v5136 = vpop.f32.mrb[0].mxu0
      %v5137 = vadd.f32 0.0, %v5136
      %v5138 = vpop.f32.mrb[0].mxu0
      %v5139 = vpop.f32.mrb[0].mxu0
      %v5140 = vadd.f32 0.0, %v5139
      %v5141 = vpop.f32.mrb[0].mxu0
      %5142 = vmatprep.mubr.bf16.mxu0 0
      %5143 = vmatmul.mubr.bf16.gmra.mrb[0].mxu0 %v5014
      %v5144 = vpop.f32.mrb[0].mxu0
      %v5145 = vadd.f32 0.0, %v5144
      %v5146 = vpop.f32.mrb[0].mxu0
      %v5147 = vpop.f32.mrb[0].mxu0
      %v5148 = vadd.f32 0.0, %v5147
      %v5149 = vpop.f32.mrb[0].mxu0
      %5150 = vmatprep.mubr.bf16.mxu0 0
      %5151 = vmatmul.mubr.bf16.gmra.mrb[0].mxu0 %v5017
      %v5152 = vpop.f32.mrb[0].mxu0
      %v5153 = vadd.f32 0.0, %v5152
      %v5154 = vpop.f32.mrb[0].mxu0
      %v5155 = vpop.f32.mrb[0].mxu0
      %v5156 = vadd.f32 0.0, %v5155
      %v5157 = vpop.f32.mrb[0].mxu0
      %5158 = vmatprep.mubr.bf16.mxu0 0
      %5159 = vmatmul.mubr.bf16.gmra.mrb[0].mxu0 %v5020
      %v5160 = vpop.f32.mrb[0].mxu0
      %v5161 = vadd.f32 0.0, %v5160
      %v5162 = vpop.f32.mrb[0].mxu0
      %v5163 = vpop.f32.mrb[0].mxu0
      %v5164 = vadd.f32 0.0, %v5163
      %v5165 = vpop.f32.mrb[0].mxu0
      %5166 = vmatprep.mubr.bf16.mxu0 0
      %5167 = vmatmul.mubr.bf16.gmra.mrb[0].mxu0 %v5023
      %v5168 = vpop.f32.mrb[0].mxu0
      %v5169 = vadd.f32 0.0, %v5168
      %v5170 = vpop.f32.mrb[0].mxu0
      %v5171 = vpop.f32.mrb[0].mxu0
      %v5172 = vadd.f32 0.0, %v5171
      %v5173 = vpop.f32.mrb[0].mxu0
      %5174 = vmatprep.mubr.bf16.mxu0 0
      %5175 = vmatmul.mubr.bf16.gmra.mrb[0].mxu0 %v5026
      %v5176 = vpop.f32.mrb[0].mxu0
      %v5177 = vadd.f32 0.0, %v5176
      %v5178 = vpop.f32.mrb[0].mxu0
      %v5179 = vpop.f32.mrb[0].mxu0
      %v5180 = vadd.f32 0.0, %v5179
      %v5181 = vpop.f32.mrb[0].mxu0
      %5182 = vmatprep.mubr.bf16.mxu0 0
      %5183 = vmatmul.mubr.bf16.gmra.mrb[0].mxu0 %v5029
      %v5184 = vpop.f32.mrb[0].mxu0
      %v5185 = vadd.f32 0.0, %v5184
      %v5186 = vpop.f32.mrb[0].mxu0
      %v5187 = vpop.f32.mrb[0].mxu0
      %v5188 = vadd.f32 0.0, %v5187
      %v5189 = vpop.f32.mrb[0].mxu0
      %5190 = vmatprep.mubr.bf16.mxu0 0
      %5191 = vmatmul.mubr.bf16.gmra.mrb[0].mxu0 %v5032
      %v5192 = vpop.f32.mrb[0].mxu0
      %v5193 = vadd.f32 0.0, %v5192
      %v5194 = vpop.f32.mrb[0].mxu0
      %v5195 = vpop.f32.mrb[0].mxu0
      %v5196 = vadd.f32 0.0, %v5195
      %v5197 = vpop.f32.mrb[0].mxu0
      %5198 = vmatprep.mubr.bf16.mxu0 0
      %5199 = vmatmul.mubr.bf16.gmra.mrb[0].mxu0 %v5035
      %v5200 = vpop.f32.mrb[0].mxu0
      %v5201 = vadd.f32 0.0, %v5200
      %v5202 = vpop.f32.mrb[0].mxu0
      %v5203 = vpop.f32.mrb[0].mxu0
      %v5204 = vadd.f32 0.0, %v5203
      %v5205 = vpop.f32.mrb[0].mxu0
      %5206 = vmatprep.mubr.bf16.mxu0 0
      %5207 = vmatmul.mubr.bf16.gmra.mrb[0].mxu0 %v5038
      %v5208 = vpop.f32.mrb[0].mxu0
      %v5209 = vadd.f32 0.0, %v5208
      %v5210 = vpop.f32.mrb[0].mxu0
      %v5211 = vpop.f32.mrb[0].mxu0
      %v5212 = vadd.f32 0.0, %v5211
      %v5213 = vpop.f32.mrb[0].mxu0
      %5214 = vmatprep.mubr.bf16.mxu0 0
      %5215 = vmatmul.mubr.bf16.gmra.mrb[0].mxu0 %v5041
      %v5216 = vpop.f32.mrb[0].mxu0
      %v5217 = vadd.f32 0.0, %v5216
      %v5218 = vpop.f32.mrb[0].mxu0
      %v5219 = vpop.f32.mrb[0].mxu0
      %v5220 = vadd.f32 0.0, %v5219
      %v5221 = vpop.f32.mrb[0].mxu0
      %5222 = vdwg.mxu0
      %v5223 = vsel %vm1157, %v4819, 0
      %v5225 = vsel %vm1157, %v4820, 0
      %v5227 = vsel %vm1157, %v4821, 0
      %v5229 = vsel %vm1157, %v4822, 0
      %v5231 = vsel %vm1157, %v4823, 0
      %v5233 = vsel %vm1157, %v4824, 0
      %v5235 = vsel %vm1157, %v4825, 0
      %v5237 = vsel %vm1157, %v4826, 0
      %v5239 = vsel %vm1157, %v4827, 0
      %v5241 = vsel %vm1157, %v4828, 0
      %v5243 = vsel %vm1157, %v4829, 0
      %v5245 = vsel %vm1157, %v4830, 0
      %v5247 = vsel %vm1157, %v4831, 0
      %v5249 = vsel %vm1157, %v4832, 0
      %v5251 = vsel %vm1157, %v4833, 0
      %v5253 = vsel %vm1157, %v4834, 0
      %v5255 = vsel %vm1157, %v4835, 0
      %v5257 = vsel %vm1157, %v4836, 0
      %v5260 = vsel %vm1212, %v4837, 0
      %5262 = vmatprep.subr.bf16.mxu0 0
      %5263 = vmatpush1.bf16.msra.mxu0 %v5260
      %5264 = vmatprep.subr.bf16.mxu0 0
      %5265 = vmatpush1.bf16.msra.mxu0 0
      %5266 = vmatprep.subr.bf16.mxu0 0
      %5267 = vmatpush1.bf16.msra.mxu0 0
      %5268 = vmatprep.subr.bf16.mxu0 0
      %5269 = vmatpush1.bf16.msra.mxu0 0
      %5270 = vmatprep.subr.bf16.mxu0 0
      %5271 = vmatpush1.bf16.msra.mxu0 0
      %5272 = vmatprep.subr.bf16.mxu0 0
      %5273 = vmatpush1.bf16.msra.mxu0 0
      %5274 = vmatprep.subr.bf16.mxu0 0
      %5275 = vmatpush1.bf16.msra.mxu0 0
      %5276 = vmatprep.subr.bf16.mxu0 0
      %5277 = vmatpush1.bf16.msra.mxu0 0
      %5278 = vmatprep.subr.bf16.mxu0 0
      %5279 = vmatpush1.bf16.msra.mxu0 0
      %5280 = vmatprep.subr.bf16.mxu0 0
      %5281 = vmatpush1.bf16.msra.mxu0 0
      %5282 = vmatprep.subr.bf16.mxu0 0
      %5283 = vmatpush1.bf16.msra.mxu0 0
      %5284 = vmatprep.subr.bf16.mxu0 0
      %5285 = vmatpush1.bf16.msra.mxu0 0
      %5286 = vmatprep.subr.bf16.mxu0 0
      %5287 = vmatpush1.bf16.msra.mxu0 0
      %5288 = vmatprep.subr.bf16.mxu0 0
      %5289 = vmatpush1.bf16.msra.mxu0 0
      %5290 = vmatprep.subr.bf16.mxu0 0
      %5291 = vmatpush1.bf16.msra.mxu0 0
      %5292 = vmatprep.subr.bf16.mxu0 0
      %5293 = vmatpush1.bf16.msra.mxu0 0
      %5294 = vmatprep.mubr.bf16.mxu0 0
      %5295 = vmatmul.mubr.bf16.gmra.mrb[0].mxu0 %v5223
      %v5296 = vpop.f32.mrb[0].mxu0
      %v5297 = vadd.f32 %v5081, %v5296
      %v5298 = vpop.f32.mrb[0].mxu0
      %v5299 = vpop.f32.mrb[0].mxu0
      %v5300 = vadd.f32 %v5084, %v5299
      %v5301 = vpop.f32.mrb[0].mxu0
      %5302 = vmatprep.mubr.bf16.mxu0 0
      %5303 = vmatmul.mubr.bf16.gmra.mrb[0].mxu0 %v5225
      %v5304 = vpop.f32.mrb[0].mxu0
      %v5305 = vadd.f32 %v5089, %v5304
      %v5306 = vpop.f32.mrb[0].mxu0
      %v5307 = vpop.f32.mrb[0].mxu0
      %v5308 = vadd.f32 %v5092, %v5307
      %v5309 = vpop.f32.mrb[0].mxu0
      %5310 = vmatprep.mubr.bf16.mxu0 0
      %5311 = vmatmul.mubr.bf16.gmra.mrb[0].mxu0 %v5227
      %v5312 = vpop.f32.mrb[0].mxu0
      %v5313 = vadd.f32 %v5097, %v5312
      %v5314 = vpop.f32.mrb[0].mxu0
      %v5315 = vpop.f32.mrb[0].mxu0
      %v5316 = vadd.f32 %v5100, %v5315
      %v5317 = vpop.f32.mrb[0].mxu0
      %5318 = vmatprep.mubr.bf16.mxu0 0
      %5319 = vmatmul.mubr.bf16.gmra.mrb[0].mxu0 %v5229
      %v5320 = vpop.f32.mrb[0].mxu0
      %v5321 = vadd.f32 %v5105, %v5320
      %v5322 = vpop.f32.mrb[0].mxu0
      %v5323 = vpop.f32.mrb[0].mxu0
      %v5324 = vadd.f32 %v5108, %v5323
      %v5325 = vpop.f32.mrb[0].mxu0
      %5326 = vmatprep.mubr.bf16.mxu0 0
      %5327 = vmatmul.mubr.bf16.gmra.mrb[0].mxu0 %v5231
      %v5328 = vpop.f32.mrb[0].mxu0
      %v5329 = vadd.f32 %v5113, %v5328
      %v5330 = vpop.f32.mrb[0].mxu0
      %v5331 = vpop.f32.mrb[0].mxu0
      %v5332 = vadd.f32 %v5116, %v5331
      %v5333 = vpop.f32.mrb[0].mxu0
      %5334 = vmatprep.mubr.bf16.mxu0 0
      %5335 = vmatmul.mubr.bf16.gmra.mrb[0].mxu0 %v5233
      %v5336 = vpop.f32.mrb[0].mxu0
      %v5337 = vadd.f32 %v5121, %v5336
      %v5338 = vpop.f32.mrb[0].mxu0
      %v5339 = vpop.f32.mrb[0].mxu0
      %v5340 = vadd.f32 %v5124, %v5339
      %v5341 = vpop.f32.mrb[0].mxu0
      %5342 = vmatprep.mubr.bf16.mxu0 0
      %5343 = vmatmul.mubr.bf16.gmra.mrb[0].mxu0 %v5235
      %v5344 = vpop.f32.mrb[0].mxu0
      %v5345 = vadd.f32 %v5129, %v5344
      %v5346 = vpop.f32.mrb[0].mxu0
      %v5347 = vpop.f32.mrb[0].mxu0
      %v5348 = vadd.f32 %v5132, %v5347
      %v5349 = vpop.f32.mrb[0].mxu0
      %5350 = vmatprep.mubr.bf16.mxu0 0
      %5351 = vmatmul.mubr.bf16.gmra.mrb[0].mxu0 %v5237
      %v5352 = vpop.f32.mrb[0].mxu0
      %v5353 = vadd.f32 %v5137, %v5352
      %v5354 = vpop.f32.mrb[0].mxu0
      %v5355 = vpop.f32.mrb[0].mxu0
      %v5356 = vadd.f32 %v5140, %v5355
      %v5357 = vpop.f32.mrb[0].mxu0
      %5358 = vmatprep.mubr.bf16.mxu0 0
      %5359 = vmatmul.mubr.bf16.gmra.mrb[0].mxu0 %v5239
      %v5360 = vpop.f32.mrb[0].mxu0
      %v5361 = vadd.f32 %v5145, %v5360
      %v5362 = vpop.f32.mrb[0].mxu0
      %v5363 = vpop.f32.mrb[0].mxu0
      %v5364 = vadd.f32 %v5148, %v5363
      %v5365 = vpop.f32.mrb[0].mxu0
      %5366 = vmatprep.mubr.bf16.mxu0 0
      %5367 = vmatmul.mubr.bf16.gmra.mrb[0].mxu0 %v5241
      %v5368 = vpop.f32.mrb[0].mxu0
      %v5369 = vadd.f32 %v5153, %v5368
      %v5370 = vpop.f32.mrb[0].mxu0
      %v5371 = vpop.f32.mrb[0].mxu0
      %v5372 = vadd.f32 %v5156, %v5371
      %v5373 = vpop.f32.mrb[0].mxu0
      %5374 = vmatprep.mubr.bf16.mxu0 0
      %5375 = vmatmul.mubr.bf16.gmra.mrb[0].mxu0 %v5243
      %v5376 = vpop.f32.mrb[0].mxu0
      %v5377 = vadd.f32 %v5161, %v5376
      %v5378 = vpop.f32.mrb[0].mxu0
      %v5379 = vpop.f32.mrb[0].mxu0
      %v5380 = vadd.f32 %v5164, %v5379
      %v5381 = vpop.f32.mrb[0].mxu0
      %5382 = vmatprep.mubr.bf16.mxu0 0
      %5383 = vmatmul.mubr.bf16.gmra.mrb[0].mxu0 %v5245
      %v5384 = vpop.f32.mrb[0].mxu0
      %v5385 = vadd.f32 %v5169, %v5384
      %v5386 = vpop.f32.mrb[0].mxu0
      %v5387 = vpop.f32.mrb[0].mxu0
      %v5388 = vadd.f32 %v5172, %v5387
      %v5389 = vpop.f32.mrb[0].mxu0
      %5390 = vmatprep.mubr.bf16.mxu0 0
      %5391 = vmatmul.mubr.bf16.gmra.mrb[0].mxu0 %v5247
      %v5392 = vpop.f32.mrb[0].mxu0
      %v5393 = vadd.f32 %v5177, %v5392
      %v5394 = vpop.f32.mrb[0].mxu0
      %v5395 = vpop.f32.mrb[0].mxu0
      %v5396 = vadd.f32 %v5180, %v5395
      %v5397 = vpop.f32.mrb[0].mxu0
      %5398 = vmatprep.mubr.bf16.mxu0 0
      %5399 = vmatmul.mubr.bf16.gmra.mrb[0].mxu0 %v5249
      %v5400 = vpop.f32.mrb[0].mxu0
      %v5401 = vadd.f32 %v5185, %v5400
      %v5402 = vpop.f32.mrb[0].mxu0
      %v5403 = vpop.f32.mrb[0].mxu0
      %v5404 = vadd.f32 %v5188, %v5403
      %v5405 = vpop.f32.mrb[0].mxu0
      %5406 = vmatprep.mubr.bf16.mxu0 0
      %5407 = vmatmul.mubr.bf16.gmra.mrb[0].mxu0 %v5251
      %v5408 = vpop.f32.mrb[0].mxu0
      %v5409 = vadd.f32 %v5193, %v5408
      %v5410 = vpop.f32.mrb[0].mxu0
      %v5411 = vpop.f32.mrb[0].mxu0
      %v5412 = vadd.f32 %v5196, %v5411
      %v5413 = vpop.f32.mrb[0].mxu0
      %5414 = vmatprep.mubr.bf16.mxu0 0
      %5415 = vmatmul.mubr.bf16.gmra.mrb[0].mxu0 %v5253
      %v5416 = vpop.f32.mrb[0].mxu0
      %v5417 = vadd.f32 %v5201, %v5416
      %v5418 = vpop.f32.mrb[0].mxu0
      %v5419 = vpop.f32.mrb[0].mxu0
      %v5420 = vadd.f32 %v5204, %v5419
      %v5421 = vpop.f32.mrb[0].mxu0
      %5422 = vmatprep.mubr.bf16.mxu0 0
      %5423 = vmatmul.mubr.bf16.gmra.mrb[0].mxu0 %v5255
      %v5424 = vpop.f32.mrb[0].mxu0
      %v5425 = vadd.f32 %v5209, %v5424
      %v5426 = vpop.f32.mrb[0].mxu0
      %v5427 = vpop.f32.mrb[0].mxu0
      %v5428 = vadd.f32 %v5212, %v5427
      %v5429 = vpop.f32.mrb[0].mxu0
      %5430 = vmatprep.mubr.bf16.mxu0 0
      %5431 = vmatmul.mubr.bf16.gmra.mrb[0].mxu0 %v5257
      %v5432 = vpop.f32.mrb[0].mxu0
      %v5433 = vadd.f32 %v5217, %v5432
      %v5434 = vpop.f32.mrb[0].mxu0
      %v5435 = vpop.f32.mrb[0].mxu0
      %v5436 = vadd.f32 %v5220, %v5435
      %v5437 = vpop.f32.mrb[0].mxu0
      %5438 = vdwg.mxu0
      %v5439 = vld [vmem:[#allocation2] sm:$0xfe]
      %s5440 = scalar_lea.vmem %s3, 4
      %v5441 = vld [vmem:[%s5440] sm:$0x3]
      %v5461 = vrot.slane %v5439, 1
      %v5462 = vrot.slane %v4820, 1
      %v5463 = vsel %vm1615, %v5461, %v5462
      %v5464 = vrot.slane %v4821, 1
      %v5465 = vsel %vm1615, %v5462, %v5464
      %v5466 = vrot.slane %v4822, 1
      %v5467 = vsel %vm1615, %v5464, %v5466
      %v5468 = vrot.slane %v4823, 1
      %v5469 = vsel %vm1615, %v5466, %v5468
      %v5470 = vrot.slane %v4824, 1
      %v5471 = vsel %vm1615, %v5468, %v5470
      %v5472 = vrot.slane %v4825, 1
      %v5473 = vsel %vm1615, %v5470, %v5472
      %v5474 = vrot.slane %v4826, 1
      %v5475 = vsel %vm1615, %v5472, %v5474
      %v5476 = vrot.slane %v4827, 1
      %v5477 = vsel %vm1615, %v5474, %v5476
      %v5478 = vrot.slane %v4828, 1
      %v5479 = vsel %vm1615, %v5476, %v5478
      %v5480 = vrot.slane %v4829, 1
      %v5481 = vsel %vm1615, %v5478, %v5480
      %v5482 = vrot.slane %v4830, 1
      %v5483 = vsel %vm1615, %v5480, %v5482
      %v5484 = vrot.slane %v4831, 1
      %v5485 = vsel %vm1615, %v5482, %v5484
      %v5486 = vrot.slane %v4832, 1
      %v5487 = vsel %vm1615, %v5484, %v5486
      %v5488 = vrot.slane %v4833, 1
      %v5489 = vsel %vm1615, %v5486, %v5488
      %v5490 = vrot.slane %v4834, 1
      %v5491 = vsel %vm1615, %v5488, %v5490
      %v5492 = vrot.slane %v4835, 1
      %v5493 = vsel %vm1615, %v5490, %v5492
      %v5494 = vrot.slane %v4836, 1
      %v5495 = vsel %vm1615, %v5492, %v5494
      %v5496 = vrot.slane %v4838, 1
      %v5497 = vsel %vm1615, %v5494, %v5496
      %v5499 = vsel %vm1157, %v5463, 0
      %v5502 = vsel %vm1157, %v5465, 0
      %v5505 = vsel %vm1157, %v5467, 0
      %v5508 = vsel %vm1157, %v5469, 0
      %v5511 = vsel %vm1157, %v5471, 0
      %v5514 = vsel %vm1157, %v5473, 0
      %v5517 = vsel %vm1157, %v5475, 0
      %v5520 = vsel %vm1157, %v5477, 0
      %v5523 = vsel %vm1157, %v5479, 0
      %v5526 = vsel %vm1157, %v5481, 0
      %v5529 = vsel %vm1157, %v5483, 0
      %v5532 = vsel %vm1157, %v5485, 0
      %v5535 = vsel %vm1157, %v5487, 0
      %v5538 = vsel %vm1157, %v5489, 0
      %v5541 = vsel %vm1157, %v5491, 0
      %v5544 = vsel %vm1157, %v5493, 0
      %v5547 = vsel %vm1157, %v5495, 0
      %v5550 = vsel %vm1157, %v5497, 0
      %v5553 = vsel %vm1212, %v5441, 0
      %5555 = vmatprep.subr.bf16.mxu0 0
      %5556 = vmatpush1.bf16.msra.mxu0 %v5553
      %5557 = vmatprep.subr.bf16.mxu0 0
      %5558 = vmatpush1.bf16.msra.mxu0 0
      %5559 = vmatprep.subr.bf16.mxu0 0
      %5560 = vmatpush1.bf16.msra.mxu0 0
      %5561 = vmatprep.subr.bf16.mxu0 0
      %5562 = vmatpush1.bf16.msra.mxu0 0
      %5563 = vmatprep.subr.bf16.mxu0 0
      %5564 = vmatpush1.bf16.msra.mxu0 0
      %5565 = vmatprep.subr.bf16.mxu0 0
      %5566 = vmatpush1.bf16.msra.mxu0 0
      %5567 = vmatprep.subr.bf16.mxu0 0
      %5568 = vmatpush1.bf16.msra.mxu0 0
      %5569 = vmatprep.subr.bf16.mxu0 0
      %5570 = vmatpush1.bf16.msra.mxu0 0
      %5571 = vmatprep.subr.bf16.mxu0 0
      %5572 = vmatpush1.bf16.msra.mxu0 0
      %5573 = vmatprep.subr.bf16.mxu0 0
      %5574 = vmatpush1.bf16.msra.mxu0 0
      %5575 = vmatprep.subr.bf16.mxu0 0
      %5576 = vmatpush1.bf16.msra.mxu0 0
      %5577 = vmatprep.subr.bf16.mxu0 0
      %5578 = vmatpush1.bf16.msra.mxu0 0
      %5579 = vmatprep.subr.bf16.mxu0 0
      %5580 = vmatpush1.bf16.msra.mxu0 0
      %5581 = vmatprep.subr.bf16.mxu0 0
      %5582 = vmatpush1.bf16.msra.mxu0 0
      %5583 = vmatprep.subr.bf16.mxu0 0
      %5584 = vmatpush1.bf16.msra.mxu0 0
      %5585 = vmatprep.subr.bf16.mxu0 0
      %5586 = vmatpush1.bf16.msra.mxu0 0
      %5587 = vmatprep.mubr.bf16.mxu0 0
      %5588 = vmatmul.mubr.bf16.gmra.mrb[0].mxu0 %v5499
      %v5589 = vpop.f32.mrb[0].mxu0
      %v5590 = vadd.f32 0.0, %v5589
      %v5591 = vpop.f32.mrb[0].mxu0
      %v5592 = vpop.f32.mrb[0].mxu0
      %v5593 = vadd.f32 0.0, %v5592
      %v5594 = vpop.f32.mrb[0].mxu0
      %5595 = vmatprep.mubr.bf16.mxu0 0
      %5596 = vmatmul.mubr.bf16.gmra.mrb[0].mxu0 %v5502
      %v5597 = vpop.f32.mrb[0].mxu0
      %v5598 = vadd.f32 0.0, %v5597
      %v5599 = vpop.f32.mrb[0].mxu0
      %v5600 = vpop.f32.mrb[0].mxu0
      %v5601 = vadd.f32 0.0, %v5600
      %v5602 = vpop.f32.mrb[0].mxu0
      %5603 = vmatprep.mubr.bf16.mxu0 0
      %5604 = vmatmul.mubr.bf16.gmra.mrb[0].mxu0 %v5505
      %v5605 = vpop.f32.mrb[0].mxu0
      %v5606 = vadd.f32 0.0, %v5605
      %v5607 = vpop.f32.mrb[0].mxu0
      %v5608 = vpop.f32.mrb[0].mxu0
      %v5609 = vadd.f32 0.0, %v5608
      %v5610 = vpop.f32.mrb[0].mxu0
      %5611 = vmatprep.mubr.bf16.mxu0 0
      %5612 = vmatmul.mubr.bf16.gmra.mrb[0].mxu0 %v5508
      %v5613 = vpop.f32.mrb[0].mxu0
      %v5614 = vadd.f32 0.0, %v5613
      %v5615 = vpop.f32.mrb[0].mxu0
      %v5616 = vpop.f32.mrb[0].mxu0
      %v5617 = vadd.f32 0.0, %v5616
      %v5618 = vpop.f32.mrb[0].mxu0
      %5619 = vmatprep.mubr.bf16.mxu0 0
      %5620 = vmatmul.mubr.bf16.gmra.mrb[0].mxu0 %v5511
      %v5621 = vpop.f32.mrb[0].mxu0
      %v5622 = vadd.f32 0.0, %v5621
      %v5623 = vpop.f32.mrb[0].mxu0
      %v5624 = vpop.f32.mrb[0].mxu0
      %v5625 = vadd.f32 0.0, %v5624
      %v5626 = vpop.f32.mrb[0].mxu0
      %5627 = vmatprep.mubr.bf16.mxu0 0
      %5628 = vmatmul.mubr.bf16.gmra.mrb[0].mxu0 %v5514
      %v5629 = vpop.f32.mrb[0].mxu0
      %v5630 = vadd.f32 0.0, %v5629
      %v5631 = vpop.f32.mrb[0].mxu0
      %v5632 = vpop.f32.mrb[0].mxu0
      %v5633 = vadd.f32 0.0, %v5632
      %v5634 = vpop.f32.mrb[0].mxu0
      %5635 = vmatprep.mubr.bf16.mxu0 0
      %5636 = vmatmul.mubr.bf16.gmra.mrb[0].mxu0 %v5517
      %v5637 = vpop.f32.mrb[0].mxu0
      %v5638 = vadd.f32 0.0, %v5637
      %v5639 = vpop.f32.mrb[0].mxu0
      %v5640 = vpop.f32.mrb[0].mxu0
      %v5641 = vadd.f32 0.0, %v5640
      %v5642 = vpop.f32.mrb[0].mxu0
      %5643 = vmatprep.mubr.bf16.mxu0 0
      %5644 = vmatmul.mubr.bf16.gmra.mrb[0].mxu0 %v5520
      %v5645 = vpop.f32.mrb[0].mxu0
      %v5646 = vadd.f32 0.0, %v5645
      %v5647 = vpop.f32.mrb[0].mxu0
      %v5648 = vpop.f32.mrb[0].mxu0
      %v5649 = vadd.f32 0.0, %v5648
      %v5650 = vpop.f32.mrb[0].mxu0
      %5651 = vmatprep.mubr.bf16.mxu0 0
      %5652 = vmatmul.mubr.bf16.gmra.mrb[0].mxu0 %v5523
      %v5653 = vpop.f32.mrb[0].mxu0
      %v5654 = vadd.f32 0.0, %v5653
      %v5655 = vpop.f32.mrb[0].mxu0
      %v5656 = vpop.f32.mrb[0].mxu0
      %v5657 = vadd.f32 0.0, %v5656
      %v5658 = vpop.f32.mrb[0].mxu0
      %5659 = vmatprep.mubr.bf16.mxu0 0
      %5660 = vmatmul.mubr.bf16.gmra.mrb[0].mxu0 %v5526
      %v5661 = vpop.f32.mrb[0].mxu0
      %v5662 = vadd.f32 0.0, %v5661
      %v5663 = vpop.f32.mrb[0].mxu0
      %v5664 = vpop.f32.mrb[0].mxu0
      %v5665 = vadd.f32 0.0, %v5664
      %v5666 = vpop.f32.mrb[0].mxu0
      %5667 = vmatprep.mubr.bf16.mxu0 0
      %5668 = vmatmul.mubr.bf16.gmra.mrb[0].mxu0 %v5529
      %v5669 = vpop.f32.mrb[0].mxu0
      %v5670 = vadd.f32 0.0, %v5669
      %v5671 = vpop.f32.mrb[0].mxu0
      %v5672 = vpop.f32.mrb[0].mxu0
      %v5673 = vadd.f32 0.0, %v5672
      %v5674 = vpop.f32.mrb[0].mxu0
      %5675 = vmatprep.mubr.bf16.mxu0 0
      %5676 = vmatmul.mubr.bf16.gmra.mrb[0].mxu0 %v5532
      %v5677 = vpop.f32.mrb[0].mxu0
      %v5678 = vadd.f32 0.0, %v5677
      %v5679 = vpop.f32.mrb[0].mxu0
      %v5680 = vpop.f32.mrb[0].mxu0
      %v5681 = vadd.f32 0.0, %v5680
      %v5682 = vpop.f32.mrb[0].mxu0
      %5683 = vmatprep.mubr.bf16.mxu0 0
      %5684 = vmatmul.mubr.bf16.gmra.mrb[0].mxu0 %v5535
      %v5685 = vpop.f32.mrb[0].mxu0
      %v5686 = vadd.f32 0.0, %v5685
      %v5687 = vpop.f32.mrb[0].mxu0
      %v5688 = vpop.f32.mrb[0].mxu0
      %v5689 = vadd.f32 0.0, %v5688
      %v5690 = vpop.f32.mrb[0].mxu0
      %5691 = vmatprep.mubr.bf16.mxu0 0
      %5692 = vmatmul.mubr.bf16.gmra.mrb[0].mxu0 %v5538
      %v5693 = vpop.f32.mrb[0].mxu0
      %v5694 = vadd.f32 0.0, %v5693
      %v5695 = vpop.f32.mrb[0].mxu0
      %v5696 = vpop.f32.mrb[0].mxu0
      %v5697 = vadd.f32 0.0, %v5696
      %v5698 = vpop.f32.mrb[0].mxu0
      %5699 = vmatprep.mubr.bf16.mxu0 0
      %5700 = vmatmul.mubr.bf16.gmra.mrb[0].mxu0 %v5541
      %v5701 = vpop.f32.mrb[0].mxu0
      %v5702 = vadd.f32 0.0, %v5701
      %v5703 = vpop.f32.mrb[0].mxu0
      %v5704 = vpop.f32.mrb[0].mxu0
      %v5705 = vadd.f32 0.0, %v5704
      %v5706 = vpop.f32.mrb[0].mxu0
      %5707 = vmatprep.mubr.bf16.mxu0 0
      %5708 = vmatmul.mubr.bf16.gmra.mrb[0].mxu0 %v5544
      %v5709 = vpop.f32.mrb[0].mxu0
      %v5710 = vadd.f32 0.0, %v5709
      %v5711 = vpop.f32.mrb[0].mxu0
      %v5712 = vpop.f32.mrb[0].mxu0
      %v5713 = vadd.f32 0.0, %v5712
      %v5714 = vpop.f32.mrb[0].mxu0
      %5715 = vmatprep.mubr.bf16.mxu0 0
      %5716 = vmatmul.mubr.bf16.gmra.mrb[0].mxu0 %v5547
      %v5717 = vpop.f32.mrb[0].mxu0
      %v5718 = vadd.f32 0.0, %v5717
      %v5719 = vpop.f32.mrb[0].mxu0
      %v5720 = vpop.f32.mrb[0].mxu0
      %v5721 = vadd.f32 0.0, %v5720
      %v5722 = vpop.f32.mrb[0].mxu0
      %5723 = vmatprep.mubr.bf16.mxu0 0
      %5724 = vmatmul.mubr.bf16.gmra.mrb[0].mxu0 %v5550
      %v5725 = vpop.f32.mrb[0].mxu0
      %v5726 = vadd.f32 0.0, %v5725
      %v5727 = vpop.f32.mrb[0].mxu0
      %v5728 = vpop.f32.mrb[0].mxu0
      %v5729 = vadd.f32 0.0, %v5728
      %v5730 = vpop.f32.mrb[0].mxu0
      %5731 = vdwg.mxu0
      %v5732 = vadd.f32 %v5297, %v5590
      %v5733 = vadd.f32 %v5300, %v5593
      %v5734 = vadd.f32 %v5305, %v5598
      %v5735 = vadd.f32 %v5308, %v5601
      %v5736 = vadd.f32 %v5313, %v5606
      %v5737 = vadd.f32 %v5316, %v5609
      %v5738 = vadd.f32 %v5321, %v5614
      %v5739 = vadd.f32 %v5324, %v5617
      %v5740 = vadd.f32 %v5329, %v5622
      %v5741 = vadd.f32 %v5332, %v5625
      %v5742 = vadd.f32 %v5337, %v5630
      %v5743 = vadd.f32 %v5340, %v5633
      %v5744 = vadd.f32 %v5345, %v5638
      %v5745 = vadd.f32 %v5348, %v5641
      %v5746 = vadd.f32 %v5353, %v5646
      %v5747 = vadd.f32 %v5356, %v5649
      %v5748 = vadd.f32 %v5361, %v5654
      %v5749 = vadd.f32 %v5364, %v5657
      %v5750 = vadd.f32 %v5369, %v5662
      %v5751 = vadd.f32 %v5372, %v5665
      %v5752 = vadd.f32 %v5377, %v5670
      %v5753 = vadd.f32 %v5380, %v5673
      %v5754 = vadd.f32 %v5385, %v5678
      %v5755 = vadd.f32 %v5388, %v5681
      %v5756 = vadd.f32 %v5393, %v5686
      %v5757 = vadd.f32 %v5396, %v5689
      %v5758 = vadd.f32 %v5401, %v5694
      %v5759 = vadd.f32 %v5404, %v5697
      %v5760 = vadd.f32 %v5409, %v5702
      %v5761 = vadd.f32 %v5412, %v5705
      %v5762 = vadd.f32 %v5417, %v5710
      %v5763 = vadd.f32 %v5420, %v5713
      %v5764 = vadd.f32 %v5425, %v5718
      %v5765 = vadd.f32 %v5428, %v5721
      %v5766 = vadd.f32 %v5433, %v5726
      %v5767 = vadd.f32 %v5436, %v5729
      %v5768 = vld [vmem:[#allocation2 + $0x8] sm:$0xfe]
      %v5769 = vld [vmem:[#allocation2 + $0x10] sm:$0xff]
      %v5770 = vld [vmem:[#allocation2 + $0x18] sm:$0xff]
      %v5771 = vld [vmem:[#allocation2 + $0x20] sm:$0xff]
      %v5772 = vld [vmem:[#allocation2 + $0x28] sm:$0xff]
      %v5773 = vld [vmem:[#allocation2 + $0x30] sm:$0xff]
      %v5774 = vld [vmem:[#allocation2 + $0x38] sm:$0xff]
      %v5775 = vld [vmem:[#allocation2 + $0x40] sm:$0xff]
      %v5776 = vld [vmem:[#allocation2 + $0x48] sm:$0xff]
      %v5777 = vld [vmem:[#allocation2 + $0x50] sm:$0xff]
      %v5778 = vld [vmem:[#allocation2 + $0x58] sm:$0xff]
      %v5779 = vld [vmem:[#allocation2 + $0x60] sm:$0xff]
      %v5780 = vld [vmem:[#allocation2 + $0x68] sm:$0xff]
      %v5781 = vld [vmem:[#allocation2 + $0x70] sm:$0xff]
      %v5782 = vld [vmem:[#allocation2 + $0x78] sm:$0xff]
      %v5783 = vld [vmem:[#allocation2 + $0x80] sm:$0xff]
      %v5784 = vld [vmem:[#allocation2 + $0x88] sm:$0xff]
      %v5785 = vld [vmem:[#allocation2 + $0x90] sm:$0xff]
      %v5786 = vld [vmem:[#allocation2 + $0x98] sm:$0x1]
      %s5787 = scalar_lea.vmem %s3, 6
      %v5788 = vld [vmem:[%s5787] sm:$0x3]
      %v5808 = vrot.slane %v5768, 1
      %v5809 = vrot.slane %v5769, 1
      %v5810 = vsel %vm1615, %v5808, %v5809
      %v5811 = vrot.slane %v5770, 1
      %v5812 = vsel %vm1615, %v5809, %v5811
      %v5813 = vrot.slane %v5771, 1
      %v5814 = vsel %vm1615, %v5811, %v5813
      %v5815 = vrot.slane %v5772, 1
      %v5816 = vsel %vm1615, %v5813, %v5815
      %v5817 = vrot.slane %v5773, 1
      %v5818 = vsel %vm1615, %v5815, %v5817
      %v5819 = vrot.slane %v5774, 1
      %v5820 = vsel %vm1615, %v5817, %v5819
      %v5821 = vrot.slane %v5775, 1
      %v5822 = vsel %vm1615, %v5819, %v5821
      %v5823 = vrot.slane %v5776, 1
      %v5824 = vsel %vm1615, %v5821, %v5823
      %v5825 = vrot.slane %v5777, 1
      %v5826 = vsel %vm1615, %v5823, %v5825
      %v5827 = vrot.slane %v5778, 1
      %v5828 = vsel %vm1615, %v5825, %v5827
      %v5829 = vrot.slane %v5779, 1
      %v5830 = vsel %vm1615, %v5827, %v5829
      %v5831 = vrot.slane %v5780, 1
      %v5832 = vsel %vm1615, %v5829, %v5831
      %v5833 = vrot.slane %v5781, 1
      %v5834 = vsel %vm1615, %v5831, %v5833
      %v5835 = vrot.slane %v5782, 1
      %v5836 = vsel %vm1615, %v5833, %v5835
      %v5837 = vrot.slane %v5783, 1
      %v5838 = vsel %vm1615, %v5835, %v5837
      %v5839 = vrot.slane %v5784, 1
      %v5840 = vsel %vm1615, %v5837, %v5839
      %v5841 = vrot.slane %v5785, 1
      %v5842 = vsel %vm1615, %v5839, %v5841
      %v5843 = vrot.slane %v5786, 1
      %v5844 = vsel %vm1615, %v5841, %v5843
      %v5846 = vsel %vm1157, %v5810, 0
      %v5849 = vsel %vm1157, %v5812, 0
      %v5852 = vsel %vm1157, %v5814, 0
      %v5855 = vsel %vm1157, %v5816, 0
      %v5858 = vsel %vm1157, %v5818, 0
      %v5861 = vsel %vm1157, %v5820, 0
      %v5864 = vsel %vm1157, %v5822, 0
      %v5867 = vsel %vm1157, %v5824, 0
      %v5870 = vsel %vm1157, %v5826, 0
      %v5873 = vsel %vm1157, %v5828, 0
      %v5876 = vsel %vm1157, %v5830, 0
      %v5879 = vsel %vm1157, %v5832, 0
      %v5882 = vsel %vm1157, %v5834, 0
      %v5885 = vsel %vm1157, %v5836, 0
      %v5888 = vsel %vm1157, %v5838, 0
      %v5891 = vsel %vm1157, %v5840, 0
      %v5894 = vsel %vm1157, %v5842, 0
      %v5897 = vsel %vm1157, %v5844, 0
      %v5900 = vsel %vm1212, %v5788, 0
      %5902 = vmatprep.subr.bf16.mxu0 0
      %5903 = vmatpush1.bf16.msra.mxu0 %v5900
      %5904 = vmatprep.subr.bf16.mxu0 0
      %5905 = vmatpush1.bf16.msra.mxu0 0
      %5906 = vmatprep.subr.bf16.mxu0 0
      %5907 = vmatpush1.bf16.msra.mxu0 0
      %5908 = vmatprep.subr.bf16.mxu0 0
      %5909 = vmatpush1.bf16.msra.mxu0 0
      %5910 = vmatprep.subr.bf16.mxu0 0
      %5911 = vmatpush1.bf16.msra.mxu0 0
      %5912 = vmatprep.subr.bf16.mxu0 0
      %5913 = vmatpush1.bf16.msra.mxu0 0
      %5914 = vmatprep.subr.bf16.mxu0 0
      %5915 = vmatpush1.bf16.msra.mxu0 0
      %5916 = vmatprep.subr.bf16.mxu0 0
      %5917 = vmatpush1.bf16.msra.mxu0 0
      %5918 = vmatprep.subr.bf16.mxu0 0
      %5919 = vmatpush1.bf16.msra.mxu0 0
      %5920 = vmatprep.subr.bf16.mxu0 0
      %5921 = vmatpush1.bf16.msra.mxu0 0
      %5922 = vmatprep.subr.bf16.mxu0 0
      %5923 = vmatpush1.bf16.msra.mxu0 0
      %5924 = vmatprep.subr.bf16.mxu0 0
      %5925 = vmatpush1.bf16.msra.mxu0 0
      %5926 = vmatprep.subr.bf16.mxu0 0
      %5927 = vmatpush1.bf16.msra.mxu0 0
      %5928 = vmatprep.subr.bf16.mxu0 0
      %5929 = vmatpush1.bf16.msra.mxu0 0
      %5930 = vmatprep.subr.bf16.mxu0 0
      %5931 = vmatpush1.bf16.msra.mxu0 0
      %5932 = vmatprep.subr.bf16.mxu0 0
      %5933 = vmatpush1.bf16.msra.mxu0 0
      %5934 = vmatprep.mubr.bf16.mxu0 0
      %5935 = vmatmul.mubr.bf16.gmra.mrb[0].mxu0 %v5846
      %v5936 = vpop.f32.mrb[0].mxu0
      %v5937 = vadd.f32 0.0, %v5936
      %v5938 = vpop.f32.mrb[0].mxu0
      %v5939 = vpop.f32.mrb[0].mxu0
      %v5940 = vadd.f32 0.0, %v5939
      %v5941 = vpop.f32.mrb[0].mxu0
      %5942 = vmatprep.mubr.bf16.mxu0 0
      %5943 = vmatmul.mubr.bf16.gmra.mrb[0].mxu0 %v5849
      %v5944 = vpop.f32.mrb[0].mxu0
      %v5945 = vadd.f32 0.0, %v5944
      %v5946 = vpop.f32.mrb[0].mxu0
      %v5947 = vpop.f32.mrb[0].mxu0
      %v5948 = vadd.f32 0.0, %v5947
      %v5949 = vpop.f32.mrb[0].mxu0
      %5950 = vmatprep.mubr.bf16.mxu0 0
      %5951 = vmatmul.mubr.bf16.gmra.mrb[0].mxu0 %v5852
      %v5952 = vpop.f32.mrb[0].mxu0
      %v5953 = vadd.f32 0.0, %v5952
      %v5954 = vpop.f32.mrb[0].mxu0
      %v5955 = vpop.f32.mrb[0].mxu0
      %v5956 = vadd.f32 0.0, %v5955
      %v5957 = vpop.f32.mrb[0].mxu0
      %5958 = vmatprep.mubr.bf16.mxu0 0
      %5959 = vmatmul.mubr.bf16.gmra.mrb[0].mxu0 %v5855
      %v5960 = vpop.f32.mrb[0].mxu0
      %v5961 = vadd.f32 0.0, %v5960
      %v5962 = vpop.f32.mrb[0].mxu0
      %v5963 = vpop.f32.mrb[0].mxu0
      %v5964 = vadd.f32 0.0, %v5963
      %v5965 = vpop.f32.mrb[0].mxu0
      %5966 = vmatprep.mubr.bf16.mxu0 0
      %5967 = vmatmul.mubr.bf16.gmra.mrb[0].mxu0 %v5858
      %v5968 = vpop.f32.mrb[0].mxu0
      %v5969 = vadd.f32 0.0, %v5968
      %v5970 = vpop.f32.mrb[0].mxu0
      %v5971 = vpop.f32.mrb[0].mxu0
      %v5972 = vadd.f32 0.0, %v5971
      %v5973 = vpop.f32.mrb[0].mxu0
      %5974 = vmatprep.mubr.bf16.mxu0 0
      %5975 = vmatmul.mubr.bf16.gmra.mrb[0].mxu0 %v5861
      %v5976 = vpop.f32.mrb[0].mxu0
      %v5977 = vadd.f32 0.0, %v5976
      %v5978 = vpop.f32.mrb[0].mxu0
      %v5979 = vpop.f32.mrb[0].mxu0
      %v5980 = vadd.f32 0.0, %v5979
      %v5981 = vpop.f32.mrb[0].mxu0
      %5982 = vmatprep.mubr.bf16.mxu0 0
      %5983 = vmatmul.mubr.bf16.gmra.mrb[0].mxu0 %v5864
      %v5984 = vpop.f32.mrb[0].mxu0
      %v5985 = vadd.f32 0.0, %v5984
      %v5986 = vpop.f32.mrb[0].mxu0
      %v5987 = vpop.f32.mrb[0].mxu0
      %v5988 = vadd.f32 0.0, %v5987
      %v5989 = vpop.f32.mrb[0].mxu0
      %5990 = vmatprep.mubr.bf16.mxu0 0
      %5991 = vmatmul.mubr.bf16.gmra.mrb[0].mxu0 %v5867
      %v5992 = vpop.f32.mrb[0].mxu0
      %v5993 = vadd.f32 0.0, %v5992
      %v5994 = vpop.f32.mrb[0].mxu0
      %v5995 = vpop.f32.mrb[0].mxu0
      %v5996 = vadd.f32 0.0, %v5995
      %v5997 = vpop.f32.mrb[0].mxu0
      %5998 = vmatprep.mubr.bf16.mxu0 0
      %5999 = vmatmul.mubr.bf16.gmra.mrb[0].mxu0 %v5870
      %v6000 = vpop.f32.mrb[0].mxu0
      %v6001 = vadd.f32 0.0, %v6000
      %v6002 = vpop.f32.mrb[0].mxu0
      %v6003 = vpop.f32.mrb[0].mxu0
      %v6004 = vadd.f32 0.0, %v6003
      %v6005 = vpop.f32.mrb[0].mxu0
      %6006 = vmatprep.mubr.bf16.mxu0 0
      %6007 = vmatmul.mubr.bf16.gmra.mrb[0].mxu0 %v5873
      %v6008 = vpop.f32.mrb[0].mxu0
      %v6009 = vadd.f32 0.0, %v6008
      %v6010 = vpop.f32.mrb[0].mxu0
      %v6011 = vpop.f32.mrb[0].mxu0
      %v6012 = vadd.f32 0.0, %v6011
      %v6013 = vpop.f32.mrb[0].mxu0
      %6014 = vmatprep.mubr.bf16.mxu0 0
      %6015 = vmatmul.mubr.bf16.gmra.mrb[0].mxu0 %v5876
      %v6016 = vpop.f32.mrb[0].mxu0
      %v6017 = vadd.f32 0.0, %v6016
      %v6018 = vpop.f32.mrb[0].mxu0
      %v6019 = vpop.f32.mrb[0].mxu0
      %v6020 = vadd.f32 0.0, %v6019
      %v6021 = vpop.f32.mrb[0].mxu0
      %6022 = vmatprep.mubr.bf16.mxu0 0
      %6023 = vmatmul.mubr.bf16.gmra.mrb[0].mxu0 %v5879
      %v6024 = vpop.f32.mrb[0].mxu0
      %v6025 = vadd.f32 0.0, %v6024
      %v6026 = vpop.f32.mrb[0].mxu0
      %v6027 = vpop.f32.mrb[0].mxu0
      %v6028 = vadd.f32 0.0, %v6027
      %v6029 = vpop.f32.mrb[0].mxu0
      %6030 = vmatprep.mubr.bf16.mxu0 0
      %6031 = vmatmul.mubr.bf16.gmra.mrb[0].mxu0 %v5882
      %v6032 = vpop.f32.mrb[0].mxu0
      %v6033 = vadd.f32 0.0, %v6032
      %v6034 = vpop.f32.mrb[0].mxu0
      %v6035 = vpop.f32.mrb[0].mxu0
      %v6036 = vadd.f32 0.0, %v6035
      %v6037 = vpop.f32.mrb[0].mxu0
      %6038 = vmatprep.mubr.bf16.mxu0 0
      %6039 = vmatmul.mubr.bf16.gmra.mrb[0].mxu0 %v5885
      %v6040 = vpop.f32.mrb[0].mxu0
      %v6041 = vadd.f32 0.0, %v6040
      %v6042 = vpop.f32.mrb[0].mxu0
      %v6043 = vpop.f32.mrb[0].mxu0
      %v6044 = vadd.f32 0.0, %v6043
      %v6045 = vpop.f32.mrb[0].mxu0
      %6046 = vmatprep.mubr.bf16.mxu0 0
      %6047 = vmatmul.mubr.bf16.gmra.mrb[0].mxu0 %v5888
      %v6048 = vpop.f32.mrb[0].mxu0
      %v6049 = vadd.f32 0.0, %v6048
      %v6050 = vpop.f32.mrb[0].mxu0
      %v6051 = vpop.f32.mrb[0].mxu0
      %v6052 = vadd.f32 0.0, %v6051
      %v6053 = vpop.f32.mrb[0].mxu0
      %6054 = vmatprep.mubr.bf16.mxu0 0
      %6055 = vmatmul.mubr.bf16.gmra.mrb[0].mxu0 %v5891
      %v6056 = vpop.f32.mrb[0].mxu0
      %v6057 = vadd.f32 0.0, %v6056
      %v6058 = vpop.f32.mrb[0].mxu0
      %v6059 = vpop.f32.mrb[0].mxu0
      %v6060 = vadd.f32 0.0, %v6059
      %v6061 = vpop.f32.mrb[0].mxu0
      %6062 = vmatprep.mubr.bf16.mxu0 0
      %6063 = vmatmul.mubr.bf16.gmra.mrb[0].mxu0 %v5894
      %v6064 = vpop.f32.mrb[0].mxu0
      %v6065 = vadd.f32 0.0, %v6064
      %v6066 = vpop.f32.mrb[0].mxu0
      %v6067 = vpop.f32.mrb[0].mxu0
      %v6068 = vadd.f32 0.0, %v6067
      %v6069 = vpop.f32.mrb[0].mxu0
      %6070 = vmatprep.mubr.bf16.mxu0 0
      %6071 = vmatmul.mubr.bf16.gmra.mrb[0].mxu0 %v5897
      %v6072 = vpop.f32.mrb[0].mxu0
      %v6073 = vadd.f32 0.0, %v6072
      %v6074 = vpop.f32.mrb[0].mxu0
      %v6075 = vpop.f32.mrb[0].mxu0
      %v6076 = vadd.f32 0.0, %v6075
      %v6077 = vpop.f32.mrb[0].mxu0
      %6078 = vdwg.mxu0
      %v6079 = vadd.f32 %v5732, %v5937
      %v6080 = vadd.f32 %v5733, %v5940
      %v6081 = vadd.f32 %v5734, %v5945
      %v6082 = vadd.f32 %v5735, %v5948
      %v6083 = vadd.f32 %v5736, %v5953
      %v6084 = vadd.f32 %v5737, %v5956
      %v6085 = vadd.f32 %v5738, %v5961
      %v6086 = vadd.f32 %v5739, %v5964
      %v6087 = vadd.f32 %v5740, %v5969
      %v6088 = vadd.f32 %v5741, %v5972
      %v6089 = vadd.f32 %v5742, %v5977
      %v6090 = vadd.f32 %v5743, %v5980
      %v6091 = vadd.f32 %v5744, %v5985
      %v6092 = vadd.f32 %v5745, %v5988
      %v6093 = vadd.f32 %v5746, %v5993
      %v6094 = vadd.f32 %v5747, %v5996
      %v6095 = vadd.f32 %v5748, %v6001
      %v6096 = vadd.f32 %v5749, %v6004
      %v6097 = vadd.f32 %v5750, %v6009
      %v6098 = vadd.f32 %v5751, %v6012
      %v6099 = vadd.f32 %v5752, %v6017
      %v6100 = vadd.f32 %v5753, %v6020
      %v6101 = vadd.f32 %v5754, %v6025
      %v6102 = vadd.f32 %v5755, %v6028
      %v6103 = vadd.f32 %v5756, %v6033
      %v6104 = vadd.f32 %v5757, %v6036
      %v6105 = vadd.f32 %v5758, %v6041
      %v6106 = vadd.f32 %v5759, %v6044
      %v6107 = vadd.f32 %v5760, %v6049
      %v6108 = vadd.f32 %v5761, %v6052
      %v6109 = vadd.f32 %v5762, %v6057
      %v6110 = vadd.f32 %v5763, %v6060
      %v6111 = vadd.f32 %v5764, %v6065
      %v6112 = vadd.f32 %v5765, %v6068
      %v6113 = vadd.f32 %v5766, %v6073
      %v6114 = vadd.f32 %v5767, %v6076
      %v6115 = vld [vmem:[#allocation2 + $0x98] sm:$0x3]
      %s6116 = scalar_lea.vmem %s3, 8
      %v6117 = vld [vmem:[%s6116] sm:$0x3]
      %v6119 = vshrl.u32 %v5768, 16
      %v6121 = vrot.slane %v6119, 1
      %v6122 = vshll.u32 %v5768, 16
      %v6124 = vrot.slane %v6122, 2
      %v6125 = vor.u32 %v6121, %v6124
      %v6127 = vshrl.u32 %v5769, 16
      %v6129 = vrot.slane %v6127, 1
      %v6130 = vshll.u32 %v5769, 16
      %v6132 = vrot.slane %v6130, 2
      %v6133 = vor.u32 %v6129, %v6132
      %v6134 = vsel %vm2368, %v6125, %v6133
      %v6136 = vshrl.u32 %v5770, 16
      %v6138 = vrot.slane %v6136, 1
      %v6139 = vshll.u32 %v5770, 16
      %v6141 = vrot.slane %v6139, 2
      %v6142 = vor.u32 %v6138, %v6141
      %v6143 = vsel %vm2368, %v6133, %v6142
      %v6145 = vshrl.u32 %v5771, 16
      %v6147 = vrot.slane %v6145, 1
      %v6148 = vshll.u32 %v5771, 16
      %v6150 = vrot.slane %v6148, 2
      %v6151 = vor.u32 %v6147, %v6150
      %v6152 = vsel %vm2368, %v6142, %v6151
      %v6154 = vshrl.u32 %v5772, 16
      %v6156 = vrot.slane %v6154, 1
      %v6157 = vshll.u32 %v5772, 16
      %v6159 = vrot.slane %v6157, 2
      %v6160 = vor.u32 %v6156, %v6159
      %v6161 = vsel %vm2368, %v6151, %v6160
      %v6163 = vshrl.u32 %v5773, 16
      %v6165 = vrot.slane %v6163, 1
      %v6166 = vshll.u32 %v5773, 16
      %v6168 = vrot.slane %v6166, 2
      %v6169 = vor.u32 %v6165, %v6168
      %v6170 = vsel %vm2368, %v6160, %v6169
      %v6172 = vshrl.u32 %v5774, 16
      %v6174 = vrot.slane %v6172, 1
      %v6175 = vshll.u32 %v5774, 16
      %v6177 = vrot.slane %v6175, 2
      %v6178 = vor.u32 %v6174, %v6177
      %v6179 = vsel %vm2368, %v6169, %v6178
      %v6181 = vshrl.u32 %v5775, 16
      %v6183 = vrot.slane %v6181, 1
      %v6184 = vshll.u32 %v5775, 16
      %v6186 = vrot.slane %v6184, 2
      %v6187 = vor.u32 %v6183, %v6186
      %v6188 = vsel %vm2368, %v6178, %v6187
      %v6190 = vshrl.u32 %v5776, 16
      %v6192 = vrot.slane %v6190, 1
      %v6193 = vshll.u32 %v5776, 16
      %v6195 = vrot.slane %v6193, 2
      %v6196 = vor.u32 %v6192, %v6195
      %v6197 = vsel %vm2368, %v6187, %v6196
      %v6199 = vshrl.u32 %v5777, 16
      %v6201 = vrot.slane %v6199, 1
      %v6202 = vshll.u32 %v5777, 16
      %v6204 = vrot.slane %v6202, 2
      %v6205 = vor.u32 %v6201, %v6204
      %v6206 = vsel %vm2368, %v6196, %v6205
      %v6208 = vshrl.u32 %v5778, 16
      %v6210 = vrot.slane %v6208, 1
      %v6211 = vshll.u32 %v5778, 16
      %v6213 = vrot.slane %v6211, 2
      %v6214 = vor.u32 %v6210, %v6213
      %v6215 = vsel %vm2368, %v6205, %v6214
      %v6217 = vshrl.u32 %v5779, 16
      %v6219 = vrot.slane %v6217, 1
      %v6220 = vshll.u32 %v5779, 16
      %v6222 = vrot.slane %v6220, 2
      %v6223 = vor.u32 %v6219, %v6222
      %v6224 = vsel %vm2368, %v6214, %v6223
      %v6226 = vshrl.u32 %v5780, 16
      %v6228 = vrot.slane %v6226, 1
      %v6229 = vshll.u32 %v5780, 16
      %v6231 = vrot.slane %v6229, 2
      %v6232 = vor.u32 %v6228, %v6231
      %v6233 = vsel %vm2368, %v6223, %v6232
      %v6235 = vshrl.u32 %v5781, 16
      %v6237 = vrot.slane %v6235, 1
      %v6238 = vshll.u32 %v5781, 16
      %v6240 = vrot.slane %v6238, 2
      %v6241 = vor.u32 %v6237, %v6240
      %v6242 = vsel %vm2368, %v6232, %v6241
      %v6244 = vshrl.u32 %v5782, 16
      %v6246 = vrot.slane %v6244, 1
      %v6247 = vshll.u32 %v5782, 16
      %v6249 = vrot.slane %v6247, 2
      %v6250 = vor.u32 %v6246, %v6249
      %v6251 = vsel %vm2368, %v6241, %v6250
      %v6253 = vshrl.u32 %v5783, 16
      %v6255 = vrot.slane %v6253, 1
      %v6256 = vshll.u32 %v5783, 16
      %v6258 = vrot.slane %v6256, 2
      %v6259 = vor.u32 %v6255, %v6258
      %v6260 = vsel %vm2368, %v6250, %v6259
      %v6262 = vshrl.u32 %v5784, 16
      %v6264 = vrot.slane %v6262, 1
      %v6265 = vshll.u32 %v5784, 16
      %v6267 = vrot.slane %v6265, 2
      %v6268 = vor.u32 %v6264, %v6267
      %v6269 = vsel %vm2368, %v6259, %v6268
      %v6271 = vshrl.u32 %v5785, 16
      %v6273 = vrot.slane %v6271, 1
      %v6274 = vshll.u32 %v5785, 16
      %v6276 = vrot.slane %v6274, 2
      %v6277 = vor.u32 %v6273, %v6276
      %v6278 = vsel %vm2368, %v6268, %v6277
      %v6280 = vshrl.u32 %v6115, 16
      %v6282 = vrot.slane %v6280, 1
      %v6283 = vshll.u32 %v6115, 16
      %v6285 = vrot.slane %v6283, 2
      %v6286 = vor.u32 %v6282, %v6285
      %v6287 = vsel %vm2368, %v6277, %v6286
      %v6289 = vsel %vm1157, %v6134, 0
      %v6292 = vsel %vm1157, %v6143, 0
      %v6295 = vsel %vm1157, %v6152, 0
      %v6298 = vsel %vm1157, %v6161, 0
      %v6301 = vsel %vm1157, %v6170, 0
      %v6304 = vsel %vm1157, %v6179, 0
      %v6307 = vsel %vm1157, %v6188, 0
      %v6310 = vsel %vm1157, %v6197, 0
      %v6313 = vsel %vm1157, %v6206, 0
      %v6316 = vsel %vm1157, %v6215, 0
      %v6319 = vsel %vm1157, %v6224, 0
      %v6322 = vsel %vm1157, %v6233, 0
      %v6325 = vsel %vm1157, %v6242, 0
      %v6328 = vsel %vm1157, %v6251, 0
      %v6331 = vsel %vm1157, %v6260, 0
      %v6334 = vsel %vm1157, %v6269, 0
      %v6337 = vsel %vm1157, %v6278, 0
      %v6340 = vsel %vm1157, %v6287, 0
      %v6343 = vsel %vm1212, %v6117, 0
      %6345 = vmatprep.subr.bf16.mxu0 0
      %6346 = vmatpush1.bf16.msra.mxu0 %v6343
      %6347 = vmatprep.subr.bf16.mxu0 0
      %6348 = vmatpush1.bf16.msra.mxu0 0
      %6349 = vmatprep.subr.bf16.mxu0 0
      %6350 = vmatpush1.bf16.msra.mxu0 0
      %6351 = vmatprep.subr.bf16.mxu0 0
      %6352 = vmatpush1.bf16.msra.mxu0 0
      %6353 = vmatprep.subr.bf16.mxu0 0
      %6354 = vmatpush1.bf16.msra.mxu0 0
      %6355 = vmatprep.subr.bf16.mxu0 0
      %6356 = vmatpush1.bf16.msra.mxu0 0
      %6357 = vmatprep.subr.bf16.mxu0 0
      %6358 = vmatpush1.bf16.msra.mxu0 0
      %6359 = vmatprep.subr.bf16.mxu0 0
      %6360 = vmatpush1.bf16.msra.mxu0 0
      %6361 = vmatprep.subr.bf16.mxu0 0
      %6362 = vmatpush1.bf16.msra.mxu0 0
      %6363 = vmatprep.subr.bf16.mxu0 0
      %6364 = vmatpush1.bf16.msra.mxu0 0
      %6365 = vmatprep.subr.bf16.mxu0 0
      %6366 = vmatpush1.bf16.msra.mxu0 0
      %6367 = vmatprep.subr.bf16.mxu0 0
      %6368 = vmatpush1.bf16.msra.mxu0 0
      %6369 = vmatprep.subr.bf16.mxu0 0
      %6370 = vmatpush1.bf16.msra.mxu0 0
      %6371 = vmatprep.subr.bf16.mxu0 0
      %6372 = vmatpush1.bf16.msra.mxu0 0
      %6373 = vmatprep.subr.bf16.mxu0 0
      %6374 = vmatpush1.bf16.msra.mxu0 0
      %6375 = vmatprep.subr.bf16.mxu0 0
      %6376 = vmatpush1.bf16.msra.mxu0 0
      %6377 = vmatprep.mubr.bf16.mxu0 0
      %6378 = vmatmul.mubr.bf16.gmra.mrb[0].mxu0 %v6289
      %v6379 = vpop.f32.mrb[0].mxu0
      %v6380 = vadd.f32 0.0, %v6379
      %v6381 = vpop.f32.mrb[0].mxu0
      %v6382 = vpop.f32.mrb[0].mxu0
      %v6383 = vadd.f32 0.0, %v6382
      %v6384 = vpop.f32.mrb[0].mxu0
      %6385 = vmatprep.mubr.bf16.mxu0 0
      %6386 = vmatmul.mubr.bf16.gmra.mrb[0].mxu0 %v6292
      %v6387 = vpop.f32.mrb[0].mxu0
      %v6388 = vadd.f32 0.0, %v6387
      %v6389 = vpop.f32.mrb[0].mxu0
      %v6390 = vpop.f32.mrb[0].mxu0
      %v6391 = vadd.f32 0.0, %v6390
      %v6392 = vpop.f32.mrb[0].mxu0
      %6393 = vmatprep.mubr.bf16.mxu0 0
      %6394 = vmatmul.mubr.bf16.gmra.mrb[0].mxu0 %v6295
      %v6395 = vpop.f32.mrb[0].mxu0
      %v6396 = vadd.f32 0.0, %v6395
      %v6397 = vpop.f32.mrb[0].mxu0
      %v6398 = vpop.f32.mrb[0].mxu0
      %v6399 = vadd.f32 0.0, %v6398
      %v6400 = vpop.f32.mrb[0].mxu0
      %6401 = vmatprep.mubr.bf16.mxu0 0
      %6402 = vmatmul.mubr.bf16.gmra.mrb[0].mxu0 %v6298
      %v6403 = vpop.f32.mrb[0].mxu0
      %v6404 = vadd.f32 0.0, %v6403
      %v6405 = vpop.f32.mrb[0].mxu0
      %v6406 = vpop.f32.mrb[0].mxu0
      %v6407 = vadd.f32 0.0, %v6406
      %v6408 = vpop.f32.mrb[0].mxu0
      %6409 = vmatprep.mubr.bf16.mxu0 0
      %6410 = vmatmul.mubr.bf16.gmra.mrb[0].mxu0 %v6301
      %v6411 = vpop.f32.mrb[0].mxu0
      %v6412 = vadd.f32 0.0, %v6411
      %v6413 = vpop.f32.mrb[0].mxu0
      %v6414 = vpop.f32.mrb[0].mxu0
      %v6415 = vadd.f32 0.0, %v6414
      %v6416 = vpop.f32.mrb[0].mxu0
      %6417 = vmatprep.mubr.bf16.mxu0 0
      %6418 = vmatmul.mubr.bf16.gmra.mrb[0].mxu0 %v6304
      %v6419 = vpop.f32.mrb[0].mxu0
      %v6420 = vadd.f32 0.0, %v6419
      %v6421 = vpop.f32.mrb[0].mxu0
      %v6422 = vpop.f32.mrb[0].mxu0
      %v6423 = vadd.f32 0.0, %v6422
      %v6424 = vpop.f32.mrb[0].mxu0
      %6425 = vmatprep.mubr.bf16.mxu0 0
      %6426 = vmatmul.mubr.bf16.gmra.mrb[0].mxu0 %v6307
      %v6427 = vpop.f32.mrb[0].mxu0
      %v6428 = vadd.f32 0.0, %v6427
      %v6429 = vpop.f32.mrb[0].mxu0
      %v6430 = vpop.f32.mrb[0].mxu0
      %v6431 = vadd.f32 0.0, %v6430
      %v6432 = vpop.f32.mrb[0].mxu0
      %6433 = vmatprep.mubr.bf16.mxu0 0
      %6434 = vmatmul.mubr.bf16.gmra.mrb[0].mxu0 %v6310
      %v6435 = vpop.f32.mrb[0].mxu0
      %v6436 = vadd.f32 0.0, %v6435
      %v6437 = vpop.f32.mrb[0].mxu0
      %v6438 = vpop.f32.mrb[0].mxu0
      %v6439 = vadd.f32 0.0, %v6438
      %v6440 = vpop.f32.mrb[0].mxu0
      %6441 = vmatprep.mubr.bf16.mxu0 0
      %6442 = vmatmul.mubr.bf16.gmra.mrb[0].mxu0 %v6313
      %v6443 = vpop.f32.mrb[0].mxu0
      %v6444 = vadd.f32 0.0, %v6443
      %v6445 = vpop.f32.mrb[0].mxu0
      %v6446 = vpop.f32.mrb[0].mxu0
      %v6447 = vadd.f32 0.0, %v6446
      %v6448 = vpop.f32.mrb[0].mxu0
      %6449 = vmatprep.mubr.bf16.mxu0 0
      %6450 = vmatmul.mubr.bf16.gmra.mrb[0].mxu0 %v6316
      %v6451 = vpop.f32.mrb[0].mxu0
      %v6452 = vadd.f32 0.0, %v6451
      %v6453 = vpop.f32.mrb[0].mxu0
      %v6454 = vpop.f32.mrb[0].mxu0
      %v6455 = vadd.f32 0.0, %v6454
      %v6456 = vpop.f32.mrb[0].mxu0
      %6457 = vmatprep.mubr.bf16.mxu0 0
      %6458 = vmatmul.mubr.bf16.gmra.mrb[0].mxu0 %v6319
      %v6459 = vpop.f32.mrb[0].mxu0
      %v6460 = vadd.f32 0.0, %v6459
      %v6461 = vpop.f32.mrb[0].mxu0
      %v6462 = vpop.f32.mrb[0].mxu0
      %v6463 = vadd.f32 0.0, %v6462
      %v6464 = vpop.f32.mrb[0].mxu0
      %6465 = vmatprep.mubr.bf16.mxu0 0
      %6466 = vmatmul.mubr.bf16.gmra.mrb[0].mxu0 %v6322
      %v6467 = vpop.f32.mrb[0].mxu0
      %v6468 = vadd.f32 0.0, %v6467
      %v6469 = vpop.f32.mrb[0].mxu0
      %v6470 = vpop.f32.mrb[0].mxu0
      %v6471 = vadd.f32 0.0, %v6470
      %v6472 = vpop.f32.mrb[0].mxu0
      %6473 = vmatprep.mubr.bf16.mxu0 0
      %6474 = vmatmul.mubr.bf16.gmra.mrb[0].mxu0 %v6325
      %v6475 = vpop.f32.mrb[0].mxu0
      %v6476 = vadd.f32 0.0, %v6475
      %v6477 = vpop.f32.mrb[0].mxu0
      %v6478 = vpop.f32.mrb[0].mxu0
      %v6479 = vadd.f32 0.0, %v6478
      %v6480 = vpop.f32.mrb[0].mxu0
      %6481 = vmatprep.mubr.bf16.mxu0 0
      %6482 = vmatmul.mubr.bf16.gmra.mrb[0].mxu0 %v6328
      %v6483 = vpop.f32.mrb[0].mxu0
      %v6484 = vadd.f32 0.0, %v6483
      %v6485 = vpop.f32.mrb[0].mxu0
      %v6486 = vpop.f32.mrb[0].mxu0
      %v6487 = vadd.f32 0.0, %v6486
      %v6488 = vpop.f32.mrb[0].mxu0
      %6489 = vmatprep.mubr.bf16.mxu0 0
      %6490 = vmatmul.mubr.bf16.gmra.mrb[0].mxu0 %v6331
      %v6491 = vpop.f32.mrb[0].mxu0
      %v6492 = vadd.f32 0.0, %v6491
      %v6493 = vpop.f32.mrb[0].mxu0
      %v6494 = vpop.f32.mrb[0].mxu0
      %v6495 = vadd.f32 0.0, %v6494
      %v6496 = vpop.f32.mrb[0].mxu0
      %6497 = vmatprep.mubr.bf16.mxu0 0
      %6498 = vmatmul.mubr.bf16.gmra.mrb[0].mxu0 %v6334
      %v6499 = vpop.f32.mrb[0].mxu0
      %v6500 = vadd.f32 0.0, %v6499
      %v6501 = vpop.f32.mrb[0].mxu0
      %v6502 = vpop.f32.mrb[0].mxu0
      %v6503 = vadd.f32 0.0, %v6502
      %v6504 = vpop.f32.mrb[0].mxu0
      %6505 = vmatprep.mubr.bf16.mxu0 0
      %6506 = vmatmul.mubr.bf16.gmra.mrb[0].mxu0 %v6337
      %v6507 = vpop.f32.mrb[0].mxu0
      %v6508 = vadd.f32 0.0, %v6507
      %v6509 = vpop.f32.mrb[0].mxu0
      %v6510 = vpop.f32.mrb[0].mxu0
      %v6511 = vadd.f32 0.0, %v6510
      %v6512 = vpop.f32.mrb[0].mxu0
      %6513 = vmatprep.mubr.bf16.mxu0 0
      %6514 = vmatmul.mubr.bf16.gmra.mrb[0].mxu0 %v6340
      %v6515 = vpop.f32.mrb[0].mxu0
      %v6516 = vadd.f32 0.0, %v6515
      %v6517 = vpop.f32.mrb[0].mxu0
      %v6518 = vpop.f32.mrb[0].mxu0
      %v6519 = vadd.f32 0.0, %v6518
      %v6520 = vpop.f32.mrb[0].mxu0
      %6521 = vdwg.mxu0
      %v6522 = vadd.f32 %v6079, %v6380
      %v6523 = vadd.f32 %v6080, %v6383
      %v6524 = vadd.f32 %v6081, %v6388
      %v6525 = vadd.f32 %v6082, %v6391
      %v6526 = vadd.f32 %v6083, %v6396
      %v6527 = vadd.f32 %v6084, %v6399
      %v6528 = vadd.f32 %v6085, %v6404
      %v6529 = vadd.f32 %v6086, %v6407
      %v6530 = vadd.f32 %v6087, %v6412
      %v6531 = vadd.f32 %v6088, %v6415
      %v6532 = vadd.f32 %v6089, %v6420
      %v6533 = vadd.f32 %v6090, %v6423
      %v6534 = vadd.f32 %v6091, %v6428
      %v6535 = vadd.f32 %v6092, %v6431
      %v6536 = vadd.f32 %v6093, %v6436
      %v6537 = vadd.f32 %v6094, %v6439
      %v6538 = vadd.f32 %v6095, %v6444
      %v6539 = vadd.f32 %v6096, %v6447
      %v6540 = vadd.f32 %v6097, %v6452
      %v6541 = vadd.f32 %v6098, %v6455
      %v6542 = vadd.f32 %v6099, %v6460
      %v6543 = vadd.f32 %v6100, %v6463
      %v6544 = vadd.f32 %v6101, %v6468
      %v6545 = vadd.f32 %v6102, %v6471
      %v6546 = vadd.f32 %v6103, %v6476
      %v6547 = vadd.f32 %v6104, %v6479
      %v6548 = vadd.f32 %v6105, %v6484
      %v6549 = vadd.f32 %v6106, %v6487
      %v6550 = vadd.f32 %v6107, %v6492
      %v6551 = vadd.f32 %v6108, %v6495
      %v6552 = vadd.f32 %v6109, %v6500
      %v6553 = vadd.f32 %v6110, %v6503
      %v6554 = vadd.f32 %v6111, %v6508
      %v6555 = vadd.f32 %v6112, %v6511
      %v6556 = vadd.f32 %v6113, %v6516
      %v6557 = vadd.f32 %v6114, %v6519
      %v6558 = vld [vmem:[#allocation2 + $0x8] sm:$0xfc]
      %s6559 = scalar_lea.vmem %s3, 10
      %v6560 = vld [vmem:[%s6559] sm:$0x3]
      %v6563 = vrot.slane %v6558, 2
      %v6564 = vrot.slane %v5769, 2
      %v6565 = vsel %vm2815, %v6563, %v6564
      %v6566 = vrot.slane %v5770, 2
      %v6567 = vsel %vm2815, %v6564, %v6566
      %v6568 = vrot.slane %v5771, 2
      %v6569 = vsel %vm2815, %v6566, %v6568
      %v6570 = vrot.slane %v5772, 2
      %v6571 = vsel %vm2815, %v6568, %v6570
      %v6572 = vrot.slane %v5773, 2
      %v6573 = vsel %vm2815, %v6570, %v6572
      %v6574 = vrot.slane %v5774, 2
      %v6575 = vsel %vm2815, %v6572, %v6574
      %v6576 = vrot.slane %v5775, 2
      %v6577 = vsel %vm2815, %v6574, %v6576
      %v6578 = vrot.slane %v5776, 2
      %v6579 = vsel %vm2815, %v6576, %v6578
      %v6580 = vrot.slane %v5777, 2
      %v6581 = vsel %vm2815, %v6578, %v6580
      %v6582 = vrot.slane %v5778, 2
      %v6583 = vsel %vm2815, %v6580, %v6582
      %v6584 = vrot.slane %v5779, 2
      %v6585 = vsel %vm2815, %v6582, %v6584
      %v6586 = vrot.slane %v5780, 2
      %v6587 = vsel %vm2815, %v6584, %v6586
      %v6588 = vrot.slane %v5781, 2
      %v6589 = vsel %vm2815, %v6586, %v6588
      %v6590 = vrot.slane %v5782, 2
      %v6591 = vsel %vm2815, %v6588, %v6590
      %v6592 = vrot.slane %v5783, 2
      %v6593 = vsel %vm2815, %v6590, %v6592
      %v6594 = vrot.slane %v5784, 2
      %v6595 = vsel %vm2815, %v6592, %v6594
      %v6596 = vrot.slane %v5785, 2
      %v6597 = vsel %vm2815, %v6594, %v6596
      %v6598 = vrot.slane %v6115, 2
      %v6599 = vsel %vm2815, %v6596, %v6598
      %v6601 = vsel %vm1157, %v6565, 0
      %v6604 = vsel %vm1157, %v6567, 0
      %v6607 = vsel %vm1157, %v6569, 0
      %v6610 = vsel %vm1157, %v6571, 0
      %v6613 = vsel %vm1157, %v6573, 0
      %v6616 = vsel %vm1157, %v6575, 0
      %v6619 = vsel %vm1157, %v6577, 0
      %v6622 = vsel %vm1157, %v6579, 0
      %v6625 = vsel %vm1157, %v6581, 0
      %v6628 = vsel %vm1157, %v6583, 0
      %v6631 = vsel %vm1157, %v6585, 0
      %v6634 = vsel %vm1157, %v6587, 0
      %v6637 = vsel %vm1157, %v6589, 0
      %v6640 = vsel %vm1157, %v6591, 0
      %v6643 = vsel %vm1157, %v6593, 0
      %v6646 = vsel %vm1157, %v6595, 0
      %v6649 = vsel %vm1157, %v6597, 0
      %v6652 = vsel %vm1157, %v6599, 0
      %v6655 = vsel %vm1212, %v6560, 0
      %6657 = vmatprep.subr.bf16.mxu0 0
      %6658 = vmatpush1.bf16.msra.mxu0 %v6655
      %6659 = vmatprep.subr.bf16.mxu0 0
      %6660 = vmatpush1.bf16.msra.mxu0 0
      %6661 = vmatprep.subr.bf16.mxu0 0
      %6662 = vmatpush1.bf16.msra.mxu0 0
      %6663 = vmatprep.subr.bf16.mxu0 0
      %6664 = vmatpush1.bf16.msra.mxu0 0
      %6665 = vmatprep.subr.bf16.mxu0 0
      %6666 = vmatpush1.bf16.msra.mxu0 0
      %6667 = vmatprep.subr.bf16.mxu0 0
      %6668 = vmatpush1.bf16.msra.mxu0 0
      %6669 = vmatprep.subr.bf16.mxu0 0
      %6670 = vmatpush1.bf16.msra.mxu0 0
      %6671 = vmatprep.subr.bf16.mxu0 0
      %6672 = vmatpush1.bf16.msra.mxu0 0
      %6673 = vmatprep.subr.bf16.mxu0 0
      %6674 = vmatpush1.bf16.msra.mxu0 0
      %6675 = vmatprep.subr.bf16.mxu0 0
      %6676 = vmatpush1.bf16.msra.mxu0 0
      %6677 = vmatprep.subr.bf16.mxu0 0
      %6678 = vmatpush1.bf16.msra.mxu0 0
      %6679 = vmatprep.subr.bf16.mxu0 0
      %6680 = vmatpush1.bf16.msra.mxu0 0
      %6681 = vmatprep.subr.bf16.mxu0 0
      %6682 = vmatpush1.bf16.msra.mxu0 0
      %6683 = vmatprep.subr.bf16.mxu0 0
      %6684 = vmatpush1.bf16.msra.mxu0 0
      %6685 = vmatprep.subr.bf16.mxu0 0
      %6686 = vmatpush1.bf16.msra.mxu0 0
      %6687 = vmatprep.subr.bf16.mxu0 0
      %6688 = vmatpush1.bf16.msra.mxu0 0
      %6689 = vmatprep.mubr.bf16.mxu0 0
      %6690 = vmatmul.mubr.bf16.gmra.mrb[0].mxu0 %v6601
      %v6691 = vpop.f32.mrb[0].mxu0
      %v6692 = vadd.f32 0.0, %v6691
      %v6693 = vpop.f32.mrb[0].mxu0
      %v6694 = vpop.f32.mrb[0].mxu0
      %v6695 = vadd.f32 0.0, %v6694
      %v6696 = vpop.f32.mrb[0].mxu0
      %6697 = vmatprep.mubr.bf16.mxu0 0
      %6698 = vmatmul.mubr.bf16.gmra.mrb[0].mxu0 %v6604
      %v6699 = vpop.f32.mrb[0].mxu0
      %v6700 = vadd.f32 0.0, %v6699
      %v6701 = vpop.f32.mrb[0].mxu0
      %v6702 = vpop.f32.mrb[0].mxu0
      %v6703 = vadd.f32 0.0, %v6702
      %v6704 = vpop.f32.mrb[0].mxu0
      %6705 = vmatprep.mubr.bf16.mxu0 0
      %6706 = vmatmul.mubr.bf16.gmra.mrb[0].mxu0 %v6607
      %v6707 = vpop.f32.mrb[0].mxu0
      %v6708 = vadd.f32 0.0, %v6707
      %v6709 = vpop.f32.mrb[0].mxu0
      %v6710 = vpop.f32.mrb[0].mxu0
      %v6711 = vadd.f32 0.0, %v6710
      %v6712 = vpop.f32.mrb[0].mxu0
      %6713 = vmatprep.mubr.bf16.mxu0 0
      %6714 = vmatmul.mubr.bf16.gmra.mrb[0].mxu0 %v6610
      %v6715 = vpop.f32.mrb[0].mxu0
      %v6716 = vadd.f32 0.0, %v6715
      %v6717 = vpop.f32.mrb[0].mxu0
      %v6718 = vpop.f32.mrb[0].mxu0
      %v6719 = vadd.f32 0.0, %v6718
      %v6720 = vpop.f32.mrb[0].mxu0
      %6721 = vmatprep.mubr.bf16.mxu0 0
      %6722 = vmatmul.mubr.bf16.gmra.mrb[0].mxu0 %v6613
      %v6723 = vpop.f32.mrb[0].mxu0
      %v6724 = vadd.f32 0.0, %v6723
      %v6725 = vpop.f32.mrb[0].mxu0
      %v6726 = vpop.f32.mrb[0].mxu0
      %v6727 = vadd.f32 0.0, %v6726
      %v6728 = vpop.f32.mrb[0].mxu0
      %6729 = vmatprep.mubr.bf16.mxu0 0
      %6730 = vmatmul.mubr.bf16.gmra.mrb[0].mxu0 %v6616
      %v6731 = vpop.f32.mrb[0].mxu0
      %v6732 = vadd.f32 0.0, %v6731
      %v6733 = vpop.f32.mrb[0].mxu0
      %v6734 = vpop.f32.mrb[0].mxu0
      %v6735 = vadd.f32 0.0, %v6734
      %v6736 = vpop.f32.mrb[0].mxu0
      %6737 = vmatprep.mubr.bf16.mxu0 0
      %6738 = vmatmul.mubr.bf16.gmra.mrb[0].mxu0 %v6619
      %v6739 = vpop.f32.mrb[0].mxu0
      %v6740 = vadd.f32 0.0, %v6739
      %v6741 = vpop.f32.mrb[0].mxu0
      %v6742 = vpop.f32.mrb[0].mxu0
      %v6743 = vadd.f32 0.0, %v6742
      %v6744 = vpop.f32.mrb[0].mxu0
      %6745 = vmatprep.mubr.bf16.mxu0 0
      %6746 = vmatmul.mubr.bf16.gmra.mrb[0].mxu0 %v6622
      %v6747 = vpop.f32.mrb[0].mxu0
      %v6748 = vadd.f32 0.0, %v6747
      %v6749 = vpop.f32.mrb[0].mxu0
      %v6750 = vpop.f32.mrb[0].mxu0
      %v6751 = vadd.f32 0.0, %v6750
      %v6752 = vpop.f32.mrb[0].mxu0
      %6753 = vmatprep.mubr.bf16.mxu0 0
      %6754 = vmatmul.mubr.bf16.gmra.mrb[0].mxu0 %v6625
      %v6755 = vpop.f32.mrb[0].mxu0
      %v6756 = vadd.f32 0.0, %v6755
      %v6757 = vpop.f32.mrb[0].mxu0
      %v6758 = vpop.f32.mrb[0].mxu0
      %v6759 = vadd.f32 0.0, %v6758
      %v6760 = vpop.f32.mrb[0].mxu0
      %6761 = vmatprep.mubr.bf16.mxu0 0
      %6762 = vmatmul.mubr.bf16.gmra.mrb[0].mxu0 %v6628
      %v6763 = vpop.f32.mrb[0].mxu0
      %v6764 = vadd.f32 0.0, %v6763
      %v6765 = vpop.f32.mrb[0].mxu0
      %v6766 = vpop.f32.mrb[0].mxu0
      %v6767 = vadd.f32 0.0, %v6766
      %v6768 = vpop.f32.mrb[0].mxu0
      %6769 = vmatprep.mubr.bf16.mxu0 0
      %6770 = vmatmul.mubr.bf16.gmra.mrb[0].mxu0 %v6631
      %v6771 = vpop.f32.mrb[0].mxu0
      %v6772 = vadd.f32 0.0, %v6771
      %v6773 = vpop.f32.mrb[0].mxu0
      %v6774 = vpop.f32.mrb[0].mxu0
      %v6775 = vadd.f32 0.0, %v6774
      %v6776 = vpop.f32.mrb[0].mxu0
      %6777 = vmatprep.mubr.bf16.mxu0 0
      %6778 = vmatmul.mubr.bf16.gmra.mrb[0].mxu0 %v6634
      %v6779 = vpop.f32.mrb[0].mxu0
      %v6780 = vadd.f32 0.0, %v6779
      %v6781 = vpop.f32.mrb[0].mxu0
      %v6782 = vpop.f32.mrb[0].mxu0
      %v6783 = vadd.f32 0.0, %v6782
      %v6784 = vpop.f32.mrb[0].mxu0
      %6785 = vmatprep.mubr.bf16.mxu0 0
      %6786 = vmatmul.mubr.bf16.gmra.mrb[0].mxu0 %v6637
      %v6787 = vpop.f32.mrb[0].mxu0
      %v6788 = vadd.f32 0.0, %v6787
      %v6789 = vpop.f32.mrb[0].mxu0
      %v6790 = vpop.f32.mrb[0].mxu0
      %v6791 = vadd.f32 0.0, %v6790
      %v6792 = vpop.f32.mrb[0].mxu0
      %6793 = vmatprep.mubr.bf16.mxu0 0
      %6794 = vmatmul.mubr.bf16.gmra.mrb[0].mxu0 %v6640
      %v6795 = vpop.f32.mrb[0].mxu0
      %v6796 = vadd.f32 0.0, %v6795
      %v6797 = vpop.f32.mrb[0].mxu0
      %v6798 = vpop.f32.mrb[0].mxu0
      %v6799 = vadd.f32 0.0, %v6798
      %v6800 = vpop.f32.mrb[0].mxu0
      %6801 = vmatprep.mubr.bf16.mxu0 0
      %6802 = vmatmul.mubr.bf16.gmra.mrb[0].mxu0 %v6643
      %v6803 = vpop.f32.mrb[0].mxu0
      %v6804 = vadd.f32 0.0, %v6803
      %v6805 = vpop.f32.mrb[0].mxu0
      %v6806 = vpop.f32.mrb[0].mxu0
      %v6807 = vadd.f32 0.0, %v6806
      %v6808 = vpop.f32.mrb[0].mxu0
      %6809 = vmatprep.mubr.bf16.mxu0 0
      %6810 = vmatmul.mubr.bf16.gmra.mrb[0].mxu0 %v6646
      %v6811 = vpop.f32.mrb[0].mxu0
      %v6812 = vadd.f32 0.0, %v6811
      %v6813 = vpop.f32.mrb[0].mxu0
      %v6814 = vpop.f32.mrb[0].mxu0
      %v6815 = vadd.f32 0.0, %v6814
      %v6816 = vpop.f32.mrb[0].mxu0
      %6817 = vmatprep.mubr.bf16.mxu0 0
      %6818 = vmatmul.mubr.bf16.gmra.mrb[0].mxu0 %v6649
      %v6819 = vpop.f32.mrb[0].mxu0
      %v6820 = vadd.f32 0.0, %v6819
      %v6821 = vpop.f32.mrb[0].mxu0
      %v6822 = vpop.f32.mrb[0].mxu0
      %v6823 = vadd.f32 0.0, %v6822
      %v6824 = vpop.f32.mrb[0].mxu0
      %6825 = vmatprep.mubr.bf16.mxu0 0
      %6826 = vmatmul.mubr.bf16.gmra.mrb[0].mxu0 %v6652
      %v6827 = vpop.f32.mrb[0].mxu0
      %v6828 = vadd.f32 0.0, %v6827
      %v6829 = vpop.f32.mrb[0].mxu0
      %v6830 = vpop.f32.mrb[0].mxu0
      %v6831 = vadd.f32 0.0, %v6830
      %v6832 = vpop.f32.mrb[0].mxu0
      %6833 = vdwg.mxu0
      %v6834 = vadd.f32 %v6522, %v6692
      %v6835 = vadd.f32 %v6523, %v6695
      %v6836 = vadd.f32 %v6524, %v6700
      %v6837 = vadd.f32 %v6525, %v6703
      %v6838 = vadd.f32 %v6526, %v6708
      %v6839 = vadd.f32 %v6527, %v6711
      %v6840 = vadd.f32 %v6528, %v6716
      %v6841 = vadd.f32 %v6529, %v6719
      %v6842 = vadd.f32 %v6530, %v6724
      %v6843 = vadd.f32 %v6531, %v6727
      %v6844 = vadd.f32 %v6532, %v6732
      %v6845 = vadd.f32 %v6533, %v6735
      %v6846 = vadd.f32 %v6534, %v6740
      %v6847 = vadd.f32 %v6535, %v6743
      %v6848 = vadd.f32 %v6536, %v6748
      %v6849 = vadd.f32 %v6537, %v6751
      %v6850 = vadd.f32 %v6538, %v6756
      %v6851 = vadd.f32 %v6539, %v6759
      %v6852 = vadd.f32 %v6540, %v6764
      %v6853 = vadd.f32 %v6541, %v6767
      %v6854 = vadd.f32 %v6542, %v6772
      %v6855 = vadd.f32 %v6543, %v6775
      %v6856 = vadd.f32 %v6544, %v6780
      %v6857 = vadd.f32 %v6545, %v6783
      %v6858 = vadd.f32 %v6546, %v6788
      %v6859 = vadd.f32 %v6547, %v6791
      %v6860 = vadd.f32 %v6548, %v6796
      %v6861 = vadd.f32 %v6549, %v6799
      %v6862 = vadd.f32 %v6550, %v6804
      %v6863 = vadd.f32 %v6551, %v6807
      %v6864 = vadd.f32 %v6552, %v6812
      %v6865 = vadd.f32 %v6553, %v6815
      %v6866 = vadd.f32 %v6554, %v6820
      %v6867 = vadd.f32 %v6555, %v6823
      %v6868 = vadd.f32 %v6556, %v6828
      %v6869 = vadd.f32 %v6557, %v6831
      %v6870 = vld [vmem:[#allocation2 + $0x10] sm:$0xfc]
      %v6871 = vld [vmem:[#allocation2 + $0x18] sm:$0xff]
      %v6872 = vld [vmem:[#allocation2 + $0x20] sm:$0xff]
      %v6873 = vld [vmem:[#allocation2 + $0x28] sm:$0xff]
      %v6874 = vld [vmem:[#allocation2 + $0x30] sm:$0xff]
      %v6875 = vld [vmem:[#allocation2 + $0x38] sm:$0xff]
      %v6876 = vld [vmem:[#allocation2 + $0x40] sm:$0xff]
      %v6877 = vld [vmem:[#allocation2 + $0x48] sm:$0xff]
      %v6878 = vld [vmem:[#allocation2 + $0x50] sm:$0xff]
      %v6879 = vld [vmem:[#allocation2 + $0x58] sm:$0xff]
      %v6880 = vld [vmem:[#allocation2 + $0x60] sm:$0xff]
      %v6881 = vld [vmem:[#allocation2 + $0x68] sm:$0xff]
      %v6882 = vld [vmem:[#allocation2 + $0x70] sm:$0xff]
      %v6883 = vld [vmem:[#allocation2 + $0x78] sm:$0xff]
      %v6884 = vld [vmem:[#allocation2 + $0x80] sm:$0xff]
      %v6885 = vld [vmem:[#allocation2 + $0x88] sm:$0xff]
      %v6886 = vld [vmem:[#allocation2 + $0x90] sm:$0xff]
      %v6887 = vld [vmem:[#allocation2 + $0x98] sm:$0xff]
      %v6888 = vld [vmem:[#allocation2 + $0xa0] sm:$0x3]
      %s6889 = scalar_lea.vmem %s3, 12
      %v6890 = vld [vmem:[%s6889] sm:$0x3]
      %v6910 = vrot.slane %v6870, 2
      %v6911 = vrot.slane %v6871, 2
      %v6912 = vsel %vm2815, %v6910, %v6911
      %v6913 = vrot.slane %v6872, 2
      %v6914 = vsel %vm2815, %v6911, %v6913
      %v6915 = vrot.slane %v6873, 2
      %v6916 = vsel %vm2815, %v6913, %v6915
      %v6917 = vrot.slane %v6874, 2
      %v6918 = vsel %vm2815, %v6915, %v6917
      %v6919 = vrot.slane %v6875, 2
      %v6920 = vsel %vm2815, %v6917, %v6919
      %v6921 = vrot.slane %v6876, 2
      %v6922 = vsel %vm2815, %v6919, %v6921
      %v6923 = vrot.slane %v6877, 2
      %v6924 = vsel %vm2815, %v6921, %v6923
      %v6925 = vrot.slane %v6878, 2
      %v6926 = vsel %vm2815, %v6923, %v6925
      %v6927 = vrot.slane %v6879, 2
      %v6928 = vsel %vm2815, %v6925, %v6927
      %v6929 = vrot.slane %v6880, 2
      %v6930 = vsel %vm2815, %v6927, %v6929
      %v6931 = vrot.slane %v6881, 2
      %v6932 = vsel %vm2815, %v6929, %v6931
      %v6933 = vrot.slane %v6882, 2
      %v6934 = vsel %vm2815, %v6931, %v6933
      %v6935 = vrot.slane %v6883, 2
      %v6936 = vsel %vm2815, %v6933, %v6935
      %v6937 = vrot.slane %v6884, 2
      %v6938 = vsel %vm2815, %v6935, %v6937
      %v6939 = vrot.slane %v6885, 2
      %v6940 = vsel %vm2815, %v6937, %v6939
      %v6941 = vrot.slane %v6886, 2
      %v6942 = vsel %vm2815, %v6939, %v6941
      %v6943 = vrot.slane %v6887, 2
      %v6944 = vsel %vm2815, %v6941, %v6943
      %v6945 = vrot.slane %v6888, 2
      %v6946 = vsel %vm2815, %v6943, %v6945
      %v6948 = vsel %vm1157, %v6912, 0
      %v6951 = vsel %vm1157, %v6914, 0
      %v6954 = vsel %vm1157, %v6916, 0
      %v6957 = vsel %vm1157, %v6918, 0
      %v6960 = vsel %vm1157, %v6920, 0
      %v6963 = vsel %vm1157, %v6922, 0
      %v6966 = vsel %vm1157, %v6924, 0
      %v6969 = vsel %vm1157, %v6926, 0
      %v6972 = vsel %vm1157, %v6928, 0
      %v6975 = vsel %vm1157, %v6930, 0
      %v6978 = vsel %vm1157, %v6932, 0
      %v6981 = vsel %vm1157, %v6934, 0
      %v6984 = vsel %vm1157, %v6936, 0
      %v6987 = vsel %vm1157, %v6938, 0
      %v6990 = vsel %vm1157, %v6940, 0
      %v6993 = vsel %vm1157, %v6942, 0
      %v6996 = vsel %vm1157, %v6944, 0
      %v6999 = vsel %vm1157, %v6946, 0
      %v7002 = vsel %vm1212, %v6890, 0
      %7004 = vmatprep.subr.bf16.mxu0 0
      %7005 = vmatpush1.bf16.msra.mxu0 %v7002
      %7006 = vmatprep.subr.bf16.mxu0 0
      %7007 = vmatpush1.bf16.msra.mxu0 0
      %7008 = vmatprep.subr.bf16.mxu0 0
      %7009 = vmatpush1.bf16.msra.mxu0 0
      %7010 = vmatprep.subr.bf16.mxu0 0
      %7011 = vmatpush1.bf16.msra.mxu0 0
      %7012 = vmatprep.subr.bf16.mxu0 0
      %7013 = vmatpush1.bf16.msra.mxu0 0
      %7014 = vmatprep.subr.bf16.mxu0 0
      %7015 = vmatpush1.bf16.msra.mxu0 0
      %7016 = vmatprep.subr.bf16.mxu0 0
      %7017 = vmatpush1.bf16.msra.mxu0 0
      %7018 = vmatprep.subr.bf16.mxu0 0
      %7019 = vmatpush1.bf16.msra.mxu0 0
      %7020 = vmatprep.subr.bf16.mxu0 0
      %7021 = vmatpush1.bf16.msra.mxu0 0
      %7022 = vmatprep.subr.bf16.mxu0 0
      %7023 = vmatpush1.bf16.msra.mxu0 0
      %7024 = vmatprep.subr.bf16.mxu0 0
      %7025 = vmatpush1.bf16.msra.mxu0 0
      %7026 = vmatprep.subr.bf16.mxu0 0
      %7027 = vmatpush1.bf16.msra.mxu0 0
      %7028 = vmatprep.subr.bf16.mxu0 0
      %7029 = vmatpush1.bf16.msra.mxu0 0
      %7030 = vmatprep.subr.bf16.mxu0 0
      %7031 = vmatpush1.bf16.msra.mxu0 0
      %7032 = vmatprep.subr.bf16.mxu0 0
      %7033 = vmatpush1.bf16.msra.mxu0 0
      %7034 = vmatprep.subr.bf16.mxu0 0
      %7035 = vmatpush1.bf16.msra.mxu0 0
      %7036 = vmatprep.mubr.bf16.mxu0 0
      %7037 = vmatmul.mubr.bf16.gmra.mrb[0].mxu0 %v6948
      %v7038 = vpop.f32.mrb[0].mxu0
      %v7039 = vadd.f32 0.0, %v7038
      %v7040 = vpop.f32.mrb[0].mxu0
      %v7041 = vpop.f32.mrb[0].mxu0
      %v7042 = vadd.f32 0.0, %v7041
      %v7043 = vpop.f32.mrb[0].mxu0
      %7044 = vmatprep.mubr.bf16.mxu0 0
      %7045 = vmatmul.mubr.bf16.gmra.mrb[0].mxu0 %v6951
      %v7046 = vpop.f32.mrb[0].mxu0
      %v7047 = vadd.f32 0.0, %v7046
      %v7048 = vpop.f32.mrb[0].mxu0
      %v7049 = vpop.f32.mrb[0].mxu0
      %v7050 = vadd.f32 0.0, %v7049
      %v7051 = vpop.f32.mrb[0].mxu0
      %7052 = vmatprep.mubr.bf16.mxu0 0
      %7053 = vmatmul.mubr.bf16.gmra.mrb[0].mxu0 %v6954
      %v7054 = vpop.f32.mrb[0].mxu0
      %v7055 = vadd.f32 0.0, %v7054
      %v7056 = vpop.f32.mrb[0].mxu0
      %v7057 = vpop.f32.mrb[0].mxu0
      %v7058 = vadd.f32 0.0, %v7057
      %v7059 = vpop.f32.mrb[0].mxu0
      %7060 = vmatprep.mubr.bf16.mxu0 0
      %7061 = vmatmul.mubr.bf16.gmra.mrb[0].mxu0 %v6957
      %v7062 = vpop.f32.mrb[0].mxu0
      %v7063 = vadd.f32 0.0, %v7062
      %v7064 = vpop.f32.mrb[0].mxu0
      %v7065 = vpop.f32.mrb[0].mxu0
      %v7066 = vadd.f32 0.0, %v7065
      %v7067 = vpop.f32.mrb[0].mxu0
      %7068 = vmatprep.mubr.bf16.mxu0 0
      %7069 = vmatmul.mubr.bf16.gmra.mrb[0].mxu0 %v6960
      %v7070 = vpop.f32.mrb[0].mxu0
      %v7071 = vadd.f32 0.0, %v7070
      %v7072 = vpop.f32.mrb[0].mxu0
      %v7073 = vpop.f32.mrb[0].mxu0
      %v7074 = vadd.f32 0.0, %v7073
      %v7075 = vpop.f32.mrb[0].mxu0
      %7076 = vmatprep.mubr.bf16.mxu0 0
      %7077 = vmatmul.mubr.bf16.gmra.mrb[0].mxu0 %v6963
      %v7078 = vpop.f32.mrb[0].mxu0
      %v7079 = vadd.f32 0.0, %v7078
      %v7080 = vpop.f32.mrb[0].mxu0
      %v7081 = vpop.f32.mrb[0].mxu0
      %v7082 = vadd.f32 0.0, %v7081
      %v7083 = vpop.f32.mrb[0].mxu0
      %7084 = vmatprep.mubr.bf16.mxu0 0
      %7085 = vmatmul.mubr.bf16.gmra.mrb[0].mxu0 %v6966
      %v7086 = vpop.f32.mrb[0].mxu0
      %v7087 = vadd.f32 0.0, %v7086
      %v7088 = vpop.f32.mrb[0].mxu0
      %v7089 = vpop.f32.mrb[0].mxu0
      %v7090 = vadd.f32 0.0, %v7089
      %v7091 = vpop.f32.mrb[0].mxu0
      %7092 = vmatprep.mubr.bf16.mxu0 0
      %7093 = vmatmul.mubr.bf16.gmra.mrb[0].mxu0 %v6969
      %v7094 = vpop.f32.mrb[0].mxu0
      %v7095 = vadd.f32 0.0, %v7094
      %v7096 = vpop.f32.mrb[0].mxu0
      %v7097 = vpop.f32.mrb[0].mxu0
      %v7098 = vadd.f32 0.0, %v7097
      %v7099 = vpop.f32.mrb[0].mxu0
      %7100 = vmatprep.mubr.bf16.mxu0 0
      %7101 = vmatmul.mubr.bf16.gmra.mrb[0].mxu0 %v6972
      %v7102 = vpop.f32.mrb[0].mxu0
      %v7103 = vadd.f32 0.0, %v7102
      %v7104 = vpop.f32.mrb[0].mxu0
      %v7105 = vpop.f32.mrb[0].mxu0
      %v7106 = vadd.f32 0.0, %v7105
      %v7107 = vpop.f32.mrb[0].mxu0
      %7108 = vmatprep.mubr.bf16.mxu0 0
      %7109 = vmatmul.mubr.bf16.gmra.mrb[0].mxu0 %v6975
      %v7110 = vpop.f32.mrb[0].mxu0
      %v7111 = vadd.f32 0.0, %v7110
      %v7112 = vpop.f32.mrb[0].mxu0
      %v7113 = vpop.f32.mrb[0].mxu0
      %v7114 = vadd.f32 0.0, %v7113
      %v7115 = vpop.f32.mrb[0].mxu0
      %7116 = vmatprep.mubr.bf16.mxu0 0
      %7117 = vmatmul.mubr.bf16.gmra.mrb[0].mxu0 %v6978
      %v7118 = vpop.f32.mrb[0].mxu0
      %v7119 = vadd.f32 0.0, %v7118
      %v7120 = vpop.f32.mrb[0].mxu0
      %v7121 = vpop.f32.mrb[0].mxu0
      %v7122 = vadd.f32 0.0, %v7121
      %v7123 = vpop.f32.mrb[0].mxu0
      %7124 = vmatprep.mubr.bf16.mxu0 0
      %7125 = vmatmul.mubr.bf16.gmra.mrb[0].mxu0 %v6981
      %v7126 = vpop.f32.mrb[0].mxu0
      %v7127 = vadd.f32 0.0, %v7126
      %v7128 = vpop.f32.mrb[0].mxu0
      %v7129 = vpop.f32.mrb[0].mxu0
      %v7130 = vadd.f32 0.0, %v7129
      %v7131 = vpop.f32.mrb[0].mxu0
      %7132 = vmatprep.mubr.bf16.mxu0 0
      %7133 = vmatmul.mubr.bf16.gmra.mrb[0].mxu0 %v6984
      %v7134 = vpop.f32.mrb[0].mxu0
      %v7135 = vadd.f32 0.0, %v7134
      %v7136 = vpop.f32.mrb[0].mxu0
      %v7137 = vpop.f32.mrb[0].mxu0
      %v7138 = vadd.f32 0.0, %v7137
      %v7139 = vpop.f32.mrb[0].mxu0
      %7140 = vmatprep.mubr.bf16.mxu0 0
      %7141 = vmatmul.mubr.bf16.gmra.mrb[0].mxu0 %v6987
      %v7142 = vpop.f32.mrb[0].mxu0
      %v7143 = vadd.f32 0.0, %v7142
      %v7144 = vpop.f32.mrb[0].mxu0
      %v7145 = vpop.f32.mrb[0].mxu0
      %v7146 = vadd.f32 0.0, %v7145
      %v7147 = vpop.f32.mrb[0].mxu0
      %7148 = vmatprep.mubr.bf16.mxu0 0
      %7149 = vmatmul.mubr.bf16.gmra.mrb[0].mxu0 %v6990
      %v7150 = vpop.f32.mrb[0].mxu0
      %v7151 = vadd.f32 0.0, %v7150
      %v7152 = vpop.f32.mrb[0].mxu0
      %v7153 = vpop.f32.mrb[0].mxu0
      %v7154 = vadd.f32 0.0, %v7153
      %v7155 = vpop.f32.mrb[0].mxu0
      %7156 = vmatprep.mubr.bf16.mxu0 0
      %7157 = vmatmul.mubr.bf16.gmra.mrb[0].mxu0 %v6993
      %v7158 = vpop.f32.mrb[0].mxu0
      %v7159 = vadd.f32 0.0, %v7158
      %v7160 = vpop.f32.mrb[0].mxu0
      %v7161 = vpop.f32.mrb[0].mxu0
      %v7162 = vadd.f32 0.0, %v7161
      %v7163 = vpop.f32.mrb[0].mxu0
      %7164 = vmatprep.mubr.bf16.mxu0 0
      %7165 = vmatmul.mubr.bf16.gmra.mrb[0].mxu0 %v6996
      %v7166 = vpop.f32.mrb[0].mxu0
      %v7167 = vadd.f32 0.0, %v7166
      %v7168 = vpop.f32.mrb[0].mxu0
      %v7169 = vpop.f32.mrb[0].mxu0
      %v7170 = vadd.f32 0.0, %v7169
      %v7171 = vpop.f32.mrb[0].mxu0
      %7172 = vmatprep.mubr.bf16.mxu0 0
      %7173 = vmatmul.mubr.bf16.gmra.mrb[0].mxu0 %v6999
      %v7174 = vpop.f32.mrb[0].mxu0
      %v7175 = vadd.f32 0.0, %v7174
      %v7176 = vpop.f32.mrb[0].mxu0
      %v7177 = vpop.f32.mrb[0].mxu0
      %v7178 = vadd.f32 0.0, %v7177
      %v7179 = vpop.f32.mrb[0].mxu0
      %7180 = vdwg.mxu0
      %v7181 = vadd.f32 %v6834, %v7039
      %v7182 = vadd.f32 %v6835, %v7042
      %v7183 = vadd.f32 %v6836, %v7047
      %v7184 = vadd.f32 %v6837, %v7050
      %v7185 = vadd.f32 %v6838, %v7055
      %v7186 = vadd.f32 %v6839, %v7058
      %v7187 = vadd.f32 %v6840, %v7063
      %v7188 = vadd.f32 %v6841, %v7066
      %v7189 = vadd.f32 %v6842, %v7071
      %v7190 = vadd.f32 %v6843, %v7074
      %v7191 = vadd.f32 %v6844, %v7079
      %v7192 = vadd.f32 %v6845, %v7082
      %v7193 = vadd.f32 %v6846, %v7087
      %v7194 = vadd.f32 %v6847, %v7090
      %v7195 = vadd.f32 %v6848, %v7095
      %v7196 = vadd.f32 %v6849, %v7098
      %v7197 = vadd.f32 %v6850, %v7103
      %v7198 = vadd.f32 %v6851, %v7106
      %v7199 = vadd.f32 %v6852, %v7111
      %v7200 = vadd.f32 %v6853, %v7114
      %v7201 = vadd.f32 %v6854, %v7119
      %v7202 = vadd.f32 %v6855, %v7122
      %v7203 = vadd.f32 %v6856, %v7127
      %v7204 = vadd.f32 %v6857, %v7130
      %v7205 = vadd.f32 %v6858, %v7135
      %v7206 = vadd.f32 %v6859, %v7138
      %v7207 = vadd.f32 %v6860, %v7143
      %v7208 = vadd.f32 %v6861, %v7146
      %v7209 = vadd.f32 %v6862, %v7151
      %v7210 = vadd.f32 %v6863, %v7154
      %v7211 = vadd.f32 %v6864, %v7159
      %v7212 = vadd.f32 %v6865, %v7162
      %v7213 = vadd.f32 %v6866, %v7167
      %v7214 = vadd.f32 %v6867, %v7170
      %v7215 = vadd.f32 %v6868, %v7175
      %v7216 = vadd.f32 %v6869, %v7178
      %v7217 = vld [vmem:[#allocation2 + $0xa0] sm:$0x7]
      %s7218 = scalar_lea.vmem %s3, 14
      %v7219 = vld [vmem:[%s7218] sm:$0x3]
      %v7221 = vshrl.u32 %v6870, 16
      %v7223 = vrot.slane %v7221, 2
      %v7224 = vshll.u32 %v6870, 16
      %v7226 = vrot.slane %v7224, 3
      %v7227 = vor.u32 %v7223, %v7226
      %v7229 = vshrl.u32 %v6871, 16
      %v7231 = vrot.slane %v7229, 2
      %v7232 = vshll.u32 %v6871, 16
      %v7234 = vrot.slane %v7232, 3
      %v7235 = vor.u32 %v7231, %v7234
      %v7236 = vsel %vm3568, %v7227, %v7235
      %v7238 = vshrl.u32 %v6872, 16
      %v7240 = vrot.slane %v7238, 2
      %v7241 = vshll.u32 %v6872, 16
      %v7243 = vrot.slane %v7241, 3
      %v7244 = vor.u32 %v7240, %v7243
      %v7245 = vsel %vm3568, %v7235, %v7244
      %v7247 = vshrl.u32 %v6873, 16
      %v7249 = vrot.slane %v7247, 2
      %v7250 = vshll.u32 %v6873, 16
      %v7252 = vrot.slane %v7250, 3
      %v7253 = vor.u32 %v7249, %v7252
      %v7254 = vsel %vm3568, %v7244, %v7253
      %v7256 = vshrl.u32 %v6874, 16
      %v7258 = vrot.slane %v7256, 2
      %v7259 = vshll.u32 %v6874, 16
      %v7261 = vrot.slane %v7259, 3
      %v7262 = vor.u32 %v7258, %v7261
      %v7263 = vsel %vm3568, %v7253, %v7262
      %v7265 = vshrl.u32 %v6875, 16
      %v7267 = vrot.slane %v7265, 2
      %v7268 = vshll.u32 %v6875, 16
      %v7270 = vrot.slane %v7268, 3
      %v7271 = vor.u32 %v7267, %v7270
      %v7272 = vsel %vm3568, %v7262, %v7271
      %v7274 = vshrl.u32 %v6876, 16
      %v7276 = vrot.slane %v7274, 2
      %v7277 = vshll.u32 %v6876, 16
      %v7279 = vrot.slane %v7277, 3
      %v7280 = vor.u32 %v7276, %v7279
      %v7281 = vsel %vm3568, %v7271, %v7280
      %v7283 = vshrl.u32 %v6877, 16
      %v7285 = vrot.slane %v7283, 2
      %v7286 = vshll.u32 %v6877, 16
      %v7288 = vrot.slane %v7286, 3
      %v7289 = vor.u32 %v7285, %v7288
      %v7290 = vsel %vm3568, %v7280, %v7289
      %v7292 = vshrl.u32 %v6878, 16
      %v7294 = vrot.slane %v7292, 2
      %v7295 = vshll.u32 %v6878, 16
      %v7297 = vrot.slane %v7295, 3
      %v7298 = vor.u32 %v7294, %v7297
      %v7299 = vsel %vm3568, %v7289, %v7298
      %v7301 = vshrl.u32 %v6879, 16
      %v7303 = vrot.slane %v7301, 2
      %v7304 = vshll.u32 %v6879, 16
      %v7306 = vrot.slane %v7304, 3
      %v7307 = vor.u32 %v7303, %v7306
      %v7308 = vsel %vm3568, %v7298, %v7307
      %v7310 = vshrl.u32 %v6880, 16
      %v7312 = vrot.slane %v7310, 2
      %v7313 = vshll.u32 %v6880, 16
      %v7315 = vrot.slane %v7313, 3
      %v7316 = vor.u32 %v7312, %v7315
      %v7317 = vsel %vm3568, %v7307, %v7316
      %v7319 = vshrl.u32 %v6881, 16
      %v7321 = vrot.slane %v7319, 2
      %v7322 = vshll.u32 %v6881, 16
      %v7324 = vrot.slane %v7322, 3
      %v7325 = vor.u32 %v7321, %v7324
      %v7326 = vsel %vm3568, %v7316, %v7325
      %v7328 = vshrl.u32 %v6882, 16
      %v7330 = vrot.slane %v7328, 2
      %v7331 = vshll.u32 %v6882, 16
      %v7333 = vrot.slane %v7331, 3
      %v7334 = vor.u32 %v7330, %v7333
      %v7335 = vsel %vm3568, %v7325, %v7334
      %v7337 = vshrl.u32 %v6883, 16
      %v7339 = vrot.slane %v7337, 2
      %v7340 = vshll.u32 %v6883, 16
      %v7342 = vrot.slane %v7340, 3
      %v7343 = vor.u32 %v7339, %v7342
      %v7344 = vsel %vm3568, %v7334, %v7343
      %v7346 = vshrl.u32 %v6884, 16
      %v7348 = vrot.slane %v7346, 2
      %v7349 = vshll.u32 %v6884, 16
      %v7351 = vrot.slane %v7349, 3
      %v7352 = vor.u32 %v7348, %v7351
      %v7353 = vsel %vm3568, %v7343, %v7352
      %v7355 = vshrl.u32 %v6885, 16
      %v7357 = vrot.slane %v7355, 2
      %v7358 = vshll.u32 %v6885, 16
      %v7360 = vrot.slane %v7358, 3
      %v7361 = vor.u32 %v7357, %v7360
      %v7362 = vsel %vm3568, %v7352, %v7361
      %v7364 = vshrl.u32 %v6886, 16
      %v7366 = vrot.slane %v7364, 2
      %v7367 = vshll.u32 %v6886, 16
      %v7369 = vrot.slane %v7367, 3
      %v7370 = vor.u32 %v7366, %v7369
      %v7371 = vsel %vm3568, %v7361, %v7370
      %v7373 = vshrl.u32 %v6887, 16
      %v7375 = vrot.slane %v7373, 2
      %v7376 = vshll.u32 %v6887, 16
      %v7378 = vrot.slane %v7376, 3
      %v7379 = vor.u32 %v7375, %v7378
      %v7380 = vsel %vm3568, %v7370, %v7379
      %v7382 = vshrl.u32 %v7217, 16
      %v7384 = vrot.slane %v7382, 2
      %v7385 = vshll.u32 %v7217, 16
      %v7387 = vrot.slane %v7385, 3
      %v7388 = vor.u32 %v7384, %v7387
      %v7389 = vsel %vm3568, %v7379, %v7388
      %v7391 = vsel %vm1157, %v7236, 0
      %v7394 = vsel %vm1157, %v7245, 0
      %v7397 = vsel %vm1157, %v7254, 0
      %v7400 = vsel %vm1157, %v7263, 0
      %v7403 = vsel %vm1157, %v7272, 0
      %v7406 = vsel %vm1157, %v7281, 0
      %v7409 = vsel %vm1157, %v7290, 0
      %v7412 = vsel %vm1157, %v7299, 0
      %v7415 = vsel %vm1157, %v7308, 0
      %v7418 = vsel %vm1157, %v7317, 0
      %v7421 = vsel %vm1157, %v7326, 0
      %v7424 = vsel %vm1157, %v7335, 0
      %v7427 = vsel %vm1157, %v7344, 0
      %v7430 = vsel %vm1157, %v7353, 0
      %v7433 = vsel %vm1157, %v7362, 0
      %v7436 = vsel %vm1157, %v7371, 0
      %v7439 = vsel %vm1157, %v7380, 0
      %v7442 = vsel %vm1157, %v7389, 0
      %v7445 = vsel %vm1212, %v7219, 0
      %7447 = vmatprep.subr.bf16.mxu0 0
      %7448 = vmatpush1.bf16.msra.mxu0 %v7445
      %7449 = vmatprep.subr.bf16.mxu0 0
      %7450 = vmatpush1.bf16.msra.mxu0 0
      %7451 = vmatprep.subr.bf16.mxu0 0
      %7452 = vmatpush1.bf16.msra.mxu0 0
      %7453 = vmatprep.subr.bf16.mxu0 0
      %7454 = vmatpush1.bf16.msra.mxu0 0
      %7455 = vmatprep.subr.bf16.mxu0 0
      %7456 = vmatpush1.bf16.msra.mxu0 0
      %7457 = vmatprep.subr.bf16.mxu0 0
      %7458 = vmatpush1.bf16.msra.mxu0 0
      %7459 = vmatprep.subr.bf16.mxu0 0
      %7460 = vmatpush1.bf16.msra.mxu0 0
      %7461 = vmatprep.subr.bf16.mxu0 0
      %7462 = vmatpush1.bf16.msra.mxu0 0
      %7463 = vmatprep.subr.bf16.mxu0 0
      %7464 = vmatpush1.bf16.msra.mxu0 0
      %7465 = vmatprep.subr.bf16.mxu0 0
      %7466 = vmatpush1.bf16.msra.mxu0 0
      %7467 = vmatprep.subr.bf16.mxu0 0
      %7468 = vmatpush1.bf16.msra.mxu0 0
      %7469 = vmatprep.subr.bf16.mxu0 0
      %7470 = vmatpush1.bf16.msra.mxu0 0
      %7471 = vmatprep.subr.bf16.mxu0 0
      %7472 = vmatpush1.bf16.msra.mxu0 0
      %7473 = vmatprep.subr.bf16.mxu0 0
      %7474 = vmatpush1.bf16.msra.mxu0 0
      %7475 = vmatprep.subr.bf16.mxu0 0
      %7476 = vmatpush1.bf16.msra.mxu0 0
      %7477 = vmatprep.subr.bf16.mxu0 0
      %7478 = vmatpush1.bf16.msra.mxu0 0
      %7479 = vmatprep.mubr.bf16.mxu0 0
      %7480 = vmatmul.mubr.bf16.gmra.mrb[0].mxu0 %v7391
      %v7481 = vpop.f32.mrb[0].mxu0
      %v7482 = vadd.f32 0.0, %v7481
      %v7483 = vpop.f32.mrb[0].mxu0
      %v7484 = vpop.f32.mrb[0].mxu0
      %v7485 = vadd.f32 0.0, %v7484
      %v7486 = vpop.f32.mrb[0].mxu0
      %7487 = vmatprep.mubr.bf16.mxu0 0
      %7488 = vmatmul.mubr.bf16.gmra.mrb[0].mxu0 %v7394
      %v7489 = vpop.f32.mrb[0].mxu0
      %v7490 = vadd.f32 0.0, %v7489
      %v7491 = vpop.f32.mrb[0].mxu0
      %v7492 = vpop.f32.mrb[0].mxu0
      %v7493 = vadd.f32 0.0, %v7492
      %v7494 = vpop.f32.mrb[0].mxu0
      %7495 = vmatprep.mubr.bf16.mxu0 0
      %7496 = vmatmul.mubr.bf16.gmra.mrb[0].mxu0 %v7397
      %v7497 = vpop.f32.mrb[0].mxu0
      %v7498 = vadd.f32 0.0, %v7497
      %v7499 = vpop.f32.mrb[0].mxu0
      %v7500 = vpop.f32.mrb[0].mxu0
      %v7501 = vadd.f32 0.0, %v7500
      %v7502 = vpop.f32.mrb[0].mxu0
      %7503 = vmatprep.mubr.bf16.mxu0 0
      %7504 = vmatmul.mubr.bf16.gmra.mrb[0].mxu0 %v7400
      %v7505 = vpop.f32.mrb[0].mxu0
      %v7506 = vadd.f32 0.0, %v7505
      %v7507 = vpop.f32.mrb[0].mxu0
      %v7508 = vpop.f32.mrb[0].mxu0
      %v7509 = vadd.f32 0.0, %v7508
      %v7510 = vpop.f32.mrb[0].mxu0
      %7511 = vmatprep.mubr.bf16.mxu0 0
      %7512 = vmatmul.mubr.bf16.gmra.mrb[0].mxu0 %v7403
      %v7513 = vpop.f32.mrb[0].mxu0
      %v7514 = vadd.f32 0.0, %v7513
      %v7515 = vpop.f32.mrb[0].mxu0
      %v7516 = vpop.f32.mrb[0].mxu0
      %v7517 = vadd.f32 0.0, %v7516
      %v7518 = vpop.f32.mrb[0].mxu0
      %7519 = vmatprep.mubr.bf16.mxu0 0
      %7520 = vmatmul.mubr.bf16.gmra.mrb[0].mxu0 %v7406
      %v7521 = vpop.f32.mrb[0].mxu0
      %v7522 = vadd.f32 0.0, %v7521
      %v7523 = vpop.f32.mrb[0].mxu0
      %v7524 = vpop.f32.mrb[0].mxu0
      %v7525 = vadd.f32 0.0, %v7524
      %v7526 = vpop.f32.mrb[0].mxu0
      %7527 = vmatprep.mubr.bf16.mxu0 0
      %7528 = vmatmul.mubr.bf16.gmra.mrb[0].mxu0 %v7409
      %v7529 = vpop.f32.mrb[0].mxu0
      %v7530 = vadd.f32 0.0, %v7529
      %v7531 = vpop.f32.mrb[0].mxu0
      %v7532 = vpop.f32.mrb[0].mxu0
      %v7533 = vadd.f32 0.0, %v7532
      %v7534 = vpop.f32.mrb[0].mxu0
      %7535 = vmatprep.mubr.bf16.mxu0 0
      %7536 = vmatmul.mubr.bf16.gmra.mrb[0].mxu0 %v7412
      %v7537 = vpop.f32.mrb[0].mxu0
      %v7538 = vadd.f32 0.0, %v7537
      %v7539 = vpop.f32.mrb[0].mxu0
      %v7540 = vpop.f32.mrb[0].mxu0
      %v7541 = vadd.f32 0.0, %v7540
      %v7542 = vpop.f32.mrb[0].mxu0
      %7543 = vmatprep.mubr.bf16.mxu0 0
      %7544 = vmatmul.mubr.bf16.gmra.mrb[0].mxu0 %v7415
      %v7545 = vpop.f32.mrb[0].mxu0
      %v7546 = vadd.f32 0.0, %v7545
      %v7547 = vpop.f32.mrb[0].mxu0
      %v7548 = vpop.f32.mrb[0].mxu0
      %v7549 = vadd.f32 0.0, %v7548
      %v7550 = vpop.f32.mrb[0].mxu0
      %7551 = vmatprep.mubr.bf16.mxu0 0
      %7552 = vmatmul.mubr.bf16.gmra.mrb[0].mxu0 %v7418
      %v7553 = vpop.f32.mrb[0].mxu0
      %v7554 = vadd.f32 0.0, %v7553
      %v7555 = vpop.f32.mrb[0].mxu0
      %v7556 = vpop.f32.mrb[0].mxu0
      %v7557 = vadd.f32 0.0, %v7556
      %v7558 = vpop.f32.mrb[0].mxu0
      %7559 = vmatprep.mubr.bf16.mxu0 0
      %7560 = vmatmul.mubr.bf16.gmra.mrb[0].mxu0 %v7421
      %v7561 = vpop.f32.mrb[0].mxu0
      %v7562 = vadd.f32 0.0, %v7561
      %v7563 = vpop.f32.mrb[0].mxu0
      %v7564 = vpop.f32.mrb[0].mxu0
      %v7565 = vadd.f32 0.0, %v7564
      %v7566 = vpop.f32.mrb[0].mxu0
      %7567 = vmatprep.mubr.bf16.mxu0 0
      %7568 = vmatmul.mubr.bf16.gmra.mrb[0].mxu0 %v7424
      %v7569 = vpop.f32.mrb[0].mxu0
      %v7570 = vadd.f32 0.0, %v7569
      %v7571 = vpop.f32.mrb[0].mxu0
      %v7572 = vpop.f32.mrb[0].mxu0
      %v7573 = vadd.f32 0.0, %v7572
      %v7574 = vpop.f32.mrb[0].mxu0
      %7575 = vmatprep.mubr.bf16.mxu0 0
      %7576 = vmatmul.mubr.bf16.gmra.mrb[0].mxu0 %v7427
      %v7577 = vpop.f32.mrb[0].mxu0
      %v7578 = vadd.f32 0.0, %v7577
      %v7579 = vpop.f32.mrb[0].mxu0
      %v7580 = vpop.f32.mrb[0].mxu0
      %v7581 = vadd.f32 0.0, %v7580
      %v7582 = vpop.f32.mrb[0].mxu0
      %7583 = vmatprep.mubr.bf16.mxu0 0
      %7584 = vmatmul.mubr.bf16.gmra.mrb[0].mxu0 %v7430
      %v7585 = vpop.f32.mrb[0].mxu0
      %v7586 = vadd.f32 0.0, %v7585
      %v7587 = vpop.f32.mrb[0].mxu0
      %v7588 = vpop.f32.mrb[0].mxu0
      %v7589 = vadd.f32 0.0, %v7588
      %v7590 = vpop.f32.mrb[0].mxu0
      %7591 = vmatprep.mubr.bf16.mxu0 0
      %7592 = vmatmul.mubr.bf16.gmra.mrb[0].mxu0 %v7433
      %v7593 = vpop.f32.mrb[0].mxu0
      %v7594 = vadd.f32 0.0, %v7593
      %v7595 = vpop.f32.mrb[0].mxu0
      %v7596 = vpop.f32.mrb[0].mxu0
      %v7597 = vadd.f32 0.0, %v7596
      %v7598 = vpop.f32.mrb[0].mxu0
      %7599 = vmatprep.mubr.bf16.mxu0 0
      %7600 = vmatmul.mubr.bf16.gmra.mrb[0].mxu0 %v7436
      %v7601 = vpop.f32.mrb[0].mxu0
      %v7602 = vadd.f32 0.0, %v7601
      %v7603 = vpop.f32.mrb[0].mxu0
      %v7604 = vpop.f32.mrb[0].mxu0
      %v7605 = vadd.f32 0.0, %v7604
      %v7606 = vpop.f32.mrb[0].mxu0
      %7607 = vmatprep.mubr.bf16.mxu0 0
      %7608 = vmatmul.mubr.bf16.gmra.mrb[0].mxu0 %v7439
      %v7609 = vpop.f32.mrb[0].mxu0
      %v7610 = vadd.f32 0.0, %v7609
      %v7611 = vpop.f32.mrb[0].mxu0
      %v7612 = vpop.f32.mrb[0].mxu0
      %v7613 = vadd.f32 0.0, %v7612
      %v7614 = vpop.f32.mrb[0].mxu0
      %7615 = vmatprep.mubr.bf16.mxu0 0
      %7616 = vmatmul.mubr.bf16.gmra.mrb[0].mxu0 %v7442
      %v7617 = vpop.f32.mrb[0].mxu0
      %v7618 = vadd.f32 0.0, %v7617
      %v7619 = vpop.f32.mrb[0].mxu0
      %v7620 = vpop.f32.mrb[0].mxu0
      %v7621 = vadd.f32 0.0, %v7620
      %v7622 = vpop.f32.mrb[0].mxu0
      %7623 = vdwg.mxu0
      %v7624 = vadd.f32 %v7181, %v7482
      %v7625 = vadd.f32 %v7182, %v7485
      %v7626 = vadd.f32 %v7183, %v7490
      %v7627 = vadd.f32 %v7184, %v7493
      %v7628 = vadd.f32 %v7185, %v7498
      %v7629 = vadd.f32 %v7186, %v7501
      %v7630 = vadd.f32 %v7187, %v7506
      %v7631 = vadd.f32 %v7188, %v7509
      %v7632 = vadd.f32 %v7189, %v7514
      %v7633 = vadd.f32 %v7190, %v7517
      %v7634 = vadd.f32 %v7191, %v7522
      %v7635 = vadd.f32 %v7192, %v7525
      %v7636 = vadd.f32 %v7193, %v7530
      %v7637 = vadd.f32 %v7194, %v7533
      %v7638 = vadd.f32 %v7195, %v7538
      %v7639 = vadd.f32 %v7196, %v7541
      %v7640 = vadd.f32 %v7197, %v7546
      %v7641 = vadd.f32 %v7198, %v7549
      %v7642 = vadd.f32 %v7199, %v7554
      %v7643 = vadd.f32 %v7200, %v7557
      %v7644 = vadd.f32 %v7201, %v7562
      %v7645 = vadd.f32 %v7202, %v7565
      %v7646 = vadd.f32 %v7203, %v7570
      %v7647 = vadd.f32 %v7204, %v7573
      %v7648 = vadd.f32 %v7205, %v7578
      %v7649 = vadd.f32 %v7206, %v7581
      %v7650 = vadd.f32 %v7207, %v7586
      %v7651 = vadd.f32 %v7208, %v7589
      %v7652 = vadd.f32 %v7209, %v7594
      %v7653 = vadd.f32 %v7210, %v7597
      %v7654 = vadd.f32 %v7211, %v7602
      %v7655 = vadd.f32 %v7212, %v7605
      %v7656 = vadd.f32 %v7213, %v7610
      %v7657 = vadd.f32 %v7214, %v7613
      %v7658 = vadd.f32 %v7215, %v7618
      %v7659 = vadd.f32 %v7216, %v7621
      %v7660 = vld [vmem:[#allocation2 + $0x10] sm:$0xf8]
      %s7661 = scalar_lea.vmem %s3, 16
      %v7662 = vld [vmem:[%s7661] sm:$0x3]
      %v7665 = vrot.slane %v7660, 3
      %v7666 = vrot.slane %v6871, 3
      %v7667 = vsel %vm4015, %v7665, %v7666
      %v7668 = vrot.slane %v6872, 3
      %v7669 = vsel %vm4015, %v7666, %v7668
      %v7670 = vrot.slane %v6873, 3
      %v7671 = vsel %vm4015, %v7668, %v7670
      %v7672 = vrot.slane %v6874, 3
      %v7673 = vsel %vm4015, %v7670, %v7672
      %v7674 = vrot.slane %v6875, 3
      %v7675 = vsel %vm4015, %v7672, %v7674
      %v7676 = vrot.slane %v6876, 3
      %v7677 = vsel %vm4015, %v7674, %v7676
      %v7678 = vrot.slane %v6877, 3
      %v7679 = vsel %vm4015, %v7676, %v7678
      %v7680 = vrot.slane %v6878, 3
      %v7681 = vsel %vm4015, %v7678, %v7680
      %v7682 = vrot.slane %v6879, 3
      %v7683 = vsel %vm4015, %v7680, %v7682
      %v7684 = vrot.slane %v6880, 3
      %v7685 = vsel %vm4015, %v7682, %v7684
      %v7686 = vrot.slane %v6881, 3
      %v7687 = vsel %vm4015, %v7684, %v7686
      %v7688 = vrot.slane %v6882, 3
      %v7689 = vsel %vm4015, %v7686, %v7688
      %v7690 = vrot.slane %v6883, 3
      %v7691 = vsel %vm4015, %v7688, %v7690
      %v7692 = vrot.slane %v6884, 3
      %v7693 = vsel %vm4015, %v7690, %v7692
      %v7694 = vrot.slane %v6885, 3
      %v7695 = vsel %vm4015, %v7692, %v7694
      %v7696 = vrot.slane %v6886, 3
      %v7697 = vsel %vm4015, %v7694, %v7696
      %v7698 = vrot.slane %v6887, 3
      %v7699 = vsel %vm4015, %v7696, %v7698
      %v7700 = vrot.slane %v7217, 3
      %v7701 = vsel %vm4015, %v7698, %v7700
      %v7703 = vsel %vm1157, %v7667, 0
      %v7706 = vsel %vm1157, %v7669, 0
      %v7709 = vsel %vm1157, %v7671, 0
      %v7712 = vsel %vm1157, %v7673, 0
      %v7715 = vsel %vm1157, %v7675, 0
      %v7718 = vsel %vm1157, %v7677, 0
      %v7721 = vsel %vm1157, %v7679, 0
      %v7724 = vsel %vm1157, %v7681, 0
      %v7727 = vsel %vm1157, %v7683, 0
      %v7730 = vsel %vm1157, %v7685, 0
      %v7733 = vsel %vm1157, %v7687, 0
      %v7736 = vsel %vm1157, %v7689, 0
      %v7739 = vsel %vm1157, %v7691, 0
      %v7742 = vsel %vm1157, %v7693, 0
      %v7745 = vsel %vm1157, %v7695, 0
      %v7748 = vsel %vm1157, %v7697, 0
      %v7751 = vsel %vm1157, %v7699, 0
      %v7754 = vsel %vm1157, %v7701, 0
      %v7757 = vsel %vm1212, %v7662, 0
      %7759 = vmatprep.subr.bf16.mxu0 0
      %7760 = vmatpush1.bf16.msra.mxu0 %v7757
      %7761 = vmatprep.subr.bf16.mxu0 0
      %7762 = vmatpush1.bf16.msra.mxu0 0
      %7763 = vmatprep.subr.bf16.mxu0 0
      %7764 = vmatpush1.bf16.msra.mxu0 0
      %7765 = vmatprep.subr.bf16.mxu0 0
      %7766 = vmatpush1.bf16.msra.mxu0 0
      %7767 = vmatprep.subr.bf16.mxu0 0
      %7768 = vmatpush1.bf16.msra.mxu0 0
      %7769 = vmatprep.subr.bf16.mxu0 0
      %7770 = vmatpush1.bf16.msra.mxu0 0
      %7771 = vmatprep.subr.bf16.mxu0 0
      %7772 = vmatpush1.bf16.msra.mxu0 0
      %7773 = vmatprep.subr.bf16.mxu0 0
      %7774 = vmatpush1.bf16.msra.mxu0 0
      %7775 = vmatprep.subr.bf16.mxu0 0
      %7776 = vmatpush1.bf16.msra.mxu0 0
      %7777 = vmatprep.subr.bf16.mxu0 0
      %7778 = vmatpush1.bf16.msra.mxu0 0
      %7779 = vmatprep.subr.bf16.mxu0 0
      %7780 = vmatpush1.bf16.msra.mxu0 0
      %7781 = vmatprep.subr.bf16.mxu0 0
      %7782 = vmatpush1.bf16.msra.mxu0 0
      %7783 = vmatprep.subr.bf16.mxu0 0
      %7784 = vmatpush1.bf16.msra.mxu0 0
      %7785 = vmatprep.subr.bf16.mxu0 0
      %7786 = vmatpush1.bf16.msra.mxu0 0
      %7787 = vmatprep.subr.bf16.mxu0 0
      %7788 = vmatpush1.bf16.msra.mxu0 0
      %7789 = vmatprep.subr.bf16.mxu0 0
      %7790 = vmatpush1.bf16.msra.mxu0 0
      %7791 = vmatprep.mubr.bf16.mxu0 0
      %7792 = vmatmul.mubr.bf16.gmra.mrb[0].mxu0 %v7703
      %v7793 = vpop.f32.mrb[0].mxu0
      %v7794 = vadd.f32 0.0, %v7793
      %v7795 = vpop.f32.mrb[0].mxu0
      %v7796 = vpop.f32.mrb[0].mxu0
      %v7797 = vadd.f32 0.0, %v7796
      %v7798 = vpop.f32.mrb[0].mxu0
      %7799 = vmatprep.mubr.bf16.mxu0 0
      %7800 = vmatmul.mubr.bf16.gmra.mrb[0].mxu0 %v7706
      %v7801 = vpop.f32.mrb[0].mxu0
      %v7802 = vadd.f32 0.0, %v7801
      %v7803 = vpop.f32.mrb[0].mxu0
      %v7804 = vpop.f32.mrb[0].mxu0
      %v7805 = vadd.f32 0.0, %v7804
      %v7806 = vpop.f32.mrb[0].mxu0
      %7807 = vmatprep.mubr.bf16.mxu0 0
      %7808 = vmatmul.mubr.bf16.gmra.mrb[0].mxu0 %v7709
      %v7809 = vpop.f32.mrb[0].mxu0
      %v7810 = vadd.f32 0.0, %v7809
      %v7811 = vpop.f32.mrb[0].mxu0
      %v7812 = vpop.f32.mrb[0].mxu0
      %v7813 = vadd.f32 0.0, %v7812
      %v7814 = vpop.f32.mrb[0].mxu0
      %7815 = vmatprep.mubr.bf16.mxu0 0
      %7816 = vmatmul.mubr.bf16.gmra.mrb[0].mxu0 %v7712
      %v7817 = vpop.f32.mrb[0].mxu0
      %v7818 = vadd.f32 0.0, %v7817
      %v7819 = vpop.f32.mrb[0].mxu0
      %v7820 = vpop.f32.mrb[0].mxu0
      %v7821 = vadd.f32 0.0, %v7820
      %v7822 = vpop.f32.mrb[0].mxu0
      %7823 = vmatprep.mubr.bf16.mxu0 0
      %7824 = vmatmul.mubr.bf16.gmra.mrb[0].mxu0 %v7715
      %v7825 = vpop.f32.mrb[0].mxu0
      %v7826 = vadd.f32 0.0, %v7825
      %v7827 = vpop.f32.mrb[0].mxu0
      %v7828 = vpop.f32.mrb[0].mxu0
      %v7829 = vadd.f32 0.0, %v7828
      %v7830 = vpop.f32.mrb[0].mxu0
      %7831 = vmatprep.mubr.bf16.mxu0 0
      %7832 = vmatmul.mubr.bf16.gmra.mrb[0].mxu0 %v7718
      %v7833 = vpop.f32.mrb[0].mxu0
      %v7834 = vadd.f32 0.0, %v7833
      %v7835 = vpop.f32.mrb[0].mxu0
      %v7836 = vpop.f32.mrb[0].mxu0
      %v7837 = vadd.f32 0.0, %v7836
      %v7838 = vpop.f32.mrb[0].mxu0
      %7839 = vmatprep.mubr.bf16.mxu0 0
      %7840 = vmatmul.mubr.bf16.gmra.mrb[0].mxu0 %v7721
      %v7841 = vpop.f32.mrb[0].mxu0
      %v7842 = vadd.f32 0.0, %v7841
      %v7843 = vpop.f32.mrb[0].mxu0
      %v7844 = vpop.f32.mrb[0].mxu0
      %v7845 = vadd.f32 0.0, %v7844
      %v7846 = vpop.f32.mrb[0].mxu0
      %7847 = vmatprep.mubr.bf16.mxu0 0
      %7848 = vmatmul.mubr.bf16.gmra.mrb[0].mxu0 %v7724
      %v7849 = vpop.f32.mrb[0].mxu0
      %v7850 = vadd.f32 0.0, %v7849
      %v7851 = vpop.f32.mrb[0].mxu0
      %v7852 = vpop.f32.mrb[0].mxu0
      %v7853 = vadd.f32 0.0, %v7852
      %v7854 = vpop.f32.mrb[0].mxu0
      %7855 = vmatprep.mubr.bf16.mxu0 0
      %7856 = vmatmul.mubr.bf16.gmra.mrb[0].mxu0 %v7727
      %v7857 = vpop.f32.mrb[0].mxu0
      %v7858 = vadd.f32 0.0, %v7857
      %v7859 = vpop.f32.mrb[0].mxu0
      %v7860 = vpop.f32.mrb[0].mxu0
      %v7861 = vadd.f32 0.0, %v7860
      %v7862 = vpop.f32.mrb[0].mxu0
      %7863 = vmatprep.mubr.bf16.mxu0 0
      %7864 = vmatmul.mubr.bf16.gmra.mrb[0].mxu0 %v7730
      %v7865 = vpop.f32.mrb[0].mxu0
      %v7866 = vadd.f32 0.0, %v7865
      %v7867 = vpop.f32.mrb[0].mxu0
      %v7868 = vpop.f32.mrb[0].mxu0
      %v7869 = vadd.f32 0.0, %v7868
      %v7870 = vpop.f32.mrb[0].mxu0
      %7871 = vmatprep.mubr.bf16.mxu0 0
      %7872 = vmatmul.mubr.bf16.gmra.mrb[0].mxu0 %v7733
      %v7873 = vpop.f32.mrb[0].mxu0
      %v7874 = vadd.f32 0.0, %v7873
      %v7875 = vpop.f32.mrb[0].mxu0
      %v7876 = vpop.f32.mrb[0].mxu0
      %v7877 = vadd.f32 0.0, %v7876
      %v7878 = vpop.f32.mrb[0].mxu0
      %7879 = vmatprep.mubr.bf16.mxu0 0
      %7880 = vmatmul.mubr.bf16.gmra.mrb[0].mxu0 %v7736
      %v7881 = vpop.f32.mrb[0].mxu0
      %v7882 = vadd.f32 0.0, %v7881
      %v7883 = vpop.f32.mrb[0].mxu0
      %v7884 = vpop.f32.mrb[0].mxu0
      %v7885 = vadd.f32 0.0, %v7884
      %v7886 = vpop.f32.mrb[0].mxu0
      %7887 = vmatprep.mubr.bf16.mxu0 0
      %7888 = vmatmul.mubr.bf16.gmra.mrb[0].mxu0 %v7739
      %v7889 = vpop.f32.mrb[0].mxu0
      %v7890 = vadd.f32 0.0, %v7889
      %v7891 = vpop.f32.mrb[0].mxu0
      %v7892 = vpop.f32.mrb[0].mxu0
      %v7893 = vadd.f32 0.0, %v7892
      %v7894 = vpop.f32.mrb[0].mxu0
      %7895 = vmatprep.mubr.bf16.mxu0 0
      %7896 = vmatmul.mubr.bf16.gmra.mrb[0].mxu0 %v7742
      %v7897 = vpop.f32.mrb[0].mxu0
      %v7898 = vadd.f32 0.0, %v7897
      %v7899 = vpop.f32.mrb[0].mxu0
      %v7900 = vpop.f32.mrb[0].mxu0
      %v7901 = vadd.f32 0.0, %v7900
      %v7902 = vpop.f32.mrb[0].mxu0
      %7903 = vmatprep.mubr.bf16.mxu0 0
      %7904 = vmatmul.mubr.bf16.gmra.mrb[0].mxu0 %v7745
      %v7905 = vpop.f32.mrb[0].mxu0
      %v7906 = vadd.f32 0.0, %v7905
      %v7907 = vpop.f32.mrb[0].mxu0
      %v7908 = vpop.f32.mrb[0].mxu0
      %v7909 = vadd.f32 0.0, %v7908
      %v7910 = vpop.f32.mrb[0].mxu0
      %7911 = vmatprep.mubr.bf16.mxu0 0
      %7912 = vmatmul.mubr.bf16.gmra.mrb[0].mxu0 %v7748
      %v7913 = vpop.f32.mrb[0].mxu0
      %v7914 = vadd.f32 0.0, %v7913
      %v7915 = vpop.f32.mrb[0].mxu0
      %v7916 = vpop.f32.mrb[0].mxu0
      %v7917 = vadd.f32 0.0, %v7916
      %v7918 = vpop.f32.mrb[0].mxu0
      %7919 = vmatprep.mubr.bf16.mxu0 0
      %7920 = vmatmul.mubr.bf16.gmra.mrb[0].mxu0 %v7751
      %v7921 = vpop.f32.mrb[0].mxu0
      %v7922 = vadd.f32 0.0, %v7921
      %v7923 = vpop.f32.mrb[0].mxu0
      %v7924 = vpop.f32.mrb[0].mxu0
      %v7925 = vadd.f32 0.0, %v7924
      %v7926 = vpop.f32.mrb[0].mxu0
      %7927 = vmatprep.mubr.bf16.mxu0 0
      %7928 = vmatmul.mubr.bf16.gmra.mrb[0].mxu0 %v7754
      %v7929 = vpop.f32.mrb[0].mxu0
      %v7930 = vadd.f32 0.0, %v7929
      %v7931 = vpop.f32.mrb[0].mxu0
      %v7932 = vpop.f32.mrb[0].mxu0
      %v7933 = vadd.f32 0.0, %v7932
      %v7934 = vpop.f32.mrb[0].mxu0
      %7935 = vdwg.mxu0
      %v7936 = vadd.f32 %v7624, %v7794
      %v7937 = vadd.f32 %v7625, %v7797
      %v7938 = vadd.f32 %v7626, %v7802
      %v7939 = vadd.f32 %v7627, %v7805
      %v7940 = vadd.f32 %v7628, %v7810
      %v7941 = vadd.f32 %v7629, %v7813
      %v7942 = vadd.f32 %v7630, %v7818
      %v7943 = vadd.f32 %v7631, %v7821
      %v7944 = vadd.f32 %v7632, %v7826
      %v7945 = vadd.f32 %v7633, %v7829
      %v7946 = vadd.f32 %v7634, %v7834
      %v7947 = vadd.f32 %v7635, %v7837
      %v7948 = vadd.f32 %v7636, %v7842
      %v7949 = vadd.f32 %v7637, %v7845
      %v7950 = vadd.f32 %v7638, %v7850
      %v7951 = vadd.f32 %v7639, %v7853
      %v7952 = vadd.f32 %v7640, %v7858
      %v7953 = vadd.f32 %v7641, %v7861
      %v7954 = vadd.f32 %v7642, %v7866
      %v7955 = vadd.f32 %v7643, %v7869
      %v7956 = vadd.f32 %v7644, %v7874
      %v7957 = vadd.f32 %v7645, %v7877
      %v7958 = vadd.f32 %v7646, %v7882
      %v7959 = vadd.f32 %v7647, %v7885
      %v7960 = vadd.f32 %v7648, %v7890
      %v7961 = vadd.f32 %v7649, %v7893
      %v7962 = vadd.f32 %v7650, %v7898
      %v7963 = vadd.f32 %v7651, %v7901
      %v7964 = vadd.f32 %v7652, %v7906
      %v7965 = vadd.f32 %v7653, %v7909
      %v7966 = vadd.f32 %v7654, %v7914
      %v7967 = vadd.f32 %v7655, %v7917
      %v7968 = vadd.f32 %v7656, %v7922
      %v7969 = vadd.f32 %v7657, %v7925
      %v7970 = vadd.f32 %v7658, %v7930
      %v7971 = vadd.f32 %v7659, %v7933
      %v7972 = vld [vmem:[%s4] sm:$0x1]
      %v7974 = vlaneseq
      %v7975 = vshrl.u32 %v7974, 7
      %v7976 = vsub.s32 0, %v7975
      %v7977 = vrot.slane %v7972, %v7976
      %v7979 = vadd.f32 %v7936, %v7977
      %v7980 = vadd.f32 %v7937, %v7977
      %v7981 = vadd.f32 %v7938, %v7977
      %v7982 = vadd.f32 %v7939, %v7977
      %v7983 = vadd.f32 %v7940, %v7977
      %v7984 = vadd.f32 %v7941, %v7977
      %v7985 = vadd.f32 %v7942, %v7977
      %v7986 = vadd.f32 %v7943, %v7977
      %v7987 = vadd.f32 %v7944, %v7977
      %v7988 = vadd.f32 %v7945, %v7977
      %v7989 = vadd.f32 %v7946, %v7977
      %v7990 = vadd.f32 %v7947, %v7977
      %v7991 = vadd.f32 %v7948, %v7977
      %v7992 = vadd.f32 %v7949, %v7977
      %v7993 = vadd.f32 %v7950, %v7977
      %v7994 = vadd.f32 %v7951, %v7977
      %v7995 = vadd.f32 %v7952, %v7977
      %v7996 = vadd.f32 %v7953, %v7977
      %v7997 = vadd.f32 %v7954, %v7977
      %v7998 = vadd.f32 %v7955, %v7977
      %v7999 = vadd.f32 %v7956, %v7977
      %v8000 = vadd.f32 %v7957, %v7977
      %v8001 = vadd.f32 %v7958, %v7977
      %v8002 = vadd.f32 %v7959, %v7977
      %v8003 = vadd.f32 %v7960, %v7977
      %v8004 = vadd.f32 %v7961, %v7977
      %v8005 = vadd.f32 %v7962, %v7977
      %v8006 = vadd.f32 %v7963, %v7977
      %v8007 = vadd.f32 %v7964, %v7977
      %v8008 = vadd.f32 %v7965, %v7977
      %v8009 = vadd.f32 %v7966, %v7977
      %v8010 = vadd.f32 %v7967, %v7977
      %v8011 = vadd.f32 %v7968, %v7977
      %v8012 = vadd.f32 %v7969, %v7977
      %v8013 = vadd.f32 %v7970, %v7977
      %v8014 = vadd.f32 %v7971, %v7977
      %vm8052 = vcmask 1044480
      %v8053 = vrot.slane %v4782, 3
      %v8054 = vrot.slane %v4783, 3
      %v8055 = vsel %vm8052, %v8053, %v8054
      %v8056 = vrot.slane %v4784, 3
      %v8057 = vsel %vm8052, %v8054, %v8056
      %v8058 = vrot.slane %v4785, 3
      %v8059 = vsel %vm8052, %v8056, %v8058
      %v8060 = vrot.slane %v4786, 3
      %v8061 = vsel %vm8052, %v8058, %v8060
      %v8062 = vrot.slane %v4787, 3
      %v8063 = vsel %vm8052, %v8060, %v8062
      %v8064 = vrot.slane %v4788, 3
      %v8065 = vsel %vm8052, %v8062, %v8064
      %v8066 = vrot.slane %v4789, 3
      %v8067 = vsel %vm8052, %v8064, %v8066
      %v8068 = vrot.slane %v4790, 3
      %v8069 = vsel %vm8052, %v8066, %v8068
      %v8070 = vrot.slane %v4791, 3
      %v8071 = vsel %vm8052, %v8068, %v8070
      %v8072 = vrot.slane %v4792, 3
      %v8073 = vsel %vm8052, %v8070, %v8072
      %v8074 = vrot.slane %v4793, 3
      %v8075 = vsel %vm8052, %v8072, %v8074
      %v8076 = vrot.slane %v4794, 3
      %v8077 = vsel %vm8052, %v8074, %v8076
      %v8078 = vrot.slane %v4795, 3
      %v8079 = vsel %vm8052, %v8076, %v8078
      %v8080 = vrot.slane %v4796, 3
      %v8081 = vsel %vm8052, %v8078, %v8080
      %v8082 = vrot.slane %v4797, 3
      %v8083 = vsel %vm8052, %v8080, %v8082
      %v8084 = vrot.slane %v4798, 3
      %v8085 = vsel %vm8052, %v8082, %v8084
      %v8086 = vrot.slane %v4799, 3
      %v8087 = vsel %vm8052, %v8084, %v8086
      %v8088 = vrot.slane %v4800, 3
      %v8089 = vsel %vm8052, %v8086, %v8088
      %v8090 = vrot.slane %v4801, 3
      %v8091 = vsel %vm8052, %v8088, %v8090
      %v8092 = vrot.slane %v4802, 3
      %v8093 = vsel %vm8052, %v8090, %v8092
      %v8094 = vrot.slane %v4803, 3
      %v8095 = vsel %vm8052, %v8092, %v8094
      %v8096 = vrot.slane %v4804, 3
      %v8097 = vsel %vm8052, %v8094, %v8096
      %v8098 = vrot.slane %v4805, 3
      %v8099 = vsel %vm8052, %v8096, %v8098
      %v8100 = vrot.slane %v4806, 3
      %v8101 = vsel %vm8052, %v8098, %v8100
      %v8102 = vrot.slane %v4807, 3
      %v8103 = vsel %vm8052, %v8100, %v8102
      %v8104 = vrot.slane %v4808, 3
      %v8105 = vsel %vm8052, %v8102, %v8104
      %v8106 = vrot.slane %v4809, 3
      %v8107 = vsel %vm8052, %v8104, %v8106
      %v8108 = vrot.slane %v4810, 3
      %v8109 = vsel %vm8052, %v8106, %v8108
      %v8110 = vrot.slane %v4811, 3
      %v8111 = vsel %vm8052, %v8108, %v8110
      %v8112 = vrot.slane %v4812, 3
      %v8113 = vsel %vm8052, %v8110, %v8112
      %v8114 = vrot.slane %v4813, 3
      %v8115 = vsel %vm8052, %v8112, %v8114
      %v8116 = vrot.slane %v4814, 3
      %v8117 = vsel %vm8052, %v8114, %v8116
      %v8118 = vrot.slane %v4815, 3
      %v8119 = vsel %vm8052, %v8116, %v8118
      %v8120 = vrot.slane %v4816, 3
      %v8121 = vsel %vm8052, %v8118, %v8120
      %v8122 = vrot.slane %v4817, 3
      %v8123 = vsel %vm8052, %v8120, %v8122
      %v8124 = vrot.slane %v4818, 3
      %v8125 = vsel %vm8052, %v8122, %v8124
      %v8162 = vadd.f32 %v7979, %v8055
      %v8163 = vadd.f32 %v7980, %v8057
      %v8164 = vadd.f32 %v7981, %v8059
      %v8165 = vadd.f32 %v7982, %v8061
      %v8166 = vadd.f32 %v7983, %v8063
      %v8167 = vadd.f32 %v7984, %v8065
      %v8168 = vadd.f32 %v7985, %v8067
      %v8169 = vadd.f32 %v7986, %v8069
      %v8170 = vadd.f32 %v7987, %v8071
      %v8171 = vadd.f32 %v7988, %v8073
      %v8172 = vadd.f32 %v7989, %v8075
      %v8173 = vadd.f32 %v7990, %v8077
      %v8174 = vadd.f32 %v7991, %v8079
      %v8175 = vadd.f32 %v7992, %v8081
      %v8176 = vadd.f32 %v7993, %v8083
      %v8177 = vadd.f32 %v7994, %v8085
      %v8178 = vadd.f32 %v7995, %v8087
      %v8179 = vadd.f32 %v7996, %v8089
      %v8180 = vadd.f32 %v7997, %v8091
      %v8181 = vadd.f32 %v7998, %v8093
      %v8182 = vadd.f32 %v7999, %v8095
      %v8183 = vadd.f32 %v8000, %v8097
      %v8184 = vadd.f32 %v8001, %v8099
      %v8185 = vadd.f32 %v8002, %v8101
      %v8186 = vadd.f32 %v8003, %v8103
      %v8187 = vadd.f32 %v8004, %v8105
      %v8188 = vadd.f32 %v8005, %v8107
      %v8189 = vadd.f32 %v8006, %v8109
      %v8190 = vadd.f32 %v8007, %v8111
      %v8191 = vadd.f32 %v8008, %v8113
      %v8192 = vadd.f32 %v8009, %v8115
      %v8193 = vadd.f32 %v8010, %v8117
      %v8194 = vadd.f32 %v8011, %v8119
      %v8195 = vadd.f32 %v8012, %v8121
      %v8196 = vadd.f32 %v8013, %v8123
      %v8197 = vadd.f32 %v8014, %v8125
      %v8198 = vmax.f32 %v8162, 0.0
      %v8199 = vmax.f32 %v8163, 0.0
      %v8200 = vmax.f32 %v8164, 0.0
      %v8201 = vmax.f32 %v8165, 0.0
      %v8202 = vmax.f32 %v8166, 0.0
      %v8203 = vmax.f32 %v8167, 0.0
      %v8204 = vmax.f32 %v8168, 0.0
      %v8205 = vmax.f32 %v8169, 0.0
      %v8206 = vmax.f32 %v8170, 0.0
      %v8207 = vmax.f32 %v8171, 0.0
      %v8208 = vmax.f32 %v8172, 0.0
      %v8209 = vmax.f32 %v8173, 0.0
      %v8210 = vmax.f32 %v8174, 0.0
      %v8211 = vmax.f32 %v8175, 0.0
      %v8212 = vmax.f32 %v8176, 0.0
      %v8213 = vmax.f32 %v8177, 0.0
      %v8214 = vmax.f32 %v8178, 0.0
      %v8215 = vmax.f32 %v8179, 0.0
      %v8216 = vmax.f32 %v8180, 0.0
      %v8217 = vmax.f32 %v8181, 0.0
      %v8218 = vmax.f32 %v8182, 0.0
      %v8219 = vmax.f32 %v8183, 0.0
      %v8220 = vmax.f32 %v8184, 0.0
      %v8221 = vmax.f32 %v8185, 0.0
      %v8222 = vmax.f32 %v8186, 0.0
      %v8223 = vmax.f32 %v8187, 0.0
      %v8224 = vmax.f32 %v8188, 0.0
      %v8225 = vmax.f32 %v8189, 0.0
      %v8226 = vmax.f32 %v8190, 0.0
      %v8227 = vmax.f32 %v8191, 0.0
      %v8228 = vmax.f32 %v8192, 0.0
      %v8229 = vmax.f32 %v8193, 0.0
      %v8230 = vmax.f32 %v8194, 0.0
      %v8231 = vmax.f32 %v8195, 0.0
      %v8232 = vmax.f32 %v8196, 0.0
      %v8233 = vmax.f32 %v8197, 0.0
      %8234 = vst.msk [vmem:[%s224] sm:$0xff] %vm1157, %v8198
      %8235 = vst.msk [vmem:[%s224 + $0x8] sm:$0xff] %vm1157, %v8199
      %8236 = vst.msk [vmem:[%s224 + $0x10] sm:$0xff] %vm1157, %v8200
      %8237 = vst.msk [vmem:[%s224 + $0x18] sm:$0xff] %vm1157, %v8201
      %8238 = vst.msk [vmem:[%s224 + $0x20] sm:$0xff] %vm1157, %v8202
      %8239 = vst.msk [vmem:[%s224 + $0x28] sm:$0xff] %vm1157, %v8203
      %8240 = vst.msk [vmem:[%s224 + $0x30] sm:$0xff] %vm1157, %v8204
      %8241 = vst.msk [vmem:[%s224 + $0x38] sm:$0xff] %vm1157, %v8205
      %8242 = vst.msk [vmem:[%s224 + $0x40] sm:$0xff] %vm1157, %v8206
      %8243 = vst.msk [vmem:[%s224 + $0x48] sm:$0xff] %vm1157, %v8207
      %8244 = vst.msk [vmem:[%s224 + $0x50] sm:$0xff] %vm1157, %v8208
      %8245 = vst.msk [vmem:[%s224 + $0x58] sm:$0xff] %vm1157, %v8209
      %8246 = vst.msk [vmem:[%s224 + $0x60] sm:$0xff] %vm1157, %v8210
      %8247 = vst.msk [vmem:[%s224 + $0x68] sm:$0xff] %vm1157, %v8211
      %8248 = vst.msk [vmem:[%s224 + $0x70] sm:$0xff] %vm1157, %v8212
      %8249 = vst.msk [vmem:[%s224 + $0x78] sm:$0xff] %vm1157, %v8213
      %8250 = vst.msk [vmem:[%s224 + $0x80] sm:$0xff] %vm1157, %v8214
      %8251 = vst.msk [vmem:[%s224 + $0x88] sm:$0xff] %vm1157, %v8215
      %8252 = vst.msk [vmem:[%s224 + $0x90] sm:$0xff] %vm1157, %v8216
      %8253 = vst.msk [vmem:[%s224 + $0x98] sm:$0xff] %vm1157, %v8217
      %8254 = vst.msk [vmem:[%s224 + $0xa0] sm:$0xff] %vm1157, %v8218
      %8255 = vst.msk [vmem:[%s224 + $0xa8] sm:$0xff] %vm1157, %v8219
      %8256 = vst.msk [vmem:[%s224 + $0xb0] sm:$0xff] %vm1157, %v8220
      %8257 = vst.msk [vmem:[%s224 + $0xb8] sm:$0xff] %vm1157, %v8221
      %8258 = vst.msk [vmem:[%s224 + $0xc0] sm:$0xff] %vm1157, %v8222
      %8259 = vst.msk [vmem:[%s224 + $0xc8] sm:$0xff] %vm1157, %v8223
      %8260 = vst.msk [vmem:[%s224 + $0xd0] sm:$0xff] %vm1157, %v8224
      %8261 = vst.msk [vmem:[%s224 + $0xd8] sm:$0xff] %vm1157, %v8225
      %8262 = vst.msk [vmem:[%s224 + $0xe0] sm:$0xff] %vm1157, %v8226
      %8263 = vst.msk [vmem:[%s224 + $0xe8] sm:$0xff] %vm1157, %v8227
      %8264 = vst.msk [vmem:[%s224 + $0xf0] sm:$0xff] %vm1157, %v8228
      %8265 = vst.msk [vmem:[%s224 + $0xf8] sm:$0xff] %vm1157, %v8229
      %8266 = vst.msk [vmem:[%s224 + $0x100] sm:$0xff] %vm1157, %v8230
      %8267 = vst.msk [vmem:[%s224 + $0x108] sm:$0xff] %vm1157, %v8231
      %8268 = vst.msk [vmem:[%s224 + $0x110] sm:$0xff] %vm1157, %v8232
      %8269 = vst.msk [vmem:[%s224 + $0x118] sm:$0xff] %vm1157, %v8233
      %p8270 = scmp.lt.s32.totalorder %s16, 1
      %s8271 = scalar_select %p8270, %s16, 1
      %s8272 = smul.addr %s8271, 36
      %s8273 = smul.addr %s8272, 8
      %s8274 = scalar_lea.vmem %s5, %s8273
      // Predicated region
      $region41: #{basic_block_forward.1} parent=39 // pred_check
        %p8275 = pneg %p144
      $region42: #{basic_block_forward.1} parent=39 // pred_check_branch
        %8277 = sbr.rel (%p8275) target = $region44
      $region43: #{basic_block_forward.1} parent=39 // pred_region
        _
      $region44: #{basic_block_forward.1} parent=39 // pred_fallthru
        _
    $region40: #{basic_block_forward.1} parent=5 // pred_fallthru
      _
    %p8278 = scmp.le.s32.totalorder 2, %s11
    // Predicated region
    $region45: #{basic_block_forward.1} parent=5 // pred_check
      %p8279 = pneg %p8278
    $region46: #{basic_block_forward.1} parent=5 // pred_check_branch
      %8281 = sbr.rel (%p8279) target = $region48
    $region47: #{basic_block_forward.1} parent=5 // pred_region
      %s8282 = ssub.s32 %s11, 2
      // Predicated region
      $region49: #{basic_block_forward.1} parent=47 // pred_check
        %p8283 = pneg %p150
      $region50: #{basic_block_forward.1} parent=47 // pred_check_branch
        %8285 = sbr.rel (%p8283) target = $region52
      $region51: #{basic_block_forward.1} parent=47 // pred_region
        %p8286 = scmp.lt.s32.totalorder %s17, 1
        %s8287 = scalar_select %p8286, %s17, 1
        %s8288 = smul.addr %s8287, 36
        %s8289 = smul.addr %s8288, 8
        %s8290 = scalar_lea.vmem %s5, %s8289
      $region52: #{basic_block_forward.1} parent=47 // pred_fallthru
        _
    $region48: #{basic_block_forward.1} parent=5 // pred_fallthru
      _
  $region6: #{basic_block_forward.1} parent=0 // loop_footer
    %s15 = sadd.s32 1, %s11
  $region7: #{basic_block_forward.1} parent=0 // loop_footer_branch
    %10 = sbr.rel target = $region3
  $region8: #{basic_block_forward.1} parent=0 // loop_exit
    _

</llo_original>
